<compile_context>
chip_gen: v5e
topology: v5e:2x2
jax: 0.10.0
libtpu: 0.0.40
codegen_flags: <defaults>
</compile_context>

<pallas_src>
import functools

import jax
import jax.numpy as jnp
from jax.experimental import pallas as pl

# ---------------- configuration (small synthetic shapes) ----------------
B, N, K = 2, 8, 4                      # graphs, nodes/graph, subgraph size
Z_HIDDEN, HIDDEN, EF_DIM = 16, 32, 16
MAX_Z = 10
INNER_LAYERS, OUTER_LAYERS = 2, 2
C, SUBG_C = 0.5, 0.5
OUTER_CUTOFF, INNER_CUTOFF = 5.0, 3.0
Y_STD, Y_MEAN = 1.3, 0.7
OUT_CHANNEL = 1


# ---------------- pallas_call plumbing ----------------
def _full_spec(shape):
    return pl.BlockSpec(shape, lambda *_: (0,) * len(shape))


def _fused_call(kernel, args, out_shape):
    """Single-invocation pallas_call: every operand is one full VMEM-resident block."""
    return pl.pallas_call(
        kernel,
        out_shape=out_shape,
        in_specs=[_full_spec(a.shape) for a in args],
        out_specs=_full_spec(out_shape.shape),
    )(*args)


# ---------------- in-kernel helpers (traced inside the fused kernels) ----------------
def _silu(x):
    return x * jax.nn.sigmoid(x)


def _cutoff(d, r_cut):
    t = jnp.clip(d / r_cut, 0.0, 1.0)
    return 0.5 * (jnp.cos(jnp.pi * t) + 1.0)


def _edge_features(d, mu_ref, wef_ref, bef_ref, gamma, r_cut):
    """d: [G,n,n] distances -> (ef [G,n,n,H], wpair [G,n,n]), entirely in VMEM.

    Fuses RBF expansion + smooth-cutoff envelope + ef projection (Dense+SiLU):
    the [G*n*n, EF_DIM] RBF tensor is never written to HBM.
    """
    G, n, _ = d.shape
    E = mu_ref.shape[-1]
    H = wef_ref.shape[-1]
    mu = mu_ref[...].reshape(1, 1, 1, E)
    env = _cutoff(d, r_cut)                                           # [G,n,n]
    rbf = jnp.exp(-gamma * (d[..., None] - mu) ** 2) * env[..., None]  # [G,n,n,E]
    ef = _silu(jnp.dot(rbf.reshape(G * n * n, E), wef_ref[...],
                       preferred_element_type=jnp.float32) + bef_ref[...])
    ef = ef.reshape(G, n, n, H)
    # off-diagonal adjacency mask without jnp.eye (2-D broadcasted_iota is TPU-native)
    ri = jax.lax.broadcasted_iota(jnp.int32, (n, n), 0)
    ci = jax.lax.broadcasted_iota(jnp.int32, (n, n), 1)
    offdiag = (ri != ci).astype(jnp.float32)
    wpair = env * offdiag[None, :, :]
    return ef, wpair


def _disgnn_layers(s, ef, wpair, w1s_ref, b1s_ref, w2s_ref, b2s_ref, num_layers):
    """Vanilla_DisGNN body, fully fused: s [G*n,H], ef [G,n,n,H], wpair [G,n,n]."""
    G, n, _, H = ef.shape
    we = ef * wpair[..., None]                       # hoisted: w_ij * e_ij   [G,n,n,H]
    for l in range(num_layers):                      # static unroll (layer weights stacked)
        s3 = s.reshape(G, n, H)
        # m_i = sum_j w_ij * (s_j * e_ij): VPU multiply + XLU sublane reduce.
        # TODO(synk): for n >= 64 route this to the MXU as a (G*n)-batched lax.dot_general.
        msg = jnp.sum(we * s3[:, None, :, :], axis=2).reshape(G * n, H)
        u = _silu(jnp.dot(msg, w1s_ref[l], preferred_element_type=jnp.float32) + b1s_ref[l])
        u = _silu(jnp.dot(u, w2s_ref[l], preferred_element_type=jnp.float32) + b2s_ref[l])
        s = s + u                                    # residual
    return s


# ---------------- fused kernels ----------------
def _inner_kernel(lab_ref, ze_ref, d_ref, dist_ref,
                  wl_ref, bl_ref, wi_ref, bi_ref,
                  wef_ref, bef_ref, mu_ref,
                  w1s_ref, b1s_ref, w2s_ref, b2s_ref,
                  o_ref, *, gamma, r_cut, num_layers, coef):
    G, Ks, _ = d_ref.shape
    H = wl_ref.shape[-1]
    # inner scalar init: label_proj(label_emb) * inner_proj(z_emb), both Dense+SiLU
    lp = _silu(jnp.dot(lab_ref[...], wl_ref[...],
                       preferred_element_type=jnp.float32) + bl_ref[...])
    ip = _silu(jnp.dot(ze_ref[...], wi_ref[...],
                       preferred_element_type=jnp.float32) + bi_ref[...])
    s = lp * ip                                                        # [G*K, H]
    # fused RBF + ef projection + adjacency weights
    ef, wpair = _edge_features(d_ref[...], mu_ref, wef_ref, bef_ref, gamma, r_cut)
    # inner DisGNN layers
    s = _disgnn_layers(s, ef, wpair, w1s_ref, b1s_ref, w2s_ref, b2s_ref, num_layers)
    # smooth-cutoff (distance-to-center) weighted subgraph pooling, scaled by subg_C
    env = _cutoff(dist_ref[...], r_cut)                                # [G, K]
    pooled = coef * jnp.sum(env[..., None] * s.reshape(G, Ks, H), axis=1)
    o_ref[...] = pooled                                                # [G, H]


def _outer_kernel(ze_ref, d_ref, env_ref,
                  wp1_ref, bp1_ref, wp2_ref, bp2_ref,
                  wf1a_ref, wf1b_ref, bf1_ref, wf2_ref, bf2_ref, wf3_ref, bf3_ref,
                  wef_ref, bef_ref, mu_ref,
                  w1s_ref, b1s_ref, w2s_ref, b2s_ref,
                  wout_ref, o_ref, *, gamma, r_cut, num_layers, coef, y_std, y_mean):
    Bs, Ns, _ = d_ref.shape
    H = wp1_ref.shape[-1]
    # outer_proj: two Dense+SiLU
    os_ = _silu(jnp.dot(ze_ref[...], wp1_ref[...],
                        preferred_element_type=jnp.float32) + bp1_ref[...])
    os_ = _silu(jnp.dot(os_, wp2_ref[...],
                        preferred_element_type=jnp.float32) + bp2_ref[...])
    # outer_fuse(concat([subg_env, outer_scalar])) with the concat folded into
    # split first-layer weights: tmp @ Wf1 == env @ Wf1a + os @ Wf1b
    f = _silu(jnp.dot(env_ref[...], wf1a_ref[...], preferred_element_type=jnp.float32)
              + jnp.dot(os_, wf1b_ref[...], preferred_element_type=jnp.float32)
              + bf1_ref[...])
    f = _silu(jnp.dot(f, wf2_ref[...], preferred_element_type=jnp.float32) + bf2_ref[...])
    f = _silu(jnp.dot(f, wf3_ref[...], preferred_element_type=jnp.float32) + bf3_ref[...])
    s = f + os_                                                        # residual fuse [B*N, H]
    # fused RBF + ef projection + adjacency weights, outer DisGNN layers
    ef, wpair = _edge_features(d_ref[...], mu_ref, wef_ref, bef_ref, gamma, r_cut)
    s = _disgnn_layers(s, ef, wpair, w1s_ref, b1s_ref, w2s_ref, b2s_ref, num_layers)
    # graph readout (C * sum over nodes), output linear (no bias), y affine — all fused
    graph = coef * jnp.sum(s.reshape(Bs, Ns, H), axis=1)               # [B, H]
    out = jnp.dot(graph, wout_ref[...], preferred_element_type=jnp.float32)
    o_ref[...] = out * y_std + y_mean                                  # [B, OUT_CHANNEL]


# ---------------- wrapper-side glue (XLA: gathers, embeddings, distances) ----------------
def pairwise_dist(pos):
    diff = pos[..., :, None, :] - pos[..., None, :, :]
    return jnp.sqrt(jnp.sum(diff * diff, axis=-1) + 1e-12)


def init_params(key):
    ks = iter(jax.random.split(key, 64))

    def dense_p(din, dout):
        w = jax.random.normal(next(ks), (din, dout), jnp.float32) / jnp.sqrt(float(din))
        b = jnp.zeros((1, dout), jnp.float32)
        return (w, b)

    p = {}
    p["z_emb"] = jax.random.normal(next(ks), (MAX_Z, Z_HIDDEN), jnp.float32) * 0.1
    le = jax.random.normal(next(ks), (3, Z_HIDDEN), jnp.float32) * 0.1
    p["label_emb"] = le.at[0].set(0.0)                       # padding_idx=0
    p["label_proj"] = dense_p(Z_HIDDEN, HIDDEN)
    p["inner_proj"] = dense_p(Z_HIDDEN, HIDDEN)
    p["inner_ef_proj"] = dense_p(EF_DIM, HIDDEN)
    p["inner_gnn"] = [dense_p(HIDDEN, HIDDEN) + dense_p(HIDDEN, HIDDEN)
                      for _ in range(INNER_LAYERS)]
    p["outer_proj"] = [dense_p(Z_HIDDEN, HIDDEN), dense_p(HIDDEN, HIDDEN)]
    p["outer_fuse"] = [dense_p(2 * HIDDEN, HIDDEN), dense_p(HIDDEN, HIDDEN),
                       dense_p(HIDDEN, HIDDEN)]
    p["outer_ef_proj"] = dense_p(EF_DIM, HIDDEN)
    p["outer_gnn"] = [dense_p(HIDDEN, HIDDEN) + dense_p(HIDDEN, HIDDEN)
                      for _ in range(OUTER_LAYERS)]
    p["output_linear_w"] = (jax.random.normal(next(ks), (HIDDEN, OUT_CHANNEL), jnp.float32)
                            / jnp.sqrt(float(HIDDEN)))
    p["mu_outer"] = jnp.linspace(0.0, OUTER_CUTOFF, EF_DIM, dtype=jnp.float32).reshape(1, EF_DIM)
    p["mu_inner"] = jnp.linspace(0.0, INNER_CUTOFF, EF_DIM, dtype=jnp.float32).reshape(1, EF_DIM)
    return p


def _stack_layers(layer_list):
    """[(w1,b1,w2,b2), ...] -> 4 stacked arrays [L,...] so the kernel holds them as one ref each."""
    return tuple(jnp.stack([lp[i] for lp in layer_list]) for i in range(4))


def geongnn_forward(params, pos, z, subg_node_index, subg_node_center_index, subg_node_label):
    bidx = jnp.arange(B)[:, None, None]

    # -------- subgraph gathers + embeddings (XLA gathers; no clean BlockSpec equivalent) ----
    inner_z = z[bidx, subg_node_index]                             # [B,N,K]
    inner_pos = pos[bidx, subg_node_index]                         # [B,N,K,3]
    center_pos = pos[bidx, subg_node_center_index]                 # [B,N,K,3]
    inner_dist = jnp.linalg.norm(inner_pos - center_pos, axis=-1)  # [B,N,K]

    outer_scalar0 = params["z_emb"][z]                             # [B,N,Zh]
    inner_scalar0 = params["z_emb"][inner_z]                       # [B,N,K,Zh]
    label_e = params["label_emb"][subg_node_label]                 # [B,N,K,Zh]

    d_outer = pairwise_dist(pos)                                   # [B,N,N]
    d_inner = pairwise_dist(inner_pos)                             # [B,N,K,K]

    G = B * N
    iw1, ib1, iw2, ib2 = _stack_layers(params["inner_gnn"])
    ow1, ob1, ow2, ob2 = _stack_layers(params["outer_gnn"])

    # -------- fused kernel 1: inner M2G + label PE + inner GNN + subgraph pooling ----------
    inner_args = (
        label_e.reshape(G * K, Z_HIDDEN),
        inner_scalar0.reshape(G * K, Z_HIDDEN),
        d_inner.reshape(G, K, K),
        inner_dist.reshape(G, K),
        params["label_proj"][0], params["label_proj"][1],
        params["inner_proj"][0], params["inner_proj"][1],
        params["inner_ef_proj"][0], params["inner_ef_proj"][1],
        params["mu_inner"],
        iw1, ib1, iw2, ib2,
    )
    outer_subg_scalar_env = _fused_call(
        functools.partial(_inner_kernel, gamma=10.0 / (INNER_CUTOFF ** 2),
                          r_cut=INNER_CUTOFF, num_layers=INNER_LAYERS, coef=SUBG_C),
        inner_args,
        jax.ShapeDtypeStruct((G, HIDDEN), jnp.float32),
    )                                                              # [B*N, H]

    # -------- fused kernel 2: outer proj/fuse + outer M2G + outer GNN + readout ------------
    wf1 = params["outer_fuse"][0][0]                               # [2H, H] -> split halves
    outer_args = (
        outer_scalar0.reshape(B * N, Z_HIDDEN),
        d_outer,
        outer_subg_scalar_env,
        params["outer_proj"][0][0], params["outer_proj"][0][1],
        params["outer_proj"][1][0], params["outer_proj"][1][1],
        wf1[:HIDDEN], wf1[HIDDEN:], params["outer_fuse"][0][1],
        params["outer_fuse"][1][0], params["outer_fuse"][1][1],
        params["outer_fuse"][2][0], params["outer_fuse"][2][1],
        params["outer_ef_proj"][0], params["outer_ef_proj"][1],
        params["mu_outer"],
        ow1, ob1, ow2, ob2,
        params["output_linear_w"],
    )
    pred_energy = _fused_call(
        functools.partial(_outer_kernel, gamma=10.0 / (OUTER_CUTOFF ** 2),
                          r_cut=OUTER_CUTOFF, num_layers=OUTER_LAYERS, coef=C,
                          y_std=Y_STD, y_mean=Y_MEAN),
        outer_args,
        jax.ShapeDtypeStruct((B, OUT_CHANNEL), jnp.float32),
    )
    return pred_energy


if __name__ == "__main__":
    key = jax.random.PRNGKey(0)
    kp, kpos, kz = jax.random.split(key, 3)
    params = init_params(kp)

    pos = jax.random.normal(kpos, (B, N, 3), jnp.float32) * 2.0
    z = jax.random.randint(kz, (B, N), 1, MAX_Z).astype(jnp.int32)

    n_idx = jnp.arange(N, dtype=jnp.int32)[:, None]
    k_idx = jnp.arange(K, dtype=jnp.int32)[None, :]
    subg_node_index = jnp.tile(((n_idx + k_idx) % N)[None], (B, 1, 1))            # [B,N,K]
    subg_node_center_index = jnp.broadcast_to(n_idx[None, :, :], (B, N, K)).astype(jnp.int32)
    subg_node_label = jnp.where(subg_node_index == subg_node_center_index, 1, 2).astype(jnp.int32)

    fwd = jax.jit(geongnn_forward)
    pred = fwd(params, pos, z, subg_node_index, subg_node_center_index, subg_node_label)
    pred = jax.block_until_ready(pred)
    assert pred.shape == (B, OUT_CHANNEL)
    print("KERNEL_OK")
</pallas_src>

<mosaic_0001>
module attributes {stable_mosaic.version = 11 : i64} {
  func.func @_inner_kernel(%arg0: memref<64x16xf32, #tpu.memory_space<vmem>>, %arg1: memref<64x16xf32, #tpu.memory_space<vmem>>, %arg2: memref<16x4x4xf32, #tpu.memory_space<vmem>>, %arg3: memref<16x4xf32, #tpu.memory_space<vmem>>, %arg4: memref<16x32xf32, #tpu.memory_space<vmem>>, %arg5: memref<1x32xf32, #tpu.memory_space<vmem>>, %arg6: memref<16x32xf32, #tpu.memory_space<vmem>>, %arg7: memref<1x32xf32, #tpu.memory_space<vmem>>, %arg8: memref<16x32xf32, #tpu.memory_space<vmem>>, %arg9: memref<1x32xf32, #tpu.memory_space<vmem>>, %arg10: memref<1x16xf32, #tpu.memory_space<vmem>>, %arg11: memref<2x32x32xf32, #tpu.memory_space<vmem>>, %arg12: memref<2x1x32xf32, #tpu.memory_space<vmem>>, %arg13: memref<2x32x32xf32, #tpu.memory_space<vmem>>, %arg14: memref<2x1x32xf32, #tpu.memory_space<vmem>>, %arg15: memref<16x32xf32, #tpu.memory_space<vmem>>) attributes {dimension_semantics = [], scalar_prefetch = 0 : i64, scratch_operands = 0 : i64, tpu.core_type = #tpu.core_type<tc>} {
    %c0 = arith.constant 0 : index
    %c0_0 = arith.constant 0 : index
    %0 = vector.load %arg0[%c0, %c0_0] : memref<64x16xf32, #tpu.memory_space<vmem>>, vector<64x16xf32>
    %c0_1 = arith.constant 0 : index
    %c0_2 = arith.constant 0 : index
    %1 = vector.load %arg4[%c0_1, %c0_2] : memref<16x32xf32, #tpu.memory_space<vmem>>, vector<16x32xf32>
    %cst = arith.constant dense<0.000000e+00> : vector<64x32xf32>
    %2 = tpu.matmul %0, %1, %cst {dimension_numbers = #tpu.dot_dimension_numbers<[1], [0], [0], [1], [0, 0, 1, 1], [], []>} : vector<64x16xf32>, vector<16x32xf32>, vector<64x32xf32> -> vector<64x32xf32>
    %c0_3 = arith.constant 0 : index
    %c0_4 = arith.constant 0 : index
    %3 = vector.load %arg5[%c0_3, %c0_4] : memref<1x32xf32, #tpu.memory_space<vmem>>, vector<1x32xf32>
    %4 = vector.broadcast %3 : vector<1x32xf32> to vector<64x32xf32>
    %5 = arith.addf %2, %4 : vector<64x32xf32>
    %6 = arith.negf %5 : vector<64x32xf32>
    %7 = math.exp %6 : vector<64x32xf32>
    %cst_5 = arith.constant 1.000000e+00 : f32
    %8 = vector.broadcast %cst_5 : f32 to vector<64x32xf32>
    %9 = arith.addf %8, %7 : vector<64x32xf32>
    %10 = arith.divf %8, %9 : vector<64x32xf32>
    %11 = arith.mulf %5, %10 : vector<64x32xf32>
    %c0_6 = arith.constant 0 : index
    %c0_7 = arith.constant 0 : index
    %12 = vector.load %arg1[%c0_6, %c0_7] : memref<64x16xf32, #tpu.memory_space<vmem>>, vector<64x16xf32>
    %c0_8 = arith.constant 0 : index
    %c0_9 = arith.constant 0 : index
    %13 = vector.load %arg6[%c0_8, %c0_9] : memref<16x32xf32, #tpu.memory_space<vmem>>, vector<16x32xf32>
    %cst_10 = arith.constant dense<0.000000e+00> : vector<64x32xf32>
    %14 = tpu.matmul %12, %13, %cst_10 {dimension_numbers = #tpu.dot_dimension_numbers<[1], [0], [0], [1], [0, 0, 1, 1], [], []>} : vector<64x16xf32>, vector<16x32xf32>, vector<64x32xf32> -> vector<64x32xf32>
    %c0_11 = arith.constant 0 : index
    %c0_12 = arith.constant 0 : index
    %15 = vector.load %arg7[%c0_11, %c0_12] : memref<1x32xf32, #tpu.memory_space<vmem>>, vector<1x32xf32>
    %16 = vector.broadcast %15 : vector<1x32xf32> to vector<64x32xf32>
    %17 = arith.addf %14, %16 : vector<64x32xf32>
    %18 = arith.negf %17 : vector<64x32xf32>
    %19 = math.exp %18 : vector<64x32xf32>
    %cst_13 = arith.constant 1.000000e+00 : f32
    %20 = vector.broadcast %cst_13 : f32 to vector<64x32xf32>
    %21 = arith.addf %20, %19 : vector<64x32xf32>
    %22 = arith.divf %20, %21 : vector<64x32xf32>
    %23 = arith.mulf %17, %22 : vector<64x32xf32>
    %24 = arith.mulf %11, %23 : vector<64x32xf32>
    %c0_14 = arith.constant 0 : index
    %c0_15 = arith.constant 0 : index
    %c0_16 = arith.constant 0 : index
    %25 = vector.load %arg2[%c0_14, %c0_15, %c0_16] : memref<16x4x4xf32, #tpu.memory_space<vmem>>, vector<16x4x4xf32>
    %c0_17 = arith.constant 0 : index
    %c0_18 = arith.constant 0 : index
    %26 = vector.load %arg10[%c0_17, %c0_18] : memref<1x16xf32, #tpu.memory_space<vmem>>, vector<1x16xf32>
    %27 = vector.shape_cast %26 : vector<1x16xf32> to vector<1x1x1x16xf32>
    %cst_19 = arith.constant 3.000000e+00 : f32
    %28 = vector.broadcast %cst_19 : f32 to vector<16x4x4xf32>
    %29 = arith.divf %25, %28 : vector<16x4x4xf32>
    %cst_20 = arith.constant 0.000000e+00 : f32
    %cst_21 = arith.constant 1.000000e+00 : f32
    %30 = vector.broadcast %cst_20 : f32 to vector<16x4x4xf32>
    %31 = arith.maximumf %30, %29 : vector<16x4x4xf32>
    %32 = vector.broadcast %cst_21 : f32 to vector<16x4x4xf32>
    %33 = arith.minimumf %32, %31 : vector<16x4x4xf32>
    %cst_22 = arith.constant 3.14159274 : f32
    %34 = vector.broadcast %cst_22 : f32 to vector<16x4x4xf32>
    %35 = arith.mulf %34, %33 : vector<16x4x4xf32>
    %36 = math.cos %35 : vector<16x4x4xf32>
    %cst_23 = arith.constant 1.000000e+00 : f32
    %37 = vector.broadcast %cst_23 : f32 to vector<16x4x4xf32>
    %38 = arith.addf %36, %37 : vector<16x4x4xf32>
    %cst_24 = arith.constant 5.000000e-01 : f32
    %39 = vector.broadcast %cst_24 : f32 to vector<16x4x4xf32>
    %40 = arith.mulf %39, %38 : vector<16x4x4xf32>
    %41 = vector.shape_cast %25 : vector<16x4x4xf32> to vector<16x4x4x1xf32>
    %42 = vector.broadcast %41 : vector<16x4x4x1xf32> to vector<16x4x4x16xf32>
    %43 = vector.broadcast %27 : vector<1x1x1x16xf32> to vector<16x4x4x16xf32>
    %44 = arith.subf %42, %43 : vector<16x4x4x16xf32>
    %45 = arith.mulf %44, %44 : vector<16x4x4x16xf32>
    %cst_25 = arith.constant -1.11111116 : f32
    %46 = vector.broadcast %cst_25 : f32 to vector<16x4x4x16xf32>
    %47 = arith.mulf %46, %45 : vector<16x4x4x16xf32>
    %48 = math.exp %47 : vector<16x4x4x16xf32>
    %49 = vector.shape_cast %40 : vector<16x4x4xf32> to vector<16x4x4x1xf32>
    %50 = vector.broadcast %49 : vector<16x4x4x1xf32> to vector<16x4x4x16xf32>
    %51 = arith.mulf %48, %50 : vector<16x4x4x16xf32>
    %52 = vector.shape_cast %51 : vector<16x4x4x16xf32> to vector<256x16xf32>
    %c0_26 = arith.constant 0 : index
    %c0_27 = arith.constant 0 : index
    %53 = vector.load %arg8[%c0_26, %c0_27] : memref<16x32xf32, #tpu.memory_space<vmem>>, vector<16x32xf32>
    %cst_28 = arith.constant dense<0.000000e+00> : vector<256x32xf32>
    %54 = tpu.matmul %52, %53, %cst_28 {dimension_numbers = #tpu.dot_dimension_numbers<[1], [0], [0], [1], [0, 0, 1, 1], [], []>} : vector<256x16xf32>, vector<16x32xf32>, vector<256x32xf32> -> vector<256x32xf32>
    %c0_29 = arith.constant 0 : index
    %c0_30 = arith.constant 0 : index
    %55 = vector.load %arg9[%c0_29, %c0_30] : memref<1x32xf32, #tpu.memory_space<vmem>>, vector<1x32xf32>
    %56 = vector.broadcast %55 : vector<1x32xf32> to vector<256x32xf32>
    %57 = arith.addf %54, %56 : vector<256x32xf32>
    %58 = arith.negf %57 : vector<256x32xf32>
    %59 = math.exp %58 : vector<256x32xf32>
    %cst_31 = arith.constant 1.000000e+00 : f32
    %60 = vector.broadcast %cst_31 : f32 to vector<256x32xf32>
    %61 = arith.addf %60, %59 : vector<256x32xf32>
    %62 = arith.divf %60, %61 : vector<256x32xf32>
    %63 = arith.mulf %57, %62 : vector<256x32xf32>
    %64 = vector.shape_cast %63 : vector<256x32xf32> to vector<16x4x4x32xf32>
    %65 = tpu.iota {dimensions = array<i32: 0>} : vector<4x4xi32>
    %66 = tpu.iota {dimensions = array<i32: 1>} : vector<4x4xi32>
    %67 = arith.cmpi ne, %65, %66 : vector<4x4xi32>
    %68 = arith.extui %67 : vector<4x4xi1> to vector<4x4xi32>
    %69 = arith.sitofp %68 : vector<4x4xi32> to vector<4x4xf32>
    %70 = vector.shape_cast %69 : vector<4x4xf32> to vector<1x4x4xf32>
    %71 = vector.broadcast %70 : vector<1x4x4xf32> to vector<16x4x4xf32>
    %72 = arith.mulf %40, %71 : vector<16x4x4xf32>
    %73 = vector.shape_cast %72 : vector<16x4x4xf32> to vector<16x4x4x1xf32>
    %74 = vector.broadcast %73 : vector<16x4x4x1xf32> to vector<16x4x4x32xf32>
    %75 = arith.mulf %64, %74 : vector<16x4x4x32xf32>
    %76 = vector.shape_cast %24 : vector<64x32xf32> to vector<16x4x32xf32>
    %77 = vector.shape_cast %76 : vector<16x4x32xf32> to vector<16x1x4x32xf32>
    %78 = vector.broadcast %77 : vector<16x1x4x32xf32> to vector<16x4x4x32xf32>
    %79 = arith.mulf %75, %78 : vector<16x4x4x32xf32>
    %cst_32 = arith.constant dense<0.000000e+00> : vector<16x4x32xf32>
    %80 = vector.multi_reduction <add>, %79, %cst_32 [2] : vector<16x4x4x32xf32> to vector<16x4x32xf32>
    %81 = vector.shape_cast %80 : vector<16x4x32xf32> to vector<64x32xf32>
    %c0_33 = arith.constant 0 : index
    %c0_34 = arith.constant 0 : index
    %c0_35 = arith.constant 0 : index
    %82 = vector.load %arg11[%c0_33, %c0_34, %c0_35] : memref<2x32x32xf32, #tpu.memory_space<vmem>>, vector<1x32x32xf32>
    %83 = vector.shape_cast %82 : vector<1x32x32xf32> to vector<32x32xf32>
    %cst_36 = arith.constant dense<0.000000e+00> : vector<64x32xf32>
    %84 = tpu.matmul %81, %83, %cst_36 {dimension_numbers = #tpu.dot_dimension_numbers<[1], [0], [0], [1], [0, 0, 1, 1], [], []>} : vector<64x32xf32>, vector<32x32xf32>, vector<64x32xf32> -> vector<64x32xf32>
    %c0_37 = arith.constant 0 : index
    %c0_38 = arith.constant 0 : index
    %c0_39 = arith.constant 0 : index
    %85 = vector.load %arg12[%c0_37, %c0_38, %c0_39] : memref<2x1x32xf32, #tpu.memory_space<vmem>>, vector<1x1x32xf32>
    %86 = vector.shape_cast %85 : vector<1x1x32xf32> to vector<1x32xf32>
    %87 = vector.broadcast %86 : vector<1x32xf32> to vector<64x32xf32>
    %88 = arith.addf %84, %87 : vector<64x32xf32>
    %89 = arith.negf %88 : vector<64x32xf32>
    %90 = math.exp %89 : vector<64x32xf32>
    %cst_40 = arith.constant 1.000000e+00 : f32
    %91 = vector.broadcast %cst_40 : f32 to vector<64x32xf32>
    %92 = arith.addf %91, %90 : vector<64x32xf32>
    %93 = arith.divf %91, %92 : vector<64x32xf32>
    %94 = arith.mulf %88, %93 : vector<64x32xf32>
    %c0_41 = arith.constant 0 : index
    %c0_42 = arith.constant 0 : index
    %c0_43 = arith.constant 0 : index
    %95 = vector.load %arg13[%c0_41, %c0_42, %c0_43] : memref<2x32x32xf32, #tpu.memory_space<vmem>>, vector<1x32x32xf32>
    %96 = vector.shape_cast %95 : vector<1x32x32xf32> to vector<32x32xf32>
    %cst_44 = arith.constant dense<0.000000e+00> : vector<64x32xf32>
    %97 = tpu.matmul %94, %96, %cst_44 {dimension_numbers = #tpu.dot_dimension_numbers<[1], [0], [0], [1], [0, 0, 1, 1], [], []>} : vector<64x32xf32>, vector<32x32xf32>, vector<64x32xf32> -> vector<64x32xf32>
    %c0_45 = arith.constant 0 : index
    %c0_46 = arith.constant 0 : index
    %c0_47 = arith.constant 0 : index
    %98 = vector.load %arg14[%c0_45, %c0_46, %c0_47] : memref<2x1x32xf32, #tpu.memory_space<vmem>>, vector<1x1x32xf32>
    %99 = vector.shape_cast %98 : vector<1x1x32xf32> to vector<1x32xf32>
    %100 = vector.broadcast %99 : vector<1x32xf32> to vector<64x32xf32>
    %101 = arith.addf %97, %100 : vector<64x32xf32>
    %102 = arith.negf %101 : vector<64x32xf32>
    %103 = math.exp %102 : vector<64x32xf32>
    %cst_48 = arith.constant 1.000000e+00 : f32
    %104 = vector.broadcast %cst_48 : f32 to vector<64x32xf32>
    %105 = arith.addf %104, %103 : vector<64x32xf32>
    %106 = arith.divf %104, %105 : vector<64x32xf32>
    %107 = arith.mulf %101, %106 : vector<64x32xf32>
    %108 = arith.addf %24, %107 : vector<64x32xf32>
    %109 = vector.shape_cast %108 : vector<64x32xf32> to vector<16x4x32xf32>
    %110 = vector.shape_cast %109 : vector<16x4x32xf32> to vector<16x1x4x32xf32>
    %111 = vector.broadcast %110 : vector<16x1x4x32xf32> to vector<16x4x4x32xf32>
    %112 = arith.mulf %75, %111 : vector<16x4x4x32xf32>
    %cst_49 = arith.constant dense<0.000000e+00> : vector<16x4x32xf32>
    %113 = vector.multi_reduction <add>, %112, %cst_49 [2] : vector<16x4x4x32xf32> to vector<16x4x32xf32>
    %114 = vector.shape_cast %113 : vector<16x4x32xf32> to vector<64x32xf32>
    %c1 = arith.constant 1 : index
    %c0_50 = arith.constant 0 : index
    %c0_51 = arith.constant 0 : index
    %115 = vector.load %arg11[%c1, %c0_50, %c0_51] : memref<2x32x32xf32, #tpu.memory_space<vmem>>, vector<1x32x32xf32>
    %116 = vector.shape_cast %115 : vector<1x32x32xf32> to vector<32x32xf32>
    %cst_52 = arith.constant dense<0.000000e+00> : vector<64x32xf32>
    %117 = tpu.matmul %114, %116, %cst_52 {dimension_numbers = #tpu.dot_dimension_numbers<[1], [0], [0], [1], [0, 0, 1, 1], [], []>} : vector<64x32xf32>, vector<32x32xf32>, vector<64x32xf32> -> vector<64x32xf32>
    %c1_53 = arith.constant 1 : index
    %c0_54 = arith.constant 0 : index
    %c0_55 = arith.constant 0 : index
    %118 = vector.load %arg12[%c1_53, %c0_54, %c0_55] : memref<2x1x32xf32, #tpu.memory_space<vmem>>, vector<1x1x32xf32>
    %119 = vector.shape_cast %118 : vector<1x1x32xf32> to vector<1x32xf32>
    %120 = vector.broadcast %119 : vector<1x32xf32> to vector<64x32xf32>
    %121 = arith.addf %117, %120 : vector<64x32xf32>
    %122 = arith.negf %121 : vector<64x32xf32>
    %123 = math.exp %122 : vector<64x32xf32>
    %cst_56 = arith.constant 1.000000e+00 : f32
    %124 = vector.broadcast %cst_56 : f32 to vector<64x32xf32>
    %125 = arith.addf %124, %123 : vector<64x32xf32>
    %126 = arith.divf %124, %125 : vector<64x32xf32>
    %127 = arith.mulf %121, %126 : vector<64x32xf32>
    %c1_57 = arith.constant 1 : index
    %c0_58 = arith.constant 0 : index
    %c0_59 = arith.constant 0 : index
    %128 = vector.load %arg13[%c1_57, %c0_58, %c0_59] : memref<2x32x32xf32, #tpu.memory_space<vmem>>, vector<1x32x32xf32>
    %129 = vector.shape_cast %128 : vector<1x32x32xf32> to vector<32x32xf32>
    %cst_60 = arith.constant dense<0.000000e+00> : vector<64x32xf32>
    %130 = tpu.matmul %127, %129, %cst_60 {dimension_numbers = #tpu.dot_dimension_numbers<[1], [0], [0], [1], [0, 0, 1, 1], [], []>} : vector<64x32xf32>, vector<32x32xf32>, vector<64x32xf32> -> vector<64x32xf32>
    %c1_61 = arith.constant 1 : index
    %c0_62 = arith.constant 0 : index
    %c0_63 = arith.constant 0 : index
    %131 = vector.load %arg14[%c1_61, %c0_62, %c0_63] : memref<2x1x32xf32, #tpu.memory_space<vmem>>, vector<1x1x32xf32>
    %132 = vector.shape_cast %131 : vector<1x1x32xf32> to vector<1x32xf32>
    %133 = vector.broadcast %132 : vector<1x32xf32> to vector<64x32xf32>
    %134 = arith.addf %130, %133 : vector<64x32xf32>
    %135 = arith.negf %134 : vector<64x32xf32>
    %136 = math.exp %135 : vector<64x32xf32>
    %cst_64 = arith.constant 1.000000e+00 : f32
    %137 = vector.broadcast %cst_64 : f32 to vector<64x32xf32>
    %138 = arith.addf %137, %136 : vector<64x32xf32>
    %139 = arith.divf %137, %138 : vector<64x32xf32>
    %140 = arith.mulf %134, %139 : vector<64x32xf32>
    %141 = arith.addf %108, %140 : vector<64x32xf32>
    %c0_65 = arith.constant 0 : index
    %c0_66 = arith.constant 0 : index
    %142 = vector.load %arg3[%c0_65, %c0_66] : memref<16x4xf32, #tpu.memory_space<vmem>>, vector<16x4xf32>
    %cst_67 = arith.constant 3.000000e+00 : f32
    %143 = vector.broadcast %cst_67 : f32 to vector<16x4xf32>
    %144 = arith.divf %142, %143 : vector<16x4xf32>
    %cst_68 = arith.constant 0.000000e+00 : f32
    %cst_69 = arith.constant 1.000000e+00 : f32
    %145 = vector.broadcast %cst_68 : f32 to vector<16x4xf32>
    %146 = arith.maximumf %145, %144 : vector<16x4xf32>
    %147 = vector.broadcast %cst_69 : f32 to vector<16x4xf32>
    %148 = arith.minimumf %147, %146 : vector<16x4xf32>
    %cst_70 = arith.constant 3.14159274 : f32
    %149 = vector.broadcast %cst_70 : f32 to vector<16x4xf32>
    %150 = arith.mulf %149, %148 : vector<16x4xf32>
    %151 = math.cos %150 : vector<16x4xf32>
    %cst_71 = arith.constant 1.000000e+00 : f32
    %152 = vector.broadcast %cst_71 : f32 to vector<16x4xf32>
    %153 = arith.addf %151, %152 : vector<16x4xf32>
    %cst_72 = arith.constant 5.000000e-01 : f32
    %154 = vector.broadcast %cst_72 : f32 to vector<16x4xf32>
    %155 = arith.mulf %154, %153 : vector<16x4xf32>
    %156 = vector.shape_cast %155 : vector<16x4xf32> to vector<16x4x1xf32>
    %157 = vector.shape_cast %141 : vector<64x32xf32> to vector<16x4x32xf32>
    %158 = vector.broadcast %156 : vector<16x4x1xf32> to vector<16x4x32xf32>
    %159 = arith.mulf %158, %157 : vector<16x4x32xf32>
    %cst_73 = arith.constant dense<0.000000e+00> : vector<16x32xf32>
    %160 = vector.multi_reduction <add>, %159, %cst_73 [1] : vector<16x4x32xf32> to vector<16x32xf32>
    %cst_74 = arith.constant 5.000000e-01 : f32
    %161 = vector.broadcast %cst_74 : f32 to vector<16x32xf32>
    %162 = arith.mulf %161, %160 : vector<16x32xf32>
    %c0_75 = arith.constant 0 : index
    %c0_76 = arith.constant 0 : index
    %163 = vector.load %arg15[%c0_75, %c0_76] : memref<16x32xf32, #tpu.memory_space<vmem>>, vector<16x32xf32>
    tpu.vector_store %arg15[%c0_75, %c0_76], %162 {strides = array<i32>} : memref<16x32xf32, #tpu.memory_space<vmem>>, vector<16x32xf32>,
    return
  }
}

module attributes {stable_mosaic.version = 11 : i64} {
  func.func @_outer_kernel(%arg0: memref<16x16xf32, #tpu.memory_space<vmem>>, %arg1: memref<2x8x8xf32, #tpu.memory_space<vmem>>, %arg2: memref<16x32xf32, #tpu.memory_space<vmem>>, %arg3: memref<16x32xf32, #tpu.memory_space<vmem>>, %arg4: memref<1x32xf32, #tpu.memory_space<vmem>>, %arg5: memref<32x32xf32, #tpu.memory_space<vmem>>, %arg6: memref<1x32xf32, #tpu.memory_space<vmem>>, %arg7: memref<32x32xf32, #tpu.memory_space<vmem>>, %arg8: memref<32x32xf32, #tpu.memory_space<vmem>>, %arg9: memref<1x32xf32, #tpu.memory_space<vmem>>, %arg10: memref<32x32xf32, #tpu.memory_space<vmem>>, %arg11: memref<1x32xf32, #tpu.memory_space<vmem>>, %arg12: memref<32x32xf32, #tpu.memory_space<vmem>>, %arg13: memref<1x32xf32, #tpu.memory_space<vmem>>, %arg14: memref<16x32xf32, #tpu.memory_space<vmem>>, %arg15: memref<1x32xf32, #tpu.memory_space<vmem>>, %arg16: memref<1x16xf32, #tpu.memory_space<vmem>>, %arg17: memref<2x32x32xf32, #tpu.memory_space<vmem>>, %arg18: memref<2x1x32xf32, #tpu.memory_space<vmem>>, %arg19: memref<2x32x32xf32, #tpu.memory_space<vmem>>, %arg20: memref<2x1x32xf32, #tpu.memory_space<vmem>>, %arg21: memref<32x1xf32, #tpu.memory_space<vmem>>, %arg22: memref<2x1xf32, #tpu.memory_space<vmem>>) attributes {dimension_semantics = [], scalar_prefetch = 0 : i64, scratch_operands = 0 : i64, tpu.core_type = #tpu.core_type<tc>} {
    %c0 = arith.constant 0 : index
    %c0_0 = arith.constant 0 : index
    %0 = vector.load %arg0[%c0, %c0_0] : memref<16x16xf32, #tpu.memory_space<vmem>>, vector<16x16xf32>
    %c0_1 = arith.constant 0 : index
    %c0_2 = arith.constant 0 : index
    %1 = vector.load %arg3[%c0_1, %c0_2] : memref<16x32xf32, #tpu.memory_space<vmem>>, vector<16x32xf32>
    %cst = arith.constant dense<0.000000e+00> : vector<16x32xf32>
    %2 = tpu.matmul %0, %1, %cst {dimension_numbers = #tpu.dot_dimension_numbers<[1], [0], [0], [1], [0, 0, 1, 1], [], []>} : vector<16x16xf32>, vector<16x32xf32>, vector<16x32xf32> -> vector<16x32xf32>
    %c0_3 = arith.constant 0 : index
    %c0_4 = arith.constant 0 : index
    %3 = vector.load %arg4[%c0_3, %c0_4] : memref<1x32xf32, #tpu.memory_space<vmem>>, vector<1x32xf32>
    %4 = vector.broadcast %3 : vector<1x32xf32> to vector<16x32xf32>
    %5 = arith.addf %2, %4 : vector<16x32xf32>
    %6 = arith.negf %5 : vector<16x32xf32>
    %7 = math.exp %6 : vector<16x32xf32>
    %cst_5 = arith.constant 1.000000e+00 : f32
    %8 = vector.broadcast %cst_5 : f32 to vector<16x32xf32>
    %9 = arith.addf %8, %7 : vector<16x32xf32>
    %10 = arith.divf %8, %9 : vector<16x32xf32>
    %11 = arith.mulf %5, %10 : vector<16x32xf32>
    %c0_6 = arith.constant 0 : index
    %c0_7 = arith.constant 0 : index
    %12 = vector.load %arg5[%c0_6, %c0_7] : memref<32x32xf32, #tpu.memory_space<vmem>>, vector<32x32xf32>
    %cst_8 = arith.constant dense<0.000000e+00> : vector<16x32xf32>
    %13 = tpu.matmul %11, %12, %cst_8 {dimension_numbers = #tpu.dot_dimension_numbers<[1], [0], [0], [1], [0, 0, 1, 1], [], []>} : vector<16x32xf32>, vector<32x32xf32>, vector<16x32xf32> -> vector<16x32xf32>
    %c0_9 = arith.constant 0 : index
    %c0_10 = arith.constant 0 : index
    %14 = vector.load %arg6[%c0_9, %c0_10] : memref<1x32xf32, #tpu.memory_space<vmem>>, vector<1x32xf32>
    %15 = vector.broadcast %14 : vector<1x32xf32> to vector<16x32xf32>
    %16 = arith.addf %13, %15 : vector<16x32xf32>
    %17 = arith.negf %16 : vector<16x32xf32>
    %18 = math.exp %17 : vector<16x32xf32>
    %cst_11 = arith.constant 1.000000e+00 : f32
    %19 = vector.broadcast %cst_11 : f32 to vector<16x32xf32>
    %20 = arith.addf %19, %18 : vector<16x32xf32>
    %21 = arith.divf %19, %20 : vector<16x32xf32>
    %22 = arith.mulf %16, %21 : vector<16x32xf32>
    %c0_12 = arith.constant 0 : index
    %c0_13 = arith.constant 0 : index
    %23 = vector.load %arg2[%c0_12, %c0_13] : memref<16x32xf32, #tpu.memory_space<vmem>>, vector<16x32xf32>
    %c0_14 = arith.constant 0 : index
    %c0_15 = arith.constant 0 : index
    %24 = vector.load %arg7[%c0_14, %c0_15] : memref<32x32xf32, #tpu.memory_space<vmem>>, vector<32x32xf32>
    %cst_16 = arith.constant dense<0.000000e+00> : vector<16x32xf32>
    %25 = tpu.matmul %23, %24, %cst_16 {dimension_numbers = #tpu.dot_dimension_numbers<[1], [0], [0], [1], [0, 0, 1, 1], [], []>} : vector<16x32xf32>, vector<32x32xf32>, vector<16x32xf32> -> vector<16x32xf32>
    %c0_17 = arith.constant 0 : index
    %c0_18 = arith.constant 0 : index
    %26 = vector.load %arg8[%c0_17, %c0_18] : memref<32x32xf32, #tpu.memory_space<vmem>>, vector<32x32xf32>
    %cst_19 = arith.constant dense<0.000000e+00> : vector<16x32xf32>
    %27 = tpu.matmul %22, %26, %cst_19 {dimension_numbers = #tpu.dot_dimension_numbers<[1], [0], [0], [1], [0, 0, 1, 1], [], []>} : vector<16x32xf32>, vector<32x32xf32>, vector<16x32xf32> -> vector<16x32xf32>
    %28 = arith.addf %25, %27 : vector<16x32xf32>
    %c0_20 = arith.constant 0 : index
    %c0_21 = arith.constant 0 : index
    %29 = vector.load %arg9[%c0_20, %c0_21] : memref<1x32xf32, #tpu.memory_space<vmem>>, vector<1x32xf32>
    %30 = vector.broadcast %29 : vector<1x32xf32> to vector<16x32xf32>
    %31 = arith.addf %28, %30 : vector<16x32xf32>
    %32 = arith.negf %31 : vector<16x32xf32>
    %33 = math.exp %32 : vector<16x32xf32>
    %cst_22 = arith.constant 1.000000e+00 : f32
    %34 = vector.broadcast %cst_22 : f32 to vector<16x32xf32>
    %35 = arith.addf %34, %33 : vector<16x32xf32>
    %36 = arith.divf %34, %35 : vector<16x32xf32>
    %37 = arith.mulf %31, %36 : vector<16x32xf32>
    %c0_23 = arith.constant 0 : index
    %c0_24 = arith.constant 0 : index
    %38 = vector.load %arg10[%c0_23, %c0_24] : memref<32x32xf32, #tpu.memory_space<vmem>>, vector<32x32xf32>
    %cst_25 = arith.constant dense<0.000000e+00> : vector<16x32xf32>
    %39 = tpu.matmul %37, %38, %cst_25 {dimension_numbers = #tpu.dot_dimension_numbers<[1], [0], [0], [1], [0, 0, 1, 1], [], []>} : vector<16x32xf32>, vector<32x32xf32>, vector<16x32xf32> -> vector<16x32xf32>
    %c0_26 = arith.constant 0 : index
    %c0_27 = arith.constant 0 : index
    %40 = vector.load %arg11[%c0_26, %c0_27] : memref<1x32xf32, #tpu.memory_space<vmem>>, vector<1x32xf32>
    %41 = vector.broadcast %40 : vector<1x32xf32> to vector<16x32xf32>
    %42 = arith.addf %39, %41 : vector<16x32xf32>
    %43 = arith.negf %42 : vector<16x32xf32>
    %44 = math.exp %43 : vector<16x32xf32>
    %cst_28 = arith.constant 1.000000e+00 : f32
    %45 = vector.broadcast %cst_28 : f32 to vector<16x32xf32>
    %46 = arith.addf %45, %44 : vector<16x32xf32>
    %47 = arith.divf %45, %46 : vector<16x32xf32>
    %48 = arith.mulf %42, %47 : vector<16x32xf32>
    %c0_29 = arith.constant 0 : index
    %c0_30 = arith.constant 0 : index
    %49 = vector.load %arg12[%c0_29, %c0_30] : memref<32x32xf32, #tpu.memory_space<vmem>>, vector<32x32xf32>
    %cst_31 = arith.constant dense<0.000000e+00> : vector<16x32xf32>
    %50 = tpu.matmul %48, %49, %cst_31 {dimension_numbers = #tpu.dot_dimension_numbers<[1], [0], [0], [1], [0, 0, 1, 1], [], []>} : vector<16x32xf32>, vector<32x32xf32>, vector<16x32xf32> -> vector<16x32xf32>
    %c0_32 = arith.constant 0 : index
    %c0_33 = arith.constant 0 : index
    %51 = vector.load %arg13[%c0_32, %c0_33] : memref<1x32xf32, #tpu.memory_space<vmem>>, vector<1x32xf32>
    %52 = vector.broadcast %51 : vector<1x32xf32> to vector<16x32xf32>
    %53 = arith.addf %50, %52 : vector<16x32xf32>
    %54 = arith.negf %53 : vector<16x32xf32>
    %55 = math.exp %54 : vector<16x32xf32>
    %cst_34 = arith.constant 1.000000e+00 : f32
    %56 = vector.broadcast %cst_34 : f32 to vector<16x32xf32>
    %57 = arith.addf %56, %55 : vector<16x32xf32>
    %58 = arith.divf %56, %57 : vector<16x32xf32>
    %59 = arith.mulf %53, %58 : vector<16x32xf32>
    %60 = arith.addf %59, %22 : vector<16x32xf32>
    %c0_35 = arith.constant 0 : index
    %c0_36 = arith.constant 0 : index
    %c0_37 = arith.constant 0 : index
    %61 = vector.load %arg1[%c0_35, %c0_36, %c0_37] : memref<2x8x8xf32, #tpu.memory_space<vmem>>, vector<2x8x8xf32>
    %c0_38 = arith.constant 0 : index
    %c0_39 = arith.constant 0 : index
    %62 = vector.load %arg16[%c0_38, %c0_39] : memref<1x16xf32, #tpu.memory_space<vmem>>, vector<1x16xf32>
    %63 = vector.shape_cast %62 : vector<1x16xf32> to vector<1x1x1x16xf32>
    %cst_40 = arith.constant 5.000000e+00 : f32
    %64 = vector.broadcast %cst_40 : f32 to vector<2x8x8xf32>
    %65 = arith.divf %61, %64 : vector<2x8x8xf32>
    %cst_41 = arith.constant 0.000000e+00 : f32
    %cst_42 = arith.constant 1.000000e+00 : f32
    %66 = vector.broadcast %cst_41 : f32 to vector<2x8x8xf32>
    %67 = arith.maximumf %66, %65 : vector<2x8x8xf32>
    %68 = vector.broadcast %cst_42 : f32 to vector<2x8x8xf32>
    %69 = arith.minimumf %68, %67 : vector<2x8x8xf32>
    %cst_43 = arith.constant 3.14159274 : f32
    %70 = vector.broadcast %cst_43 : f32 to vector<2x8x8xf32>
    %71 = arith.mulf %70, %69 : vector<2x8x8xf32>
    %72 = math.cos %71 : vector<2x8x8xf32>
    %cst_44 = arith.constant 1.000000e+00 : f32
    %73 = vector.broadcast %cst_44 : f32 to vector<2x8x8xf32>
    %74 = arith.addf %72, %73 : vector<2x8x8xf32>
    %cst_45 = arith.constant 5.000000e-01 : f32
    %75 = vector.broadcast %cst_45 : f32 to vector<2x8x8xf32>
    %76 = arith.mulf %75, %74 : vector<2x8x8xf32>
    %77 = vector.shape_cast %61 : vector<2x8x8xf32> to vector<2x8x8x1xf32>
    %78 = vector.broadcast %77 : vector<2x8x8x1xf32> to vector<2x8x8x16xf32>
    %79 = vector.broadcast %63 : vector<1x1x1x16xf32> to vector<2x8x8x16xf32>
    %80 = arith.subf %78, %79 : vector<2x8x8x16xf32>
    %81 = arith.mulf %80, %80 : vector<2x8x8x16xf32>
    %cst_46 = arith.constant -4.000000e-01 : f32
    %82 = vector.broadcast %cst_46 : f32 to vector<2x8x8x16xf32>
    %83 = arith.mulf %82, %81 : vector<2x8x8x16xf32>
    %84 = math.exp %83 : vector<2x8x8x16xf32>
    %85 = vector.shape_cast %76 : vector<2x8x8xf32> to vector<2x8x8x1xf32>
    %86 = vector.broadcast %85 : vector<2x8x8x1xf32> to vector<2x8x8x16xf32>
    %87 = arith.mulf %84, %86 : vector<2x8x8x16xf32>
    %88 = vector.shape_cast %87 : vector<2x8x8x16xf32> to vector<128x16xf32>
    %c0_47 = arith.constant 0 : index
    %c0_48 = arith.constant 0 : index
    %89 = vector.load %arg14[%c0_47, %c0_48] : memref<16x32xf32, #tpu.memory_space<vmem>>, vector<16x32xf32>
    %cst_49 = arith.constant dense<0.000000e+00> : vector<128x32xf32>
    %90 = tpu.matmul %88, %89, %cst_49 {dimension_numbers = #tpu.dot_dimension_numbers<[1], [0], [0], [1], [0, 0, 1, 1], [], []>} : vector<128x16xf32>, vector<16x32xf32>, vector<128x32xf32> -> vector<128x32xf32>
    %c0_50 = arith.constant 0 : index
    %c0_51 = arith.constant 0 : index
    %91 = vector.load %arg15[%c0_50, %c0_51] : memref<1x32xf32, #tpu.memory_space<vmem>>, vector<1x32xf32>
    %92 = vector.broadcast %91 : vector<1x32xf32> to vector<128x32xf32>
    %93 = arith.addf %90, %92 : vector<128x32xf32>
    %94 = arith.negf %93 : vector<128x32xf32>
    %95 = math.exp %94 : vector<128x32xf32>
    %cst_52 = arith.constant 1.000000e+00 : f32
    %96 = vector.broadcast %cst_52 : f32 to vector<128x32xf32>
    %97 = arith.addf %96, %95 : vector<128x32xf32>
    %98 = arith.divf %96, %97 : vector<128x32xf32>
    %99 = arith.mulf %93, %98 : vector<128x32xf32>
    %100 = vector.shape_cast %99 : vector<128x32xf32> to vector<2x8x8x32xf32>
    %101 = tpu.iota {dimensions = array<i32: 0>} : vector<8x8xi32>
    %102 = tpu.iota {dimensions = array<i32: 1>} : vector<8x8xi32>
    %103 = arith.cmpi ne, %101, %102 : vector<8x8xi32>
    %104 = arith.extui %103 : vector<8x8xi1> to vector<8x8xi32>
    %105 = arith.sitofp %104 : vector<8x8xi32> to vector<8x8xf32>
    %106 = vector.shape_cast %105 : vector<8x8xf32> to vector<1x8x8xf32>
    %107 = vector.broadcast %106 : vector<1x8x8xf32> to vector<2x8x8xf32>
    %108 = arith.mulf %76, %107 : vector<2x8x8xf32>
    %109 = vector.shape_cast %108 : vector<2x8x8xf32> to vector<2x8x8x1xf32>
    %110 = vector.broadcast %109 : vector<2x8x8x1xf32> to vector<2x8x8x32xf32>
    %111 = arith.mulf %100, %110 : vector<2x8x8x32xf32>
    %112 = vector.shape_cast %60 : vector<16x32xf32> to vector<2x8x32xf32>
    %113 = vector.shape_cast %112 : vector<2x8x32xf32> to vector<2x1x8x32xf32>
    %114 = vector.broadcast %113 : vector<2x1x8x32xf32> to vector<2x8x8x32xf32>
    %115 = arith.mulf %111, %114 : vector<2x8x8x32xf32>
    %cst_53 = arith.constant dense<0.000000e+00> : vector<2x8x32xf32>
    %116 = vector.multi_reduction <add>, %115, %cst_53 [2] : vector<2x8x8x32xf32> to vector<2x8x32xf32>
    %117 = vector.shape_cast %116 : vector<2x8x32xf32> to vector<16x32xf32>
    %c0_54 = arith.constant 0 : index
    %c0_55 = arith.constant 0 : index
    %c0_56 = arith.constant 0 : index
    %118 = vector.load %arg17[%c0_54, %c0_55, %c0_56] : memref<2x32x32xf32, #tpu.memory_space<vmem>>, vector<1x32x32xf32>
    %119 = vector.shape_cast %118 : vector<1x32x32xf32> to vector<32x32xf32>
    %cst_57 = arith.constant dense<0.000000e+00> : vector<16x32xf32>
    %120 = tpu.matmul %117, %119, %cst_57 {dimension_numbers = #tpu.dot_dimension_numbers<[1], [0], [0], [1], [0, 0, 1, 1], [], []>} : vector<16x32xf32>, vector<32x32xf32>, vector<16x32xf32> -> vector<16x32xf32>
    %c0_58 = arith.constant 0 : index
    %c0_59 = arith.constant 0 : index
    %c0_60 = arith.constant 0 : index
    %121 = vector.load %arg18[%c0_58, %c0_59, %c0_60] : memref<2x1x32xf32, #tpu.memory_space<vmem>>, vector<1x1x32xf32>
    %122 = vector.shape_cast %121 : vector<1x1x32xf32> to vector<1x32xf32>
    %123 = vector.broadcast %122 : vector<1x32xf32> to vector<16x32xf32>
    %124 = arith.addf %120, %123 : vector<16x32xf32>
    %125 = arith.negf %124 : vector<16x32xf32>
    %126 = math.exp %125 : vector<16x32xf32>
    %cst_61 = arith.constant 1.000000e+00 : f32
    %127 = vector.broadcast %cst_61 : f32 to vector<16x32xf32>
    %128 = arith.addf %127, %126 : vector<16x32xf32>
    %129 = arith.divf %127, %128 : vector<16x32xf32>
    %130 = arith.mulf %124, %129 : vector<16x32xf32>
    %c0_62 = arith.constant 0 : index
    %c0_63 = arith.constant 0 : index
    %c0_64 = arith.constant 0 : index
    %131 = vector.load %arg19[%c0_62, %c0_63, %c0_64] : memref<2x32x32xf32, #tpu.memory_space<vmem>>, vector<1x32x32xf32>
    %132 = vector.shape_cast %131 : vector<1x32x32xf32> to vector<32x32xf32>
    %cst_65 = arith.constant dense<0.000000e+00> : vector<16x32xf32>
    %133 = tpu.matmul %130, %132, %cst_65 {dimension_numbers = #tpu.dot_dimension_numbers<[1], [0], [0], [1], [0, 0, 1, 1], [], []>} : vector<16x32xf32>, vector<32x32xf32>, vector<16x32xf32> -> vector<16x32xf32>
    %c0_66 = arith.constant 0 : index
    %c0_67 = arith.constant 0 : index
    %c0_68 = arith.constant 0 : index
    %134 = vector.load %arg20[%c0_66, %c0_67, %c0_68] : memref<2x1x32xf32, #tpu.memory_space<vmem>>, vector<1x1x32xf32>
    %135 = vector.shape_cast %134 : vector<1x1x32xf32> to vector<1x32xf32>
    %136 = vector.broadcast %135 : vector<1x32xf32> to vector<16x32xf32>
    %137 = arith.addf %133, %136 : vector<16x32xf32>
    %138 = arith.negf %137 : vector<16x32xf32>
    %139 = math.exp %138 : vector<16x32xf32>
    %cst_69 = arith.constant 1.000000e+00 : f32
    %140 = vector.broadcast %cst_69 : f32 to vector<16x32xf32>
    %141 = arith.addf %140, %139 : vector<16x32xf32>
    %142 = arith.divf %140, %141 : vector<16x32xf32>
    %143 = arith.mulf %137, %142 : vector<16x32xf32>
    %144 = arith.addf %60, %143 : vector<16x32xf32>
    %145 = vector.shape_cast %144 : vector<16x32xf32> to vector<2x8x32xf32>
    %146 = vector.shape_cast %145 : vector<2x8x32xf32> to vector<2x1x8x32xf32>
    %147 = vector.broadcast %146 : vector<2x1x8x32xf32> to vector<2x8x8x32xf32>
    %148 = arith.mulf %111, %147 : vector<2x8x8x32xf32>
    %cst_70 = arith.constant dense<0.000000e+00> : vector<2x8x32xf32>
    %149 = vector.multi_reduction <add>, %148, %cst_70 [2] : vector<2x8x8x32xf32> to vector<2x8x32xf32>
    %150 = vector.shape_cast %149 : vector<2x8x32xf32> to vector<16x32xf32>
    %c1 = arith.constant 1 : index
    %c0_71 = arith.constant 0 : index
    %c0_72 = arith.constant 0 : index
    %151 = vector.load %arg17[%c1, %c0_71, %c0_72] : memref<2x32x32xf32, #tpu.memory_space<vmem>>, vector<1x32x32xf32>
    %152 = vector.shape_cast %151 : vector<1x32x32xf32> to vector<32x32xf32>
    %cst_73 = arith.constant dense<0.000000e+00> : vector<16x32xf32>
    %153 = tpu.matmul %150, %152, %cst_73 {dimension_numbers = #tpu.dot_dimension_numbers<[1], [0], [0], [1], [0, 0, 1, 1], [], []>} : vector<16x32xf32>, vector<32x32xf32>, vector<16x32xf32> -> vector<16x32xf32>
    %c1_74 = arith.constant 1 : index
    %c0_75 = arith.constant 0 : index
    %c0_76 = arith.constant 0 : index
    %154 = vector.load %arg18[%c1_74, %c0_75, %c0_76] : memref<2x1x32xf32, #tpu.memory_space<vmem>>, vector<1x1x32xf32>
    %155 = vector.shape_cast %154 : vector<1x1x32xf32> to vector<1x32xf32>
    %156 = vector.broadcast %155 : vector<1x32xf32> to vector<16x32xf32>
    %157 = arith.addf %153, %156 : vector<16x32xf32>
    %158 = arith.negf %157 : vector<16x32xf32>
    %159 = math.exp %158 : vector<16x32xf32>
    %cst_77 = arith.constant 1.000000e+00 : f32
    %160 = vector.broadcast %cst_77 : f32 to vector<16x32xf32>
    %161 = arith.addf %160, %159 : vector<16x32xf32>
    %162 = arith.divf %160, %161 : vector<16x32xf32>
    %163 = arith.mulf %157, %162 : vector<16x32xf32>
    %c1_78 = arith.constant 1 : index
    %c0_79 = arith.constant 0 : index
    %c0_80 = arith.constant 0 : index
    %164 = vector.load %arg19[%c1_78, %c0_79, %c0_80] : memref<2x32x32xf32, #tpu.memory_space<vmem>>, vector<1x32x32xf32>
    %165 = vector.shape_cast %164 : vector<1x32x32xf32> to vector<32x32xf32>
    %cst_81 = arith.constant dense<0.000000e+00> : vector<16x32xf32>
    %166 = tpu.matmul %163, %165, %cst_81 {dimension_numbers = #tpu.dot_dimension_numbers<[1], [0], [0], [1], [0, 0, 1, 1], [], []>} : vector<16x32xf32>, vector<32x32xf32>, vector<16x32xf32> -> vector<16x32xf32>
    %c1_82 = arith.constant 1 : index
    %c0_83 = arith.constant 0 : index
    %c0_84 = arith.constant 0 : index
    %167 = vector.load %arg20[%c1_82, %c0_83, %c0_84] : memref<2x1x32xf32, #tpu.memory_space<vmem>>, vector<1x1x32xf32>
    %168 = vector.shape_cast %167 : vector<1x1x32xf32> to vector<1x32xf32>
    %169 = vector.broadcast %168 : vector<1x32xf32> to vector<16x32xf32>
    %170 = arith.addf %166, %169 : vector<16x32xf32>
    %171 = arith.negf %170 : vector<16x32xf32>
    %172 = math.exp %171 : vector<16x32xf32>
    %cst_85 = arith.constant 1.000000e+00 : f32
    %173 = vector.broadcast %cst_85 : f32 to vector<16x32xf32>
    %174 = arith.addf %173, %172 : vector<16x32xf32>
    %175 = arith.divf %173, %174 : vector<16x32xf32>
    %176 = arith.mulf %170, %175 : vector<16x32xf32>
    %177 = arith.addf %144, %176 : vector<16x32xf32>
    %178 = vector.shape_cast %177 : vector<16x32xf32> to vector<2x8x32xf32>
    %cst_86 = arith.constant dense<0.000000e+00> : vector<2x32xf32>
    %179 = vector.multi_reduction <add>, %178, %cst_86 [1] : vector<2x8x32xf32> to vector<2x32xf32>
    %cst_87 = arith.constant 5.000000e-01 : f32
    %180 = vector.broadcast %cst_87 : f32 to vector<2x32xf32>
    %181 = arith.mulf %180, %179 : vector<2x32xf32>
    %c0_88 = arith.constant 0 : index
    %c0_89 = arith.constant 0 : index
    %182 = vector.load %arg21[%c0_88, %c0_89] : memref<32x1xf32, #tpu.memory_space<vmem>>, vector<32x1xf32>
    %cst_90 = arith.constant dense<0.000000e+00> : vector<2x1xf32>
    %183 = tpu.matmul %181, %182, %cst_90 {dimension_numbers = #tpu.dot_dimension_numbers<[1], [0], [0], [1], [0, 0, 1, 1], [], []>} : vector<2x32xf32>, vector<32x1xf32>, vector<2x1xf32> -> vector<2x1xf32>
    %cst_91 = arith.constant 1.300000e+00 : f32
    %184 = vector.broadcast %cst_91 : f32 to vector<2x1xf32>
    %185 = arith.mulf %183, %184 : vector<2x1xf32>
    %cst_92 = arith.constant 0.699999988 : f32
    %186 = vector.broadcast %cst_92 : f32 to vector<2x1xf32>
    %187 = arith.addf %185, %186 : vector<2x1xf32>
    %c0_93 = arith.constant 0 : index
    %c0_94 = arith.constant 0 : index
    %188 = vector.load %arg22[%c0_93, %c0_94] : memref<2x1xf32, #tpu.memory_space<vmem>>, vector<2x1xf32>
    tpu.vector_store %arg22[%c0_93, %c0_94], %187 {strides = array<i32>} : memref<2x1xf32, #tpu.memory_space<vmem>>, vector<2x1xf32>,
    return
  }
}

</mosaic_0001>

<llo_original>
// kernel: geongnn_forward.3
$region0: #{geongnn_forward.3}
  #allocation0 [shape = 'u32[]', space=smem, size = 0x4, offset = 0x4, fixed_abs, tag = 'smem constant byte address 0x4 - core index']
  #allocation1 [shape = 'u32[72,128]{1,0:T(1,128)}', space=vmem, size = 0x9000, scoped, tag = 'internal scratch']
  %s0 = inlined_call_operand.vmem [shape: f32[16,16], index: 0, kind: input, shape index: {}]
  %s1 = inlined_call_operand.vmem [shape: f32[2,8,8], index: 1, kind: input, shape index: {}]
  %s2 = inlined_call_operand.vmem [shape: f32[16,32], index: 2, kind: input, shape index: {}]
  %s3 = inlined_call_operand.vmem [shape: f32[16,32], index: 3, kind: input, shape index: {}]
  %s4 = inlined_call_operand.vmem [shape: f32[1,32], index: 4, kind: input, shape index: {}]
  %s5 = inlined_call_operand.vmem [shape: f32[32,32], index: 5, kind: input, shape index: {}]
  %s6 = inlined_call_operand.vmem [shape: f32[1,32], index: 6, kind: input, shape index: {}]
  %s7 = inlined_call_operand.vmem [shape: f32[32,32], index: 7, kind: input, shape index: {}]
  %s8 = inlined_call_operand.vmem [shape: f32[32,32], index: 8, kind: input, shape index: {}]
  %s9 = inlined_call_operand.vmem [shape: f32[1,32], index: 9, kind: input, shape index: {}]
  %s10 = inlined_call_operand.vmem [shape: f32[32,32], index: 10, kind: input, shape index: {}]
  %s11 = inlined_call_operand.vmem [shape: f32[1,32], index: 11, kind: input, shape index: {}]
  %s12 = inlined_call_operand.vmem [shape: f32[32,32], index: 12, kind: input, shape index: {}]
  %s13 = inlined_call_operand.vmem [shape: f32[1,32], index: 13, kind: input, shape index: {}]
  %s14 = inlined_call_operand.vmem [shape: f32[16,32], index: 14, kind: input, shape index: {}]
  %s15 = inlined_call_operand.vmem [shape: f32[1,32], index: 15, kind: input, shape index: {}]
  %s16 = inlined_call_operand.vmem [shape: f32[1,16], index: 16, kind: input, shape index: {}]
  %s17 = inlined_call_operand.vmem [shape: f32[2,32,32], index: 17, kind: input, shape index: {}]
  %s18 = inlined_call_operand.vmem [shape: f32[2,1,32], index: 18, kind: input, shape index: {}]
  %s19 = inlined_call_operand.vmem [shape: f32[2,32,32], index: 19, kind: input, shape index: {}]
  %s20 = inlined_call_operand.vmem [shape: f32[2,1,32], index: 20, kind: input, shape index: {}]
  %s21 = inlined_call_operand.vmem [shape: f32[32,1], index: 21, kind: input, shape index: {}]
  %s22 = inlined_call_operand.vmem [shape: f32[2,1], index: 22, kind: output, shape index: {}]
  %s23 = sld [smem:[#allocation0]]
  $region98: #{geongnn_forward.3} parent=0
    _
  %s25 = ssub.s32 1, %s23
  %s26 = scalar_select 0, %s25, %s23
  // Predicated region
  $region2: #{geongnn_forward.3} parent=0 // pred_check
    _
  $region3: #{geongnn_forward.3} parent=0 // pred_check_branch
    %28 = sbr.rel (0) target = $region5
  $region4: #{geongnn_forward.3} parent=0 // pred_region
    _
  $region5: #{geongnn_forward.3} parent=0 // pred_fallthru
    _
  // Predicated region
  $region6: #{geongnn_forward.3} parent=0 // pred_check
    _
  $region7: #{geongnn_forward.3} parent=0 // pred_check_branch
    %30 = sbr.rel (0) target = $region9
  $region8: #{geongnn_forward.3} parent=0 // pred_region
    _
  $region9: #{geongnn_forward.3} parent=0 // pred_fallthru
    _
  // Predicated region
  $region10: #{geongnn_forward.3} parent=0 // pred_check
    _
  $region11: #{geongnn_forward.3} parent=0 // pred_check_branch
    %32 = sbr.rel (0) target = $region13
  $region12: #{geongnn_forward.3} parent=0 // pred_region
    _
  $region13: #{geongnn_forward.3} parent=0 // pred_fallthru
    _
  // Predicated region
  $region14: #{geongnn_forward.3} parent=0 // pred_check
    _
  $region15: #{geongnn_forward.3} parent=0 // pred_check_branch
    %34 = sbr.rel (0) target = $region17
  $region16: #{geongnn_forward.3} parent=0 // pred_region
    _
  $region17: #{geongnn_forward.3} parent=0 // pred_fallthru
    _
  // Predicated region
  $region18: #{geongnn_forward.3} parent=0 // pred_check
    _
  $region19: #{geongnn_forward.3} parent=0 // pred_check_branch
    %36 = sbr.rel (0) target = $region21
  $region20: #{geongnn_forward.3} parent=0 // pred_region
    _
  $region21: #{geongnn_forward.3} parent=0 // pred_fallthru
    _
  // Predicated region
  $region22: #{geongnn_forward.3} parent=0 // pred_check
    _
  $region23: #{geongnn_forward.3} parent=0 // pred_check_branch
    %38 = sbr.rel (0) target = $region25
  $region24: #{geongnn_forward.3} parent=0 // pred_region
    _
  $region25: #{geongnn_forward.3} parent=0 // pred_fallthru
    _
  // Predicated region
  $region26: #{geongnn_forward.3} parent=0 // pred_check
    _
  $region27: #{geongnn_forward.3} parent=0 // pred_check_branch
    %40 = sbr.rel (0) target = $region29
  $region28: #{geongnn_forward.3} parent=0 // pred_region
    _
  $region29: #{geongnn_forward.3} parent=0 // pred_fallthru
    _
  // Predicated region
  $region30: #{geongnn_forward.3} parent=0 // pred_check
    _
  $region31: #{geongnn_forward.3} parent=0 // pred_check_branch
    %42 = sbr.rel (0) target = $region33
  $region32: #{geongnn_forward.3} parent=0 // pred_region
    _
  $region33: #{geongnn_forward.3} parent=0 // pred_fallthru
    _
  // Predicated region
  $region34: #{geongnn_forward.3} parent=0 // pred_check
    _
  $region35: #{geongnn_forward.3} parent=0 // pred_check_branch
    %44 = sbr.rel (0) target = $region37
  $region36: #{geongnn_forward.3} parent=0 // pred_region
    _
  $region37: #{geongnn_forward.3} parent=0 // pred_fallthru
    _
  // Predicated region
  $region38: #{geongnn_forward.3} parent=0 // pred_check
    _
  $region39: #{geongnn_forward.3} parent=0 // pred_check_branch
    %46 = sbr.rel (0) target = $region41
  $region40: #{geongnn_forward.3} parent=0 // pred_region
    _
  $region41: #{geongnn_forward.3} parent=0 // pred_fallthru
    _
  // Predicated region
  $region42: #{geongnn_forward.3} parent=0 // pred_check
    _
  $region43: #{geongnn_forward.3} parent=0 // pred_check_branch
    %48 = sbr.rel (0) target = $region45
  $region44: #{geongnn_forward.3} parent=0 // pred_region
    _
  $region45: #{geongnn_forward.3} parent=0 // pred_fallthru
    _
  // Predicated region
  $region46: #{geongnn_forward.3} parent=0 // pred_check
    _
  $region47: #{geongnn_forward.3} parent=0 // pred_check_branch
    %50 = sbr.rel (0) target = $region49
  $region48: #{geongnn_forward.3} parent=0 // pred_region
    _
  $region49: #{geongnn_forward.3} parent=0 // pred_fallthru
    _
  // Predicated region
  $region50: #{geongnn_forward.3} parent=0 // pred_check
    _
  $region51: #{geongnn_forward.3} parent=0 // pred_check_branch
    %52 = sbr.rel (0) target = $region53
  $region52: #{geongnn_forward.3} parent=0 // pred_region
    _
  $region53: #{geongnn_forward.3} parent=0 // pred_fallthru
    _
  // Predicated region
  $region54: #{geongnn_forward.3} parent=0 // pred_check
    _
  $region55: #{geongnn_forward.3} parent=0 // pred_check_branch
    %54 = sbr.rel (0) target = $region57
  $region56: #{geongnn_forward.3} parent=0 // pred_region
    _
  $region57: #{geongnn_forward.3} parent=0 // pred_fallthru
    _
  // Predicated region
  $region58: #{geongnn_forward.3} parent=0 // pred_check
    _
  $region59: #{geongnn_forward.3} parent=0 // pred_check_branch
    %56 = sbr.rel (0) target = $region61
  $region60: #{geongnn_forward.3} parent=0 // pred_region
    _
  $region61: #{geongnn_forward.3} parent=0 // pred_fallthru
    _
  // Predicated region
  $region62: #{geongnn_forward.3} parent=0 // pred_check
    _
  $region63: #{geongnn_forward.3} parent=0 // pred_check_branch
    %58 = sbr.rel (0) target = $region65
  $region64: #{geongnn_forward.3} parent=0 // pred_region
    _
  $region65: #{geongnn_forward.3} parent=0 // pred_fallthru
    _
  // Predicated region
  $region66: #{geongnn_forward.3} parent=0 // pred_check
    _
  $region67: #{geongnn_forward.3} parent=0 // pred_check_branch
    %60 = sbr.rel (0) target = $region69
  $region68: #{geongnn_forward.3} parent=0 // pred_region
    _
  $region69: #{geongnn_forward.3} parent=0 // pred_fallthru
    _
  // Predicated region
  $region70: #{geongnn_forward.3} parent=0 // pred_check
    _
  $region71: #{geongnn_forward.3} parent=0 // pred_check_branch
    %62 = sbr.rel (0) target = $region73
  $region72: #{geongnn_forward.3} parent=0 // pred_region
    _
  $region73: #{geongnn_forward.3} parent=0 // pred_fallthru
    _
  // Predicated region
  $region74: #{geongnn_forward.3} parent=0 // pred_check
    _
  $region75: #{geongnn_forward.3} parent=0 // pred_check_branch
    %64 = sbr.rel (0) target = $region77
  $region76: #{geongnn_forward.3} parent=0 // pred_region
    _
  $region77: #{geongnn_forward.3} parent=0 // pred_fallthru
    _
  // Predicated region
  $region78: #{geongnn_forward.3} parent=0 // pred_check
    _
  $region79: #{geongnn_forward.3} parent=0 // pred_check_branch
    %66 = sbr.rel (0) target = $region81
  $region80: #{geongnn_forward.3} parent=0 // pred_region
    _
  $region81: #{geongnn_forward.3} parent=0 // pred_fallthru
    _
  // Predicated region
  $region82: #{geongnn_forward.3} parent=0 // pred_check
    _
  $region83: #{geongnn_forward.3} parent=0 // pred_check_branch
    %68 = sbr.rel (0) target = $region85
  $region84: #{geongnn_forward.3} parent=0 // pred_region
    _
  $region85: #{geongnn_forward.3} parent=0 // pred_fallthru
    _
  // Predicated region
  $region86: #{geongnn_forward.3} parent=0 // pred_check
    _
  $region87: #{geongnn_forward.3} parent=0 // pred_check_branch
    %70 = sbr.rel (0) target = $region89
  $region88: #{geongnn_forward.3} parent=0 // pred_region
    _
  $region89: #{geongnn_forward.3} parent=0 // pred_fallthru
    _
  %v71 = vld [vmem:[%s0] sm:$0xff]
  %v72 = vld [vmem:[%s0 + $0x8] sm:$0xff]
  %v73 = vld [vmem:[%s3] sm:$0xff]
  %v74 = vld [vmem:[%s3 + $0x8] sm:$0xff]
  %v75 = vld [vmem:[%s4] sm:$0x1]
  %v77 = vperm.slane %v75, 0
  %vm79 = vcmask 130048
  %v81 = vsel %vm79, %v71, 0
  %v84 = vsel %vm79, %v72, 0
  %86 = vmatpush.msra.mxu0 0.0
  %87 = vmatpush.msra.mxu0 0.0
  %88 = vmatpush.msra.mxu0 0.0
  %89 = vmatpush.msra.mxu0 0.0
  %90 = vmatpush.msra.mxu0 0.0
  %91 = vmatpush.msra.mxu0 0.0
  %92 = vmatpush.msra.mxu0 0.0
  %93 = vmatpush.msra.mxu0 0.0
  %94 = vmatpush.msra.mxu0 0.0
  %95 = vmatpush.msra.mxu0 0.0
  %96 = vmatpush.msra.mxu0 0.0
  %97 = vmatpush.msra.mxu0 0.0
  %98 = vmatpush.msra.mxu0 0.0
  %99 = vmatpush.msra.mxu0 0.0
  %100 = vmatpush.msra.mxu0 %v74
  %101 = vmatpush.msra.mxu0 %v73
  %102 = vmatmul.f32.gmra.mxu0 %v81
  %v103 = vpop.f32.mrf.mxu0
  %v104 = vadd.f32 %v77, %v103
  %105 = vmatmul.f32.gmra.mxu0 %v84
  %v106 = vpop.f32.mrf.mxu0
  %v107 = vadd.f32 %v77, %v106
  %108 = vdwg.mxu0
  %v109 = vxor.u32 %v104, 2147483648
  %v110 = vxor.u32 %v107, 2147483648
  %v111 = vmul.f32 %v109, 1.442695
  %v112 = vpow.pop %v111
  %v113 = vmul.f32 %v110, 1.442695
  %v114 = vpow.pop %v113
  %v115 = vadd.f32 %v112, 1.0
  %v116 = vadd.f32 %v114, 1.0
  %v117 = vrcp.pop %v115
  %v118 = vmul.f32 %v115, %v117
  %v119 = vsub.f32 1.0, %v118
  %v120 = vmul.f32 %v117, %v119
  %v121 = vadd.f32 %v117, %v120
  %vm122 = vweird.f32 %v115
  %vm123 = vweird.f32 %v117
  %vm124 = vmor %vm122, %vm123
  %v125 = vsel %vm124, %v117, %v121
  %v126 = vand.u32 2147483647, %v115
  %vm127 = vcmp.eq.f32.partialorder %v126, 8.507059e+37
  %v128 = vand.u32 %v115, 2147483648
  %v129 = vor.u32 1.1754944e-38, %v128
  %v130 = vsel %vm127, %v129, %v125
  %v131 = vmul.f32 1.0, %v130
  %v132 = vrcp.pop %v116
  %v133 = vmul.f32 %v116, %v132
  %v134 = vsub.f32 1.0, %v133
  %v135 = vmul.f32 %v132, %v134
  %v136 = vadd.f32 %v132, %v135
  %vm137 = vweird.f32 %v116
  %vm138 = vweird.f32 %v132
  %vm139 = vmor %vm137, %vm138
  %v140 = vsel %vm139, %v132, %v136
  %v141 = vand.u32 2147483647, %v116
  %vm142 = vcmp.eq.f32.partialorder %v141, 8.507059e+37
  %v143 = vand.u32 %v116, 2147483648
  %v144 = vor.u32 1.1754944e-38, %v143
  %v145 = vsel %vm142, %v144, %v140
  %v146 = vmul.f32 1.0, %v145
  %v147 = vmul.f32 %v104, %v131
  %v148 = vmul.f32 %v107, %v146
  %v149 = vld [vmem:[%s5] sm:$0xff]
  %v150 = vld [vmem:[%s5 + $0x8] sm:$0xff]
  %v151 = vld [vmem:[%s5 + $0x10] sm:$0xff]
  %v152 = vld [vmem:[%s5 + $0x18] sm:$0xff]
  %v153 = vld [vmem:[%s6] sm:$0x1]
  %v155 = vperm.slane %v153, 0
  %vm157 = vcmask 261120
  %v159 = vsel %vm157, %v147, 0
  %v162 = vsel %vm157, %v148, 0
  %164 = vmatpush.msra.mxu0 0.0
  %165 = vmatpush.msra.mxu0 0.0
  %166 = vmatpush.msra.mxu0 0.0
  %167 = vmatpush.msra.mxu0 0.0
  %168 = vmatpush.msra.mxu0 0.0
  %169 = vmatpush.msra.mxu0 0.0
  %170 = vmatpush.msra.mxu0 0.0
  %171 = vmatpush.msra.mxu0 0.0
  %172 = vmatpush.msra.mxu0 0.0
  %173 = vmatpush.msra.mxu0 0.0
  %174 = vmatpush.msra.mxu0 0.0
  %175 = vmatpush.msra.mxu0 0.0
  %176 = vmatpush.msra.mxu0 %v152
  %177 = vmatpush.msra.mxu0 %v151
  %178 = vmatpush.msra.mxu0 %v150
  %179 = vmatpush.msra.mxu0 %v149
  %180 = vmatmul.f32.gmra.mxu0 %v159
  %v181 = vpop.f32.mrf.mxu0
  %v182 = vadd.f32 %v155, %v181
  %183 = vmatmul.f32.gmra.mxu0 %v162
  %v184 = vpop.f32.mrf.mxu0
  %v185 = vadd.f32 %v155, %v184
  %186 = vdwg.mxu0
  %v187 = vxor.u32 %v182, 2147483648
  %v188 = vxor.u32 %v185, 2147483648
  %v189 = vmul.f32 %v187, 1.442695
  %v190 = vpow.pop %v189
  %v191 = vmul.f32 %v188, 1.442695
  %v192 = vpow.pop %v191
  %v193 = vadd.f32 %v190, 1.0
  %v194 = vadd.f32 %v192, 1.0
  %v195 = vrcp.pop %v193
  %v196 = vmul.f32 %v193, %v195
  %v197 = vsub.f32 1.0, %v196
  %v198 = vmul.f32 %v195, %v197
  %v199 = vadd.f32 %v195, %v198
  %vm200 = vweird.f32 %v193
  %vm201 = vweird.f32 %v195
  %vm202 = vmor %vm200, %vm201
  %v203 = vsel %vm202, %v195, %v199
  %v204 = vand.u32 2147483647, %v193
  %vm205 = vcmp.eq.f32.partialorder %v204, 8.507059e+37
  %v206 = vand.u32 %v193, 2147483648
  %v207 = vor.u32 1.1754944e-38, %v206
  %v208 = vsel %vm205, %v207, %v203
  %v209 = vmul.f32 1.0, %v208
  %v210 = vrcp.pop %v194
  %v211 = vmul.f32 %v194, %v210
  %v212 = vsub.f32 1.0, %v211
  %v213 = vmul.f32 %v210, %v212
  %v214 = vadd.f32 %v210, %v213
  %vm215 = vweird.f32 %v194
  %vm216 = vweird.f32 %v210
  %vm217 = vmor %vm215, %vm216
  %v218 = vsel %vm217, %v210, %v214
  %v219 = vand.u32 2147483647, %v194
  %vm220 = vcmp.eq.f32.partialorder %v219, 8.507059e+37
  %v221 = vand.u32 %v194, 2147483648
  %v222 = vor.u32 1.1754944e-38, %v221
  %v223 = vsel %vm220, %v222, %v218
  %v224 = vmul.f32 1.0, %v223
  %v225 = vmul.f32 %v182, %v209
  %v226 = vmul.f32 %v185, %v224
  %v227 = vld [vmem:[%s2] sm:$0xff]
  %v228 = vld [vmem:[%s2 + $0x8] sm:$0xff]
  %v229 = vld [vmem:[%s7] sm:$0xff]
  %v230 = vld [vmem:[%s7 + $0x8] sm:$0xff]
  %v231 = vld [vmem:[%s7 + $0x10] sm:$0xff]
  %v232 = vld [vmem:[%s7 + $0x18] sm:$0xff]
  %v233 = vld [vmem:[%s8] sm:$0xff]
  %v234 = vld [vmem:[%s8 + $0x8] sm:$0xff]
  %v235 = vld [vmem:[%s8 + $0x10] sm:$0xff]
  %v236 = vld [vmem:[%s8 + $0x18] sm:$0xff]
  %v238 = vsel %vm157, %v225, 0
  %v241 = vsel %vm157, %v226, 0
  %243 = vmatpush.msra.mxu0 0.0
  %244 = vmatpush.msra.mxu0 0.0
  %245 = vmatpush.msra.mxu0 0.0
  %246 = vmatpush.msra.mxu0 0.0
  %247 = vmatpush.msra.mxu0 0.0
  %248 = vmatpush.msra.mxu0 0.0
  %249 = vmatpush.msra.mxu0 0.0
  %250 = vmatpush.msra.mxu0 0.0
  %251 = vmatpush.msra.mxu0 0.0
  %252 = vmatpush.msra.mxu0 0.0
  %253 = vmatpush.msra.mxu0 0.0
  %254 = vmatpush.msra.mxu0 0.0
  %255 = vmatpush.msra.mxu0 %v236
  %256 = vmatpush.msra.mxu0 %v235
  %257 = vmatpush.msra.mxu0 %v234
  %258 = vmatpush.msra.mxu0 %v233
  %259 = vmatmul.f32.gmra.mxu0 %v238
  %v260 = vpop.f32.mrf.mxu0
  %v261 = vadd.f32 0.0, %v260
  %262 = vmatmul.f32.gmra.mxu0 %v241
  %v263 = vpop.f32.mrf.mxu0
  %v264 = vadd.f32 0.0, %v263
  %265 = vdwg.mxu0
  %v267 = vsel %vm157, %v227, 0
  %v270 = vsel %vm157, %v228, 0
  %272 = vmatpush.msra.mxu0 0.0
  %273 = vmatpush.msra.mxu0 0.0
  %274 = vmatpush.msra.mxu0 0.0
  %275 = vmatpush.msra.mxu0 0.0
  %276 = vmatpush.msra.mxu0 0.0
  %277 = vmatpush.msra.mxu0 0.0
  %278 = vmatpush.msra.mxu0 0.0
  %279 = vmatpush.msra.mxu0 0.0
  %280 = vmatpush.msra.mxu0 0.0
  %281 = vmatpush.msra.mxu0 0.0
  %282 = vmatpush.msra.mxu0 0.0
  %283 = vmatpush.msra.mxu0 0.0
  %284 = vmatpush.msra.mxu0 %v232
  %285 = vmatpush.msra.mxu0 %v231
  %286 = vmatpush.msra.mxu0 %v230
  %287 = vmatpush.msra.mxu0 %v229
  %288 = vmatmul.f32.gmra.mxu0 %v267
  %v289 = vpop.f32.mrf.mxu0
  %v290 = vadd.f32 %v261, %v289
  %291 = vmatmul.f32.gmra.mxu0 %v270
  %v292 = vpop.f32.mrf.mxu0
  %v293 = vadd.f32 %v264, %v292
  %294 = vdwg.mxu0
  %v295 = vld [vmem:[%s9] sm:$0x1]
  %v297 = vperm.slane %v295, 0
  %v299 = vadd.f32 %v290, %v297
  %v300 = vadd.f32 %v293, %v297
  %v301 = vxor.u32 %v299, 2147483648
  %v302 = vxor.u32 %v300, 2147483648
  %v303 = vmul.f32 %v301, 1.442695
  %v304 = vpow.pop %v303
  %v305 = vmul.f32 %v302, 1.442695
  %v306 = vpow.pop %v305
  %v307 = vadd.f32 %v304, 1.0
  %v308 = vadd.f32 %v306, 1.0
  %v309 = vrcp.pop %v307
  %v310 = vmul.f32 %v307, %v309
  %v311 = vsub.f32 1.0, %v310
  %v312 = vmul.f32 %v309, %v311
  %v313 = vadd.f32 %v309, %v312
  %vm314 = vweird.f32 %v307
  %vm315 = vweird.f32 %v309
  %vm316 = vmor %vm314, %vm315
  %v317 = vsel %vm316, %v309, %v313
  %v318 = vand.u32 2147483647, %v307
  %vm319 = vcmp.eq.f32.partialorder %v318, 8.507059e+37
  %v320 = vand.u32 %v307, 2147483648
  %v321 = vor.u32 1.1754944e-38, %v320
  %v322 = vsel %vm319, %v321, %v317
  %v323 = vmul.f32 1.0, %v322
  %v324 = vrcp.pop %v308
  %v325 = vmul.f32 %v308, %v324
  %v326 = vsub.f32 1.0, %v325
  %v327 = vmul.f32 %v324, %v326
  %v328 = vadd.f32 %v324, %v327
  %vm329 = vweird.f32 %v308
  %vm330 = vweird.f32 %v324
  %vm331 = vmor %vm329, %vm330
  %v332 = vsel %vm331, %v324, %v328
  %v333 = vand.u32 2147483647, %v308
  %vm334 = vcmp.eq.f32.partialorder %v333, 8.507059e+37
  %v335 = vand.u32 %v308, 2147483648
  %v336 = vor.u32 1.1754944e-38, %v335
  %v337 = vsel %vm334, %v336, %v332
  %v338 = vmul.f32 1.0, %v337
  %v339 = vmul.f32 %v299, %v323
  %v340 = vmul.f32 %v300, %v338
  %v341 = vld [vmem:[%s10] sm:$0xff]
  %v342 = vld [vmem:[%s10 + $0x8] sm:$0xff]
  %v343 = vld [vmem:[%s10 + $0x10] sm:$0xff]
  %v344 = vld [vmem:[%s10 + $0x18] sm:$0xff]
  %v345 = vld [vmem:[%s11] sm:$0x1]
  %v347 = vperm.slane %v345, 0
  %v350 = vsel %vm157, %v339, 0
  %v353 = vsel %vm157, %v340, 0
  %355 = vmatpush.msra.mxu0 0.0
  %356 = vmatpush.msra.mxu0 0.0
  %357 = vmatpush.msra.mxu0 0.0
  %358 = vmatpush.msra.mxu0 0.0
  %359 = vmatpush.msra.mxu0 0.0
  %360 = vmatpush.msra.mxu0 0.0
  %361 = vmatpush.msra.mxu0 0.0
  %362 = vmatpush.msra.mxu0 0.0
  %363 = vmatpush.msra.mxu0 0.0
  %364 = vmatpush.msra.mxu0 0.0
  %365 = vmatpush.msra.mxu0 0.0
  %366 = vmatpush.msra.mxu0 0.0
  %367 = vmatpush.msra.mxu0 %v344
  %368 = vmatpush.msra.mxu0 %v343
  %369 = vmatpush.msra.mxu0 %v342
  %370 = vmatpush.msra.mxu0 %v341
  %371 = vmatmul.f32.gmra.mxu0 %v350
  %v372 = vpop.f32.mrf.mxu0
  %v373 = vadd.f32 %v347, %v372
  %374 = vmatmul.f32.gmra.mxu0 %v353
  %v375 = vpop.f32.mrf.mxu0
  %v376 = vadd.f32 %v347, %v375
  %377 = vdwg.mxu0
  %v378 = vxor.u32 %v373, 2147483648
  %v379 = vxor.u32 %v376, 2147483648
  %v380 = vmul.f32 %v378, 1.442695
  %v381 = vpow.pop %v380
  %v382 = vmul.f32 %v379, 1.442695
  %v383 = vpow.pop %v382
  %v384 = vadd.f32 %v381, 1.0
  %v385 = vadd.f32 %v383, 1.0
  %v386 = vrcp.pop %v384
  %v387 = vmul.f32 %v384, %v386
  %v388 = vsub.f32 1.0, %v387
  %v389 = vmul.f32 %v386, %v388
  %v390 = vadd.f32 %v386, %v389
  %vm391 = vweird.f32 %v384
  %vm392 = vweird.f32 %v386
  %vm393 = vmor %vm391, %vm392
  %v394 = vsel %vm393, %v386, %v390
  %v395 = vand.u32 2147483647, %v384
  %vm396 = vcmp.eq.f32.partialorder %v395, 8.507059e+37
  %v397 = vand.u32 %v384, 2147483648
  %v398 = vor.u32 1.1754944e-38, %v397
  %v399 = vsel %vm396, %v398, %v394
  %v400 = vmul.f32 1.0, %v399
  %v401 = vrcp.pop %v385
  %v402 = vmul.f32 %v385, %v401
  %v403 = vsub.f32 1.0, %v402
  %v404 = vmul.f32 %v401, %v403
  %v405 = vadd.f32 %v401, %v404
  %vm406 = vweird.f32 %v385
  %vm407 = vweird.f32 %v401
  %vm408 = vmor %vm406, %vm407
  %v409 = vsel %vm408, %v401, %v405
  %v410 = vand.u32 2147483647, %v385
  %vm411 = vcmp.eq.f32.partialorder %v410, 8.507059e+37
  %v412 = vand.u32 %v385, 2147483648
  %v413 = vor.u32 1.1754944e-38, %v412
  %v414 = vsel %vm411, %v413, %v409
  %v415 = vmul.f32 1.0, %v414
  %v416 = vmul.f32 %v373, %v400
  %v417 = vmul.f32 %v376, %v415
  %v418 = vld [vmem:[%s12] sm:$0xff]
  %v419 = vld [vmem:[%s12 + $0x8] sm:$0xff]
  %v420 = vld [vmem:[%s12 + $0x10] sm:$0xff]
  %v421 = vld [vmem:[%s12 + $0x18] sm:$0xff]
  %v422 = vld [vmem:[%s13] sm:$0x1]
  %v424 = vperm.slane %v422, 0
  %v427 = vsel %vm157, %v416, 0
  %v430 = vsel %vm157, %v417, 0
  %432 = vmatpush.msra.mxu0 0.0
  %433 = vmatpush.msra.mxu0 0.0
  %434 = vmatpush.msra.mxu0 0.0
  %435 = vmatpush.msra.mxu0 0.0
  %436 = vmatpush.msra.mxu0 0.0
  %437 = vmatpush.msra.mxu0 0.0
  %438 = vmatpush.msra.mxu0 0.0
  %439 = vmatpush.msra.mxu0 0.0
  %440 = vmatpush.msra.mxu0 0.0
  %441 = vmatpush.msra.mxu0 0.0
  %442 = vmatpush.msra.mxu0 0.0
  %443 = vmatpush.msra.mxu0 0.0
  %444 = vmatpush.msra.mxu0 %v421
  %445 = vmatpush.msra.mxu0 %v420
  %446 = vmatpush.msra.mxu0 %v419
  %447 = vmatpush.msra.mxu0 %v418
  %448 = vmatmul.f32.gmra.mxu0 %v427
  %v449 = vpop.f32.mrf.mxu0
  %v450 = vadd.f32 %v424, %v449
  %451 = vmatmul.f32.gmra.mxu0 %v430
  %v452 = vpop.f32.mrf.mxu0
  %v453 = vadd.f32 %v424, %v452
  %454 = vdwg.mxu0
  %v455 = vxor.u32 %v450, 2147483648
  %v456 = vxor.u32 %v453, 2147483648
  %v457 = vmul.f32 %v455, 1.442695
  %v458 = vpow.pop %v457
  %v459 = vmul.f32 %v456, 1.442695
  %v460 = vpow.pop %v459
  %v461 = vadd.f32 %v458, 1.0
  %v462 = vadd.f32 %v460, 1.0
  %v463 = vrcp.pop %v461
  %v464 = vmul.f32 %v461, %v463
  %v465 = vsub.f32 1.0, %v464
  %v466 = vmul.f32 %v463, %v465
  %v467 = vadd.f32 %v463, %v466
  %vm468 = vweird.f32 %v461
  %vm469 = vweird.f32 %v463
  %vm470 = vmor %vm468, %vm469
  %v471 = vsel %vm470, %v463, %v467
  %v472 = vand.u32 2147483647, %v461
  %vm473 = vcmp.eq.f32.partialorder %v472, 8.507059e+37
  %v474 = vand.u32 %v461, 2147483648
  %v475 = vor.u32 1.1754944e-38, %v474
  %v476 = vsel %vm473, %v475, %v471
  %v477 = vmul.f32 1.0, %v476
  %v478 = vrcp.pop %v462
  %v479 = vmul.f32 %v462, %v478
  %v480 = vsub.f32 1.0, %v479
  %v481 = vmul.f32 %v478, %v480
  %v482 = vadd.f32 %v478, %v481
  %vm483 = vweird.f32 %v462
  %vm484 = vweird.f32 %v478
  %vm485 = vmor %vm483, %vm484
  %v486 = vsel %vm485, %v478, %v482
  %v487 = vand.u32 2147483647, %v462
  %vm488 = vcmp.eq.f32.partialorder %v487, 8.507059e+37
  %v489 = vand.u32 %v462, 2147483648
  %v490 = vor.u32 1.1754944e-38, %v489
  %v491 = vsel %vm488, %v490, %v486
  %v492 = vmul.f32 1.0, %v491
  %v493 = vmul.f32 %v450, %v477
  %v494 = vmul.f32 %v453, %v492
  %v495 = vadd.f32 %v493, %v225
  %v496 = vadd.f32 %v494, %v226
  %v497 = vld [vmem:[%s1] sm:$0xff]
  %v498 = vld [vmem:[%s1 + $0x8] sm:$0xff]
  %v499 = vld [vmem:[%s16] sm:$0x1]
  %v500 = vrcp.pop 5.0
  %v501 = vmul.f32 5.0, %v500
  %v502 = vsub.f32 1.0, %v501
  %v503 = vmul.f32 %v500, %v502
  %v504 = vadd.f32 %v500, %v503
  %vm505 = vweird.f32 %v500
  %v506 = vsel %vm505, %v500, %v504
  %v507 = vmul.f32 %v497, %v506
  %v508 = vmul.f32 %v498, %v506
  %v509 = vmax.f32 %v507, 0.0
  %v510 = vmax.f32 %v508, 0.0
  %v511 = vmin.f32 %v509, 1.0
  %v512 = vmin.f32 %v510, 1.0
  %v513 = vmul.f32 %v511, 3.1415927
  %v514 = vmul.f32 %v512, 3.1415927
  %v515 = vand.u32 2147483647, %v513
  %vm516 = vcmp.le.f32.partialorder %v515, 0.7853982
  %vm517 = vcmp.lt.s32.totalorder %v513, 0
  %v518 = vand.u32 %v513, 2139095040
  %v519 = vshrl.u32 %v518, 23
  %v520 = vsub.s32 %v519, 127
  %v521 = vand.u32 2147483647, %v513
  %v522 = vand.u32 %v521, 8388607
  %v523 = vor.u32 %v522, 8388608
  %v524 = vsub.s32 0, %v523
  %v525 = vadd.s32 %v520, 1
  %vm526 = vcmp.gt.s32.totalorder %v525, 0
  %v527 = vsel %vm526, %v525, 0
  %v528 = vshrl.u32 %v527, 5
  %v529 = vand.u32 %v527, 31
  %v530 = vsub.s32 32, %v529
  %v531 = vshrl.u32 683565275, %v530
  %v532 = vshll.u32 683565275, %v529
  %v533 = vshrl.u32 2475754826, %v530
  %v534 = vor.u32 %v532, %v533
  %v535 = vshll.u32 2475754826, %v529
  %v536 = vshrl.u32 2131351028, %v530
  %v537 = vor.u32 %v535, %v536
  %v538 = vshll.u32 2131351028, %v529
  %v539 = vshrl.u32 2102212464, %v530
  %v540 = vor.u32 %v538, %v539
  %v541 = vshll.u32 2102212464, %v529
  %v542 = vshrl.u32 920167782, %v530
  %v543 = vor.u32 %v541, %v542
  %v544 = vshll.u32 920167782, %v529
  %v545 = vshrl.u32 1326507024, %v530
  %v546 = vor.u32 %v544, %v545
  %vm547 = vcmp.lt.s32.totalorder %v528, 1
  %vm548 = vcmp.lt.s32.totalorder %v528, 2
  %vm549 = vcmp.lt.s32.totalorder %v528, 3
  %vm550 = vcmp.lt.s32.totalorder %v528, 4
  %v551 = vsel %vm547, %v531, %v534
  %v552 = vsel %vm550, %v540, 2102212464
  %v553 = vsel %vm549, %v537, %v552
  %v554 = vsel %vm548, %v551, %v553
  %v555 = vsel %vm547, %v534, %v537
  %v556 = vsel %vm550, %v543, 920167782
  %v557 = vsel %vm549, %v540, %v556
  %v558 = vsel %vm548, %v555, %v557
  %v559 = vsel %vm547, %v537, %v540
  %v560 = vsel %vm550, %v546, 1326507024
  %v561 = vsel %vm549, %v543, %v560
  %v562 = vsel %vm548, %v559, %v561
  %v563 = vshll.u32 %v523, 8
  %v564 = vand.u32 %v563, 65535
  %v565 = vshrl.u32 %v563, 16
  %v566 = vand.u32 %v562, 65535
  %v567 = vshrl.u32 %v562, 16
  %v568 = vmul.u32 %v564, %v566
  %v569 = vmul.u32 %v564, %v567
  %v570 = vmul.u32 %v565, %v566
  %v571 = vmul.u32 %v565, %v567
  %v572 = vshll.u32 %v569, 16
  %v573 = vshrl.u32 %v569, 16
  %v574 = vshll.u32 %v570, 16
  %v575 = vshrl.u32 %v570, 16
  %vm576 = vc.u32 %v568, %v572
  %v577 = vsel %vm576, 1, 0
  %v578 = vadd.s32 %v568, %v572
  %v579 = vadd.s32 %v571, %v577
  %vm580 = vc.u32 %v578, %v574
  %v581 = vsel %vm580, 1, 0
  %v582 = vadd.s32 %v578, %v574
  %v583 = vadd.s32 %v579, %v581
  %v584 = vadd.s32 %v583, %v573
  %v585 = vadd.s32 %v584, %v575
  %v586 = vand.u32 %v563, 65535
  %v587 = vshrl.u32 %v563, 16
  %v588 = vand.u32 %v558, 65535
  %v589 = vshrl.u32 %v558, 16
  %v590 = vmul.u32 %v586, %v588
  %v591 = vmul.u32 %v586, %v589
  %v592 = vmul.u32 %v587, %v588
  %v593 = vmul.u32 %v587, %v589
  %v594 = vshll.u32 %v591, 16
  %v595 = vshrl.u32 %v591, 16
  %v596 = vshll.u32 %v592, 16
  %v597 = vshrl.u32 %v592, 16
  %vm598 = vc.u32 %v590, %v594
  %v599 = vsel %vm598, 1, 0
  %v600 = vadd.s32 %v590, %v594
  %v601 = vadd.s32 %v593, %v599
  %vm602 = vc.u32 %v600, %v596
  %v603 = vsel %vm602, 1, 0
  %v604 = vadd.s32 %v600, %v596
  %v605 = vadd.s32 %v601, %v603
  %v606 = vadd.s32 %v605, %v595
  %v607 = vadd.s32 %v606, %v597
  %v608 = vmul.u32 %v563, %v554
  %v609 = vadd.s32 %v585, %v604
  %vm610 = vc.u32 %v585, %v604
  %v611 = vadd.s32 %v607, 1
  %v612 = vsel %vm610, %v611, %v607
  %v613 = vadd.s32 %v608, %v612
  %v614 = vadd.s32 %v613, 536870912
  %v615 = vshrl.u32 %v614, 30
  %v616 = vshll.u32 %v615, 30
  %v617 = vsub.s32 %v613, %v616
  %vm618 = vcmp.lt.s32.totalorder %v617, 0
  %v619 = vsub.s32 0, %v617
  %v620 = vsel %vm618, %v619, %v617
  %v621 = vclz %v620
  %v622 = vsub.s32 %v621, 2
  %vm623 = vcmp.gt.s32.totalorder 0, %v622
  %v624 = vsel %vm623, 0, %v622
  %v625 = vsub.s32 32, %v624
  %v626 = vshll.u32 %v617, %v624
  %v627 = vshrl.u32 %v609, %v625
  %v628 = vor.u32 %v626, %v627
  %v629 = vsub.s32 4294967266, %v624
  %v630 = vadd.s32 %v629, 127
  %v631 = vshll.u32 %v630, 23
  %v632 = vor.u32 4788187, %v631
  %v633 = vand.u32 2147483647, %v632
  %v635 = vcvt.s32.f32 %v628
  %v636 = vmul.f32 %v635, %v633
  %v637 = vxor.u32 %v636, 2147483648
  %v638 = vsel %vm517, %v637, %v636
  %v639 = vsub.s32 4, %v615
  %v640 = vsel %vm517, %v639, %v615
  %v641 = vsel %vm516, %v513, %v638
  %v642 = vsel %vm516, 0, %v640
  %v643 = vmul.f32 %v641, %v641
  %v644 = vmul.f32 %v643, -0.001358992
  %v645 = vadd.f32 %v644, 0.041655596
  %v646 = vmul.f32 %v643, %v645
  %v647 = vadd.f32 %v646, -0.4999988
  %v648 = vmul.f32 %v643, %v647
  %v649 = vadd.f32 1.0, %v648
  %v650 = vmul.f32 %v641, %v641
  %v651 = vmul.f32 %v650, -0.00019511016
  %v652 = vadd.f32 %v651, 0.008332121
  %v653 = vmul.f32 %v650, %v652
  %v654 = vadd.f32 %v653, -0.16666654
  %v655 = vmul.f32 %v650, %v654
  %v656 = vadd.f32 %v655, 1.0
  %v657 = vmul.f32 %v656, %v641
  %vm658 = vweird.f32 %v513
  %v659 = vand.u32 %v642, 3
  %vm660 = vcmp.lt.s32.totalorder %v659, 2
  %vm661 = vcmp.eq.s32.totalorder %v659, 0
  %v662 = vxor.u32 %v657, 2147483648
  %v663 = vsel %vm661, %v649, %v662
  %vm664 = vcmp.eq.s32.totalorder %v659, 2
  %v665 = vxor.u32 %v649, 2147483648
  %v666 = vsel %vm664, %v665, %v657
  %v667 = vsel %vm660, %v663, %v666
  %v668 = vsel %vm658, nan, %v667
  %v669 = vand.u32 2147483647, %v514
  %vm670 = vcmp.le.f32.partialorder %v669, 0.7853982
  %vm671 = vcmp.lt.s32.totalorder %v514, 0
  %v672 = vand.u32 %v514, 2139095040
  %v673 = vshrl.u32 %v672, 23
  %v674 = vsub.s32 %v673, 127
  %v675 = vand.u32 2147483647, %v514
  %v676 = vand.u32 %v675, 8388607
  %v677 = vor.u32 %v676, 8388608
  %v678 = vsub.s32 0, %v677
  %v679 = vadd.s32 %v674, 1
  %vm680 = vcmp.gt.s32.totalorder %v679, 0
  %v681 = vsel %vm680, %v679, 0
  %v682 = vshrl.u32 %v681, 5
  %v683 = vand.u32 %v681, 31
  %v684 = vsub.s32 32, %v683
  %v685 = vshrl.u32 683565275, %v684
  %v686 = vshll.u32 683565275, %v683
  %v687 = vshrl.u32 2475754826, %v684
  %v688 = vor.u32 %v686, %v687
  %v689 = vshll.u32 2475754826, %v683
  %v690 = vshrl.u32 2131351028, %v684
  %v691 = vor.u32 %v689, %v690
  %v692 = vshll.u32 2131351028, %v683
  %v693 = vshrl.u32 2102212464, %v684
  %v694 = vor.u32 %v692, %v693
  %v695 = vshll.u32 2102212464, %v683
  %v696 = vshrl.u32 920167782, %v684
  %v697 = vor.u32 %v695, %v696
  %v698 = vshll.u32 920167782, %v683
  %v699 = vshrl.u32 1326507024, %v684
  %v700 = vor.u32 %v698, %v699
  %vm701 = vcmp.lt.s32.totalorder %v682, 1
  %vm702 = vcmp.lt.s32.totalorder %v682, 2
  %vm703 = vcmp.lt.s32.totalorder %v682, 3
  %vm704 = vcmp.lt.s32.totalorder %v682, 4
  %v705 = vsel %vm701, %v685, %v688
  %v706 = vsel %vm704, %v694, 2102212464
  %v707 = vsel %vm703, %v691, %v706
  %v708 = vsel %vm702, %v705, %v707
  %v709 = vsel %vm701, %v688, %v691
  %v710 = vsel %vm704, %v697, 920167782
  %v711 = vsel %vm703, %v694, %v710
  %v712 = vsel %vm702, %v709, %v711
  %v713 = vsel %vm701, %v691, %v694
  %v714 = vsel %vm704, %v700, 1326507024
  %v715 = vsel %vm703, %v697, %v714
  %v716 = vsel %vm702, %v713, %v715
  %v717 = vshll.u32 %v677, 8
  %v718 = vand.u32 %v717, 65535
  %v719 = vshrl.u32 %v717, 16
  %v720 = vand.u32 %v716, 65535
  %v721 = vshrl.u32 %v716, 16
  %v722 = vmul.u32 %v718, %v720
  %v723 = vmul.u32 %v718, %v721
  %v724 = vmul.u32 %v719, %v720
  %v725 = vmul.u32 %v719, %v721
  %v726 = vshll.u32 %v723, 16
  %v727 = vshrl.u32 %v723, 16
  %v728 = vshll.u32 %v724, 16
  %v729 = vshrl.u32 %v724, 16
  %vm730 = vc.u32 %v722, %v726
  %v731 = vsel %vm730, 1, 0
  %v732 = vadd.s32 %v722, %v726
  %v733 = vadd.s32 %v725, %v731
  %vm734 = vc.u32 %v732, %v728
  %v735 = vsel %vm734, 1, 0
  %v736 = vadd.s32 %v732, %v728
  %v737 = vadd.s32 %v733, %v735
  %v738 = vadd.s32 %v737, %v727
  %v739 = vadd.s32 %v738, %v729
  %v740 = vand.u32 %v717, 65535
  %v741 = vshrl.u32 %v717, 16
  %v742 = vand.u32 %v712, 65535
  %v743 = vshrl.u32 %v712, 16
  %v744 = vmul.u32 %v740, %v742
  %v745 = vmul.u32 %v740, %v743
  %v746 = vmul.u32 %v741, %v742
  %v747 = vmul.u32 %v741, %v743
  %v748 = vshll.u32 %v745, 16
  %v749 = vshrl.u32 %v745, 16
  %v750 = vshll.u32 %v746, 16
  %v751 = vshrl.u32 %v746, 16
  %vm752 = vc.u32 %v744, %v748
  %v753 = vsel %vm752, 1, 0
  %v754 = vadd.s32 %v744, %v748
  %v755 = vadd.s32 %v747, %v753
  %vm756 = vc.u32 %v754, %v750
  %v757 = vsel %vm756, 1, 0
  %v758 = vadd.s32 %v754, %v750
  %v759 = vadd.s32 %v755, %v757
  %v760 = vadd.s32 %v759, %v749
  %v761 = vadd.s32 %v760, %v751
  %v762 = vmul.u32 %v717, %v708
  %v763 = vadd.s32 %v739, %v758
  %vm764 = vc.u32 %v739, %v758
  %v765 = vadd.s32 %v761, 1
  %v766 = vsel %vm764, %v765, %v761
  %v767 = vadd.s32 %v762, %v766
  %v768 = vadd.s32 %v767, 536870912
  %v769 = vshrl.u32 %v768, 30
  %v770 = vshll.u32 %v769, 30
  %v771 = vsub.s32 %v767, %v770
  %vm772 = vcmp.lt.s32.totalorder %v771, 0
  %v773 = vsub.s32 0, %v771
  %v774 = vsel %vm772, %v773, %v771
  %v775 = vclz %v774
  %v776 = vsub.s32 %v775, 2
  %vm777 = vcmp.gt.s32.totalorder 0, %v776
  %v778 = vsel %vm777, 0, %v776
  %v779 = vsub.s32 32, %v778
  %v780 = vshll.u32 %v771, %v778
  %v781 = vshrl.u32 %v763, %v779
  %v782 = vor.u32 %v780, %v781
  %v783 = vsub.s32 4294967266, %v778
  %v784 = vadd.s32 %v783, 127
  %v785 = vshll.u32 %v784, 23
  %v786 = vor.u32 4788187, %v785
  %v787 = vand.u32 2147483647, %v786
  %v789 = vcvt.s32.f32 %v782
  %v790 = vmul.f32 %v789, %v787
  %v791 = vxor.u32 %v790, 2147483648
  %v792 = vsel %vm671, %v791, %v790
  %v793 = vsub.s32 4, %v769
  %v794 = vsel %vm671, %v793, %v769
  %v795 = vsel %vm670, %v514, %v792
  %v796 = vsel %vm670, 0, %v794
  %v797 = vmul.f32 %v795, %v795
  %v798 = vmul.f32 %v797, -0.001358992
  %v799 = vadd.f32 %v798, 0.041655596
  %v800 = vmul.f32 %v797, %v799
  %v801 = vadd.f32 %v800, -0.4999988
  %v802 = vmul.f32 %v797, %v801
  %v803 = vadd.f32 1.0, %v802
  %v804 = vmul.f32 %v795, %v795
  %v805 = vmul.f32 %v804, -0.00019511016
  %v806 = vadd.f32 %v805, 0.008332121
  %v807 = vmul.f32 %v804, %v806
  %v808 = vadd.f32 %v807, -0.16666654
  %v809 = vmul.f32 %v804, %v808
  %v810 = vadd.f32 %v809, 1.0
  %v811 = vmul.f32 %v810, %v795
  %vm812 = vweird.f32 %v514
  %v813 = vand.u32 %v796, 3
  %vm814 = vcmp.lt.s32.totalorder %v813, 2
  %vm815 = vcmp.eq.s32.totalorder %v813, 0
  %v816 = vxor.u32 %v811, 2147483648
  %v817 = vsel %vm815, %v803, %v816
  %vm818 = vcmp.eq.s32.totalorder %v813, 2
  %v819 = vxor.u32 %v803, 2147483648
  %v820 = vsel %vm818, %v819, %v811
  %v821 = vsel %vm814, %v817, %v820
  %v822 = vsel %vm812, nan, %v821
  %v823 = vadd.f32 %v668, 1.0
  %v824 = vadd.f32 %v822, 1.0
  %v825 = vmul.f32 %v823, 0.5
  %v826 = vmul.f32 %v824, 0.5
  %v827 = vperm.slane %v497, 0
  %v828 = vlaneseq
  %v829 = vshrl.u32 %v828, 7
  %831 = vset.pattern.permute.xlu0 %v829
  %832 = vperm.xlu0 %831, %v827
  %v833 = vpop.permute.xlu0 %832
  %v834 = vperm.slane %v497, 1
  %v835 = vlaneseq
  %v836 = vshrl.u32 %v835, 7
  %838 = vset.pattern.permute.xlu0 %v836
  %839 = vperm.xlu0 %838, %v834
  %v840 = vpop.permute.xlu0 %839
  %v841 = vperm.slane %v497, 2
  %v842 = vlaneseq
  %v843 = vshrl.u32 %v842, 7
  %845 = vset.pattern.permute.xlu0 %v843
  %846 = vperm.xlu0 %845, %v841
  %v847 = vpop.permute.xlu0 %846
  %v848 = vperm.slane %v497, 3
  %v849 = vlaneseq
  %v850 = vshrl.u32 %v849, 7
  %852 = vset.pattern.permute.xlu0 %v850
  %853 = vperm.xlu0 %852, %v848
  %v854 = vpop.permute.xlu0 %853
  %v855 = vperm.slane %v497, 4
  %v856 = vlaneseq
  %v857 = vshrl.u32 %v856, 7
  %859 = vset.pattern.permute.xlu0 %v857
  %860 = vperm.xlu0 %859, %v855
  %v861 = vpop.permute.xlu0 %860
  %v862 = vperm.slane %v497, 5
  %v863 = vlaneseq
  %v864 = vshrl.u32 %v863, 7
  %866 = vset.pattern.permute.xlu0 %v864
  %867 = vperm.xlu0 %866, %v862
  %v868 = vpop.permute.xlu0 %867
  %v869 = vperm.slane %v497, 6
  %v870 = vlaneseq
  %v871 = vshrl.u32 %v870, 7
  %873 = vset.pattern.permute.xlu0 %v871
  %874 = vperm.xlu0 %873, %v869
  %v875 = vpop.permute.xlu0 %874
  %v876 = vperm.slane %v497, 7
  %v877 = vlaneseq
  %v878 = vshrl.u32 %v877, 7
  %880 = vset.pattern.permute.xlu0 %v878
  %881 = vperm.xlu0 %880, %v876
  %v882 = vpop.permute.xlu0 %881
  %v883 = vperm.slane %v498, 0
  %v884 = vlaneseq
  %v885 = vshrl.u32 %v884, 7
  %887 = vset.pattern.permute.xlu0 %v885
  %888 = vperm.xlu0 %887, %v883
  %v889 = vpop.permute.xlu0 %888
  %v890 = vperm.slane %v498, 1
  %v891 = vlaneseq
  %v892 = vshrl.u32 %v891, 7
  %894 = vset.pattern.permute.xlu0 %v892
  %895 = vperm.xlu0 %894, %v890
  %v896 = vpop.permute.xlu0 %895
  %v897 = vperm.slane %v498, 2
  %v898 = vlaneseq
  %v899 = vshrl.u32 %v898, 7
  %901 = vset.pattern.permute.xlu0 %v899
  %902 = vperm.xlu0 %901, %v897
  %v903 = vpop.permute.xlu0 %902
  %v904 = vperm.slane %v498, 3
  %v905 = vlaneseq
  %v906 = vshrl.u32 %v905, 7
  %908 = vset.pattern.permute.xlu0 %v906
  %909 = vperm.xlu0 %908, %v904
  %v910 = vpop.permute.xlu0 %909
  %v911 = vperm.slane %v498, 4
  %v912 = vlaneseq
  %v913 = vshrl.u32 %v912, 7
  %915 = vset.pattern.permute.xlu0 %v913
  %916 = vperm.xlu0 %915, %v911
  %v917 = vpop.permute.xlu0 %916
  %v918 = vperm.slane %v498, 5
  %v919 = vlaneseq
  %v920 = vshrl.u32 %v919, 7
  %922 = vset.pattern.permute.xlu0 %v920
  %923 = vperm.xlu0 %922, %v918
  %v924 = vpop.permute.xlu0 %923
  %v925 = vperm.slane %v498, 6
  %v926 = vlaneseq
  %v927 = vshrl.u32 %v926, 7
  %929 = vset.pattern.permute.xlu0 %v927
  %930 = vperm.xlu0 %929, %v925
  %v931 = vpop.permute.xlu0 %930
  %v932 = vperm.slane %v498, 7
  %v933 = vlaneseq
  %v934 = vshrl.u32 %v933, 7
  %936 = vset.pattern.permute.xlu0 %v934
  %937 = vperm.xlu0 %936, %v932
  %v938 = vpop.permute.xlu0 %937
  %v940 = vperm.slane %v499, 0
  %v942 = vsub.f32 %v833, %v940
  %v943 = vsub.f32 %v840, %v940
  %v944 = vsub.f32 %v847, %v940
  %v945 = vsub.f32 %v854, %v940
  %v946 = vsub.f32 %v861, %v940
  %v947 = vsub.f32 %v868, %v940
  %v948 = vsub.f32 %v875, %v940
  %v949 = vsub.f32 %v882, %v940
  %v950 = vsub.f32 %v889, %v940
  %v951 = vsub.f32 %v896, %v940
  %v952 = vsub.f32 %v903, %v940
  %v953 = vsub.f32 %v910, %v940
  %v954 = vsub.f32 %v917, %v940
  %v955 = vsub.f32 %v924, %v940
  %v956 = vsub.f32 %v931, %v940
  %v957 = vsub.f32 %v938, %v940
  %v958 = vmul.f32 %v942, %v942
  %v959 = vmul.f32 %v943, %v943
  %v960 = vmul.f32 %v944, %v944
  %v961 = vmul.f32 %v945, %v945
  %v962 = vmul.f32 %v946, %v946
  %v963 = vmul.f32 %v947, %v947
  %v964 = vmul.f32 %v948, %v948
  %v965 = vmul.f32 %v949, %v949
  %v966 = vmul.f32 %v950, %v950
  %v967 = vmul.f32 %v951, %v951
  %v968 = vmul.f32 %v952, %v952
  %v969 = vmul.f32 %v953, %v953
  %v970 = vmul.f32 %v954, %v954
  %v971 = vmul.f32 %v955, %v955
  %v972 = vmul.f32 %v956, %v956
  %v973 = vmul.f32 %v957, %v957
  %v974 = vmul.f32 %v958, -0.4
  %v975 = vmul.f32 %v959, -0.4
  %v976 = vmul.f32 %v960, -0.4
  %v977 = vmul.f32 %v961, -0.4
  %v978 = vmul.f32 %v962, -0.4
  %v979 = vmul.f32 %v963, -0.4
  %v980 = vmul.f32 %v964, -0.4
  %v981 = vmul.f32 %v965, -0.4
  %v982 = vmul.f32 %v966, -0.4
  %v983 = vmul.f32 %v967, -0.4
  %v984 = vmul.f32 %v968, -0.4
  %v985 = vmul.f32 %v969, -0.4
  %v986 = vmul.f32 %v970, -0.4
  %v987 = vmul.f32 %v971, -0.4
  %v988 = vmul.f32 %v972, -0.4
  %v989 = vmul.f32 %v973, -0.4
  %v990 = vmul.f32 %v974, 1.442695
  %v991 = vpow.pop %v990
  %v992 = vmul.f32 %v975, 1.442695
  %v993 = vpow.pop %v992
  %v994 = vmul.f32 %v976, 1.442695
  %v995 = vpow.pop %v994
  %v996 = vmul.f32 %v977, 1.442695
  %v997 = vpow.pop %v996
  %v998 = vmul.f32 %v978, 1.442695
  %v999 = vpow.pop %v998
  %v1000 = vmul.f32 %v979, 1.442695
  %v1001 = vpow.pop %v1000
  %v1002 = vmul.f32 %v980, 1.442695
  %v1003 = vpow.pop %v1002
  %v1004 = vmul.f32 %v981, 1.442695
  %v1005 = vpow.pop %v1004
  %v1006 = vmul.f32 %v982, 1.442695
  %v1007 = vpow.pop %v1006
  %v1008 = vmul.f32 %v983, 1.442695
  %v1009 = vpow.pop %v1008
  %v1010 = vmul.f32 %v984, 1.442695
  %v1011 = vpow.pop %v1010
  %v1012 = vmul.f32 %v985, 1.442695
  %v1013 = vpow.pop %v1012
  %v1014 = vmul.f32 %v986, 1.442695
  %v1015 = vpow.pop %v1014
  %v1016 = vmul.f32 %v987, 1.442695
  %v1017 = vpow.pop %v1016
  %v1018 = vmul.f32 %v988, 1.442695
  %v1019 = vpow.pop %v1018
  %v1020 = vmul.f32 %v989, 1.442695
  %v1021 = vpow.pop %v1020
  %v1022 = vperm.slane %v825, 0
  %v1023 = vlaneseq
  %v1024 = vshrl.u32 %v1023, 7
  %1026 = vset.pattern.permute.xlu0 %v1024
  %1027 = vperm.xlu0 %1026, %v1022
  %v1028 = vpop.permute.xlu0 %1027
  %v1029 = vperm.slane %v825, 1
  %v1030 = vlaneseq
  %v1031 = vshrl.u32 %v1030, 7
  %1033 = vset.pattern.permute.xlu0 %v1031
  %1034 = vperm.xlu0 %1033, %v1029
  %v1035 = vpop.permute.xlu0 %1034
  %v1036 = vperm.slane %v825, 2
  %v1037 = vlaneseq
  %v1038 = vshrl.u32 %v1037, 7
  %1040 = vset.pattern.permute.xlu0 %v1038
  %1041 = vperm.xlu0 %1040, %v1036
  %v1042 = vpop.permute.xlu0 %1041
  %v1043 = vperm.slane %v825, 3
  %v1044 = vlaneseq
  %v1045 = vshrl.u32 %v1044, 7
  %1047 = vset.pattern.permute.xlu0 %v1045
  %1048 = vperm.xlu0 %1047, %v1043
  %v1049 = vpop.permute.xlu0 %1048
  %v1050 = vperm.slane %v825, 4
  %v1051 = vlaneseq
  %v1052 = vshrl.u32 %v1051, 7
  %1054 = vset.pattern.permute.xlu0 %v1052
  %1055 = vperm.xlu0 %1054, %v1050
  %v1056 = vpop.permute.xlu0 %1055
  %v1057 = vperm.slane %v825, 5
  %v1058 = vlaneseq
  %v1059 = vshrl.u32 %v1058, 7
  %1061 = vset.pattern.permute.xlu0 %v1059
  %1062 = vperm.xlu0 %1061, %v1057
  %v1063 = vpop.permute.xlu0 %1062
  %v1064 = vperm.slane %v825, 6
  %v1065 = vlaneseq
  %v1066 = vshrl.u32 %v1065, 7
  %1068 = vset.pattern.permute.xlu0 %v1066
  %1069 = vperm.xlu0 %1068, %v1064
  %v1070 = vpop.permute.xlu0 %1069
  %v1071 = vperm.slane %v825, 7
  %v1072 = vlaneseq
  %v1073 = vshrl.u32 %v1072, 7
  %1075 = vset.pattern.permute.xlu0 %v1073
  %1076 = vperm.xlu0 %1075, %v1071
  %v1077 = vpop.permute.xlu0 %1076
  %v1078 = vperm.slane %v826, 0
  %v1079 = vlaneseq
  %v1080 = vshrl.u32 %v1079, 7
  %1082 = vset.pattern.permute.xlu0 %v1080
  %1083 = vperm.xlu0 %1082, %v1078
  %v1084 = vpop.permute.xlu0 %1083
  %v1085 = vperm.slane %v826, 1
  %v1086 = vlaneseq
  %v1087 = vshrl.u32 %v1086, 7
  %1089 = vset.pattern.permute.xlu0 %v1087
  %1090 = vperm.xlu0 %1089, %v1085
  %v1091 = vpop.permute.xlu0 %1090
  %v1092 = vperm.slane %v826, 2
  %v1093 = vlaneseq
  %v1094 = vshrl.u32 %v1093, 7
  %1096 = vset.pattern.permute.xlu0 %v1094
  %1097 = vperm.xlu0 %1096, %v1092
  %v1098 = vpop.permute.xlu0 %1097
  %v1099 = vperm.slane %v826, 3
  %v1100 = vlaneseq
  %v1101 = vshrl.u32 %v1100, 7
  %1103 = vset.pattern.permute.xlu0 %v1101
  %1104 = vperm.xlu0 %1103, %v1099
  %v1105 = vpop.permute.xlu0 %1104
  %v1106 = vperm.slane %v826, 4
  %v1107 = vlaneseq
  %v1108 = vshrl.u32 %v1107, 7
  %1110 = vset.pattern.permute.xlu0 %v1108
  %1111 = vperm.xlu0 %1110, %v1106
  %v1112 = vpop.permute.xlu0 %1111
  %v1113 = vperm.slane %v826, 5
  %v1114 = vlaneseq
  %v1115 = vshrl.u32 %v1114, 7
  %1117 = vset.pattern.permute.xlu0 %v1115
  %1118 = vperm.xlu0 %1117, %v1113
  %v1119 = vpop.permute.xlu0 %1118
  %v1120 = vperm.slane %v826, 6
  %v1121 = vlaneseq
  %v1122 = vshrl.u32 %v1121, 7
  %1124 = vset.pattern.permute.xlu0 %v1122
  %1125 = vperm.xlu0 %1124, %v1120
  %v1126 = vpop.permute.xlu0 %1125
  %v1127 = vperm.slane %v826, 7
  %v1128 = vlaneseq
  %v1129 = vshrl.u32 %v1128, 7
  %1131 = vset.pattern.permute.xlu0 %v1129
  %1132 = vperm.xlu0 %1131, %v1127
  %v1133 = vpop.permute.xlu0 %1132
  %v1134 = vmul.f32 %v991, %v1028
  %v1135 = vmul.f32 %v993, %v1035
  %v1136 = vmul.f32 %v995, %v1042
  %v1137 = vmul.f32 %v997, %v1049
  %v1138 = vmul.f32 %v999, %v1056
  %v1139 = vmul.f32 %v1001, %v1063
  %v1140 = vmul.f32 %v1003, %v1070
  %v1141 = vmul.f32 %v1005, %v1077
  %v1142 = vmul.f32 %v1007, %v1084
  %v1143 = vmul.f32 %v1009, %v1091
  %v1144 = vmul.f32 %v1011, %v1098
  %v1145 = vmul.f32 %v1013, %v1105
  %v1146 = vmul.f32 %v1015, %v1112
  %v1147 = vmul.f32 %v1017, %v1119
  %v1148 = vmul.f32 %v1019, %v1126
  %v1149 = vmul.f32 %v1021, %v1133
  %v1150 = vld [vmem:[%s14] sm:$0xff]
  %v1151 = vld [vmem:[%s14 + $0x8] sm:$0xff]
  %v1152 = vld [vmem:[%s15] sm:$0x1]
  %v1154 = vperm.slane %v1152, 0
  %v1157 = vsel %vm79, %v1134, 0
  %v1160 = vsel %vm79, %v1135, 0
  %v1163 = vsel %vm79, %v1136, 0
  %v1166 = vsel %vm79, %v1137, 0
  %v1169 = vsel %vm79, %v1138, 0
  %v1172 = vsel %vm79, %v1139, 0
  %v1175 = vsel %vm79, %v1140, 0
  %v1178 = vsel %vm79, %v1141, 0
  %v1181 = vsel %vm79, %v1142, 0
  %v1184 = vsel %vm79, %v1143, 0
  %v1187 = vsel %vm79, %v1144, 0
  %v1190 = vsel %vm79, %v1145, 0
  %v1193 = vsel %vm79, %v1146, 0
  %v1196 = vsel %vm79, %v1147, 0
  %v1199 = vsel %vm79, %v1148, 0
  %v1202 = vsel %vm79, %v1149, 0
  %1204 = vmatpush.msra.mxu0 0.0
  %1205 = vmatpush.msra.mxu0 0.0
  %1206 = vmatpush.msra.mxu0 0.0
  %1207 = vmatpush.msra.mxu0 0.0
  %1208 = vmatpush.msra.mxu0 0.0
  %1209 = vmatpush.msra.mxu0 0.0
  %1210 = vmatpush.msra.mxu0 0.0
  %1211 = vmatpush.msra.mxu0 0.0
  %1212 = vmatpush.msra.mxu0 0.0
  %1213 = vmatpush.msra.mxu0 0.0
  %1214 = vmatpush.msra.mxu0 0.0
  %1215 = vmatpush.msra.mxu0 0.0
  %1216 = vmatpush.msra.mxu0 0.0
  %1217 = vmatpush.msra.mxu0 0.0
  %1218 = vmatpush.msra.mxu0 %v1151
  %1219 = vmatpush.msra.mxu0 %v1150
  %1220 = vmatmul.f32.gmra.mxu0 %v1157
  %v1221 = vpop.f32.mrf.mxu0
  %v1222 = vadd.f32 %v1154, %v1221
  %1223 = vmatmul.f32.gmra.mxu0 %v1160
  %v1224 = vpop.f32.mrf.mxu0
  %v1225 = vadd.f32 %v1154, %v1224
  %1226 = vmatmul.f32.gmra.mxu0 %v1163
  %v1227 = vpop.f32.mrf.mxu0
  %v1228 = vadd.f32 %v1154, %v1227
  %1229 = vmatmul.f32.gmra.mxu0 %v1166
  %v1230 = vpop.f32.mrf.mxu0
  %v1231 = vadd.f32 %v1154, %v1230
  %1232 = vmatmul.f32.gmra.mxu0 %v1169
  %v1233 = vpop.f32.mrf.mxu0
  %v1234 = vadd.f32 %v1154, %v1233
  %1235 = vmatmul.f32.gmra.mxu0 %v1172
  %v1236 = vpop.f32.mrf.mxu0
  %v1237 = vadd.f32 %v1154, %v1236
  %1238 = vmatmul.f32.gmra.mxu0 %v1175
  %v1239 = vpop.f32.mrf.mxu0
  %v1240 = vadd.f32 %v1154, %v1239
  %1241 = vmatmul.f32.gmra.mxu0 %v1178
  %v1242 = vpop.f32.mrf.mxu0
  %v1243 = vadd.f32 %v1154, %v1242
  %1244 = vmatmul.f32.gmra.mxu0 %v1181
  %v1245 = vpop.f32.mrf.mxu0
  %v1246 = vadd.f32 %v1154, %v1245
  %1247 = vmatmul.f32.gmra.mxu0 %v1184
  %v1248 = vpop.f32.mrf.mxu0
  %v1249 = vadd.f32 %v1154, %v1248
  %1250 = vmatmul.f32.gmra.mxu0 %v1187
  %v1251 = vpop.f32.mrf.mxu0
  %v1252 = vadd.f32 %v1154, %v1251
  %1253 = vmatmul.f32.gmra.mxu0 %v1190
  %v1254 = vpop.f32.mrf.mxu0
  %v1255 = vadd.f32 %v1154, %v1254
  %1256 = vmatmul.f32.gmra.mxu0 %v1193
  %v1257 = vpop.f32.mrf.mxu0
  %v1258 = vadd.f32 %v1154, %v1257
  %1259 = vmatmul.f32.gmra.mxu0 %v1196
  %v1260 = vpop.f32.mrf.mxu0
  %v1261 = vadd.f32 %v1154, %v1260
  %1262 = vmatmul.f32.gmra.mxu0 %v1199
  %v1263 = vpop.f32.mrf.mxu0
  %v1264 = vadd.f32 %v1154, %v1263
  %1265 = vmatmul.f32.gmra.mxu0 %v1202
  %v1266 = vpop.f32.mrf.mxu0
  %v1267 = vadd.f32 %v1154, %v1266
  %1268 = vdwg.mxu0
  %v1269 = vxor.u32 %v1222, 2147483648
  %v1270 = vxor.u32 %v1225, 2147483648
  %v1271 = vxor.u32 %v1228, 2147483648
  %v1272 = vxor.u32 %v1231, 2147483648
  %v1273 = vxor.u32 %v1234, 2147483648
  %v1274 = vxor.u32 %v1237, 2147483648
  %v1275 = vxor.u32 %v1240, 2147483648
  %v1276 = vxor.u32 %v1243, 2147483648
  %v1277 = vxor.u32 %v1246, 2147483648
  %v1278 = vxor.u32 %v1249, 2147483648
  %v1279 = vxor.u32 %v1252, 2147483648
  %v1280 = vxor.u32 %v1255, 2147483648
  %v1281 = vxor.u32 %v1258, 2147483648
  %v1282 = vxor.u32 %v1261, 2147483648
  %v1283 = vxor.u32 %v1264, 2147483648
  %v1284 = vxor.u32 %v1267, 2147483648
  %v1285 = vmul.f32 %v1269, 1.442695
  %v1286 = vpow.pop %v1285
  %v1287 = vmul.f32 %v1270, 1.442695
  %v1288 = vpow.pop %v1287
  %v1289 = vmul.f32 %v1271, 1.442695
  %v1290 = vpow.pop %v1289
  %v1291 = vmul.f32 %v1272, 1.442695
  %v1292 = vpow.pop %v1291
  %v1293 = vmul.f32 %v1273, 1.442695
  %v1294 = vpow.pop %v1293
  %v1295 = vmul.f32 %v1274, 1.442695
  %v1296 = vpow.pop %v1295
  %v1297 = vmul.f32 %v1275, 1.442695
  %v1298 = vpow.pop %v1297
  %v1299 = vmul.f32 %v1276, 1.442695
  %v1300 = vpow.pop %v1299
  %v1301 = vmul.f32 %v1277, 1.442695
  %v1302 = vpow.pop %v1301
  %v1303 = vmul.f32 %v1278, 1.442695
  %v1304 = vpow.pop %v1303
  %v1305 = vmul.f32 %v1279, 1.442695
  %v1306 = vpow.pop %v1305
  %v1307 = vmul.f32 %v1280, 1.442695
  %v1308 = vpow.pop %v1307
  %v1309 = vmul.f32 %v1281, 1.442695
  %v1310 = vpow.pop %v1309
  %v1311 = vmul.f32 %v1282, 1.442695
  %v1312 = vpow.pop %v1311
  %v1313 = vmul.f32 %v1283, 1.442695
  %v1314 = vpow.pop %v1313
  %v1315 = vmul.f32 %v1284, 1.442695
  %v1316 = vpow.pop %v1315
  %v1317 = vadd.f32 %v1286, 1.0
  %v1318 = vadd.f32 %v1288, 1.0
  %v1319 = vadd.f32 %v1290, 1.0
  %v1320 = vadd.f32 %v1292, 1.0
  %v1321 = vadd.f32 %v1294, 1.0
  %v1322 = vadd.f32 %v1296, 1.0
  %v1323 = vadd.f32 %v1298, 1.0
  %v1324 = vadd.f32 %v1300, 1.0
  %v1325 = vadd.f32 %v1302, 1.0
  %v1326 = vadd.f32 %v1304, 1.0
  %v1327 = vadd.f32 %v1306, 1.0
  %v1328 = vadd.f32 %v1308, 1.0
  %v1329 = vadd.f32 %v1310, 1.0
  %v1330 = vadd.f32 %v1312, 1.0
  %v1331 = vadd.f32 %v1314, 1.0
  %v1332 = vadd.f32 %v1316, 1.0
  %v1333 = vrcp.pop %v1317
  %v1334 = vmul.f32 %v1317, %v1333
  %v1335 = vsub.f32 1.0, %v1334
  %v1336 = vmul.f32 %v1333, %v1335
  %v1337 = vadd.f32 %v1333, %v1336
  %vm1338 = vweird.f32 %v1317
  %vm1339 = vweird.f32 %v1333
  %vm1340 = vmor %vm1338, %vm1339
  %v1341 = vsel %vm1340, %v1333, %v1337
  %v1342 = vand.u32 2147483647, %v1317
  %vm1343 = vcmp.eq.f32.partialorder %v1342, 8.507059e+37
  %v1344 = vand.u32 %v1317, 2147483648
  %v1345 = vor.u32 1.1754944e-38, %v1344
  %v1346 = vsel %vm1343, %v1345, %v1341
  %v1347 = vmul.f32 1.0, %v1346
  %v1348 = vrcp.pop %v1318
  %v1349 = vmul.f32 %v1318, %v1348
  %v1350 = vsub.f32 1.0, %v1349
  %v1351 = vmul.f32 %v1348, %v1350
  %v1352 = vadd.f32 %v1348, %v1351
  %vm1353 = vweird.f32 %v1318
  %vm1354 = vweird.f32 %v1348
  %vm1355 = vmor %vm1353, %vm1354
  %v1356 = vsel %vm1355, %v1348, %v1352
  %v1357 = vand.u32 2147483647, %v1318
  %vm1358 = vcmp.eq.f32.partialorder %v1357, 8.507059e+37
  %v1359 = vand.u32 %v1318, 2147483648
  %v1360 = vor.u32 1.1754944e-38, %v1359
  %v1361 = vsel %vm1358, %v1360, %v1356
  %v1362 = vmul.f32 1.0, %v1361
  %v1363 = vrcp.pop %v1319
  %v1364 = vmul.f32 %v1319, %v1363
  %v1365 = vsub.f32 1.0, %v1364
  %v1366 = vmul.f32 %v1363, %v1365
  %v1367 = vadd.f32 %v1363, %v1366
  %vm1368 = vweird.f32 %v1319
  %vm1369 = vweird.f32 %v1363
  %vm1370 = vmor %vm1368, %vm1369
  %v1371 = vsel %vm1370, %v1363, %v1367
  %v1372 = vand.u32 2147483647, %v1319
  %vm1373 = vcmp.eq.f32.partialorder %v1372, 8.507059e+37
  %v1374 = vand.u32 %v1319, 2147483648
  %v1375 = vor.u32 1.1754944e-38, %v1374
  %v1376 = vsel %vm1373, %v1375, %v1371
  %v1377 = vmul.f32 1.0, %v1376
  %v1378 = vrcp.pop %v1320
  %v1379 = vmul.f32 %v1320, %v1378
  %v1380 = vsub.f32 1.0, %v1379
  %v1381 = vmul.f32 %v1378, %v1380
  %v1382 = vadd.f32 %v1378, %v1381
  %vm1383 = vweird.f32 %v1320
  %vm1384 = vweird.f32 %v1378
  %vm1385 = vmor %vm1383, %vm1384
  %v1386 = vsel %vm1385, %v1378, %v1382
  %v1387 = vand.u32 2147483647, %v1320
  %vm1388 = vcmp.eq.f32.partialorder %v1387, 8.507059e+37
  %v1389 = vand.u32 %v1320, 2147483648
  %v1390 = vor.u32 1.1754944e-38, %v1389
  %v1391 = vsel %vm1388, %v1390, %v1386
  %v1392 = vmul.f32 1.0, %v1391
  %v1393 = vrcp.pop %v1321
  %v1394 = vmul.f32 %v1321, %v1393
  %v1395 = vsub.f32 1.0, %v1394
  %v1396 = vmul.f32 %v1393, %v1395
  %v1397 = vadd.f32 %v1393, %v1396
  %vm1398 = vweird.f32 %v1321
  %vm1399 = vweird.f32 %v1393
  %vm1400 = vmor %vm1398, %vm1399
  %v1401 = vsel %vm1400, %v1393, %v1397
  %v1402 = vand.u32 2147483647, %v1321
  %vm1403 = vcmp.eq.f32.partialorder %v1402, 8.507059e+37
  %v1404 = vand.u32 %v1321, 2147483648
  %v1405 = vor.u32 1.1754944e-38, %v1404
  %v1406 = vsel %vm1403, %v1405, %v1401
  %v1407 = vmul.f32 1.0, %v1406
  %v1408 = vrcp.pop %v1322
  %v1409 = vmul.f32 %v1322, %v1408
  %v1410 = vsub.f32 1.0, %v1409
  %v1411 = vmul.f32 %v1408, %v1410
  %v1412 = vadd.f32 %v1408, %v1411
  %vm1413 = vweird.f32 %v1322
  %vm1414 = vweird.f32 %v1408
  %vm1415 = vmor %vm1413, %vm1414
  %v1416 = vsel %vm1415, %v1408, %v1412
  %v1417 = vand.u32 2147483647, %v1322
  %vm1418 = vcmp.eq.f32.partialorder %v1417, 8.507059e+37
  %v1419 = vand.u32 %v1322, 2147483648
  %v1420 = vor.u32 1.1754944e-38, %v1419
  %v1421 = vsel %vm1418, %v1420, %v1416
  %v1422 = vmul.f32 1.0, %v1421
  %v1423 = vrcp.pop %v1323
  %v1424 = vmul.f32 %v1323, %v1423
  %v1425 = vsub.f32 1.0, %v1424
  %v1426 = vmul.f32 %v1423, %v1425
  %v1427 = vadd.f32 %v1423, %v1426
  %vm1428 = vweird.f32 %v1323
  %vm1429 = vweird.f32 %v1423
  %vm1430 = vmor %vm1428, %vm1429
  %v1431 = vsel %vm1430, %v1423, %v1427
  %v1432 = vand.u32 2147483647, %v1323
  %vm1433 = vcmp.eq.f32.partialorder %v1432, 8.507059e+37
  %v1434 = vand.u32 %v1323, 2147483648
  %v1435 = vor.u32 1.1754944e-38, %v1434
  %v1436 = vsel %vm1433, %v1435, %v1431
  %v1437 = vmul.f32 1.0, %v1436
  %v1438 = vrcp.pop %v1324
  %v1439 = vmul.f32 %v1324, %v1438
  %v1440 = vsub.f32 1.0, %v1439
  %v1441 = vmul.f32 %v1438, %v1440
  %v1442 = vadd.f32 %v1438, %v1441
  %vm1443 = vweird.f32 %v1324
  %vm1444 = vweird.f32 %v1438
  %vm1445 = vmor %vm1443, %vm1444
  %v1446 = vsel %vm1445, %v1438, %v1442
  %v1447 = vand.u32 2147483647, %v1324
  %vm1448 = vcmp.eq.f32.partialorder %v1447, 8.507059e+37
  %v1449 = vand.u32 %v1324, 2147483648
  %v1450 = vor.u32 1.1754944e-38, %v1449
  %v1451 = vsel %vm1448, %v1450, %v1446
  %v1452 = vmul.f32 1.0, %v1451
  %v1453 = vrcp.pop %v1325
  %v1454 = vmul.f32 %v1325, %v1453
  %v1455 = vsub.f32 1.0, %v1454
  %v1456 = vmul.f32 %v1453, %v1455
  %v1457 = vadd.f32 %v1453, %v1456
  %vm1458 = vweird.f32 %v1325
  %vm1459 = vweird.f32 %v1453
  %vm1460 = vmor %vm1458, %vm1459
  %v1461 = vsel %vm1460, %v1453, %v1457
  %v1462 = vand.u32 2147483647, %v1325
  %vm1463 = vcmp.eq.f32.partialorder %v1462, 8.507059e+37
  %v1464 = vand.u32 %v1325, 2147483648
  %v1465 = vor.u32 1.1754944e-38, %v1464
  %v1466 = vsel %vm1463, %v1465, %v1461
  %v1467 = vmul.f32 1.0, %v1466
  %v1468 = vrcp.pop %v1326
  %v1469 = vmul.f32 %v1326, %v1468
  %v1470 = vsub.f32 1.0, %v1469
  %v1471 = vmul.f32 %v1468, %v1470
  %v1472 = vadd.f32 %v1468, %v1471
  %vm1473 = vweird.f32 %v1326
  %vm1474 = vweird.f32 %v1468
  %vm1475 = vmor %vm1473, %vm1474
  %v1476 = vsel %vm1475, %v1468, %v1472
  %v1477 = vand.u32 2147483647, %v1326
  %vm1478 = vcmp.eq.f32.partialorder %v1477, 8.507059e+37
  %v1479 = vand.u32 %v1326, 2147483648
  %v1480 = vor.u32 1.1754944e-38, %v1479
  %v1481 = vsel %vm1478, %v1480, %v1476
  %v1482 = vmul.f32 1.0, %v1481
  %v1483 = vrcp.pop %v1327
  %v1484 = vmul.f32 %v1327, %v1483
  %v1485 = vsub.f32 1.0, %v1484
  %v1486 = vmul.f32 %v1483, %v1485
  %v1487 = vadd.f32 %v1483, %v1486
  %vm1488 = vweird.f32 %v1327
  %vm1489 = vweird.f32 %v1483
  %vm1490 = vmor %vm1488, %vm1489
  %v1491 = vsel %vm1490, %v1483, %v1487
  %v1492 = vand.u32 2147483647, %v1327
  %vm1493 = vcmp.eq.f32.partialorder %v1492, 8.507059e+37
  %v1494 = vand.u32 %v1327, 2147483648
  %v1495 = vor.u32 1.1754944e-38, %v1494
  %v1496 = vsel %vm1493, %v1495, %v1491
  %v1497 = vmul.f32 1.0, %v1496
  %v1498 = vrcp.pop %v1328
  %v1499 = vmul.f32 %v1328, %v1498
  %v1500 = vsub.f32 1.0, %v1499
  %v1501 = vmul.f32 %v1498, %v1500
  %v1502 = vadd.f32 %v1498, %v1501
  %vm1503 = vweird.f32 %v1328
  %vm1504 = vweird.f32 %v1498
  %vm1505 = vmor %vm1503, %vm1504
  %v1506 = vsel %vm1505, %v1498, %v1502
  %v1507 = vand.u32 2147483647, %v1328
  %vm1508 = vcmp.eq.f32.partialorder %v1507, 8.507059e+37
  %v1509 = vand.u32 %v1328, 2147483648
  %v1510 = vor.u32 1.1754944e-38, %v1509
  %v1511 = vsel %vm1508, %v1510, %v1506
  %v1512 = vmul.f32 1.0, %v1511
  %v1513 = vrcp.pop %v1329
  %v1514 = vmul.f32 %v1329, %v1513
  %v1515 = vsub.f32 1.0, %v1514
  %v1516 = vmul.f32 %v1513, %v1515
  %v1517 = vadd.f32 %v1513, %v1516
  %vm1518 = vweird.f32 %v1329
  %vm1519 = vweird.f32 %v1513
  %vm1520 = vmor %vm1518, %vm1519
  %v1521 = vsel %vm1520, %v1513, %v1517
  %v1522 = vand.u32 2147483647, %v1329
  %vm1523 = vcmp.eq.f32.partialorder %v1522, 8.507059e+37
  %v1524 = vand.u32 %v1329, 2147483648
  %v1525 = vor.u32 1.1754944e-38, %v1524
  %v1526 = vsel %vm1523, %v1525, %v1521
  %v1527 = vmul.f32 1.0, %v1526
  %v1528 = vrcp.pop %v1330
  %v1529 = vmul.f32 %v1330, %v1528
  %v1530 = vsub.f32 1.0, %v1529
  %v1531 = vmul.f32 %v1528, %v1530
  %v1532 = vadd.f32 %v1528, %v1531
  %vm1533 = vweird.f32 %v1330
  %vm1534 = vweird.f32 %v1528
  %vm1535 = vmor %vm1533, %vm1534
  %v1536 = vsel %vm1535, %v1528, %v1532
  %v1537 = vand.u32 2147483647, %v1330
  %vm1538 = vcmp.eq.f32.partialorder %v1537, 8.507059e+37
  %v1539 = vand.u32 %v1330, 2147483648
  %v1540 = vor.u32 1.1754944e-38, %v1539
  %v1541 = vsel %vm1538, %v1540, %v1536
  %v1542 = vmul.f32 1.0, %v1541
  %v1543 = vrcp.pop %v1331
  %v1544 = vmul.f32 %v1331, %v1543
  %v1545 = vsub.f32 1.0, %v1544
  %v1546 = vmul.f32 %v1543, %v1545
  %v1547 = vadd.f32 %v1543, %v1546
  %vm1548 = vweird.f32 %v1331
  %vm1549 = vweird.f32 %v1543
  %vm1550 = vmor %vm1548, %vm1549
  %v1551 = vsel %vm1550, %v1543, %v1547
  %v1552 = vand.u32 2147483647, %v1331
  %vm1553 = vcmp.eq.f32.partialorder %v1552, 8.507059e+37
  %v1554 = vand.u32 %v1331, 2147483648
  %v1555 = vor.u32 1.1754944e-38, %v1554
  %v1556 = vsel %vm1553, %v1555, %v1551
  %v1557 = vmul.f32 1.0, %v1556
  %v1558 = vrcp.pop %v1332
  %v1559 = vmul.f32 %v1332, %v1558
  %v1560 = vsub.f32 1.0, %v1559
  %v1561 = vmul.f32 %v1558, %v1560
  %v1562 = vadd.f32 %v1558, %v1561
  %vm1563 = vweird.f32 %v1332
  %vm1564 = vweird.f32 %v1558
  %vm1565 = vmor %vm1563, %vm1564
  %v1566 = vsel %vm1565, %v1558, %v1562
  %v1567 = vand.u32 2147483647, %v1332
  %vm1568 = vcmp.eq.f32.partialorder %v1567, 8.507059e+37
  %v1569 = vand.u32 %v1332, 2147483648
  %v1570 = vor.u32 1.1754944e-38, %v1569
  %v1571 = vsel %vm1568, %v1570, %v1566
  %v1572 = vmul.f32 1.0, %v1571
  %v1573 = vmul.f32 %v1222, %v1347
  %v1574 = vmul.f32 %v1225, %v1362
  %v1575 = vmul.f32 %v1228, %v1377
  %v1576 = vmul.f32 %v1231, %v1392
  %v1577 = vmul.f32 %v1234, %v1407
  %v1578 = vmul.f32 %v1237, %v1422
  %v1579 = vmul.f32 %v1240, %v1437
  %v1580 = vmul.f32 %v1243, %v1452
  %v1581 = vmul.f32 %v1246, %v1467
  %v1582 = vmul.f32 %v1249, %v1482
  %v1583 = vmul.f32 %v1252, %v1497
  %v1584 = vmul.f32 %v1255, %v1512
  %v1585 = vmul.f32 %v1258, %v1527
  %v1586 = vmul.f32 %v1261, %v1542
  %v1587 = vmul.f32 %v1264, %v1557
  %v1588 = vmul.f32 %v1267, %v1572
  %v1589 = vlaneseq
  %v1590 = vshrl.u32 %v1589, 7
  %v1591 = vlaneseq
  %v1592 = vand.u32 %v1591, 127
  %vm1593 = vcmp.ne.s32.totalorder %v1590, %v1592
  %v1594 = vsel %vm1593, 1, 0
  %v1595 = vcvt.s32.f32 %v1594
  %v1596 = vmul.f32 %v825, %v1595
  %v1597 = vmul.f32 %v826, %v1595
  %v1598 = vperm.slane %v1596, 0
  %v1599 = vlaneseq
  %v1600 = vshrl.u32 %v1599, 7
  %1602 = vset.pattern.permute.xlu0 %v1600
  %1603 = vperm.xlu0 %1602, %v1598
  %v1604 = vpop.permute.xlu0 %1603
  %v1605 = vperm.slane %v1596, 1
  %v1606 = vlaneseq
  %v1607 = vshrl.u32 %v1606, 7
  %1609 = vset.pattern.permute.xlu0 %v1607
  %1610 = vperm.xlu0 %1609, %v1605
  %v1611 = vpop.permute.xlu0 %1610
  %v1612 = vperm.slane %v1596, 2
  %v1613 = vlaneseq
  %v1614 = vshrl.u32 %v1613, 7
  %1616 = vset.pattern.permute.xlu0 %v1614
  %1617 = vperm.xlu0 %1616, %v1612
  %v1618 = vpop.permute.xlu0 %1617
  %v1619 = vperm.slane %v1596, 3
  %v1620 = vlaneseq
  %v1621 = vshrl.u32 %v1620, 7
  %1623 = vset.pattern.permute.xlu0 %v1621
  %1624 = vperm.xlu0 %1623, %v1619
  %v1625 = vpop.permute.xlu0 %1624
  %v1626 = vperm.slane %v1596, 4
  %v1627 = vlaneseq
  %v1628 = vshrl.u32 %v1627, 7
  %1630 = vset.pattern.permute.xlu0 %v1628
  %1631 = vperm.xlu0 %1630, %v1626
  %v1632 = vpop.permute.xlu0 %1631
  %v1633 = vperm.slane %v1596, 5
  %v1634 = vlaneseq
  %v1635 = vshrl.u32 %v1634, 7
  %1637 = vset.pattern.permute.xlu0 %v1635
  %1638 = vperm.xlu0 %1637, %v1633
  %v1639 = vpop.permute.xlu0 %1638
  %v1640 = vperm.slane %v1596, 6
  %v1641 = vlaneseq
  %v1642 = vshrl.u32 %v1641, 7
  %1644 = vset.pattern.permute.xlu0 %v1642
  %1645 = vperm.xlu0 %1644, %v1640
  %v1646 = vpop.permute.xlu0 %1645
  %v1647 = vperm.slane %v1596, 7
  %v1648 = vlaneseq
  %v1649 = vshrl.u32 %v1648, 7
  %1651 = vset.pattern.permute.xlu0 %v1649
  %1652 = vperm.xlu0 %1651, %v1647
  %v1653 = vpop.permute.xlu0 %1652
  %v1654 = vperm.slane %v1597, 0
  %v1655 = vlaneseq
  %v1656 = vshrl.u32 %v1655, 7
  %1658 = vset.pattern.permute.xlu0 %v1656
  %1659 = vperm.xlu0 %1658, %v1654
  %v1660 = vpop.permute.xlu0 %1659
  %v1661 = vperm.slane %v1597, 1
  %v1662 = vlaneseq
  %v1663 = vshrl.u32 %v1662, 7
  %1665 = vset.pattern.permute.xlu0 %v1663
  %1666 = vperm.xlu0 %1665, %v1661
  %v1667 = vpop.permute.xlu0 %1666
  %v1668 = vperm.slane %v1597, 2
  %v1669 = vlaneseq
  %v1670 = vshrl.u32 %v1669, 7
  %1672 = vset.pattern.permute.xlu0 %v1670
  %1673 = vperm.xlu0 %1672, %v1668
  %v1674 = vpop.permute.xlu0 %1673
  %v1675 = vperm.slane %v1597, 3
  %v1676 = vlaneseq
  %v1677 = vshrl.u32 %v1676, 7
  %1679 = vset.pattern.permute.xlu0 %v1677
  %1680 = vperm.xlu0 %1679, %v1675
  %v1681 = vpop.permute.xlu0 %1680
  %v1682 = vperm.slane %v1597, 4
  %v1683 = vlaneseq
  %v1684 = vshrl.u32 %v1683, 7
  %1686 = vset.pattern.permute.xlu0 %v1684
  %1687 = vperm.xlu0 %1686, %v1682
  %v1688 = vpop.permute.xlu0 %1687
  %v1689 = vperm.slane %v1597, 5
  %v1690 = vlaneseq
  %v1691 = vshrl.u32 %v1690, 7
  %1693 = vset.pattern.permute.xlu0 %v1691
  %1694 = vperm.xlu0 %1693, %v1689
  %v1695 = vpop.permute.xlu0 %1694
  %v1696 = vperm.slane %v1597, 6
  %v1697 = vlaneseq
  %v1698 = vshrl.u32 %v1697, 7
  %1700 = vset.pattern.permute.xlu0 %v1698
  %1701 = vperm.xlu0 %1700, %v1696
  %v1702 = vpop.permute.xlu0 %1701
  %v1703 = vperm.slane %v1597, 7
  %v1704 = vlaneseq
  %v1705 = vshrl.u32 %v1704, 7
  %1707 = vset.pattern.permute.xlu0 %v1705
  %1708 = vperm.xlu0 %1707, %v1703
  %v1709 = vpop.permute.xlu0 %1708
  %v1710 = vmul.f32 %v1573, %v1604
  %v1711 = vmul.f32 %v1574, %v1611
  %v1712 = vmul.f32 %v1575, %v1618
  %v1713 = vmul.f32 %v1576, %v1625
  %v1714 = vmul.f32 %v1577, %v1632
  %v1715 = vmul.f32 %v1578, %v1639
  %v1716 = vmul.f32 %v1579, %v1646
  %v1717 = vmul.f32 %v1580, %v1653
  %v1718 = vmul.f32 %v1581, %v1660
  %v1719 = vmul.f32 %v1582, %v1667
  %v1720 = vmul.f32 %v1583, %v1674
  %v1721 = vmul.f32 %v1584, %v1681
  %v1722 = vmul.f32 %v1585, %v1688
  %v1723 = vmul.f32 %v1586, %v1695
  %v1724 = vmul.f32 %v1587, %v1702
  %v1725 = vmul.f32 %v1588, %v1709
  %v1726 = vmul.f32 %v1710, %v495
  %v1727 = vmul.f32 %v1711, %v495
  %v1728 = vmul.f32 %v1712, %v495
  %v1729 = vmul.f32 %v1713, %v495
  %v1730 = vmul.f32 %v1714, %v495
  %v1731 = vmul.f32 %v1715, %v495
  %v1732 = vmul.f32 %v1716, %v495
  %v1733 = vmul.f32 %v1717, %v495
  %v1734 = vmul.f32 %v1718, %v496
  %v1735 = vmul.f32 %v1719, %v496
  %v1736 = vmul.f32 %v1720, %v496
  %v1737 = vmul.f32 %v1721, %v496
  %v1738 = vmul.f32 %v1722, %v496
  %v1739 = vmul.f32 %v1723, %v496
  %v1740 = vmul.f32 %v1724, %v496
  %v1741 = vmul.f32 %v1725, %v496
  %v1742 = vsel %vm157, %v1726, 0.0
  %v1743 = vrot.slane %v1742, 4
  %v1744 = vadd.f32 %v1742, %v1743
  %v1745 = vrot.slane %v1744, 2
  %v1746 = vadd.f32 %v1744, %v1745
  %v1747 = vrot.slane %v1746, 1
  %v1748 = vadd.f32 %v1746, %v1747
  %v1749 = vsel %vm157, %v1727, 0.0
  %v1750 = vrot.slane %v1749, 4
  %v1751 = vadd.f32 %v1749, %v1750
  %v1752 = vrot.slane %v1751, 2
  %v1753 = vadd.f32 %v1751, %v1752
  %v1754 = vrot.slane %v1753, 1
  %v1755 = vadd.f32 %v1753, %v1754
  %v1756 = vsel %vm157, %v1728, 0.0
  %v1757 = vrot.slane %v1756, 4
  %v1758 = vadd.f32 %v1756, %v1757
  %v1759 = vrot.slane %v1758, 2
  %v1760 = vadd.f32 %v1758, %v1759
  %v1761 = vrot.slane %v1760, 1
  %v1762 = vadd.f32 %v1760, %v1761
  %v1763 = vsel %vm157, %v1729, 0.0
  %v1764 = vrot.slane %v1763, 4
  %v1765 = vadd.f32 %v1763, %v1764
  %v1766 = vrot.slane %v1765, 2
  %v1767 = vadd.f32 %v1765, %v1766
  %v1768 = vrot.slane %v1767, 1
  %v1769 = vadd.f32 %v1767, %v1768
  %v1770 = vsel %vm157, %v1730, 0.0
  %v1771 = vrot.slane %v1770, 4
  %v1772 = vadd.f32 %v1770, %v1771
  %v1773 = vrot.slane %v1772, 2
  %v1774 = vadd.f32 %v1772, %v1773
  %v1775 = vrot.slane %v1774, 1
  %v1776 = vadd.f32 %v1774, %v1775
  %v1777 = vsel %vm157, %v1731, 0.0
  %v1778 = vrot.slane %v1777, 4
  %v1779 = vadd.f32 %v1777, %v1778
  %v1780 = vrot.slane %v1779, 2
  %v1781 = vadd.f32 %v1779, %v1780
  %v1782 = vrot.slane %v1781, 1
  %v1783 = vadd.f32 %v1781, %v1782
  %v1784 = vsel %vm157, %v1732, 0.0
  %v1785 = vrot.slane %v1784, 4
  %v1786 = vadd.f32 %v1784, %v1785
  %v1787 = vrot.slane %v1786, 2
  %v1788 = vadd.f32 %v1786, %v1787
  %v1789 = vrot.slane %v1788, 1
  %v1790 = vadd.f32 %v1788, %v1789
  %v1791 = vsel %vm157, %v1733, 0.0
  %v1792 = vrot.slane %v1791, 4
  %v1793 = vadd.f32 %v1791, %v1792
  %v1794 = vrot.slane %v1793, 2
  %v1795 = vadd.f32 %v1793, %v1794
  %v1796 = vrot.slane %v1795, 1
  %v1797 = vadd.f32 %v1795, %v1796
  %v1798 = vsel %vm157, %v1734, 0.0
  %v1799 = vrot.slane %v1798, 4
  %v1800 = vadd.f32 %v1798, %v1799
  %v1801 = vrot.slane %v1800, 2
  %v1802 = vadd.f32 %v1800, %v1801
  %v1803 = vrot.slane %v1802, 1
  %v1804 = vadd.f32 %v1802, %v1803
  %v1805 = vsel %vm157, %v1735, 0.0
  %v1806 = vrot.slane %v1805, 4
  %v1807 = vadd.f32 %v1805, %v1806
  %v1808 = vrot.slane %v1807, 2
  %v1809 = vadd.f32 %v1807, %v1808
  %v1810 = vrot.slane %v1809, 1
  %v1811 = vadd.f32 %v1809, %v1810
  %v1812 = vsel %vm157, %v1736, 0.0
  %v1813 = vrot.slane %v1812, 4
  %v1814 = vadd.f32 %v1812, %v1813
  %v1815 = vrot.slane %v1814, 2
  %v1816 = vadd.f32 %v1814, %v1815
  %v1817 = vrot.slane %v1816, 1
  %v1818 = vadd.f32 %v1816, %v1817
  %v1819 = vsel %vm157, %v1737, 0.0
  %v1820 = vrot.slane %v1819, 4
  %v1821 = vadd.f32 %v1819, %v1820
  %v1822 = vrot.slane %v1821, 2
  %v1823 = vadd.f32 %v1821, %v1822
  %v1824 = vrot.slane %v1823, 1
  %v1825 = vadd.f32 %v1823, %v1824
  %v1826 = vsel %vm157, %v1738, 0.0
  %v1827 = vrot.slane %v1826, 4
  %v1828 = vadd.f32 %v1826, %v1827
  %v1829 = vrot.slane %v1828, 2
  %v1830 = vadd.f32 %v1828, %v1829
  %v1831 = vrot.slane %v1830, 1
  %v1832 = vadd.f32 %v1830, %v1831
  %v1833 = vsel %vm157, %v1739, 0.0
  %v1834 = vrot.slane %v1833, 4
  %v1835 = vadd.f32 %v1833, %v1834
  %v1836 = vrot.slane %v1835, 2
  %v1837 = vadd.f32 %v1835, %v1836
  %v1838 = vrot.slane %v1837, 1
  %v1839 = vadd.f32 %v1837, %v1838
  %v1840 = vsel %vm157, %v1740, 0.0
  %v1841 = vrot.slane %v1840, 4
  %v1842 = vadd.f32 %v1840, %v1841
  %v1843 = vrot.slane %v1842, 2
  %v1844 = vadd.f32 %v1842, %v1843
  %v1845 = vrot.slane %v1844, 1
  %v1846 = vadd.f32 %v1844, %v1845
  %v1847 = vsel %vm157, %v1741, 0.0
  %v1848 = vrot.slane %v1847, 4
  %v1849 = vadd.f32 %v1847, %v1848
  %v1850 = vrot.slane %v1849, 2
  %v1851 = vadd.f32 %v1849, %v1850
  %v1852 = vrot.slane %v1851, 1
  %v1853 = vadd.f32 %v1851, %v1852
  %v1854 = vld [vmem:[%s17] sm:$0xff]
  %v1855 = vld [vmem:[%s17 + $0x8] sm:$0xff]
  %v1856 = vld [vmem:[%s17 + $0x10] sm:$0xff]
  %v1857 = vld [vmem:[%s17 + $0x18] sm:$0xff]
  %v1858 = vld [vmem:[%s18] sm:$0x1]
  %v1860 = vperm.slane %v1858, 0
  %vm1878 = vcmask 1041409
  %v1879 = vsel %vm1878, %v1755, %v1748
  %vm1880 = vcmask 1042434
  %v1881 = vsel %vm1880, %v1762, %v1879
  %vm1882 = vcmask 1043459
  %v1883 = vsel %vm1882, %v1769, %v1881
  %vm1884 = vcmask 1044484
  %v1885 = vsel %vm1884, %v1776, %v1883
  %vm1886 = vcmask 1045509
  %v1887 = vsel %vm1886, %v1783, %v1885
  %vm1888 = vcmask 1046534
  %v1889 = vsel %vm1888, %v1790, %v1887
  %vm1890 = vcmask 1047559
  %v1891 = vsel %vm1890, %v1797, %v1889
  %v1892 = vsel %vm1878, %v1811, %v1804
  %v1893 = vsel %vm1880, %v1818, %v1892
  %v1894 = vsel %vm1882, %v1825, %v1893
  %v1895 = vsel %vm1884, %v1832, %v1894
  %v1896 = vsel %vm1886, %v1839, %v1895
  %v1897 = vsel %vm1888, %v1846, %v1896
  %v1898 = vsel %vm1890, %v1853, %v1897
  %v1899 = vsel %vm157, %v1891, 0
  %v1901 = vsel %vm157, %v1898, 0
  %1903 = vmatpush.msra.mxu0 0.0
  %1904 = vmatpush.msra.mxu0 0.0
  %1905 = vmatpush.msra.mxu0 0.0
  %1906 = vmatpush.msra.mxu0 0.0
  %1907 = vmatpush.msra.mxu0 0.0
  %1908 = vmatpush.msra.mxu0 0.0
  %1909 = vmatpush.msra.mxu0 0.0
  %1910 = vmatpush.msra.mxu0 0.0
  %1911 = vmatpush.msra.mxu0 0.0
  %1912 = vmatpush.msra.mxu0 0.0
  %1913 = vmatpush.msra.mxu0 0.0
  %1914 = vmatpush.msra.mxu0 0.0
  %1915 = vmatpush.msra.mxu0 %v1857
  %1916 = vmatpush.msra.mxu0 %v1856
  %1917 = vmatpush.msra.mxu0 %v1855
  %1918 = vmatpush.msra.mxu0 %v1854
  %1919 = vmatmul.f32.gmra.mxu0 %v1899
  %v1920 = vpop.f32.mrf.mxu0
  %v1921 = vadd.f32 %v1860, %v1920
  %1922 = vmatmul.f32.gmra.mxu0 %v1901
  %v1923 = vpop.f32.mrf.mxu0
  %v1924 = vadd.f32 %v1860, %v1923
  %1925 = vdwg.mxu0
  %v1926 = vxor.u32 %v1921, 2147483648
  %v1927 = vxor.u32 %v1924, 2147483648
  %v1928 = vmul.f32 %v1926, 1.442695
  %v1929 = vpow.pop %v1928
  %v1930 = vmul.f32 %v1927, 1.442695
  %v1931 = vpow.pop %v1930
  %v1932 = vadd.f32 %v1929, 1.0
  %v1933 = vadd.f32 %v1931, 1.0
  %v1934 = vrcp.pop %v1932
  %v1935 = vmul.f32 %v1932, %v1934
  %v1936 = vsub.f32 1.0, %v1935
  %v1937 = vmul.f32 %v1934, %v1936
  %v1938 = vadd.f32 %v1934, %v1937
  %vm1939 = vweird.f32 %v1932
  %vm1940 = vweird.f32 %v1934
  %vm1941 = vmor %vm1939, %vm1940
  %v1942 = vsel %vm1941, %v1934, %v1938
  %v1943 = vand.u32 2147483647, %v1932
  %vm1944 = vcmp.eq.f32.partialorder %v1943, 8.507059e+37
  %v1945 = vand.u32 %v1932, 2147483648
  %v1946 = vor.u32 1.1754944e-38, %v1945
  %v1947 = vsel %vm1944, %v1946, %v1942
  %v1948 = vmul.f32 1.0, %v1947
  %v1949 = vrcp.pop %v1933
  %v1950 = vmul.f32 %v1933, %v1949
  %v1951 = vsub.f32 1.0, %v1950
  %v1952 = vmul.f32 %v1949, %v1951
  %v1953 = vadd.f32 %v1949, %v1952
  %vm1954 = vweird.f32 %v1933
  %vm1955 = vweird.f32 %v1949
  %vm1956 = vmor %vm1954, %vm1955
  %v1957 = vsel %vm1956, %v1949, %v1953
  %v1958 = vand.u32 2147483647, %v1933
  %vm1959 = vcmp.eq.f32.partialorder %v1958, 8.507059e+37
  %v1960 = vand.u32 %v1933, 2147483648
  %v1961 = vor.u32 1.1754944e-38, %v1960
  %v1962 = vsel %vm1959, %v1961, %v1957
  %v1963 = vmul.f32 1.0, %v1962
  %v1964 = vmul.f32 %v1921, %v1948
  %v1965 = vmul.f32 %v1924, %v1963
  %v1966 = vld [vmem:[%s19] sm:$0xff]
  %v1967 = vld [vmem:[%s19 + $0x8] sm:$0xff]
  %v1968 = vld [vmem:[%s19 + $0x10] sm:$0xff]
  %v1969 = vld [vmem:[%s19 + $0x18] sm:$0xff]
  %v1970 = vld [vmem:[%s20] sm:$0x1]
  %v1972 = vperm.slane %v1970, 0
  %v1975 = vsel %vm157, %v1964, 0
  %v1978 = vsel %vm157, %v1965, 0
  %1980 = vmatpush.msra.mxu0 0.0
  %1981 = vmatpush.msra.mxu0 0.0
  %1982 = vmatpush.msra.mxu0 0.0
  %1983 = vmatpush.msra.mxu0 0.0
  %1984 = vmatpush.msra.mxu0 0.0
  %1985 = vmatpush.msra.mxu0 0.0
  %1986 = vmatpush.msra.mxu0 0.0
  %1987 = vmatpush.msra.mxu0 0.0
  %1988 = vmatpush.msra.mxu0 0.0
  %1989 = vmatpush.msra.mxu0 0.0
  %1990 = vmatpush.msra.mxu0 0.0
  %1991 = vmatpush.msra.mxu0 0.0
  %1992 = vmatpush.msra.mxu0 %v1969
  %1993 = vmatpush.msra.mxu0 %v1968
  %1994 = vmatpush.msra.mxu0 %v1967
  %1995 = vmatpush.msra.mxu0 %v1966
  %1996 = vmatmul.f32.gmra.mxu0 %v1975
  %v1997 = vpop.f32.mrf.mxu0
  %v1998 = vadd.f32 %v1972, %v1997
  %1999 = vmatmul.f32.gmra.mxu0 %v1978
  %v2000 = vpop.f32.mrf.mxu0
  %v2001 = vadd.f32 %v1972, %v2000
  %2002 = vdwg.mxu0
  %v2003 = vxor.u32 %v1998, 2147483648
  %v2004 = vxor.u32 %v2001, 2147483648
  %v2005 = vmul.f32 %v2003, 1.442695
  %v2006 = vpow.pop %v2005
  %v2007 = vmul.f32 %v2004, 1.442695
  %v2008 = vpow.pop %v2007
  %v2009 = vadd.f32 %v2006, 1.0
  %v2010 = vadd.f32 %v2008, 1.0
  %v2011 = vrcp.pop %v2009
  %v2012 = vmul.f32 %v2009, %v2011
  %v2013 = vsub.f32 1.0, %v2012
  %v2014 = vmul.f32 %v2011, %v2013
  %v2015 = vadd.f32 %v2011, %v2014
  %vm2016 = vweird.f32 %v2009
  %vm2017 = vweird.f32 %v2011
  %vm2018 = vmor %vm2016, %vm2017
  %v2019 = vsel %vm2018, %v2011, %v2015
  %v2020 = vand.u32 2147483647, %v2009
  %vm2021 = vcmp.eq.f32.partialorder %v2020, 8.507059e+37
  %v2022 = vand.u32 %v2009, 2147483648
  %v2023 = vor.u32 1.1754944e-38, %v2022
  %v2024 = vsel %vm2021, %v2023, %v2019
  %v2025 = vmul.f32 1.0, %v2024
  %v2026 = vrcp.pop %v2010
  %v2027 = vmul.f32 %v2010, %v2026
  %v2028 = vsub.f32 1.0, %v2027
  %v2029 = vmul.f32 %v2026, %v2028
  %v2030 = vadd.f32 %v2026, %v2029
  %vm2031 = vweird.f32 %v2010
  %vm2032 = vweird.f32 %v2026
  %vm2033 = vmor %vm2031, %vm2032
  %v2034 = vsel %vm2033, %v2026, %v2030
  %v2035 = vand.u32 2147483647, %v2010
  %vm2036 = vcmp.eq.f32.partialorder %v2035, 8.507059e+37
  %v2037 = vand.u32 %v2010, 2147483648
  %v2038 = vor.u32 1.1754944e-38, %v2037
  %v2039 = vsel %vm2036, %v2038, %v2034
  %v2040 = vmul.f32 1.0, %v2039
  %v2041 = vmul.f32 %v1998, %v2025
  %v2042 = vmul.f32 %v2001, %v2040
  %v2043 = vadd.f32 %v495, %v2041
  %v2044 = vadd.f32 %v496, %v2042
  %v2045 = vmul.f32 %v1710, %v2043
  %v2046 = vmul.f32 %v1711, %v2043
  %v2047 = vmul.f32 %v1712, %v2043
  %v2048 = vmul.f32 %v1713, %v2043
  %v2049 = vmul.f32 %v1714, %v2043
  %v2050 = vmul.f32 %v1715, %v2043
  %v2051 = vmul.f32 %v1716, %v2043
  %v2052 = vmul.f32 %v1717, %v2043
  %v2053 = vmul.f32 %v1718, %v2044
  %v2054 = vmul.f32 %v1719, %v2044
  %v2055 = vmul.f32 %v1720, %v2044
  %v2056 = vmul.f32 %v1721, %v2044
  %v2057 = vmul.f32 %v1722, %v2044
  %v2058 = vmul.f32 %v1723, %v2044
  %v2059 = vmul.f32 %v1724, %v2044
  %v2060 = vmul.f32 %v1725, %v2044
  %v2061 = vsel %vm157, %v2045, 0.0
  %v2062 = vrot.slane %v2061, 4
  %v2063 = vadd.f32 %v2061, %v2062
  %v2064 = vrot.slane %v2063, 2
  %v2065 = vadd.f32 %v2063, %v2064
  %v2066 = vrot.slane %v2065, 1
  %v2067 = vadd.f32 %v2065, %v2066
  %v2068 = vsel %vm157, %v2046, 0.0
  %v2069 = vrot.slane %v2068, 4
  %v2070 = vadd.f32 %v2068, %v2069
  %v2071 = vrot.slane %v2070, 2
  %v2072 = vadd.f32 %v2070, %v2071
  %v2073 = vrot.slane %v2072, 1
  %v2074 = vadd.f32 %v2072, %v2073
  %v2075 = vsel %vm157, %v2047, 0.0
  %v2076 = vrot.slane %v2075, 4
  %v2077 = vadd.f32 %v2075, %v2076
  %v2078 = vrot.slane %v2077, 2
  %v2079 = vadd.f32 %v2077, %v2078
  %v2080 = vrot.slane %v2079, 1
  %v2081 = vadd.f32 %v2079, %v2080
  %v2082 = vsel %vm157, %v2048, 0.0
  %v2083 = vrot.slane %v2082, 4
  %v2084 = vadd.f32 %v2082, %v2083
  %v2085 = vrot.slane %v2084, 2
  %v2086 = vadd.f32 %v2084, %v2085
  %v2087 = vrot.slane %v2086, 1
  %v2088 = vadd.f32 %v2086, %v2087
  %v2089 = vsel %vm157, %v2049, 0.0
  %v2090 = vrot.slane %v2089, 4
  %v2091 = vadd.f32 %v2089, %v2090
  %v2092 = vrot.slane %v2091, 2
  %v2093 = vadd.f32 %v2091, %v2092
  %v2094 = vrot.slane %v2093, 1
  %v2095 = vadd.f32 %v2093, %v2094
  %v2096 = vsel %vm157, %v2050, 0.0
  %v2097 = vrot.slane %v2096, 4
  %v2098 = vadd.f32 %v2096, %v2097
  %v2099 = vrot.slane %v2098, 2
  %v2100 = vadd.f32 %v2098, %v2099
  %v2101 = vrot.slane %v2100, 1
  %v2102 = vadd.f32 %v2100, %v2101
  %v2103 = vsel %vm157, %v2051, 0.0
  %v2104 = vrot.slane %v2103, 4
  %v2105 = vadd.f32 %v2103, %v2104
  %v2106 = vrot.slane %v2105, 2
  %v2107 = vadd.f32 %v2105, %v2106
  %v2108 = vrot.slane %v2107, 1
  %v2109 = vadd.f32 %v2107, %v2108
  %v2110 = vsel %vm157, %v2052, 0.0
  %v2111 = vrot.slane %v2110, 4
  %v2112 = vadd.f32 %v2110, %v2111
  %v2113 = vrot.slane %v2112, 2
  %v2114 = vadd.f32 %v2112, %v2113
  %v2115 = vrot.slane %v2114, 1
  %v2116 = vadd.f32 %v2114, %v2115
  %v2117 = vsel %vm157, %v2053, 0.0
  %v2118 = vrot.slane %v2117, 4
  %v2119 = vadd.f32 %v2117, %v2118
  %v2120 = vrot.slane %v2119, 2
  %v2121 = vadd.f32 %v2119, %v2120
  %v2122 = vrot.slane %v2121, 1
  %v2123 = vadd.f32 %v2121, %v2122
  %v2124 = vsel %vm157, %v2054, 0.0
  %v2125 = vrot.slane %v2124, 4
  %v2126 = vadd.f32 %v2124, %v2125
  %v2127 = vrot.slane %v2126, 2
  %v2128 = vadd.f32 %v2126, %v2127
  %v2129 = vrot.slane %v2128, 1
  %v2130 = vadd.f32 %v2128, %v2129
  %v2131 = vsel %vm157, %v2055, 0.0
  %v2132 = vrot.slane %v2131, 4
  %v2133 = vadd.f32 %v2131, %v2132
  %v2134 = vrot.slane %v2133, 2
  %v2135 = vadd.f32 %v2133, %v2134
  %v2136 = vrot.slane %v2135, 1
  %v2137 = vadd.f32 %v2135, %v2136
  %v2138 = vsel %vm157, %v2056, 0.0
  %v2139 = vrot.slane %v2138, 4
  %v2140 = vadd.f32 %v2138, %v2139
  %v2141 = vrot.slane %v2140, 2
  %v2142 = vadd.f32 %v2140, %v2141
  %v2143 = vrot.slane %v2142, 1
  %v2144 = vadd.f32 %v2142, %v2143
  %v2145 = vsel %vm157, %v2057, 0.0
  %v2146 = vrot.slane %v2145, 4
  %v2147 = vadd.f32 %v2145, %v2146
  %v2148 = vrot.slane %v2147, 2
  %v2149 = vadd.f32 %v2147, %v2148
  %v2150 = vrot.slane %v2149, 1
  %v2151 = vadd.f32 %v2149, %v2150
  %v2152 = vsel %vm157, %v2058, 0.0
  %v2153 = vrot.slane %v2152, 4
  %v2154 = vadd.f32 %v2152, %v2153
  %v2155 = vrot.slane %v2154, 2
  %v2156 = vadd.f32 %v2154, %v2155
  %v2157 = vrot.slane %v2156, 1
  %v2158 = vadd.f32 %v2156, %v2157
  %v2159 = vsel %vm157, %v2059, 0.0
  %v2160 = vrot.slane %v2159, 4
  %v2161 = vadd.f32 %v2159, %v2160
  %v2162 = vrot.slane %v2161, 2
  %v2163 = vadd.f32 %v2161, %v2162
  %v2164 = vrot.slane %v2163, 1
  %v2165 = vadd.f32 %v2163, %v2164
  %v2166 = vsel %vm157, %v2060, 0.0
  %v2167 = vrot.slane %v2166, 4
  %v2168 = vadd.f32 %v2166, %v2167
  %v2169 = vrot.slane %v2168, 2
  %v2170 = vadd.f32 %v2168, %v2169
  %v2171 = vrot.slane %v2170, 1
  %v2172 = vadd.f32 %v2170, %v2171
  %s2173 = scalar_lea.vmem %s17, 32
  %v2174 = vld [vmem:[%s2173] sm:$0xff]
  %v2175 = vld [vmem:[%s2173 + $0x8] sm:$0xff]
  %v2176 = vld [vmem:[%s2173 + $0x10] sm:$0xff]
  %v2177 = vld [vmem:[%s2173 + $0x18] sm:$0xff]
  %s2178 = scalar_lea.vmem %s18, 1
  %v2179 = vld [vmem:[%s2178] sm:$0x1]
  %v2181 = vperm.slane %v2179, 0
  %v2199 = vsel %vm1878, %v2074, %v2067
  %v2200 = vsel %vm1880, %v2081, %v2199
  %v2201 = vsel %vm1882, %v2088, %v2200
  %v2202 = vsel %vm1884, %v2095, %v2201
  %v2203 = vsel %vm1886, %v2102, %v2202
  %v2204 = vsel %vm1888, %v2109, %v2203
  %v2205 = vsel %vm1890, %v2116, %v2204
  %v2206 = vsel %vm1878, %v2130, %v2123
  %v2207 = vsel %vm1880, %v2137, %v2206
  %v2208 = vsel %vm1882, %v2144, %v2207
  %v2209 = vsel %vm1884, %v2151, %v2208
  %v2210 = vsel %vm1886, %v2158, %v2209
  %v2211 = vsel %vm1888, %v2165, %v2210
  %v2212 = vsel %vm1890, %v2172, %v2211
  %v2213 = vsel %vm157, %v2205, 0
  %v2215 = vsel %vm157, %v2212, 0
  %2217 = vmatpush.msra.mxu0 0.0
  %2218 = vmatpush.msra.mxu0 0.0
  %2219 = vmatpush.msra.mxu0 0.0
  %2220 = vmatpush.msra.mxu0 0.0
  %2221 = vmatpush.msra.mxu0 0.0
  %2222 = vmatpush.msra.mxu0 0.0
  %2223 = vmatpush.msra.mxu0 0.0
  %2224 = vmatpush.msra.mxu0 0.0
  %2225 = vmatpush.msra.mxu0 0.0
  %2226 = vmatpush.msra.mxu0 0.0
  %2227 = vmatpush.msra.mxu0 0.0
  %2228 = vmatpush.msra.mxu0 0.0
  %2229 = vmatpush.msra.mxu0 %v2177
  %2230 = vmatpush.msra.mxu0 %v2176
  %2231 = vmatpush.msra.mxu0 %v2175
  %2232 = vmatpush.msra.mxu0 %v2174
  %2233 = vmatmul.f32.gmra.mxu0 %v2213
  %v2234 = vpop.f32.mrf.mxu0
  %v2235 = vadd.f32 %v2181, %v2234
  %2236 = vmatmul.f32.gmra.mxu0 %v2215
  %v2237 = vpop.f32.mrf.mxu0
  %v2238 = vadd.f32 %v2181, %v2237
  %2239 = vdwg.mxu0
  %v2240 = vxor.u32 %v2235, 2147483648
  %v2241 = vxor.u32 %v2238, 2147483648
  %v2242 = vmul.f32 %v2240, 1.442695
  %v2243 = vpow.pop %v2242
  %v2244 = vmul.f32 %v2241, 1.442695
  %v2245 = vpow.pop %v2244
  %v2246 = vadd.f32 %v2243, 1.0
  %v2247 = vadd.f32 %v2245, 1.0
  %v2248 = vrcp.pop %v2246
  %v2249 = vmul.f32 %v2246, %v2248
  %v2250 = vsub.f32 1.0, %v2249
  %v2251 = vmul.f32 %v2248, %v2250
  %v2252 = vadd.f32 %v2248, %v2251
  %vm2253 = vweird.f32 %v2246
  %vm2254 = vweird.f32 %v2248
  %vm2255 = vmor %vm2253, %vm2254
  %v2256 = vsel %vm2255, %v2248, %v2252
  %v2257 = vand.u32 2147483647, %v2246
  %vm2258 = vcmp.eq.f32.partialorder %v2257, 8.507059e+37
  %v2259 = vand.u32 %v2246, 2147483648
  %v2260 = vor.u32 1.1754944e-38, %v2259
  %v2261 = vsel %vm2258, %v2260, %v2256
  %v2262 = vmul.f32 1.0, %v2261
  %v2263 = vrcp.pop %v2247
  %v2264 = vmul.f32 %v2247, %v2263
  %v2265 = vsub.f32 1.0, %v2264
  %v2266 = vmul.f32 %v2263, %v2265
  %v2267 = vadd.f32 %v2263, %v2266
  %vm2268 = vweird.f32 %v2247
  %vm2269 = vweird.f32 %v2263
  %vm2270 = vmor %vm2268, %vm2269
  %v2271 = vsel %vm2270, %v2263, %v2267
  %v2272 = vand.u32 2147483647, %v2247
  %vm2273 = vcmp.eq.f32.partialorder %v2272, 8.507059e+37
  %v2274 = vand.u32 %v2247, 2147483648
  %v2275 = vor.u32 1.1754944e-38, %v2274
  %v2276 = vsel %vm2273, %v2275, %v2271
  %v2277 = vmul.f32 1.0, %v2276
  %v2278 = vmul.f32 %v2235, %v2262
  %v2279 = vmul.f32 %v2238, %v2277
  %s2280 = scalar_lea.vmem %s19, 32
  %v2281 = vld [vmem:[%s2280] sm:$0xff]
  %v2282 = vld [vmem:[%s2280 + $0x8] sm:$0xff]
  %v2283 = vld [vmem:[%s2280 + $0x10] sm:$0xff]
  %v2284 = vld [vmem:[%s2280 + $0x18] sm:$0xff]
  %s2285 = scalar_lea.vmem %s20, 1
  %v2286 = vld [vmem:[%s2285] sm:$0x1]
  %v2288 = vperm.slane %v2286, 0
  %v2291 = vsel %vm157, %v2278, 0
  %v2294 = vsel %vm157, %v2279, 0
  %2296 = vmatpush.msra.mxu0 0.0
  %2297 = vmatpush.msra.mxu0 0.0
  %2298 = vmatpush.msra.mxu0 0.0
  %2299 = vmatpush.msra.mxu0 0.0
  %2300 = vmatpush.msra.mxu0 0.0
  %2301 = vmatpush.msra.mxu0 0.0
  %2302 = vmatpush.msra.mxu0 0.0
  %2303 = vmatpush.msra.mxu0 0.0
  %2304 = vmatpush.msra.mxu0 0.0
  %2305 = vmatpush.msra.mxu0 0.0
  %2306 = vmatpush.msra.mxu0 0.0
  %2307 = vmatpush.msra.mxu0 0.0
  %2308 = vmatpush.msra.mxu0 %v2284
  %2309 = vmatpush.msra.mxu0 %v2283
  %2310 = vmatpush.msra.mxu0 %v2282
  %2311 = vmatpush.msra.mxu0 %v2281
  %2312 = vmatmul.f32.gmra.mxu0 %v2291
  %v2313 = vpop.f32.mrf.mxu0
  %v2314 = vadd.f32 %v2288, %v2313
  %2315 = vmatmul.f32.gmra.mxu0 %v2294
  %v2316 = vpop.f32.mrf.mxu0
  %v2317 = vadd.f32 %v2288, %v2316
  %2318 = vdwg.mxu0
  %v2319 = vxor.u32 %v2314, 2147483648
  %v2320 = vxor.u32 %v2317, 2147483648
  %v2321 = vmul.f32 %v2319, 1.442695
  %v2322 = vpow.pop %v2321
  %v2323 = vmul.f32 %v2320, 1.442695
  %v2324 = vpow.pop %v2323
  %v2325 = vadd.f32 %v2322, 1.0
  %v2326 = vadd.f32 %v2324, 1.0
  %v2327 = vrcp.pop %v2325
  %v2328 = vmul.f32 %v2325, %v2327
  %v2329 = vsub.f32 1.0, %v2328
  %v2330 = vmul.f32 %v2327, %v2329
  %v2331 = vadd.f32 %v2327, %v2330
  %vm2332 = vweird.f32 %v2325
  %vm2333 = vweird.f32 %v2327
  %vm2334 = vmor %vm2332, %vm2333
  %v2335 = vsel %vm2334, %v2327, %v2331
  %v2336 = vand.u32 2147483647, %v2325
  %vm2337 = vcmp.eq.f32.partialorder %v2336, 8.507059e+37
  %v2338 = vand.u32 %v2325, 2147483648
  %v2339 = vor.u32 1.1754944e-38, %v2338
  %v2340 = vsel %vm2337, %v2339, %v2335
  %v2341 = vmul.f32 1.0, %v2340
  %v2342 = vrcp.pop %v2326
  %v2343 = vmul.f32 %v2326, %v2342
  %v2344 = vsub.f32 1.0, %v2343
  %v2345 = vmul.f32 %v2342, %v2344
  %v2346 = vadd.f32 %v2342, %v2345
  %vm2347 = vweird.f32 %v2326
  %vm2348 = vweird.f32 %v2342
  %vm2349 = vmor %vm2347, %vm2348
  %v2350 = vsel %vm2349, %v2342, %v2346
  %v2351 = vand.u32 2147483647, %v2326
  %vm2352 = vcmp.eq.f32.partialorder %v2351, 8.507059e+37
  %v2353 = vand.u32 %v2326, 2147483648
  %v2354 = vor.u32 1.1754944e-38, %v2353
  %v2355 = vsel %vm2352, %v2354, %v2350
  %v2356 = vmul.f32 1.0, %v2355
  %v2357 = vmul.f32 %v2314, %v2341
  %v2358 = vmul.f32 %v2317, %v2356
  %v2359 = vadd.f32 %v2043, %v2357
  %v2360 = vadd.f32 %v2044, %v2358
  %v2361 = vsel %vm157, %v2359, 0.0
  %v2362 = vrot.slane %v2361, 4
  %v2363 = vadd.f32 %v2361, %v2362
  %v2364 = vrot.slane %v2363, 2
  %v2365 = vadd.f32 %v2363, %v2364
  %v2366 = vrot.slane %v2365, 1
  %v2367 = vadd.f32 %v2365, %v2366
  %v2368 = vsel %vm157, %v2360, 0.0
  %v2369 = vrot.slane %v2368, 4
  %v2370 = vadd.f32 %v2368, %v2369
  %v2371 = vrot.slane %v2370, 2
  %v2372 = vadd.f32 %v2370, %v2371
  %v2373 = vrot.slane %v2372, 1
  %v2374 = vadd.f32 %v2372, %v2373
  %v2375 = vmul.f32 %v2367, 0.5
  %v2376 = vmul.f32 %v2374, 0.5
  %v2377 = vld [vmem:[%s21] sm:$0xff]
  %v2378 = vld [vmem:[%s21 + $0x8] sm:$0xff]
  %v2379 = vld [vmem:[%s21 + $0x10] sm:$0xff]
  %v2380 = vld [vmem:[%s21 + $0x18] sm:$0xff]
  %v2383 = vsel %vm1878, %v2376, %v2375
  %v2384 = vsel %vm157, %v2383, 0
  %2386 = vmatpush.msra.mxu0 0.0
  %2387 = vmatpush.msra.mxu0 0.0
  %2388 = vmatpush.msra.mxu0 0.0
  %2389 = vmatpush.msra.mxu0 0.0
  %2390 = vmatpush.msra.mxu0 0.0
  %2391 = vmatpush.msra.mxu0 0.0
  %2392 = vmatpush.msra.mxu0 0.0
  %2393 = vmatpush.msra.mxu0 0.0
  %2394 = vmatpush.msra.mxu0 0.0
  %2395 = vmatpush.msra.mxu0 0.0
  %2396 = vmatpush.msra.mxu0 0.0
  %2397 = vmatpush.msra.mxu0 0.0
  %2398 = vmatpush.msra.mxu0 %v2380
  %2399 = vmatpush.msra.mxu0 %v2379
  %2400 = vmatpush.msra.mxu0 %v2378
  %2401 = vmatpush.msra.mxu0 %v2377
  %2402 = vmatmul.f32.gmra.mxu0 %v2384
  %v2403 = vpop.f32.mrf.mxu0
  %v2404 = vadd.f32 0.0, %v2403
  %2405 = vdwg.mxu0
  %v2406 = vmul.f32 %v2404, 1.3
  %v2407 = vadd.f32 %v2406, 0.7
  %vm2408 = vcmask 1024
  %2409 = vst.msk [vmem:[%s22] sm:$0x3] %vm2408, %v2407
  // Predicated region
  $region90: #{geongnn_forward.3} parent=0 // pred_check
    _
  $region91: #{geongnn_forward.3} parent=0 // pred_check_branch
    %2411 = sbr.rel (0) target = $region93
  $region92: #{geongnn_forward.3} parent=0 // pred_region
    _
  $region93: #{geongnn_forward.3} parent=0 // pred_fallthru
    _
  // Predicated region
  $region94: #{geongnn_forward.3} parent=0 // pred_check
    _
  $region95: #{geongnn_forward.3} parent=0 // pred_check_branch
    %2413 = sbr.rel (0) target = $region97
  $region96: #{geongnn_forward.3} parent=0 // pred_region
    _
  $region97: #{geongnn_forward.3} parent=0 // pred_fallthru
    _

// kernel: geongnn_forward.2
$region0: #{geongnn_forward.2}
  #allocation0 [shape = 'u32[]', space=smem, size = 0x4, offset = 0x4, fixed_abs, tag = 'smem constant byte address 0x4 - core index']
  #allocation1 [shape = 'u32[72,128]{1,0:T(1,128)}', space=vmem, size = 0x9000, scoped, tag = 'internal scratch']
  %s0 = inlined_call_operand.vmem [shape: f32[64,16], index: 0, kind: input, shape index: {}]
  %s1 = inlined_call_operand.vmem [shape: f32[64,16], index: 1, kind: input, shape index: {}]
  %s2 = inlined_call_operand.vmem [shape: f32[16,4,4], index: 2, kind: input, shape index: {}]
  %s3 = inlined_call_operand.vmem [shape: f32[16,4], index: 3, kind: input, shape index: {}]
  %s4 = inlined_call_operand.vmem [shape: f32[16,32], index: 4, kind: input, shape index: {}]
  %s5 = inlined_call_operand.vmem [shape: f32[1,32], index: 5, kind: input, shape index: {}]
  %s6 = inlined_call_operand.vmem [shape: f32[16,32], index: 6, kind: input, shape index: {}]
  %s7 = inlined_call_operand.vmem [shape: f32[1,32], index: 7, kind: input, shape index: {}]
  %s8 = inlined_call_operand.vmem [shape: f32[16,32], index: 8, kind: input, shape index: {}]
  %s9 = inlined_call_operand.vmem [shape: f32[1,32], index: 9, kind: input, shape index: {}]
  %s10 = inlined_call_operand.vmem [shape: f32[1,16], index: 10, kind: input, shape index: {}]
  %s11 = inlined_call_operand.vmem [shape: f32[2,32,32], index: 11, kind: input, shape index: {}]
  %s12 = inlined_call_operand.vmem [shape: f32[2,1,32], index: 12, kind: input, shape index: {}]
  %s13 = inlined_call_operand.vmem [shape: f32[2,32,32], index: 13, kind: input, shape index: {}]
  %s14 = inlined_call_operand.vmem [shape: f32[2,1,32], index: 14, kind: input, shape index: {}]
  %s15 = inlined_call_operand.vmem [shape: f32[16,32], index: 15, kind: output, shape index: {}]
  %s16 = sld [smem:[#allocation0]]
  $region70: #{geongnn_forward.2} parent=0
    _
  %s18 = ssub.s32 1, %s16
  %s19 = scalar_select 0, %s18, %s16
  // Predicated region
  $region2: #{geongnn_forward.2} parent=0 // pred_check
    _
  $region3: #{geongnn_forward.2} parent=0 // pred_check_branch
    %21 = sbr.rel (0) target = $region5
  $region4: #{geongnn_forward.2} parent=0 // pred_region
    _
  $region5: #{geongnn_forward.2} parent=0 // pred_fallthru
    _
  // Predicated region
  $region6: #{geongnn_forward.2} parent=0 // pred_check
    _
  $region7: #{geongnn_forward.2} parent=0 // pred_check_branch
    %23 = sbr.rel (0) target = $region9
  $region8: #{geongnn_forward.2} parent=0 // pred_region
    _
  $region9: #{geongnn_forward.2} parent=0 // pred_fallthru
    _
  // Predicated region
  $region10: #{geongnn_forward.2} parent=0 // pred_check
    _
  $region11: #{geongnn_forward.2} parent=0 // pred_check_branch
    %25 = sbr.rel (0) target = $region13
  $region12: #{geongnn_forward.2} parent=0 // pred_region
    _
  $region13: #{geongnn_forward.2} parent=0 // pred_fallthru
    _
  // Predicated region
  $region14: #{geongnn_forward.2} parent=0 // pred_check
    _
  $region15: #{geongnn_forward.2} parent=0 // pred_check_branch
    %27 = sbr.rel (0) target = $region17
  $region16: #{geongnn_forward.2} parent=0 // pred_region
    _
  $region17: #{geongnn_forward.2} parent=0 // pred_fallthru
    _
  // Predicated region
  $region18: #{geongnn_forward.2} parent=0 // pred_check
    _
  $region19: #{geongnn_forward.2} parent=0 // pred_check_branch
    %29 = sbr.rel (0) target = $region21
  $region20: #{geongnn_forward.2} parent=0 // pred_region
    _
  $region21: #{geongnn_forward.2} parent=0 // pred_fallthru
    _
  // Predicated region
  $region22: #{geongnn_forward.2} parent=0 // pred_check
    _
  $region23: #{geongnn_forward.2} parent=0 // pred_check_branch
    %31 = sbr.rel (0) target = $region25
  $region24: #{geongnn_forward.2} parent=0 // pred_region
    _
  $region25: #{geongnn_forward.2} parent=0 // pred_fallthru
    _
  // Predicated region
  $region26: #{geongnn_forward.2} parent=0 // pred_check
    _
  $region27: #{geongnn_forward.2} parent=0 // pred_check_branch
    %33 = sbr.rel (0) target = $region29
  $region28: #{geongnn_forward.2} parent=0 // pred_region
    _
  $region29: #{geongnn_forward.2} parent=0 // pred_fallthru
    _
  // Predicated region
  $region30: #{geongnn_forward.2} parent=0 // pred_check
    _
  $region31: #{geongnn_forward.2} parent=0 // pred_check_branch
    %35 = sbr.rel (0) target = $region33
  $region32: #{geongnn_forward.2} parent=0 // pred_region
    _
  $region33: #{geongnn_forward.2} parent=0 // pred_fallthru
    _
  // Predicated region
  $region34: #{geongnn_forward.2} parent=0 // pred_check
    _
  $region35: #{geongnn_forward.2} parent=0 // pred_check_branch
    %37 = sbr.rel (0) target = $region37
  $region36: #{geongnn_forward.2} parent=0 // pred_region
    _
  $region37: #{geongnn_forward.2} parent=0 // pred_fallthru
    _
  // Predicated region
  $region38: #{geongnn_forward.2} parent=0 // pred_check
    _
  $region39: #{geongnn_forward.2} parent=0 // pred_check_branch
    %39 = sbr.rel (0) target = $region41
  $region40: #{geongnn_forward.2} parent=0 // pred_region
    _
  $region41: #{geongnn_forward.2} parent=0 // pred_fallthru
    _
  // Predicated region
  $region42: #{geongnn_forward.2} parent=0 // pred_check
    _
  $region43: #{geongnn_forward.2} parent=0 // pred_check_branch
    %41 = sbr.rel (0) target = $region45
  $region44: #{geongnn_forward.2} parent=0 // pred_region
    _
  $region45: #{geongnn_forward.2} parent=0 // pred_fallthru
    _
  // Predicated region
  $region46: #{geongnn_forward.2} parent=0 // pred_check
    _
  $region47: #{geongnn_forward.2} parent=0 // pred_check_branch
    %43 = sbr.rel (0) target = $region49
  $region48: #{geongnn_forward.2} parent=0 // pred_region
    _
  $region49: #{geongnn_forward.2} parent=0 // pred_fallthru
    _
  // Predicated region
  $region50: #{geongnn_forward.2} parent=0 // pred_check
    _
  $region51: #{geongnn_forward.2} parent=0 // pred_check_branch
    %45 = sbr.rel (0) target = $region53
  $region52: #{geongnn_forward.2} parent=0 // pred_region
    _
  $region53: #{geongnn_forward.2} parent=0 // pred_fallthru
    _
  // Predicated region
  $region54: #{geongnn_forward.2} parent=0 // pred_check
    _
  $region55: #{geongnn_forward.2} parent=0 // pred_check_branch
    %47 = sbr.rel (0) target = $region57
  $region56: #{geongnn_forward.2} parent=0 // pred_region
    _
  $region57: #{geongnn_forward.2} parent=0 // pred_fallthru
    _
  // Predicated region
  $region58: #{geongnn_forward.2} parent=0 // pred_check
    _
  $region59: #{geongnn_forward.2} parent=0 // pred_check_branch
    %49 = sbr.rel (0) target = $region61
  $region60: #{geongnn_forward.2} parent=0 // pred_region
    _
  $region61: #{geongnn_forward.2} parent=0 // pred_fallthru
    _
  %v50 = vld [vmem:[%s0] sm:$0xff]
  %v51 = vld [vmem:[%s0 + $0x8] sm:$0xff]
  %v52 = vld [vmem:[%s0 + $0x10] sm:$0xff]
  %v53 = vld [vmem:[%s0 + $0x18] sm:$0xff]
  %v54 = vld [vmem:[%s0 + $0x20] sm:$0xff]
  %v55 = vld [vmem:[%s0 + $0x28] sm:$0xff]
  %v56 = vld [vmem:[%s0 + $0x30] sm:$0xff]
  %v57 = vld [vmem:[%s0 + $0x38] sm:$0xff]
  %v58 = vld [vmem:[%s4] sm:$0xff]
  %v59 = vld [vmem:[%s4 + $0x8] sm:$0xff]
  %v60 = vld [vmem:[%s5] sm:$0x1]
  %v62 = vperm.slane %v60, 0
  %vm64 = vcmask 130048
  %v66 = vsel %vm64, %v50, 0
  %v69 = vsel %vm64, %v51, 0
  %v72 = vsel %vm64, %v52, 0
  %v75 = vsel %vm64, %v53, 0
  %v78 = vsel %vm64, %v54, 0
  %v81 = vsel %vm64, %v55, 0
  %v84 = vsel %vm64, %v56, 0
  %v87 = vsel %vm64, %v57, 0
  %89 = vmatpush.msra.mxu0 0.0
  %90 = vmatpush.msra.mxu0 0.0
  %91 = vmatpush.msra.mxu0 0.0
  %92 = vmatpush.msra.mxu0 0.0
  %93 = vmatpush.msra.mxu0 0.0
  %94 = vmatpush.msra.mxu0 0.0
  %95 = vmatpush.msra.mxu0 0.0
  %96 = vmatpush.msra.mxu0 0.0
  %97 = vmatpush.msra.mxu0 0.0
  %98 = vmatpush.msra.mxu0 0.0
  %99 = vmatpush.msra.mxu0 0.0
  %100 = vmatpush.msra.mxu0 0.0
  %101 = vmatpush.msra.mxu0 0.0
  %102 = vmatpush.msra.mxu0 0.0
  %103 = vmatpush.msra.mxu0 %v59
  %104 = vmatpush.msra.mxu0 %v58
  %105 = vmatmul.f32.gmra.mxu0 %v66
  %v106 = vpop.f32.mrf.mxu0
  %v107 = vadd.f32 %v62, %v106
  %108 = vmatmul.f32.gmra.mxu0 %v69
  %v109 = vpop.f32.mrf.mxu0
  %v110 = vadd.f32 %v62, %v109
  %111 = vmatmul.f32.gmra.mxu0 %v72
  %v112 = vpop.f32.mrf.mxu0
  %v113 = vadd.f32 %v62, %v112
  %114 = vmatmul.f32.gmra.mxu0 %v75
  %v115 = vpop.f32.mrf.mxu0
  %v116 = vadd.f32 %v62, %v115
  %117 = vmatmul.f32.gmra.mxu0 %v78
  %v118 = vpop.f32.mrf.mxu0
  %v119 = vadd.f32 %v62, %v118
  %120 = vmatmul.f32.gmra.mxu0 %v81
  %v121 = vpop.f32.mrf.mxu0
  %v122 = vadd.f32 %v62, %v121
  %123 = vmatmul.f32.gmra.mxu0 %v84
  %v124 = vpop.f32.mrf.mxu0
  %v125 = vadd.f32 %v62, %v124
  %126 = vmatmul.f32.gmra.mxu0 %v87
  %v127 = vpop.f32.mrf.mxu0
  %v128 = vadd.f32 %v62, %v127
  %129 = vdwg.mxu0
  %v130 = vxor.u32 %v107, 2147483648
  %v131 = vxor.u32 %v110, 2147483648
  %v132 = vxor.u32 %v113, 2147483648
  %v133 = vxor.u32 %v116, 2147483648
  %v134 = vxor.u32 %v119, 2147483648
  %v135 = vxor.u32 %v122, 2147483648
  %v136 = vxor.u32 %v125, 2147483648
  %v137 = vxor.u32 %v128, 2147483648
  %v138 = vmul.f32 %v130, 1.442695
  %v139 = vpow.pop %v138
  %v140 = vmul.f32 %v131, 1.442695
  %v141 = vpow.pop %v140
  %v142 = vmul.f32 %v132, 1.442695
  %v143 = vpow.pop %v142
  %v144 = vmul.f32 %v133, 1.442695
  %v145 = vpow.pop %v144
  %v146 = vmul.f32 %v134, 1.442695
  %v147 = vpow.pop %v146
  %v148 = vmul.f32 %v135, 1.442695
  %v149 = vpow.pop %v148
  %v150 = vmul.f32 %v136, 1.442695
  %v151 = vpow.pop %v150
  %v152 = vmul.f32 %v137, 1.442695
  %v153 = vpow.pop %v152
  %v154 = vadd.f32 %v139, 1.0
  %v155 = vadd.f32 %v141, 1.0
  %v156 = vadd.f32 %v143, 1.0
  %v157 = vadd.f32 %v145, 1.0
  %v158 = vadd.f32 %v147, 1.0
  %v159 = vadd.f32 %v149, 1.0
  %v160 = vadd.f32 %v151, 1.0
  %v161 = vadd.f32 %v153, 1.0
  %v162 = vrcp.pop %v154
  %v163 = vmul.f32 %v154, %v162
  %v164 = vsub.f32 1.0, %v163
  %v165 = vmul.f32 %v162, %v164
  %v166 = vadd.f32 %v162, %v165
  %vm167 = vweird.f32 %v154
  %vm168 = vweird.f32 %v162
  %vm169 = vmor %vm167, %vm168
  %v170 = vsel %vm169, %v162, %v166
  %v171 = vand.u32 2147483647, %v154
  %vm172 = vcmp.eq.f32.partialorder %v171, 8.507059e+37
  %v173 = vand.u32 %v154, 2147483648
  %v174 = vor.u32 1.1754944e-38, %v173
  %v175 = vsel %vm172, %v174, %v170
  %v176 = vmul.f32 1.0, %v175
  %v177 = vrcp.pop %v155
  %v178 = vmul.f32 %v155, %v177
  %v179 = vsub.f32 1.0, %v178
  %v180 = vmul.f32 %v177, %v179
  %v181 = vadd.f32 %v177, %v180
  %vm182 = vweird.f32 %v155
  %vm183 = vweird.f32 %v177
  %vm184 = vmor %vm182, %vm183
  %v185 = vsel %vm184, %v177, %v181
  %v186 = vand.u32 2147483647, %v155
  %vm187 = vcmp.eq.f32.partialorder %v186, 8.507059e+37
  %v188 = vand.u32 %v155, 2147483648
  %v189 = vor.u32 1.1754944e-38, %v188
  %v190 = vsel %vm187, %v189, %v185
  %v191 = vmul.f32 1.0, %v190
  %v192 = vrcp.pop %v156
  %v193 = vmul.f32 %v156, %v192
  %v194 = vsub.f32 1.0, %v193
  %v195 = vmul.f32 %v192, %v194
  %v196 = vadd.f32 %v192, %v195
  %vm197 = vweird.f32 %v156
  %vm198 = vweird.f32 %v192
  %vm199 = vmor %vm197, %vm198
  %v200 = vsel %vm199, %v192, %v196
  %v201 = vand.u32 2147483647, %v156
  %vm202 = vcmp.eq.f32.partialorder %v201, 8.507059e+37
  %v203 = vand.u32 %v156, 2147483648
  %v204 = vor.u32 1.1754944e-38, %v203
  %v205 = vsel %vm202, %v204, %v200
  %v206 = vmul.f32 1.0, %v205
  %v207 = vrcp.pop %v157
  %v208 = vmul.f32 %v157, %v207
  %v209 = vsub.f32 1.0, %v208
  %v210 = vmul.f32 %v207, %v209
  %v211 = vadd.f32 %v207, %v210
  %vm212 = vweird.f32 %v157
  %vm213 = vweird.f32 %v207
  %vm214 = vmor %vm212, %vm213
  %v215 = vsel %vm214, %v207, %v211
  %v216 = vand.u32 2147483647, %v157
  %vm217 = vcmp.eq.f32.partialorder %v216, 8.507059e+37
  %v218 = vand.u32 %v157, 2147483648
  %v219 = vor.u32 1.1754944e-38, %v218
  %v220 = vsel %vm217, %v219, %v215
  %v221 = vmul.f32 1.0, %v220
  %v222 = vrcp.pop %v158
  %v223 = vmul.f32 %v158, %v222
  %v224 = vsub.f32 1.0, %v223
  %v225 = vmul.f32 %v222, %v224
  %v226 = vadd.f32 %v222, %v225
  %vm227 = vweird.f32 %v158
  %vm228 = vweird.f32 %v222
  %vm229 = vmor %vm227, %vm228
  %v230 = vsel %vm229, %v222, %v226
  %v231 = vand.u32 2147483647, %v158
  %vm232 = vcmp.eq.f32.partialorder %v231, 8.507059e+37
  %v233 = vand.u32 %v158, 2147483648
  %v234 = vor.u32 1.1754944e-38, %v233
  %v235 = vsel %vm232, %v234, %v230
  %v236 = vmul.f32 1.0, %v235
  %v237 = vrcp.pop %v159
  %v238 = vmul.f32 %v159, %v237
  %v239 = vsub.f32 1.0, %v238
  %v240 = vmul.f32 %v237, %v239
  %v241 = vadd.f32 %v237, %v240
  %vm242 = vweird.f32 %v159
  %vm243 = vweird.f32 %v237
  %vm244 = vmor %vm242, %vm243
  %v245 = vsel %vm244, %v237, %v241
  %v246 = vand.u32 2147483647, %v159
  %vm247 = vcmp.eq.f32.partialorder %v246, 8.507059e+37
  %v248 = vand.u32 %v159, 2147483648
  %v249 = vor.u32 1.1754944e-38, %v248
  %v250 = vsel %vm247, %v249, %v245
  %v251 = vmul.f32 1.0, %v250
  %v252 = vrcp.pop %v160
  %v253 = vmul.f32 %v160, %v252
  %v254 = vsub.f32 1.0, %v253
  %v255 = vmul.f32 %v252, %v254
  %v256 = vadd.f32 %v252, %v255
  %vm257 = vweird.f32 %v160
  %vm258 = vweird.f32 %v252
  %vm259 = vmor %vm257, %vm258
  %v260 = vsel %vm259, %v252, %v256
  %v261 = vand.u32 2147483647, %v160
  %vm262 = vcmp.eq.f32.partialorder %v261, 8.507059e+37
  %v263 = vand.u32 %v160, 2147483648
  %v264 = vor.u32 1.1754944e-38, %v263
  %v265 = vsel %vm262, %v264, %v260
  %v266 = vmul.f32 1.0, %v265
  %v267 = vrcp.pop %v161
  %v268 = vmul.f32 %v161, %v267
  %v269 = vsub.f32 1.0, %v268
  %v270 = vmul.f32 %v267, %v269
  %v271 = vadd.f32 %v267, %v270
  %vm272 = vweird.f32 %v161
  %vm273 = vweird.f32 %v267
  %vm274 = vmor %vm272, %vm273
  %v275 = vsel %vm274, %v267, %v271
  %v276 = vand.u32 2147483647, %v161
  %vm277 = vcmp.eq.f32.partialorder %v276, 8.507059e+37
  %v278 = vand.u32 %v161, 2147483648
  %v279 = vor.u32 1.1754944e-38, %v278
  %v280 = vsel %vm277, %v279, %v275
  %v281 = vmul.f32 1.0, %v280
  %v282 = vmul.f32 %v107, %v176
  %v283 = vmul.f32 %v110, %v191
  %v284 = vmul.f32 %v113, %v206
  %v285 = vmul.f32 %v116, %v221
  %v286 = vmul.f32 %v119, %v236
  %v287 = vmul.f32 %v122, %v251
  %v288 = vmul.f32 %v125, %v266
  %v289 = vmul.f32 %v128, %v281
  %v290 = vld [vmem:[%s1] sm:$0xff]
  %v291 = vld [vmem:[%s1 + $0x8] sm:$0xff]
  %v292 = vld [vmem:[%s1 + $0x10] sm:$0xff]
  %v293 = vld [vmem:[%s1 + $0x18] sm:$0xff]
  %v294 = vld [vmem:[%s1 + $0x20] sm:$0xff]
  %v295 = vld [vmem:[%s1 + $0x28] sm:$0xff]
  %v296 = vld [vmem:[%s1 + $0x30] sm:$0xff]
  %v297 = vld [vmem:[%s1 + $0x38] sm:$0xff]
  %v298 = vld [vmem:[%s6] sm:$0xff]
  %v299 = vld [vmem:[%s6 + $0x8] sm:$0xff]
  %v300 = vld [vmem:[%s7] sm:$0x1]
  %v302 = vperm.slane %v300, 0
  %v305 = vsel %vm64, %v290, 0
  %v308 = vsel %vm64, %v291, 0
  %v311 = vsel %vm64, %v292, 0
  %v314 = vsel %vm64, %v293, 0
  %v317 = vsel %vm64, %v294, 0
  %v320 = vsel %vm64, %v295, 0
  %v323 = vsel %vm64, %v296, 0
  %v326 = vsel %vm64, %v297, 0
  %328 = vmatpush.msra.mxu0 0.0
  %329 = vmatpush.msra.mxu0 0.0
  %330 = vmatpush.msra.mxu0 0.0
  %331 = vmatpush.msra.mxu0 0.0
  %332 = vmatpush.msra.mxu0 0.0
  %333 = vmatpush.msra.mxu0 0.0
  %334 = vmatpush.msra.mxu0 0.0
  %335 = vmatpush.msra.mxu0 0.0
  %336 = vmatpush.msra.mxu0 0.0
  %337 = vmatpush.msra.mxu0 0.0
  %338 = vmatpush.msra.mxu0 0.0
  %339 = vmatpush.msra.mxu0 0.0
  %340 = vmatpush.msra.mxu0 0.0
  %341 = vmatpush.msra.mxu0 0.0
  %342 = vmatpush.msra.mxu0 %v299
  %343 = vmatpush.msra.mxu0 %v298
  %344 = vmatmul.f32.gmra.mxu0 %v305
  %v345 = vpop.f32.mrf.mxu0
  %v346 = vadd.f32 %v302, %v345
  %347 = vmatmul.f32.gmra.mxu0 %v308
  %v348 = vpop.f32.mrf.mxu0
  %v349 = vadd.f32 %v302, %v348
  %350 = vmatmul.f32.gmra.mxu0 %v311
  %v351 = vpop.f32.mrf.mxu0
  %v352 = vadd.f32 %v302, %v351
  %353 = vmatmul.f32.gmra.mxu0 %v314
  %v354 = vpop.f32.mrf.mxu0
  %v355 = vadd.f32 %v302, %v354
  %356 = vmatmul.f32.gmra.mxu0 %v317
  %v357 = vpop.f32.mrf.mxu0
  %v358 = vadd.f32 %v302, %v357
  %359 = vmatmul.f32.gmra.mxu0 %v320
  %v360 = vpop.f32.mrf.mxu0
  %v361 = vadd.f32 %v302, %v360
  %362 = vmatmul.f32.gmra.mxu0 %v323
  %v363 = vpop.f32.mrf.mxu0
  %v364 = vadd.f32 %v302, %v363
  %365 = vmatmul.f32.gmra.mxu0 %v326
  %v366 = vpop.f32.mrf.mxu0
  %v367 = vadd.f32 %v302, %v366
  %368 = vdwg.mxu0
  %v369 = vxor.u32 %v346, 2147483648
  %v370 = vxor.u32 %v349, 2147483648
  %v371 = vxor.u32 %v352, 2147483648
  %v372 = vxor.u32 %v355, 2147483648
  %v373 = vxor.u32 %v358, 2147483648
  %v374 = vxor.u32 %v361, 2147483648
  %v375 = vxor.u32 %v364, 2147483648
  %v376 = vxor.u32 %v367, 2147483648
  %v377 = vmul.f32 %v369, 1.442695
  %v378 = vpow.pop %v377
  %v379 = vmul.f32 %v370, 1.442695
  %v380 = vpow.pop %v379
  %v381 = vmul.f32 %v371, 1.442695
  %v382 = vpow.pop %v381
  %v383 = vmul.f32 %v372, 1.442695
  %v384 = vpow.pop %v383
  %v385 = vmul.f32 %v373, 1.442695
  %v386 = vpow.pop %v385
  %v387 = vmul.f32 %v374, 1.442695
  %v388 = vpow.pop %v387
  %v389 = vmul.f32 %v375, 1.442695
  %v390 = vpow.pop %v389
  %v391 = vmul.f32 %v376, 1.442695
  %v392 = vpow.pop %v391
  %v393 = vadd.f32 %v378, 1.0
  %v394 = vadd.f32 %v380, 1.0
  %v395 = vadd.f32 %v382, 1.0
  %v396 = vadd.f32 %v384, 1.0
  %v397 = vadd.f32 %v386, 1.0
  %v398 = vadd.f32 %v388, 1.0
  %v399 = vadd.f32 %v390, 1.0
  %v400 = vadd.f32 %v392, 1.0
  %v401 = vrcp.pop %v393
  %v402 = vmul.f32 %v393, %v401
  %v403 = vsub.f32 1.0, %v402
  %v404 = vmul.f32 %v401, %v403
  %v405 = vadd.f32 %v401, %v404
  %vm406 = vweird.f32 %v393
  %vm407 = vweird.f32 %v401
  %vm408 = vmor %vm406, %vm407
  %v409 = vsel %vm408, %v401, %v405
  %v410 = vand.u32 2147483647, %v393
  %vm411 = vcmp.eq.f32.partialorder %v410, 8.507059e+37
  %v412 = vand.u32 %v393, 2147483648
  %v413 = vor.u32 1.1754944e-38, %v412
  %v414 = vsel %vm411, %v413, %v409
  %v415 = vmul.f32 1.0, %v414
  %v416 = vrcp.pop %v394
  %v417 = vmul.f32 %v394, %v416
  %v418 = vsub.f32 1.0, %v417
  %v419 = vmul.f32 %v416, %v418
  %v420 = vadd.f32 %v416, %v419
  %vm421 = vweird.f32 %v394
  %vm422 = vweird.f32 %v416
  %vm423 = vmor %vm421, %vm422
  %v424 = vsel %vm423, %v416, %v420
  %v425 = vand.u32 2147483647, %v394
  %vm426 = vcmp.eq.f32.partialorder %v425, 8.507059e+37
  %v427 = vand.u32 %v394, 2147483648
  %v428 = vor.u32 1.1754944e-38, %v427
  %v429 = vsel %vm426, %v428, %v424
  %v430 = vmul.f32 1.0, %v429
  %v431 = vrcp.pop %v395
  %v432 = vmul.f32 %v395, %v431
  %v433 = vsub.f32 1.0, %v432
  %v434 = vmul.f32 %v431, %v433
  %v435 = vadd.f32 %v431, %v434
  %vm436 = vweird.f32 %v395
  %vm437 = vweird.f32 %v431
  %vm438 = vmor %vm436, %vm437
  %v439 = vsel %vm438, %v431, %v435
  %v440 = vand.u32 2147483647, %v395
  %vm441 = vcmp.eq.f32.partialorder %v440, 8.507059e+37
  %v442 = vand.u32 %v395, 2147483648
  %v443 = vor.u32 1.1754944e-38, %v442
  %v444 = vsel %vm441, %v443, %v439
  %v445 = vmul.f32 1.0, %v444
  %v446 = vrcp.pop %v396
  %v447 = vmul.f32 %v396, %v446
  %v448 = vsub.f32 1.0, %v447
  %v449 = vmul.f32 %v446, %v448
  %v450 = vadd.f32 %v446, %v449
  %vm451 = vweird.f32 %v396
  %vm452 = vweird.f32 %v446
  %vm453 = vmor %vm451, %vm452
  %v454 = vsel %vm453, %v446, %v450
  %v455 = vand.u32 2147483647, %v396
  %vm456 = vcmp.eq.f32.partialorder %v455, 8.507059e+37
  %v457 = vand.u32 %v396, 2147483648
  %v458 = vor.u32 1.1754944e-38, %v457
  %v459 = vsel %vm456, %v458, %v454
  %v460 = vmul.f32 1.0, %v459
  %v461 = vrcp.pop %v397
  %v462 = vmul.f32 %v397, %v461
  %v463 = vsub.f32 1.0, %v462
  %v464 = vmul.f32 %v461, %v463
  %v465 = vadd.f32 %v461, %v464
  %vm466 = vweird.f32 %v397
  %vm467 = vweird.f32 %v461
  %vm468 = vmor %vm466, %vm467
  %v469 = vsel %vm468, %v461, %v465
  %v470 = vand.u32 2147483647, %v397
  %vm471 = vcmp.eq.f32.partialorder %v470, 8.507059e+37
  %v472 = vand.u32 %v397, 2147483648
  %v473 = vor.u32 1.1754944e-38, %v472
  %v474 = vsel %vm471, %v473, %v469
  %v475 = vmul.f32 1.0, %v474
  %v476 = vrcp.pop %v398
  %v477 = vmul.f32 %v398, %v476
  %v478 = vsub.f32 1.0, %v477
  %v479 = vmul.f32 %v476, %v478
  %v480 = vadd.f32 %v476, %v479
  %vm481 = vweird.f32 %v398
  %vm482 = vweird.f32 %v476
  %vm483 = vmor %vm481, %vm482
  %v484 = vsel %vm483, %v476, %v480
  %v485 = vand.u32 2147483647, %v398
  %vm486 = vcmp.eq.f32.partialorder %v485, 8.507059e+37
  %v487 = vand.u32 %v398, 2147483648
  %v488 = vor.u32 1.1754944e-38, %v487
  %v489 = vsel %vm486, %v488, %v484
  %v490 = vmul.f32 1.0, %v489
  %v491 = vrcp.pop %v399
  %v492 = vmul.f32 %v399, %v491
  %v493 = vsub.f32 1.0, %v492
  %v494 = vmul.f32 %v491, %v493
  %v495 = vadd.f32 %v491, %v494
  %vm496 = vweird.f32 %v399
  %vm497 = vweird.f32 %v491
  %vm498 = vmor %vm496, %vm497
  %v499 = vsel %vm498, %v491, %v495
  %v500 = vand.u32 2147483647, %v399
  %vm501 = vcmp.eq.f32.partialorder %v500, 8.507059e+37
  %v502 = vand.u32 %v399, 2147483648
  %v503 = vor.u32 1.1754944e-38, %v502
  %v504 = vsel %vm501, %v503, %v499
  %v505 = vmul.f32 1.0, %v504
  %v506 = vrcp.pop %v400
  %v507 = vmul.f32 %v400, %v506
  %v508 = vsub.f32 1.0, %v507
  %v509 = vmul.f32 %v506, %v508
  %v510 = vadd.f32 %v506, %v509
  %vm511 = vweird.f32 %v400
  %vm512 = vweird.f32 %v506
  %vm513 = vmor %vm511, %vm512
  %v514 = vsel %vm513, %v506, %v510
  %v515 = vand.u32 2147483647, %v400
  %vm516 = vcmp.eq.f32.partialorder %v515, 8.507059e+37
  %v517 = vand.u32 %v400, 2147483648
  %v518 = vor.u32 1.1754944e-38, %v517
  %v519 = vsel %vm516, %v518, %v514
  %v520 = vmul.f32 1.0, %v519
  %v521 = vmul.f32 %v346, %v415
  %v522 = vmul.f32 %v349, %v430
  %v523 = vmul.f32 %v352, %v445
  %v524 = vmul.f32 %v355, %v460
  %v525 = vmul.f32 %v358, %v475
  %v526 = vmul.f32 %v361, %v490
  %v527 = vmul.f32 %v364, %v505
  %v528 = vmul.f32 %v367, %v520
  %v529 = vmul.f32 %v282, %v521
  %v530 = vmul.f32 %v283, %v522
  %v531 = vmul.f32 %v284, %v523
  %v532 = vmul.f32 %v285, %v524
  %v533 = vmul.f32 %v286, %v525
  %v534 = vmul.f32 %v287, %v526
  %v535 = vmul.f32 %v288, %v527
  %v536 = vmul.f32 %v289, %v528
  %v537 = vld [vmem:[%s2] sm:$0xf]
  %v538 = vld [vmem:[%s2 + $0x4] sm:$0xf]
  %v539 = vld [vmem:[%s2 + $0x8] sm:$0xf]
  %v540 = vld [vmem:[%s2 + $0xc] sm:$0xf]
  %v541 = vld [vmem:[%s2 + $0x10] sm:$0xf]
  %v542 = vld [vmem:[%s2 + $0x14] sm:$0xf]
  %v543 = vld [vmem:[%s2 + $0x18] sm:$0xf]
  %v544 = vld [vmem:[%s2 + $0x1c] sm:$0xf]
  %v545 = vld [vmem:[%s2 + $0x20] sm:$0xf]
  %v546 = vld [vmem:[%s2 + $0x24] sm:$0xf]
  %v547 = vld [vmem:[%s2 + $0x28] sm:$0xf]
  %v548 = vld [vmem:[%s2 + $0x2c] sm:$0xf]
  %v549 = vld [vmem:[%s2 + $0x30] sm:$0xf]
  %v550 = vld [vmem:[%s2 + $0x34] sm:$0xf]
  %v551 = vld [vmem:[%s2 + $0x38] sm:$0xf]
  %v552 = vld [vmem:[%s2 + $0x3c] sm:$0xf]
  %v553 = vld [vmem:[%s10] sm:$0x1]
  %v554 = vrcp.pop 3.0
  %v555 = vmul.f32 3.0, %v554
  %v556 = vsub.f32 1.0, %v555
  %v557 = vmul.f32 %v554, %v556
  %v558 = vadd.f32 %v554, %v557
  %vm559 = vweird.f32 %v554
  %v560 = vsel %vm559, %v554, %v558
  %v561 = vmul.f32 %v537, %v560
  %v562 = vmul.f32 %v538, %v560
  %v563 = vmul.f32 %v539, %v560
  %v564 = vmul.f32 %v540, %v560
  %v565 = vmul.f32 %v541, %v560
  %v566 = vmul.f32 %v542, %v560
  %v567 = vmul.f32 %v543, %v560
  %v568 = vmul.f32 %v544, %v560
  %v569 = vmul.f32 %v545, %v560
  %v570 = vmul.f32 %v546, %v560
  %v571 = vmul.f32 %v547, %v560
  %v572 = vmul.f32 %v548, %v560
  %v573 = vmul.f32 %v549, %v560
  %v574 = vmul.f32 %v550, %v560
  %v575 = vmul.f32 %v551, %v560
  %v576 = vmul.f32 %v552, %v560
  %v577 = vmax.f32 %v561, 0.0
  %v578 = vmax.f32 %v562, 0.0
  %v579 = vmax.f32 %v563, 0.0
  %v580 = vmax.f32 %v564, 0.0
  %v581 = vmax.f32 %v565, 0.0
  %v582 = vmax.f32 %v566, 0.0
  %v583 = vmax.f32 %v567, 0.0
  %v584 = vmax.f32 %v568, 0.0
  %v585 = vmax.f32 %v569, 0.0
  %v586 = vmax.f32 %v570, 0.0
  %v587 = vmax.f32 %v571, 0.0
  %v588 = vmax.f32 %v572, 0.0
  %v589 = vmax.f32 %v573, 0.0
  %v590 = vmax.f32 %v574, 0.0
  %v591 = vmax.f32 %v575, 0.0
  %v592 = vmax.f32 %v576, 0.0
  %v593 = vmin.f32 %v577, 1.0
  %v594 = vmin.f32 %v578, 1.0
  %v595 = vmin.f32 %v579, 1.0
  %v596 = vmin.f32 %v580, 1.0
  %v597 = vmin.f32 %v581, 1.0
  %v598 = vmin.f32 %v582, 1.0
  %v599 = vmin.f32 %v583, 1.0
  %v600 = vmin.f32 %v584, 1.0
  %v601 = vmin.f32 %v585, 1.0
  %v602 = vmin.f32 %v586, 1.0
  %v603 = vmin.f32 %v587, 1.0
  %v604 = vmin.f32 %v588, 1.0
  %v605 = vmin.f32 %v589, 1.0
  %v606 = vmin.f32 %v590, 1.0
  %v607 = vmin.f32 %v591, 1.0
  %v608 = vmin.f32 %v592, 1.0
  %v609 = vmul.f32 %v593, 3.1415927
  %v610 = vmul.f32 %v594, 3.1415927
  %v611 = vmul.f32 %v595, 3.1415927
  %v612 = vmul.f32 %v596, 3.1415927
  %v613 = vmul.f32 %v597, 3.1415927
  %v614 = vmul.f32 %v598, 3.1415927
  %v615 = vmul.f32 %v599, 3.1415927
  %v616 = vmul.f32 %v600, 3.1415927
  %v617 = vmul.f32 %v601, 3.1415927
  %v618 = vmul.f32 %v602, 3.1415927
  %v619 = vmul.f32 %v603, 3.1415927
  %v620 = vmul.f32 %v604, 3.1415927
  %v621 = vmul.f32 %v605, 3.1415927
  %v622 = vmul.f32 %v606, 3.1415927
  %v623 = vmul.f32 %v607, 3.1415927
  %v624 = vmul.f32 %v608, 3.1415927
  %v625 = vand.u32 2147483647, %v609
  %vm626 = vcmp.le.f32.partialorder %v625, 0.7853982
  %vm627 = vcmp.lt.s32.totalorder %v609, 0
  %v628 = vand.u32 %v609, 2139095040
  %v629 = vshrl.u32 %v628, 23
  %v630 = vsub.s32 %v629, 127
  %v631 = vand.u32 2147483647, %v609
  %v632 = vand.u32 %v631, 8388607
  %v633 = vor.u32 %v632, 8388608
  %v634 = vsub.s32 0, %v633
  %v635 = vadd.s32 %v630, 1
  %vm636 = vcmp.gt.s32.totalorder %v635, 0
  %v637 = vsel %vm636, %v635, 0
  %v638 = vshrl.u32 %v637, 5
  %v639 = vand.u32 %v637, 31
  %v640 = vsub.s32 32, %v639
  %v641 = vshrl.u32 683565275, %v640
  %v642 = vshll.u32 683565275, %v639
  %v643 = vshrl.u32 2475754826, %v640
  %v644 = vor.u32 %v642, %v643
  %v645 = vshll.u32 2475754826, %v639
  %v646 = vshrl.u32 2131351028, %v640
  %v647 = vor.u32 %v645, %v646
  %v648 = vshll.u32 2131351028, %v639
  %v649 = vshrl.u32 2102212464, %v640
  %v650 = vor.u32 %v648, %v649
  %v651 = vshll.u32 2102212464, %v639
  %v652 = vshrl.u32 920167782, %v640
  %v653 = vor.u32 %v651, %v652
  %v654 = vshll.u32 920167782, %v639
  %v655 = vshrl.u32 1326507024, %v640
  %v656 = vor.u32 %v654, %v655
  %vm657 = vcmp.lt.s32.totalorder %v638, 1
  %vm658 = vcmp.lt.s32.totalorder %v638, 2
  %vm659 = vcmp.lt.s32.totalorder %v638, 3
  %vm660 = vcmp.lt.s32.totalorder %v638, 4
  %v661 = vsel %vm657, %v641, %v644
  %v662 = vsel %vm660, %v650, 2102212464
  %v663 = vsel %vm659, %v647, %v662
  %v664 = vsel %vm658, %v661, %v663
  %v665 = vsel %vm657, %v644, %v647
  %v666 = vsel %vm660, %v653, 920167782
  %v667 = vsel %vm659, %v650, %v666
  %v668 = vsel %vm658, %v665, %v667
  %v669 = vsel %vm657, %v647, %v650
  %v670 = vsel %vm660, %v656, 1326507024
  %v671 = vsel %vm659, %v653, %v670
  %v672 = vsel %vm658, %v669, %v671
  %v673 = vshll.u32 %v633, 8
  %v674 = vand.u32 %v673, 65535
  %v675 = vshrl.u32 %v673, 16
  %v676 = vand.u32 %v672, 65535
  %v677 = vshrl.u32 %v672, 16
  %v678 = vmul.u32 %v674, %v676
  %v679 = vmul.u32 %v674, %v677
  %v680 = vmul.u32 %v675, %v676
  %v681 = vmul.u32 %v675, %v677
  %v682 = vshll.u32 %v679, 16
  %v683 = vshrl.u32 %v679, 16
  %v684 = vshll.u32 %v680, 16
  %v685 = vshrl.u32 %v680, 16
  %vm686 = vc.u32 %v678, %v682
  %v687 = vsel %vm686, 1, 0
  %v688 = vadd.s32 %v678, %v682
  %v689 = vadd.s32 %v681, %v687
  %vm690 = vc.u32 %v688, %v684
  %v691 = vsel %vm690, 1, 0
  %v692 = vadd.s32 %v688, %v684
  %v693 = vadd.s32 %v689, %v691
  %v694 = vadd.s32 %v693, %v683
  %v695 = vadd.s32 %v694, %v685
  %v696 = vand.u32 %v673, 65535
  %v697 = vshrl.u32 %v673, 16
  %v698 = vand.u32 %v668, 65535
  %v699 = vshrl.u32 %v668, 16
  %v700 = vmul.u32 %v696, %v698
  %v701 = vmul.u32 %v696, %v699
  %v702 = vmul.u32 %v697, %v698
  %v703 = vmul.u32 %v697, %v699
  %v704 = vshll.u32 %v701, 16
  %v705 = vshrl.u32 %v701, 16
  %v706 = vshll.u32 %v702, 16
  %v707 = vshrl.u32 %v702, 16
  %vm708 = vc.u32 %v700, %v704
  %v709 = vsel %vm708, 1, 0
  %v710 = vadd.s32 %v700, %v704
  %v711 = vadd.s32 %v703, %v709
  %vm712 = vc.u32 %v710, %v706
  %v713 = vsel %vm712, 1, 0
  %v714 = vadd.s32 %v710, %v706
  %v715 = vadd.s32 %v711, %v713
  %v716 = vadd.s32 %v715, %v705
  %v717 = vadd.s32 %v716, %v707
  %v718 = vmul.u32 %v673, %v664
  %v719 = vadd.s32 %v695, %v714
  %vm720 = vc.u32 %v695, %v714
  %v721 = vadd.s32 %v717, 1
  %v722 = vsel %vm720, %v721, %v717
  %v723 = vadd.s32 %v718, %v722
  %v724 = vadd.s32 %v723, 536870912
  %v725 = vshrl.u32 %v724, 30
  %v726 = vshll.u32 %v725, 30
  %v727 = vsub.s32 %v723, %v726
  %vm728 = vcmp.lt.s32.totalorder %v727, 0
  %v729 = vsub.s32 0, %v727
  %v730 = vsel %vm728, %v729, %v727
  %v731 = vclz %v730
  %v732 = vsub.s32 %v731, 2
  %vm733 = vcmp.gt.s32.totalorder 0, %v732
  %v734 = vsel %vm733, 0, %v732
  %v735 = vsub.s32 32, %v734
  %v736 = vshll.u32 %v727, %v734
  %v737 = vshrl.u32 %v719, %v735
  %v738 = vor.u32 %v736, %v737
  %v739 = vsub.s32 4294967266, %v734
  %v740 = vadd.s32 %v739, 127
  %v741 = vshll.u32 %v740, 23
  %v742 = vor.u32 4788187, %v741
  %v743 = vand.u32 2147483647, %v742
  %v745 = vcvt.s32.f32 %v738
  %v746 = vmul.f32 %v745, %v743
  %v747 = vxor.u32 %v746, 2147483648
  %v748 = vsel %vm627, %v747, %v746
  %v749 = vsub.s32 4, %v725
  %v750 = vsel %vm627, %v749, %v725
  %v751 = vsel %vm626, %v609, %v748
  %v752 = vsel %vm626, 0, %v750
  %v753 = vmul.f32 %v751, %v751
  %v754 = vmul.f32 %v753, -0.001358992
  %v755 = vadd.f32 %v754, 0.041655596
  %v756 = vmul.f32 %v753, %v755
  %v757 = vadd.f32 %v756, -0.4999988
  %v758 = vmul.f32 %v753, %v757
  %v759 = vadd.f32 1.0, %v758
  %v760 = vmul.f32 %v751, %v751
  %v761 = vmul.f32 %v760, -0.00019511016
  %v762 = vadd.f32 %v761, 0.008332121
  %v763 = vmul.f32 %v760, %v762
  %v764 = vadd.f32 %v763, -0.16666654
  %v765 = vmul.f32 %v760, %v764
  %v766 = vadd.f32 %v765, 1.0
  %v767 = vmul.f32 %v766, %v751
  %vm768 = vweird.f32 %v609
  %v769 = vand.u32 %v752, 3
  %vm770 = vcmp.lt.s32.totalorder %v769, 2
  %vm771 = vcmp.eq.s32.totalorder %v769, 0
  %v772 = vxor.u32 %v767, 2147483648
  %v773 = vsel %vm771, %v759, %v772
  %vm774 = vcmp.eq.s32.totalorder %v769, 2
  %v775 = vxor.u32 %v759, 2147483648
  %v776 = vsel %vm774, %v775, %v767
  %v777 = vsel %vm770, %v773, %v776
  %v778 = vsel %vm768, nan, %v777
  %v779 = vand.u32 2147483647, %v610
  %vm780 = vcmp.le.f32.partialorder %v779, 0.7853982
  %vm781 = vcmp.lt.s32.totalorder %v610, 0
  %v782 = vand.u32 %v610, 2139095040
  %v783 = vshrl.u32 %v782, 23
  %v784 = vsub.s32 %v783, 127
  %v785 = vand.u32 2147483647, %v610
  %v786 = vand.u32 %v785, 8388607
  %v787 = vor.u32 %v786, 8388608
  %v788 = vsub.s32 0, %v787
  %v789 = vadd.s32 %v784, 1
  %vm790 = vcmp.gt.s32.totalorder %v789, 0
  %v791 = vsel %vm790, %v789, 0
  %v792 = vshrl.u32 %v791, 5
  %v793 = vand.u32 %v791, 31
  %v794 = vsub.s32 32, %v793
  %v795 = vshrl.u32 683565275, %v794
  %v796 = vshll.u32 683565275, %v793
  %v797 = vshrl.u32 2475754826, %v794
  %v798 = vor.u32 %v796, %v797
  %v799 = vshll.u32 2475754826, %v793
  %v800 = vshrl.u32 2131351028, %v794
  %v801 = vor.u32 %v799, %v800
  %v802 = vshll.u32 2131351028, %v793
  %v803 = vshrl.u32 2102212464, %v794
  %v804 = vor.u32 %v802, %v803
  %v805 = vshll.u32 2102212464, %v793
  %v806 = vshrl.u32 920167782, %v794
  %v807 = vor.u32 %v805, %v806
  %v808 = vshll.u32 920167782, %v793
  %v809 = vshrl.u32 1326507024, %v794
  %v810 = vor.u32 %v808, %v809
  %vm811 = vcmp.lt.s32.totalorder %v792, 1
  %vm812 = vcmp.lt.s32.totalorder %v792, 2
  %vm813 = vcmp.lt.s32.totalorder %v792, 3
  %vm814 = vcmp.lt.s32.totalorder %v792, 4
  %v815 = vsel %vm811, %v795, %v798
  %v816 = vsel %vm814, %v804, 2102212464
  %v817 = vsel %vm813, %v801, %v816
  %v818 = vsel %vm812, %v815, %v817
  %v819 = vsel %vm811, %v798, %v801
  %v820 = vsel %vm814, %v807, 920167782
  %v821 = vsel %vm813, %v804, %v820
  %v822 = vsel %vm812, %v819, %v821
  %v823 = vsel %vm811, %v801, %v804
  %v824 = vsel %vm814, %v810, 1326507024
  %v825 = vsel %vm813, %v807, %v824
  %v826 = vsel %vm812, %v823, %v825
  %v827 = vshll.u32 %v787, 8
  %v828 = vand.u32 %v827, 65535
  %v829 = vshrl.u32 %v827, 16
  %v830 = vand.u32 %v826, 65535
  %v831 = vshrl.u32 %v826, 16
  %v832 = vmul.u32 %v828, %v830
  %v833 = vmul.u32 %v828, %v831
  %v834 = vmul.u32 %v829, %v830
  %v835 = vmul.u32 %v829, %v831
  %v836 = vshll.u32 %v833, 16
  %v837 = vshrl.u32 %v833, 16
  %v838 = vshll.u32 %v834, 16
  %v839 = vshrl.u32 %v834, 16
  %vm840 = vc.u32 %v832, %v836
  %v841 = vsel %vm840, 1, 0
  %v842 = vadd.s32 %v832, %v836
  %v843 = vadd.s32 %v835, %v841
  %vm844 = vc.u32 %v842, %v838
  %v845 = vsel %vm844, 1, 0
  %v846 = vadd.s32 %v842, %v838
  %v847 = vadd.s32 %v843, %v845
  %v848 = vadd.s32 %v847, %v837
  %v849 = vadd.s32 %v848, %v839
  %v850 = vand.u32 %v827, 65535
  %v851 = vshrl.u32 %v827, 16
  %v852 = vand.u32 %v822, 65535
  %v853 = vshrl.u32 %v822, 16
  %v854 = vmul.u32 %v850, %v852
  %v855 = vmul.u32 %v850, %v853
  %v856 = vmul.u32 %v851, %v852
  %v857 = vmul.u32 %v851, %v853
  %v858 = vshll.u32 %v855, 16
  %v859 = vshrl.u32 %v855, 16
  %v860 = vshll.u32 %v856, 16
  %v861 = vshrl.u32 %v856, 16
  %vm862 = vc.u32 %v854, %v858
  %v863 = vsel %vm862, 1, 0
  %v864 = vadd.s32 %v854, %v858
  %v865 = vadd.s32 %v857, %v863
  %vm866 = vc.u32 %v864, %v860
  %v867 = vsel %vm866, 1, 0
  %v868 = vadd.s32 %v864, %v860
  %v869 = vadd.s32 %v865, %v867
  %v870 = vadd.s32 %v869, %v859
  %v871 = vadd.s32 %v870, %v861
  %v872 = vmul.u32 %v827, %v818
  %v873 = vadd.s32 %v849, %v868
  %vm874 = vc.u32 %v849, %v868
  %v875 = vadd.s32 %v871, 1
  %v876 = vsel %vm874, %v875, %v871
  %v877 = vadd.s32 %v872, %v876
  %v878 = vadd.s32 %v877, 536870912
  %v879 = vshrl.u32 %v878, 30
  %v880 = vshll.u32 %v879, 30
  %v881 = vsub.s32 %v877, %v880
  %vm882 = vcmp.lt.s32.totalorder %v881, 0
  %v883 = vsub.s32 0, %v881
  %v884 = vsel %vm882, %v883, %v881
  %v885 = vclz %v884
  %v886 = vsub.s32 %v885, 2
  %vm887 = vcmp.gt.s32.totalorder 0, %v886
  %v888 = vsel %vm887, 0, %v886
  %v889 = vsub.s32 32, %v888
  %v890 = vshll.u32 %v881, %v888
  %v891 = vshrl.u32 %v873, %v889
  %v892 = vor.u32 %v890, %v891
  %v893 = vsub.s32 4294967266, %v888
  %v894 = vadd.s32 %v893, 127
  %v895 = vshll.u32 %v894, 23
  %v896 = vor.u32 4788187, %v895
  %v897 = vand.u32 2147483647, %v896
  %v899 = vcvt.s32.f32 %v892
  %v900 = vmul.f32 %v899, %v897
  %v901 = vxor.u32 %v900, 2147483648
  %v902 = vsel %vm781, %v901, %v900
  %v903 = vsub.s32 4, %v879
  %v904 = vsel %vm781, %v903, %v879
  %v905 = vsel %vm780, %v610, %v902
  %v906 = vsel %vm780, 0, %v904
  %v907 = vmul.f32 %v905, %v905
  %v908 = vmul.f32 %v907, -0.001358992
  %v909 = vadd.f32 %v908, 0.041655596
  %v910 = vmul.f32 %v907, %v909
  %v911 = vadd.f32 %v910, -0.4999988
  %v912 = vmul.f32 %v907, %v911
  %v913 = vadd.f32 1.0, %v912
  %v914 = vmul.f32 %v905, %v905
  %v915 = vmul.f32 %v914, -0.00019511016
  %v916 = vadd.f32 %v915, 0.008332121
  %v917 = vmul.f32 %v914, %v916
  %v918 = vadd.f32 %v917, -0.16666654
  %v919 = vmul.f32 %v914, %v918
  %v920 = vadd.f32 %v919, 1.0
  %v921 = vmul.f32 %v920, %v905
  %vm922 = vweird.f32 %v610
  %v923 = vand.u32 %v906, 3
  %vm924 = vcmp.lt.s32.totalorder %v923, 2
  %vm925 = vcmp.eq.s32.totalorder %v923, 0
  %v926 = vxor.u32 %v921, 2147483648
  %v927 = vsel %vm925, %v913, %v926
  %vm928 = vcmp.eq.s32.totalorder %v923, 2
  %v929 = vxor.u32 %v913, 2147483648
  %v930 = vsel %vm928, %v929, %v921
  %v931 = vsel %vm924, %v927, %v930
  %v932 = vsel %vm922, nan, %v931
  %v933 = vand.u32 2147483647, %v611
  %vm934 = vcmp.le.f32.partialorder %v933, 0.7853982
  %vm935 = vcmp.lt.s32.totalorder %v611, 0
  %v936 = vand.u32 %v611, 2139095040
  %v937 = vshrl.u32 %v936, 23
  %v938 = vsub.s32 %v937, 127
  %v939 = vand.u32 2147483647, %v611
  %v940 = vand.u32 %v939, 8388607
  %v941 = vor.u32 %v940, 8388608
  %v942 = vsub.s32 0, %v941
  %v943 = vadd.s32 %v938, 1
  %vm944 = vcmp.gt.s32.totalorder %v943, 0
  %v945 = vsel %vm944, %v943, 0
  %v946 = vshrl.u32 %v945, 5
  %v947 = vand.u32 %v945, 31
  %v948 = vsub.s32 32, %v947
  %v949 = vshrl.u32 683565275, %v948
  %v950 = vshll.u32 683565275, %v947
  %v951 = vshrl.u32 2475754826, %v948
  %v952 = vor.u32 %v950, %v951
  %v953 = vshll.u32 2475754826, %v947
  %v954 = vshrl.u32 2131351028, %v948
  %v955 = vor.u32 %v953, %v954
  %v956 = vshll.u32 2131351028, %v947
  %v957 = vshrl.u32 2102212464, %v948
  %v958 = vor.u32 %v956, %v957
  %v959 = vshll.u32 2102212464, %v947
  %v960 = vshrl.u32 920167782, %v948
  %v961 = vor.u32 %v959, %v960
  %v962 = vshll.u32 920167782, %v947
  %v963 = vshrl.u32 1326507024, %v948
  %v964 = vor.u32 %v962, %v963
  %vm965 = vcmp.lt.s32.totalorder %v946, 1
  %vm966 = vcmp.lt.s32.totalorder %v946, 2
  %vm967 = vcmp.lt.s32.totalorder %v946, 3
  %vm968 = vcmp.lt.s32.totalorder %v946, 4
  %v969 = vsel %vm965, %v949, %v952
  %v970 = vsel %vm968, %v958, 2102212464
  %v971 = vsel %vm967, %v955, %v970
  %v972 = vsel %vm966, %v969, %v971
  %v973 = vsel %vm965, %v952, %v955
  %v974 = vsel %vm968, %v961, 920167782
  %v975 = vsel %vm967, %v958, %v974
  %v976 = vsel %vm966, %v973, %v975
  %v977 = vsel %vm965, %v955, %v958
  %v978 = vsel %vm968, %v964, 1326507024
  %v979 = vsel %vm967, %v961, %v978
  %v980 = vsel %vm966, %v977, %v979
  %v981 = vshll.u32 %v941, 8
  %v982 = vand.u32 %v981, 65535
  %v983 = vshrl.u32 %v981, 16
  %v984 = vand.u32 %v980, 65535
  %v985 = vshrl.u32 %v980, 16
  %v986 = vmul.u32 %v982, %v984
  %v987 = vmul.u32 %v982, %v985
  %v988 = vmul.u32 %v983, %v984
  %v989 = vmul.u32 %v983, %v985
  %v990 = vshll.u32 %v987, 16
  %v991 = vshrl.u32 %v987, 16
  %v992 = vshll.u32 %v988, 16
  %v993 = vshrl.u32 %v988, 16
  %vm994 = vc.u32 %v986, %v990
  %v995 = vsel %vm994, 1, 0
  %v996 = vadd.s32 %v986, %v990
  %v997 = vadd.s32 %v989, %v995
  %vm998 = vc.u32 %v996, %v992
  %v999 = vsel %vm998, 1, 0
  %v1000 = vadd.s32 %v996, %v992
  %v1001 = vadd.s32 %v997, %v999
  %v1002 = vadd.s32 %v1001, %v991
  %v1003 = vadd.s32 %v1002, %v993
  %v1004 = vand.u32 %v981, 65535
  %v1005 = vshrl.u32 %v981, 16
  %v1006 = vand.u32 %v976, 65535
  %v1007 = vshrl.u32 %v976, 16
  %v1008 = vmul.u32 %v1004, %v1006
  %v1009 = vmul.u32 %v1004, %v1007
  %v1010 = vmul.u32 %v1005, %v1006
  %v1011 = vmul.u32 %v1005, %v1007
  %v1012 = vshll.u32 %v1009, 16
  %v1013 = vshrl.u32 %v1009, 16
  %v1014 = vshll.u32 %v1010, 16
  %v1015 = vshrl.u32 %v1010, 16
  %vm1016 = vc.u32 %v1008, %v1012
  %v1017 = vsel %vm1016, 1, 0
  %v1018 = vadd.s32 %v1008, %v1012
  %v1019 = vadd.s32 %v1011, %v1017
  %vm1020 = vc.u32 %v1018, %v1014
  %v1021 = vsel %vm1020, 1, 0
  %v1022 = vadd.s32 %v1018, %v1014
  %v1023 = vadd.s32 %v1019, %v1021
  %v1024 = vadd.s32 %v1023, %v1013
  %v1025 = vadd.s32 %v1024, %v1015
  %v1026 = vmul.u32 %v981, %v972
  %v1027 = vadd.s32 %v1003, %v1022
  %vm1028 = vc.u32 %v1003, %v1022
  %v1029 = vadd.s32 %v1025, 1
  %v1030 = vsel %vm1028, %v1029, %v1025
  %v1031 = vadd.s32 %v1026, %v1030
  %v1032 = vadd.s32 %v1031, 536870912
  %v1033 = vshrl.u32 %v1032, 30
  %v1034 = vshll.u32 %v1033, 30
  %v1035 = vsub.s32 %v1031, %v1034
  %vm1036 = vcmp.lt.s32.totalorder %v1035, 0
  %v1037 = vsub.s32 0, %v1035
  %v1038 = vsel %vm1036, %v1037, %v1035
  %v1039 = vclz %v1038
  %v1040 = vsub.s32 %v1039, 2
  %vm1041 = vcmp.gt.s32.totalorder 0, %v1040
  %v1042 = vsel %vm1041, 0, %v1040
  %v1043 = vsub.s32 32, %v1042
  %v1044 = vshll.u32 %v1035, %v1042
  %v1045 = vshrl.u32 %v1027, %v1043
  %v1046 = vor.u32 %v1044, %v1045
  %v1047 = vsub.s32 4294967266, %v1042
  %v1048 = vadd.s32 %v1047, 127
  %v1049 = vshll.u32 %v1048, 23
  %v1050 = vor.u32 4788187, %v1049
  %v1051 = vand.u32 2147483647, %v1050
  %v1053 = vcvt.s32.f32 %v1046
  %v1054 = vmul.f32 %v1053, %v1051
  %v1055 = vxor.u32 %v1054, 2147483648
  %v1056 = vsel %vm935, %v1055, %v1054
  %v1057 = vsub.s32 4, %v1033
  %v1058 = vsel %vm935, %v1057, %v1033
  %v1059 = vsel %vm934, %v611, %v1056
  %v1060 = vsel %vm934, 0, %v1058
  %v1061 = vmul.f32 %v1059, %v1059
  %v1062 = vmul.f32 %v1061, -0.001358992
  %v1063 = vadd.f32 %v1062, 0.041655596
  %v1064 = vmul.f32 %v1061, %v1063
  %v1065 = vadd.f32 %v1064, -0.4999988
  %v1066 = vmul.f32 %v1061, %v1065
  %v1067 = vadd.f32 1.0, %v1066
  %v1068 = vmul.f32 %v1059, %v1059
  %v1069 = vmul.f32 %v1068, -0.00019511016
  %v1070 = vadd.f32 %v1069, 0.008332121
  %v1071 = vmul.f32 %v1068, %v1070
  %v1072 = vadd.f32 %v1071, -0.16666654
  %v1073 = vmul.f32 %v1068, %v1072
  %v1074 = vadd.f32 %v1073, 1.0
  %v1075 = vmul.f32 %v1074, %v1059
  %vm1076 = vweird.f32 %v611
  %v1077 = vand.u32 %v1060, 3
  %vm1078 = vcmp.lt.s32.totalorder %v1077, 2
  %vm1079 = vcmp.eq.s32.totalorder %v1077, 0
  %v1080 = vxor.u32 %v1075, 2147483648
  %v1081 = vsel %vm1079, %v1067, %v1080
  %vm1082 = vcmp.eq.s32.totalorder %v1077, 2
  %v1083 = vxor.u32 %v1067, 2147483648
  %v1084 = vsel %vm1082, %v1083, %v1075
  %v1085 = vsel %vm1078, %v1081, %v1084
  %v1086 = vsel %vm1076, nan, %v1085
  %v1087 = vand.u32 2147483647, %v612
  %vm1088 = vcmp.le.f32.partialorder %v1087, 0.7853982
  %vm1089 = vcmp.lt.s32.totalorder %v612, 0
  %v1090 = vand.u32 %v612, 2139095040
  %v1091 = vshrl.u32 %v1090, 23
  %v1092 = vsub.s32 %v1091, 127
  %v1093 = vand.u32 2147483647, %v612
  %v1094 = vand.u32 %v1093, 8388607
  %v1095 = vor.u32 %v1094, 8388608
  %v1096 = vsub.s32 0, %v1095
  %v1097 = vadd.s32 %v1092, 1
  %vm1098 = vcmp.gt.s32.totalorder %v1097, 0
  %v1099 = vsel %vm1098, %v1097, 0
  %v1100 = vshrl.u32 %v1099, 5
  %v1101 = vand.u32 %v1099, 31
  %v1102 = vsub.s32 32, %v1101
  %v1103 = vshrl.u32 683565275, %v1102
  %v1104 = vshll.u32 683565275, %v1101
  %v1105 = vshrl.u32 2475754826, %v1102
  %v1106 = vor.u32 %v1104, %v1105
  %v1107 = vshll.u32 2475754826, %v1101
  %v1108 = vshrl.u32 2131351028, %v1102
  %v1109 = vor.u32 %v1107, %v1108
  %v1110 = vshll.u32 2131351028, %v1101
  %v1111 = vshrl.u32 2102212464, %v1102
  %v1112 = vor.u32 %v1110, %v1111
  %v1113 = vshll.u32 2102212464, %v1101
  %v1114 = vshrl.u32 920167782, %v1102
  %v1115 = vor.u32 %v1113, %v1114
  %v1116 = vshll.u32 920167782, %v1101
  %v1117 = vshrl.u32 1326507024, %v1102
  %v1118 = vor.u32 %v1116, %v1117
  %vm1119 = vcmp.lt.s32.totalorder %v1100, 1
  %vm1120 = vcmp.lt.s32.totalorder %v1100, 2
  %vm1121 = vcmp.lt.s32.totalorder %v1100, 3
  %vm1122 = vcmp.lt.s32.totalorder %v1100, 4
  %v1123 = vsel %vm1119, %v1103, %v1106
  %v1124 = vsel %vm1122, %v1112, 2102212464
  %v1125 = vsel %vm1121, %v1109, %v1124
  %v1126 = vsel %vm1120, %v1123, %v1125
  %v1127 = vsel %vm1119, %v1106, %v1109
  %v1128 = vsel %vm1122, %v1115, 920167782
  %v1129 = vsel %vm1121, %v1112, %v1128
  %v1130 = vsel %vm1120, %v1127, %v1129
  %v1131 = vsel %vm1119, %v1109, %v1112
  %v1132 = vsel %vm1122, %v1118, 1326507024
  %v1133 = vsel %vm1121, %v1115, %v1132
  %v1134 = vsel %vm1120, %v1131, %v1133
  %v1135 = vshll.u32 %v1095, 8
  %v1136 = vand.u32 %v1135, 65535
  %v1137 = vshrl.u32 %v1135, 16
  %v1138 = vand.u32 %v1134, 65535
  %v1139 = vshrl.u32 %v1134, 16
  %v1140 = vmul.u32 %v1136, %v1138
  %v1141 = vmul.u32 %v1136, %v1139
  %v1142 = vmul.u32 %v1137, %v1138
  %v1143 = vmul.u32 %v1137, %v1139
  %v1144 = vshll.u32 %v1141, 16
  %v1145 = vshrl.u32 %v1141, 16
  %v1146 = vshll.u32 %v1142, 16
  %v1147 = vshrl.u32 %v1142, 16
  %vm1148 = vc.u32 %v1140, %v1144
  %v1149 = vsel %vm1148, 1, 0
  %v1150 = vadd.s32 %v1140, %v1144
  %v1151 = vadd.s32 %v1143, %v1149
  %vm1152 = vc.u32 %v1150, %v1146
  %v1153 = vsel %vm1152, 1, 0
  %v1154 = vadd.s32 %v1150, %v1146
  %v1155 = vadd.s32 %v1151, %v1153
  %v1156 = vadd.s32 %v1155, %v1145
  %v1157 = vadd.s32 %v1156, %v1147
  %v1158 = vand.u32 %v1135, 65535
  %v1159 = vshrl.u32 %v1135, 16
  %v1160 = vand.u32 %v1130, 65535
  %v1161 = vshrl.u32 %v1130, 16
  %v1162 = vmul.u32 %v1158, %v1160
  %v1163 = vmul.u32 %v1158, %v1161
  %v1164 = vmul.u32 %v1159, %v1160
  %v1165 = vmul.u32 %v1159, %v1161
  %v1166 = vshll.u32 %v1163, 16
  %v1167 = vshrl.u32 %v1163, 16
  %v1168 = vshll.u32 %v1164, 16
  %v1169 = vshrl.u32 %v1164, 16
  %vm1170 = vc.u32 %v1162, %v1166
  %v1171 = vsel %vm1170, 1, 0
  %v1172 = vadd.s32 %v1162, %v1166
  %v1173 = vadd.s32 %v1165, %v1171
  %vm1174 = vc.u32 %v1172, %v1168
  %v1175 = vsel %vm1174, 1, 0
  %v1176 = vadd.s32 %v1172, %v1168
  %v1177 = vadd.s32 %v1173, %v1175
  %v1178 = vadd.s32 %v1177, %v1167
  %v1179 = vadd.s32 %v1178, %v1169
  %v1180 = vmul.u32 %v1135, %v1126
  %v1181 = vadd.s32 %v1157, %v1176
  %vm1182 = vc.u32 %v1157, %v1176
  %v1183 = vadd.s32 %v1179, 1
  %v1184 = vsel %vm1182, %v1183, %v1179
  %v1185 = vadd.s32 %v1180, %v1184
  %v1186 = vadd.s32 %v1185, 536870912
  %v1187 = vshrl.u32 %v1186, 30
  %v1188 = vshll.u32 %v1187, 30
  %v1189 = vsub.s32 %v1185, %v1188
  %vm1190 = vcmp.lt.s32.totalorder %v1189, 0
  %v1191 = vsub.s32 0, %v1189
  %v1192 = vsel %vm1190, %v1191, %v1189
  %v1193 = vclz %v1192
  %v1194 = vsub.s32 %v1193, 2
  %vm1195 = vcmp.gt.s32.totalorder 0, %v1194
  %v1196 = vsel %vm1195, 0, %v1194
  %v1197 = vsub.s32 32, %v1196
  %v1198 = vshll.u32 %v1189, %v1196
  %v1199 = vshrl.u32 %v1181, %v1197
  %v1200 = vor.u32 %v1198, %v1199
  %v1201 = vsub.s32 4294967266, %v1196
  %v1202 = vadd.s32 %v1201, 127
  %v1203 = vshll.u32 %v1202, 23
  %v1204 = vor.u32 4788187, %v1203
  %v1205 = vand.u32 2147483647, %v1204
  %v1207 = vcvt.s32.f32 %v1200
  %v1208 = vmul.f32 %v1207, %v1205
  %v1209 = vxor.u32 %v1208, 2147483648
  %v1210 = vsel %vm1089, %v1209, %v1208
  %v1211 = vsub.s32 4, %v1187
  %v1212 = vsel %vm1089, %v1211, %v1187
  %v1213 = vsel %vm1088, %v612, %v1210
  %v1214 = vsel %vm1088, 0, %v1212
  %v1215 = vmul.f32 %v1213, %v1213
  %v1216 = vmul.f32 %v1215, -0.001358992
  %v1217 = vadd.f32 %v1216, 0.041655596
  %v1218 = vmul.f32 %v1215, %v1217
  %v1219 = vadd.f32 %v1218, -0.4999988
  %v1220 = vmul.f32 %v1215, %v1219
  %v1221 = vadd.f32 1.0, %v1220
  %v1222 = vmul.f32 %v1213, %v1213
  %v1223 = vmul.f32 %v1222, -0.00019511016
  %v1224 = vadd.f32 %v1223, 0.008332121
  %v1225 = vmul.f32 %v1222, %v1224
  %v1226 = vadd.f32 %v1225, -0.16666654
  %v1227 = vmul.f32 %v1222, %v1226
  %v1228 = vadd.f32 %v1227, 1.0
  %v1229 = vmul.f32 %v1228, %v1213
  %vm1230 = vweird.f32 %v612
  %v1231 = vand.u32 %v1214, 3
  %vm1232 = vcmp.lt.s32.totalorder %v1231, 2
  %vm1233 = vcmp.eq.s32.totalorder %v1231, 0
  %v1234 = vxor.u32 %v1229, 2147483648
  %v1235 = vsel %vm1233, %v1221, %v1234
  %vm1236 = vcmp.eq.s32.totalorder %v1231, 2
  %v1237 = vxor.u32 %v1221, 2147483648
  %v1238 = vsel %vm1236, %v1237, %v1229
  %v1239 = vsel %vm1232, %v1235, %v1238
  %v1240 = vsel %vm1230, nan, %v1239
  %v1241 = vand.u32 2147483647, %v613
  %vm1242 = vcmp.le.f32.partialorder %v1241, 0.7853982
  %vm1243 = vcmp.lt.s32.totalorder %v613, 0
  %v1244 = vand.u32 %v613, 2139095040
  %v1245 = vshrl.u32 %v1244, 23
  %v1246 = vsub.s32 %v1245, 127
  %v1247 = vand.u32 2147483647, %v613
  %v1248 = vand.u32 %v1247, 8388607
  %v1249 = vor.u32 %v1248, 8388608
  %v1250 = vsub.s32 0, %v1249
  %v1251 = vadd.s32 %v1246, 1
  %vm1252 = vcmp.gt.s32.totalorder %v1251, 0
  %v1253 = vsel %vm1252, %v1251, 0
  %v1254 = vshrl.u32 %v1253, 5
  %v1255 = vand.u32 %v1253, 31
  %v1256 = vsub.s32 32, %v1255
  %v1257 = vshrl.u32 683565275, %v1256
  %v1258 = vshll.u32 683565275, %v1255
  %v1259 = vshrl.u32 2475754826, %v1256
  %v1260 = vor.u32 %v1258, %v1259
  %v1261 = vshll.u32 2475754826, %v1255
  %v1262 = vshrl.u32 2131351028, %v1256
  %v1263 = vor.u32 %v1261, %v1262
  %v1264 = vshll.u32 2131351028, %v1255
  %v1265 = vshrl.u32 2102212464, %v1256
  %v1266 = vor.u32 %v1264, %v1265
  %v1267 = vshll.u32 2102212464, %v1255
  %v1268 = vshrl.u32 920167782, %v1256
  %v1269 = vor.u32 %v1267, %v1268
  %v1270 = vshll.u32 920167782, %v1255
  %v1271 = vshrl.u32 1326507024, %v1256
  %v1272 = vor.u32 %v1270, %v1271
  %vm1273 = vcmp.lt.s32.totalorder %v1254, 1
  %vm1274 = vcmp.lt.s32.totalorder %v1254, 2
  %vm1275 = vcmp.lt.s32.totalorder %v1254, 3
  %vm1276 = vcmp.lt.s32.totalorder %v1254, 4
  %v1277 = vsel %vm1273, %v1257, %v1260
  %v1278 = vsel %vm1276, %v1266, 2102212464
  %v1279 = vsel %vm1275, %v1263, %v1278
  %v1280 = vsel %vm1274, %v1277, %v1279
  %v1281 = vsel %vm1273, %v1260, %v1263
  %v1282 = vsel %vm1276, %v1269, 920167782
  %v1283 = vsel %vm1275, %v1266, %v1282
  %v1284 = vsel %vm1274, %v1281, %v1283
  %v1285 = vsel %vm1273, %v1263, %v1266
  %v1286 = vsel %vm1276, %v1272, 1326507024
  %v1287 = vsel %vm1275, %v1269, %v1286
  %v1288 = vsel %vm1274, %v1285, %v1287
  %v1289 = vshll.u32 %v1249, 8
  %v1290 = vand.u32 %v1289, 65535
  %v1291 = vshrl.u32 %v1289, 16
  %v1292 = vand.u32 %v1288, 65535
  %v1293 = vshrl.u32 %v1288, 16
  %v1294 = vmul.u32 %v1290, %v1292
  %v1295 = vmul.u32 %v1290, %v1293
  %v1296 = vmul.u32 %v1291, %v1292
  %v1297 = vmul.u32 %v1291, %v1293
  %v1298 = vshll.u32 %v1295, 16
  %v1299 = vshrl.u32 %v1295, 16
  %v1300 = vshll.u32 %v1296, 16
  %v1301 = vshrl.u32 %v1296, 16
  %vm1302 = vc.u32 %v1294, %v1298
  %v1303 = vsel %vm1302, 1, 0
  %v1304 = vadd.s32 %v1294, %v1298
  %v1305 = vadd.s32 %v1297, %v1303
  %vm1306 = vc.u32 %v1304, %v1300
  %v1307 = vsel %vm1306, 1, 0
  %v1308 = vadd.s32 %v1304, %v1300
  %v1309 = vadd.s32 %v1305, %v1307
  %v1310 = vadd.s32 %v1309, %v1299
  %v1311 = vadd.s32 %v1310, %v1301
  %v1312 = vand.u32 %v1289, 65535
  %v1313 = vshrl.u32 %v1289, 16
  %v1314 = vand.u32 %v1284, 65535
  %v1315 = vshrl.u32 %v1284, 16
  %v1316 = vmul.u32 %v1312, %v1314
  %v1317 = vmul.u32 %v1312, %v1315
  %v1318 = vmul.u32 %v1313, %v1314
  %v1319 = vmul.u32 %v1313, %v1315
  %v1320 = vshll.u32 %v1317, 16
  %v1321 = vshrl.u32 %v1317, 16
  %v1322 = vshll.u32 %v1318, 16
  %v1323 = vshrl.u32 %v1318, 16
  %vm1324 = vc.u32 %v1316, %v1320
  %v1325 = vsel %vm1324, 1, 0
  %v1326 = vadd.s32 %v1316, %v1320
  %v1327 = vadd.s32 %v1319, %v1325
  %vm1328 = vc.u32 %v1326, %v1322
  %v1329 = vsel %vm1328, 1, 0
  %v1330 = vadd.s32 %v1326, %v1322
  %v1331 = vadd.s32 %v1327, %v1329
  %v1332 = vadd.s32 %v1331, %v1321
  %v1333 = vadd.s32 %v1332, %v1323
  %v1334 = vmul.u32 %v1289, %v1280
  %v1335 = vadd.s32 %v1311, %v1330
  %vm1336 = vc.u32 %v1311, %v1330
  %v1337 = vadd.s32 %v1333, 1
  %v1338 = vsel %vm1336, %v1337, %v1333
  %v1339 = vadd.s32 %v1334, %v1338
  %v1340 = vadd.s32 %v1339, 536870912
  %v1341 = vshrl.u32 %v1340, 30
  %v1342 = vshll.u32 %v1341, 30
  %v1343 = vsub.s32 %v1339, %v1342
  %vm1344 = vcmp.lt.s32.totalorder %v1343, 0
  %v1345 = vsub.s32 0, %v1343
  %v1346 = vsel %vm1344, %v1345, %v1343
  %v1347 = vclz %v1346
  %v1348 = vsub.s32 %v1347, 2
  %vm1349 = vcmp.gt.s32.totalorder 0, %v1348
  %v1350 = vsel %vm1349, 0, %v1348
  %v1351 = vsub.s32 32, %v1350
  %v1352 = vshll.u32 %v1343, %v1350
  %v1353 = vshrl.u32 %v1335, %v1351
  %v1354 = vor.u32 %v1352, %v1353
  %v1355 = vsub.s32 4294967266, %v1350
  %v1356 = vadd.s32 %v1355, 127
  %v1357 = vshll.u32 %v1356, 23
  %v1358 = vor.u32 4788187, %v1357
  %v1359 = vand.u32 2147483647, %v1358
  %v1361 = vcvt.s32.f32 %v1354
  %v1362 = vmul.f32 %v1361, %v1359
  %v1363 = vxor.u32 %v1362, 2147483648
  %v1364 = vsel %vm1243, %v1363, %v1362
  %v1365 = vsub.s32 4, %v1341
  %v1366 = vsel %vm1243, %v1365, %v1341
  %v1367 = vsel %vm1242, %v613, %v1364
  %v1368 = vsel %vm1242, 0, %v1366
  %v1369 = vmul.f32 %v1367, %v1367
  %v1370 = vmul.f32 %v1369, -0.001358992
  %v1371 = vadd.f32 %v1370, 0.041655596
  %v1372 = vmul.f32 %v1369, %v1371
  %v1373 = vadd.f32 %v1372, -0.4999988
  %v1374 = vmul.f32 %v1369, %v1373
  %v1375 = vadd.f32 1.0, %v1374
  %v1376 = vmul.f32 %v1367, %v1367
  %v1377 = vmul.f32 %v1376, -0.00019511016
  %v1378 = vadd.f32 %v1377, 0.008332121
  %v1379 = vmul.f32 %v1376, %v1378
  %v1380 = vadd.f32 %v1379, -0.16666654
  %v1381 = vmul.f32 %v1376, %v1380
  %v1382 = vadd.f32 %v1381, 1.0
  %v1383 = vmul.f32 %v1382, %v1367
  %vm1384 = vweird.f32 %v613
  %v1385 = vand.u32 %v1368, 3
  %vm1386 = vcmp.lt.s32.totalorder %v1385, 2
  %vm1387 = vcmp.eq.s32.totalorder %v1385, 0
  %v1388 = vxor.u32 %v1383, 2147483648
  %v1389 = vsel %vm1387, %v1375, %v1388
  %vm1390 = vcmp.eq.s32.totalorder %v1385, 2
  %v1391 = vxor.u32 %v1375, 2147483648
  %v1392 = vsel %vm1390, %v1391, %v1383
  %v1393 = vsel %vm1386, %v1389, %v1392
  %v1394 = vsel %vm1384, nan, %v1393
  %v1395 = vand.u32 2147483647, %v614
  %vm1396 = vcmp.le.f32.partialorder %v1395, 0.7853982
  %vm1397 = vcmp.lt.s32.totalorder %v614, 0
  %v1398 = vand.u32 %v614, 2139095040
  %v1399 = vshrl.u32 %v1398, 23
  %v1400 = vsub.s32 %v1399, 127
  %v1401 = vand.u32 2147483647, %v614
  %v1402 = vand.u32 %v1401, 8388607
  %v1403 = vor.u32 %v1402, 8388608
  %v1404 = vsub.s32 0, %v1403
  %v1405 = vadd.s32 %v1400, 1
  %vm1406 = vcmp.gt.s32.totalorder %v1405, 0
  %v1407 = vsel %vm1406, %v1405, 0
  %v1408 = vshrl.u32 %v1407, 5
  %v1409 = vand.u32 %v1407, 31
  %v1410 = vsub.s32 32, %v1409
  %v1411 = vshrl.u32 683565275, %v1410
  %v1412 = vshll.u32 683565275, %v1409
  %v1413 = vshrl.u32 2475754826, %v1410
  %v1414 = vor.u32 %v1412, %v1413
  %v1415 = vshll.u32 2475754826, %v1409
  %v1416 = vshrl.u32 2131351028, %v1410
  %v1417 = vor.u32 %v1415, %v1416
  %v1418 = vshll.u32 2131351028, %v1409
  %v1419 = vshrl.u32 2102212464, %v1410
  %v1420 = vor.u32 %v1418, %v1419
  %v1421 = vshll.u32 2102212464, %v1409
  %v1422 = vshrl.u32 920167782, %v1410
  %v1423 = vor.u32 %v1421, %v1422
  %v1424 = vshll.u32 920167782, %v1409
  %v1425 = vshrl.u32 1326507024, %v1410
  %v1426 = vor.u32 %v1424, %v1425
  %vm1427 = vcmp.lt.s32.totalorder %v1408, 1
  %vm1428 = vcmp.lt.s32.totalorder %v1408, 2
  %vm1429 = vcmp.lt.s32.totalorder %v1408, 3
  %vm1430 = vcmp.lt.s32.totalorder %v1408, 4
  %v1431 = vsel %vm1427, %v1411, %v1414
  %v1432 = vsel %vm1430, %v1420, 2102212464
  %v1433 = vsel %vm1429, %v1417, %v1432
  %v1434 = vsel %vm1428, %v1431, %v1433
  %v1435 = vsel %vm1427, %v1414, %v1417
  %v1436 = vsel %vm1430, %v1423, 920167782
  %v1437 = vsel %vm1429, %v1420, %v1436
  %v1438 = vsel %vm1428, %v1435, %v1437
  %v1439 = vsel %vm1427, %v1417, %v1420
  %v1440 = vsel %vm1430, %v1426, 1326507024
  %v1441 = vsel %vm1429, %v1423, %v1440
  %v1442 = vsel %vm1428, %v1439, %v1441
  %v1443 = vshll.u32 %v1403, 8
  %v1444 = vand.u32 %v1443, 65535
  %v1445 = vshrl.u32 %v1443, 16
  %v1446 = vand.u32 %v1442, 65535
  %v1447 = vshrl.u32 %v1442, 16
  %v1448 = vmul.u32 %v1444, %v1446
  %v1449 = vmul.u32 %v1444, %v1447
  %v1450 = vmul.u32 %v1445, %v1446
  %v1451 = vmul.u32 %v1445, %v1447
  %v1452 = vshll.u32 %v1449, 16
  %v1453 = vshrl.u32 %v1449, 16
  %v1454 = vshll.u32 %v1450, 16
  %v1455 = vshrl.u32 %v1450, 16
  %vm1456 = vc.u32 %v1448, %v1452
  %v1457 = vsel %vm1456, 1, 0
  %v1458 = vadd.s32 %v1448, %v1452
  %v1459 = vadd.s32 %v1451, %v1457
  %vm1460 = vc.u32 %v1458, %v1454
  %v1461 = vsel %vm1460, 1, 0
  %v1462 = vadd.s32 %v1458, %v1454
  %v1463 = vadd.s32 %v1459, %v1461
  %v1464 = vadd.s32 %v1463, %v1453
  %v1465 = vadd.s32 %v1464, %v1455
  %v1466 = vand.u32 %v1443, 65535
  %v1467 = vshrl.u32 %v1443, 16
  %v1468 = vand.u32 %v1438, 65535
  %v1469 = vshrl.u32 %v1438, 16
  %v1470 = vmul.u32 %v1466, %v1468
  %v1471 = vmul.u32 %v1466, %v1469
  %v1472 = vmul.u32 %v1467, %v1468
  %v1473 = vmul.u32 %v1467, %v1469
  %v1474 = vshll.u32 %v1471, 16
  %v1475 = vshrl.u32 %v1471, 16
  %v1476 = vshll.u32 %v1472, 16
  %v1477 = vshrl.u32 %v1472, 16
  %vm1478 = vc.u32 %v1470, %v1474
  %v1479 = vsel %vm1478, 1, 0
  %v1480 = vadd.s32 %v1470, %v1474
  %v1481 = vadd.s32 %v1473, %v1479
  %vm1482 = vc.u32 %v1480, %v1476
  %v1483 = vsel %vm1482, 1, 0
  %v1484 = vadd.s32 %v1480, %v1476
  %v1485 = vadd.s32 %v1481, %v1483
  %v1486 = vadd.s32 %v1485, %v1475
  %v1487 = vadd.s32 %v1486, %v1477
  %v1488 = vmul.u32 %v1443, %v1434
  %v1489 = vadd.s32 %v1465, %v1484
  %vm1490 = vc.u32 %v1465, %v1484
  %v1491 = vadd.s32 %v1487, 1
  %v1492 = vsel %vm1490, %v1491, %v1487
  %v1493 = vadd.s32 %v1488, %v1492
  %v1494 = vadd.s32 %v1493, 536870912
  %v1495 = vshrl.u32 %v1494, 30
  %v1496 = vshll.u32 %v1495, 30
  %v1497 = vsub.s32 %v1493, %v1496
  %vm1498 = vcmp.lt.s32.totalorder %v1497, 0
  %v1499 = vsub.s32 0, %v1497
  %v1500 = vsel %vm1498, %v1499, %v1497
  %v1501 = vclz %v1500
  %v1502 = vsub.s32 %v1501, 2
  %vm1503 = vcmp.gt.s32.totalorder 0, %v1502
  %v1504 = vsel %vm1503, 0, %v1502
  %v1505 = vsub.s32 32, %v1504
  %v1506 = vshll.u32 %v1497, %v1504
  %v1507 = vshrl.u32 %v1489, %v1505
  %v1508 = vor.u32 %v1506, %v1507
  %v1509 = vsub.s32 4294967266, %v1504
  %v1510 = vadd.s32 %v1509, 127
  %v1511 = vshll.u32 %v1510, 23
  %v1512 = vor.u32 4788187, %v1511
  %v1513 = vand.u32 2147483647, %v1512
  %v1515 = vcvt.s32.f32 %v1508
  %v1516 = vmul.f32 %v1515, %v1513
  %v1517 = vxor.u32 %v1516, 2147483648
  %v1518 = vsel %vm1397, %v1517, %v1516
  %v1519 = vsub.s32 4, %v1495
  %v1520 = vsel %vm1397, %v1519, %v1495
  %v1521 = vsel %vm1396, %v614, %v1518
  %v1522 = vsel %vm1396, 0, %v1520
  %v1523 = vmul.f32 %v1521, %v1521
  %v1524 = vmul.f32 %v1523, -0.001358992
  %v1525 = vadd.f32 %v1524, 0.041655596
  %v1526 = vmul.f32 %v1523, %v1525
  %v1527 = vadd.f32 %v1526, -0.4999988
  %v1528 = vmul.f32 %v1523, %v1527
  %v1529 = vadd.f32 1.0, %v1528
  %v1530 = vmul.f32 %v1521, %v1521
  %v1531 = vmul.f32 %v1530, -0.00019511016
  %v1532 = vadd.f32 %v1531, 0.008332121
  %v1533 = vmul.f32 %v1530, %v1532
  %v1534 = vadd.f32 %v1533, -0.16666654
  %v1535 = vmul.f32 %v1530, %v1534
  %v1536 = vadd.f32 %v1535, 1.0
  %v1537 = vmul.f32 %v1536, %v1521
  %vm1538 = vweird.f32 %v614
  %v1539 = vand.u32 %v1522, 3
  %vm1540 = vcmp.lt.s32.totalorder %v1539, 2
  %vm1541 = vcmp.eq.s32.totalorder %v1539, 0
  %v1542 = vxor.u32 %v1537, 2147483648
  %v1543 = vsel %vm1541, %v1529, %v1542
  %vm1544 = vcmp.eq.s32.totalorder %v1539, 2
  %v1545 = vxor.u32 %v1529, 2147483648
  %v1546 = vsel %vm1544, %v1545, %v1537
  %v1547 = vsel %vm1540, %v1543, %v1546
  %v1548 = vsel %vm1538, nan, %v1547
  %v1549 = vand.u32 2147483647, %v615
  %vm1550 = vcmp.le.f32.partialorder %v1549, 0.7853982
  %vm1551 = vcmp.lt.s32.totalorder %v615, 0
  %v1552 = vand.u32 %v615, 2139095040
  %v1553 = vshrl.u32 %v1552, 23
  %v1554 = vsub.s32 %v1553, 127
  %v1555 = vand.u32 2147483647, %v615
  %v1556 = vand.u32 %v1555, 8388607
  %v1557 = vor.u32 %v1556, 8388608
  %v1558 = vsub.s32 0, %v1557
  %v1559 = vadd.s32 %v1554, 1
  %vm1560 = vcmp.gt.s32.totalorder %v1559, 0
  %v1561 = vsel %vm1560, %v1559, 0
  %v1562 = vshrl.u32 %v1561, 5
  %v1563 = vand.u32 %v1561, 31
  %v1564 = vsub.s32 32, %v1563
  %v1565 = vshrl.u32 683565275, %v1564
  %v1566 = vshll.u32 683565275, %v1563
  %v1567 = vshrl.u32 2475754826, %v1564
  %v1568 = vor.u32 %v1566, %v1567
  %v1569 = vshll.u32 2475754826, %v1563
  %v1570 = vshrl.u32 2131351028, %v1564
  %v1571 = vor.u32 %v1569, %v1570
  %v1572 = vshll.u32 2131351028, %v1563
  %v1573 = vshrl.u32 2102212464, %v1564
  %v1574 = vor.u32 %v1572, %v1573
  %v1575 = vshll.u32 2102212464, %v1563
  %v1576 = vshrl.u32 920167782, %v1564
  %v1577 = vor.u32 %v1575, %v1576
  %v1578 = vshll.u32 920167782, %v1563
  %v1579 = vshrl.u32 1326507024, %v1564
  %v1580 = vor.u32 %v1578, %v1579
  %vm1581 = vcmp.lt.s32.totalorder %v1562, 1
  %vm1582 = vcmp.lt.s32.totalorder %v1562, 2
  %vm1583 = vcmp.lt.s32.totalorder %v1562, 3
  %vm1584 = vcmp.lt.s32.totalorder %v1562, 4
  %v1585 = vsel %vm1581, %v1565, %v1568
  %v1586 = vsel %vm1584, %v1574, 2102212464
  %v1587 = vsel %vm1583, %v1571, %v1586
  %v1588 = vsel %vm1582, %v1585, %v1587
  %v1589 = vsel %vm1581, %v1568, %v1571
  %v1590 = vsel %vm1584, %v1577, 920167782
  %v1591 = vsel %vm1583, %v1574, %v1590
  %v1592 = vsel %vm1582, %v1589, %v1591
  %v1593 = vsel %vm1581, %v1571, %v1574
  %v1594 = vsel %vm1584, %v1580, 1326507024
  %v1595 = vsel %vm1583, %v1577, %v1594
  %v1596 = vsel %vm1582, %v1593, %v1595
  %v1597 = vshll.u32 %v1557, 8
  %v1598 = vand.u32 %v1597, 65535
  %v1599 = vshrl.u32 %v1597, 16
  %v1600 = vand.u32 %v1596, 65535
  %v1601 = vshrl.u32 %v1596, 16
  %v1602 = vmul.u32 %v1598, %v1600
  %v1603 = vmul.u32 %v1598, %v1601
  %v1604 = vmul.u32 %v1599, %v1600
  %v1605 = vmul.u32 %v1599, %v1601
  %v1606 = vshll.u32 %v1603, 16
  %v1607 = vshrl.u32 %v1603, 16
  %v1608 = vshll.u32 %v1604, 16
  %v1609 = vshrl.u32 %v1604, 16
  %vm1610 = vc.u32 %v1602, %v1606
  %v1611 = vsel %vm1610, 1, 0
  %v1612 = vadd.s32 %v1602, %v1606
  %v1613 = vadd.s32 %v1605, %v1611
  %vm1614 = vc.u32 %v1612, %v1608
  %v1615 = vsel %vm1614, 1, 0
  %v1616 = vadd.s32 %v1612, %v1608
  %v1617 = vadd.s32 %v1613, %v1615
  %v1618 = vadd.s32 %v1617, %v1607
  %v1619 = vadd.s32 %v1618, %v1609
  %v1620 = vand.u32 %v1597, 65535
  %v1621 = vshrl.u32 %v1597, 16
  %v1622 = vand.u32 %v1592, 65535
  %v1623 = vshrl.u32 %v1592, 16
  %v1624 = vmul.u32 %v1620, %v1622
  %v1625 = vmul.u32 %v1620, %v1623
  %v1626 = vmul.u32 %v1621, %v1622
  %v1627 = vmul.u32 %v1621, %v1623
  %v1628 = vshll.u32 %v1625, 16
  %v1629 = vshrl.u32 %v1625, 16
  %v1630 = vshll.u32 %v1626, 16
  %v1631 = vshrl.u32 %v1626, 16
  %vm1632 = vc.u32 %v1624, %v1628
  %v1633 = vsel %vm1632, 1, 0
  %v1634 = vadd.s32 %v1624, %v1628
  %v1635 = vadd.s32 %v1627, %v1633
  %vm1636 = vc.u32 %v1634, %v1630
  %v1637 = vsel %vm1636, 1, 0
  %v1638 = vadd.s32 %v1634, %v1630
  %v1639 = vadd.s32 %v1635, %v1637
  %v1640 = vadd.s32 %v1639, %v1629
  %v1641 = vadd.s32 %v1640, %v1631
  %v1642 = vmul.u32 %v1597, %v1588
  %v1643 = vadd.s32 %v1619, %v1638
  %vm1644 = vc.u32 %v1619, %v1638
  %v1645 = vadd.s32 %v1641, 1
  %v1646 = vsel %vm1644, %v1645, %v1641
  %v1647 = vadd.s32 %v1642, %v1646
  %v1648 = vadd.s32 %v1647, 536870912
  %v1649 = vshrl.u32 %v1648, 30
  %v1650 = vshll.u32 %v1649, 30
  %v1651 = vsub.s32 %v1647, %v1650
  %vm1652 = vcmp.lt.s32.totalorder %v1651, 0
  %v1653 = vsub.s32 0, %v1651
  %v1654 = vsel %vm1652, %v1653, %v1651
  %v1655 = vclz %v1654
  %v1656 = vsub.s32 %v1655, 2
  %vm1657 = vcmp.gt.s32.totalorder 0, %v1656
  %v1658 = vsel %vm1657, 0, %v1656
  %v1659 = vsub.s32 32, %v1658
  %v1660 = vshll.u32 %v1651, %v1658
  %v1661 = vshrl.u32 %v1643, %v1659
  %v1662 = vor.u32 %v1660, %v1661
  %v1663 = vsub.s32 4294967266, %v1658
  %v1664 = vadd.s32 %v1663, 127
  %v1665 = vshll.u32 %v1664, 23
  %v1666 = vor.u32 4788187, %v1665
  %v1667 = vand.u32 2147483647, %v1666
  %v1669 = vcvt.s32.f32 %v1662
  %v1670 = vmul.f32 %v1669, %v1667
  %v1671 = vxor.u32 %v1670, 2147483648
  %v1672 = vsel %vm1551, %v1671, %v1670
  %v1673 = vsub.s32 4, %v1649
  %v1674 = vsel %vm1551, %v1673, %v1649
  %v1675 = vsel %vm1550, %v615, %v1672
  %v1676 = vsel %vm1550, 0, %v1674
  %v1677 = vmul.f32 %v1675, %v1675
  %v1678 = vmul.f32 %v1677, -0.001358992
  %v1679 = vadd.f32 %v1678, 0.041655596
  %v1680 = vmul.f32 %v1677, %v1679
  %v1681 = vadd.f32 %v1680, -0.4999988
  %v1682 = vmul.f32 %v1677, %v1681
  %v1683 = vadd.f32 1.0, %v1682
  %v1684 = vmul.f32 %v1675, %v1675
  %v1685 = vmul.f32 %v1684, -0.00019511016
  %v1686 = vadd.f32 %v1685, 0.008332121
  %v1687 = vmul.f32 %v1684, %v1686
  %v1688 = vadd.f32 %v1687, -0.16666654
  %v1689 = vmul.f32 %v1684, %v1688
  %v1690 = vadd.f32 %v1689, 1.0
  %v1691 = vmul.f32 %v1690, %v1675
  %vm1692 = vweird.f32 %v615
  %v1693 = vand.u32 %v1676, 3
  %vm1694 = vcmp.lt.s32.totalorder %v1693, 2
  %vm1695 = vcmp.eq.s32.totalorder %v1693, 0
  %v1696 = vxor.u32 %v1691, 2147483648
  %v1697 = vsel %vm1695, %v1683, %v1696
  %vm1698 = vcmp.eq.s32.totalorder %v1693, 2
  %v1699 = vxor.u32 %v1683, 2147483648
  %v1700 = vsel %vm1698, %v1699, %v1691
  %v1701 = vsel %vm1694, %v1697, %v1700
  %v1702 = vsel %vm1692, nan, %v1701
  %v1703 = vand.u32 2147483647, %v616
  %vm1704 = vcmp.le.f32.partialorder %v1703, 0.7853982
  %vm1705 = vcmp.lt.s32.totalorder %v616, 0
  %v1706 = vand.u32 %v616, 2139095040
  %v1707 = vshrl.u32 %v1706, 23
  %v1708 = vsub.s32 %v1707, 127
  %v1709 = vand.u32 2147483647, %v616
  %v1710 = vand.u32 %v1709, 8388607
  %v1711 = vor.u32 %v1710, 8388608
  %v1712 = vsub.s32 0, %v1711
  %v1713 = vadd.s32 %v1708, 1
  %vm1714 = vcmp.gt.s32.totalorder %v1713, 0
  %v1715 = vsel %vm1714, %v1713, 0
  %v1716 = vshrl.u32 %v1715, 5
  %v1717 = vand.u32 %v1715, 31
  %v1718 = vsub.s32 32, %v1717
  %v1719 = vshrl.u32 683565275, %v1718
  %v1720 = vshll.u32 683565275, %v1717
  %v1721 = vshrl.u32 2475754826, %v1718
  %v1722 = vor.u32 %v1720, %v1721
  %v1723 = vshll.u32 2475754826, %v1717
  %v1724 = vshrl.u32 2131351028, %v1718
  %v1725 = vor.u32 %v1723, %v1724
  %v1726 = vshll.u32 2131351028, %v1717
  %v1727 = vshrl.u32 2102212464, %v1718
  %v1728 = vor.u32 %v1726, %v1727
  %v1729 = vshll.u32 2102212464, %v1717
  %v1730 = vshrl.u32 920167782, %v1718
  %v1731 = vor.u32 %v1729, %v1730
  %v1732 = vshll.u32 920167782, %v1717
  %v1733 = vshrl.u32 1326507024, %v1718
  %v1734 = vor.u32 %v1732, %v1733
  %vm1735 = vcmp.lt.s32.totalorder %v1716, 1
  %vm1736 = vcmp.lt.s32.totalorder %v1716, 2
  %vm1737 = vcmp.lt.s32.totalorder %v1716, 3
  %vm1738 = vcmp.lt.s32.totalorder %v1716, 4
  %v1739 = vsel %vm1735, %v1719, %v1722
  %v1740 = vsel %vm1738, %v1728, 2102212464
  %v1741 = vsel %vm1737, %v1725, %v1740
  %v1742 = vsel %vm1736, %v1739, %v1741
  %v1743 = vsel %vm1735, %v1722, %v1725
  %v1744 = vsel %vm1738, %v1731, 920167782
  %v1745 = vsel %vm1737, %v1728, %v1744
  %v1746 = vsel %vm1736, %v1743, %v1745
  %v1747 = vsel %vm1735, %v1725, %v1728
  %v1748 = vsel %vm1738, %v1734, 1326507024
  %v1749 = vsel %vm1737, %v1731, %v1748
  %v1750 = vsel %vm1736, %v1747, %v1749
  %v1751 = vshll.u32 %v1711, 8
  %v1752 = vand.u32 %v1751, 65535
  %v1753 = vshrl.u32 %v1751, 16
  %v1754 = vand.u32 %v1750, 65535
  %v1755 = vshrl.u32 %v1750, 16
  %v1756 = vmul.u32 %v1752, %v1754
  %v1757 = vmul.u32 %v1752, %v1755
  %v1758 = vmul.u32 %v1753, %v1754
  %v1759 = vmul.u32 %v1753, %v1755
  %v1760 = vshll.u32 %v1757, 16
  %v1761 = vshrl.u32 %v1757, 16
  %v1762 = vshll.u32 %v1758, 16
  %v1763 = vshrl.u32 %v1758, 16
  %vm1764 = vc.u32 %v1756, %v1760
  %v1765 = vsel %vm1764, 1, 0
  %v1766 = vadd.s32 %v1756, %v1760
  %v1767 = vadd.s32 %v1759, %v1765
  %vm1768 = vc.u32 %v1766, %v1762
  %v1769 = vsel %vm1768, 1, 0
  %v1770 = vadd.s32 %v1766, %v1762
  %v1771 = vadd.s32 %v1767, %v1769
  %v1772 = vadd.s32 %v1771, %v1761
  %v1773 = vadd.s32 %v1772, %v1763
  %v1774 = vand.u32 %v1751, 65535
  %v1775 = vshrl.u32 %v1751, 16
  %v1776 = vand.u32 %v1746, 65535
  %v1777 = vshrl.u32 %v1746, 16
  %v1778 = vmul.u32 %v1774, %v1776
  %v1779 = vmul.u32 %v1774, %v1777
  %v1780 = vmul.u32 %v1775, %v1776
  %v1781 = vmul.u32 %v1775, %v1777
  %v1782 = vshll.u32 %v1779, 16
  %v1783 = vshrl.u32 %v1779, 16
  %v1784 = vshll.u32 %v1780, 16
  %v1785 = vshrl.u32 %v1780, 16
  %vm1786 = vc.u32 %v1778, %v1782
  %v1787 = vsel %vm1786, 1, 0
  %v1788 = vadd.s32 %v1778, %v1782
  %v1789 = vadd.s32 %v1781, %v1787
  %vm1790 = vc.u32 %v1788, %v1784
  %v1791 = vsel %vm1790, 1, 0
  %v1792 = vadd.s32 %v1788, %v1784
  %v1793 = vadd.s32 %v1789, %v1791
  %v1794 = vadd.s32 %v1793, %v1783
  %v1795 = vadd.s32 %v1794, %v1785
  %v1796 = vmul.u32 %v1751, %v1742
  %v1797 = vadd.s32 %v1773, %v1792
  %vm1798 = vc.u32 %v1773, %v1792
  %v1799 = vadd.s32 %v1795, 1
  %v1800 = vsel %vm1798, %v1799, %v1795
  %v1801 = vadd.s32 %v1796, %v1800
  %v1802 = vadd.s32 %v1801, 536870912
  %v1803 = vshrl.u32 %v1802, 30
  %v1804 = vshll.u32 %v1803, 30
  %v1805 = vsub.s32 %v1801, %v1804
  %vm1806 = vcmp.lt.s32.totalorder %v1805, 0
  %v1807 = vsub.s32 0, %v1805
  %v1808 = vsel %vm1806, %v1807, %v1805
  %v1809 = vclz %v1808
  %v1810 = vsub.s32 %v1809, 2
  %vm1811 = vcmp.gt.s32.totalorder 0, %v1810
  %v1812 = vsel %vm1811, 0, %v1810
  %v1813 = vsub.s32 32, %v1812
  %v1814 = vshll.u32 %v1805, %v1812
  %v1815 = vshrl.u32 %v1797, %v1813
  %v1816 = vor.u32 %v1814, %v1815
  %v1817 = vsub.s32 4294967266, %v1812
  %v1818 = vadd.s32 %v1817, 127
  %v1819 = vshll.u32 %v1818, 23
  %v1820 = vor.u32 4788187, %v1819
  %v1821 = vand.u32 2147483647, %v1820
  %v1823 = vcvt.s32.f32 %v1816
  %v1824 = vmul.f32 %v1823, %v1821
  %v1825 = vxor.u32 %v1824, 2147483648
  %v1826 = vsel %vm1705, %v1825, %v1824
  %v1827 = vsub.s32 4, %v1803
  %v1828 = vsel %vm1705, %v1827, %v1803
  %v1829 = vsel %vm1704, %v616, %v1826
  %v1830 = vsel %vm1704, 0, %v1828
  %v1831 = vmul.f32 %v1829, %v1829
  %v1832 = vmul.f32 %v1831, -0.001358992
  %v1833 = vadd.f32 %v1832, 0.041655596
  %v1834 = vmul.f32 %v1831, %v1833
  %v1835 = vadd.f32 %v1834, -0.4999988
  %v1836 = vmul.f32 %v1831, %v1835
  %v1837 = vadd.f32 1.0, %v1836
  %v1838 = vmul.f32 %v1829, %v1829
  %v1839 = vmul.f32 %v1838, -0.00019511016
  %v1840 = vadd.f32 %v1839, 0.008332121
  %v1841 = vmul.f32 %v1838, %v1840
  %v1842 = vadd.f32 %v1841, -0.16666654
  %v1843 = vmul.f32 %v1838, %v1842
  %v1844 = vadd.f32 %v1843, 1.0
  %v1845 = vmul.f32 %v1844, %v1829
  %vm1846 = vweird.f32 %v616
  %v1847 = vand.u32 %v1830, 3
  %vm1848 = vcmp.lt.s32.totalorder %v1847, 2
  %vm1849 = vcmp.eq.s32.totalorder %v1847, 0
  %v1850 = vxor.u32 %v1845, 2147483648
  %v1851 = vsel %vm1849, %v1837, %v1850
  %vm1852 = vcmp.eq.s32.totalorder %v1847, 2
  %v1853 = vxor.u32 %v1837, 2147483648
  %v1854 = vsel %vm1852, %v1853, %v1845
  %v1855 = vsel %vm1848, %v1851, %v1854
  %v1856 = vsel %vm1846, nan, %v1855
  %v1857 = vand.u32 2147483647, %v617
  %vm1858 = vcmp.le.f32.partialorder %v1857, 0.7853982
  %vm1859 = vcmp.lt.s32.totalorder %v617, 0
  %v1860 = vand.u32 %v617, 2139095040
  %v1861 = vshrl.u32 %v1860, 23
  %v1862 = vsub.s32 %v1861, 127
  %v1863 = vand.u32 2147483647, %v617
  %v1864 = vand.u32 %v1863, 8388607
  %v1865 = vor.u32 %v1864, 8388608
  %v1866 = vsub.s32 0, %v1865
  %v1867 = vadd.s32 %v1862, 1
  %vm1868 = vcmp.gt.s32.totalorder %v1867, 0
  %v1869 = vsel %vm1868, %v1867, 0
  %v1870 = vshrl.u32 %v1869, 5
  %v1871 = vand.u32 %v1869, 31
  %v1872 = vsub.s32 32, %v1871
  %v1873 = vshrl.u32 683565275, %v1872
  %v1874 = vshll.u32 683565275, %v1871
  %v1875 = vshrl.u32 2475754826, %v1872
  %v1876 = vor.u32 %v1874, %v1875
  %v1877 = vshll.u32 2475754826, %v1871
  %v1878 = vshrl.u32 2131351028, %v1872
  %v1879 = vor.u32 %v1877, %v1878
  %v1880 = vshll.u32 2131351028, %v1871
  %v1881 = vshrl.u32 2102212464, %v1872
  %v1882 = vor.u32 %v1880, %v1881
  %v1883 = vshll.u32 2102212464, %v1871
  %v1884 = vshrl.u32 920167782, %v1872
  %v1885 = vor.u32 %v1883, %v1884
  %v1886 = vshll.u32 920167782, %v1871
  %v1887 = vshrl.u32 1326507024, %v1872
  %v1888 = vor.u32 %v1886, %v1887
  %vm1889 = vcmp.lt.s32.totalorder %v1870, 1
  %vm1890 = vcmp.lt.s32.totalorder %v1870, 2
  %vm1891 = vcmp.lt.s32.totalorder %v1870, 3
  %vm1892 = vcmp.lt.s32.totalorder %v1870, 4
  %v1893 = vsel %vm1889, %v1873, %v1876
  %v1894 = vsel %vm1892, %v1882, 2102212464
  %v1895 = vsel %vm1891, %v1879, %v1894
  %v1896 = vsel %vm1890, %v1893, %v1895
  %v1897 = vsel %vm1889, %v1876, %v1879
  %v1898 = vsel %vm1892, %v1885, 920167782
  %v1899 = vsel %vm1891, %v1882, %v1898
  %v1900 = vsel %vm1890, %v1897, %v1899
  %v1901 = vsel %vm1889, %v1879, %v1882
  %v1902 = vsel %vm1892, %v1888, 1326507024
  %v1903 = vsel %vm1891, %v1885, %v1902
  %v1904 = vsel %vm1890, %v1901, %v1903
  %v1905 = vshll.u32 %v1865, 8
  %v1906 = vand.u32 %v1905, 65535
  %v1907 = vshrl.u32 %v1905, 16
  %v1908 = vand.u32 %v1904, 65535
  %v1909 = vshrl.u32 %v1904, 16
  %v1910 = vmul.u32 %v1906, %v1908
  %v1911 = vmul.u32 %v1906, %v1909
  %v1912 = vmul.u32 %v1907, %v1908
  %v1913 = vmul.u32 %v1907, %v1909
  %v1914 = vshll.u32 %v1911, 16
  %v1915 = vshrl.u32 %v1911, 16
  %v1916 = vshll.u32 %v1912, 16
  %v1917 = vshrl.u32 %v1912, 16
  %vm1918 = vc.u32 %v1910, %v1914
  %v1919 = vsel %vm1918, 1, 0
  %v1920 = vadd.s32 %v1910, %v1914
  %v1921 = vadd.s32 %v1913, %v1919
  %vm1922 = vc.u32 %v1920, %v1916
  %v1923 = vsel %vm1922, 1, 0
  %v1924 = vadd.s32 %v1920, %v1916
  %v1925 = vadd.s32 %v1921, %v1923
  %v1926 = vadd.s32 %v1925, %v1915
  %v1927 = vadd.s32 %v1926, %v1917
  %v1928 = vand.u32 %v1905, 65535
  %v1929 = vshrl.u32 %v1905, 16
  %v1930 = vand.u32 %v1900, 65535
  %v1931 = vshrl.u32 %v1900, 16
  %v1932 = vmul.u32 %v1928, %v1930
  %v1933 = vmul.u32 %v1928, %v1931
  %v1934 = vmul.u32 %v1929, %v1930
  %v1935 = vmul.u32 %v1929, %v1931
  %v1936 = vshll.u32 %v1933, 16
  %v1937 = vshrl.u32 %v1933, 16
  %v1938 = vshll.u32 %v1934, 16
  %v1939 = vshrl.u32 %v1934, 16
  %vm1940 = vc.u32 %v1932, %v1936
  %v1941 = vsel %vm1940, 1, 0
  %v1942 = vadd.s32 %v1932, %v1936
  %v1943 = vadd.s32 %v1935, %v1941
  %vm1944 = vc.u32 %v1942, %v1938
  %v1945 = vsel %vm1944, 1, 0
  %v1946 = vadd.s32 %v1942, %v1938
  %v1947 = vadd.s32 %v1943, %v1945
  %v1948 = vadd.s32 %v1947, %v1937
  %v1949 = vadd.s32 %v1948, %v1939
  %v1950 = vmul.u32 %v1905, %v1896
  %v1951 = vadd.s32 %v1927, %v1946
  %vm1952 = vc.u32 %v1927, %v1946
  %v1953 = vadd.s32 %v1949, 1
  %v1954 = vsel %vm1952, %v1953, %v1949
  %v1955 = vadd.s32 %v1950, %v1954
  %v1956 = vadd.s32 %v1955, 536870912
  %v1957 = vshrl.u32 %v1956, 30
  %v1958 = vshll.u32 %v1957, 30
  %v1959 = vsub.s32 %v1955, %v1958
  %vm1960 = vcmp.lt.s32.totalorder %v1959, 0
  %v1961 = vsub.s32 0, %v1959
  %v1962 = vsel %vm1960, %v1961, %v1959
  %v1963 = vclz %v1962
  %v1964 = vsub.s32 %v1963, 2
  %vm1965 = vcmp.gt.s32.totalorder 0, %v1964
  %v1966 = vsel %vm1965, 0, %v1964
  %v1967 = vsub.s32 32, %v1966
  %v1968 = vshll.u32 %v1959, %v1966
  %v1969 = vshrl.u32 %v1951, %v1967
  %v1970 = vor.u32 %v1968, %v1969
  %v1971 = vsub.s32 4294967266, %v1966
  %v1972 = vadd.s32 %v1971, 127
  %v1973 = vshll.u32 %v1972, 23
  %v1974 = vor.u32 4788187, %v1973
  %v1975 = vand.u32 2147483647, %v1974
  %v1977 = vcvt.s32.f32 %v1970
  %v1978 = vmul.f32 %v1977, %v1975
  %v1979 = vxor.u32 %v1978, 2147483648
  %v1980 = vsel %vm1859, %v1979, %v1978
  %v1981 = vsub.s32 4, %v1957
  %v1982 = vsel %vm1859, %v1981, %v1957
  %v1983 = vsel %vm1858, %v617, %v1980
  %v1984 = vsel %vm1858, 0, %v1982
  %v1985 = vmul.f32 %v1983, %v1983
  %v1986 = vmul.f32 %v1985, -0.001358992
  %v1987 = vadd.f32 %v1986, 0.041655596
  %v1988 = vmul.f32 %v1985, %v1987
  %v1989 = vadd.f32 %v1988, -0.4999988
  %v1990 = vmul.f32 %v1985, %v1989
  %v1991 = vadd.f32 1.0, %v1990
  %v1992 = vmul.f32 %v1983, %v1983
  %v1993 = vmul.f32 %v1992, -0.00019511016
  %v1994 = vadd.f32 %v1993, 0.008332121
  %v1995 = vmul.f32 %v1992, %v1994
  %v1996 = vadd.f32 %v1995, -0.16666654
  %v1997 = vmul.f32 %v1992, %v1996
  %v1998 = vadd.f32 %v1997, 1.0
  %v1999 = vmul.f32 %v1998, %v1983
  %vm2000 = vweird.f32 %v617
  %v2001 = vand.u32 %v1984, 3
  %vm2002 = vcmp.lt.s32.totalorder %v2001, 2
  %vm2003 = vcmp.eq.s32.totalorder %v2001, 0
  %v2004 = vxor.u32 %v1999, 2147483648
  %v2005 = vsel %vm2003, %v1991, %v2004
  %vm2006 = vcmp.eq.s32.totalorder %v2001, 2
  %v2007 = vxor.u32 %v1991, 2147483648
  %v2008 = vsel %vm2006, %v2007, %v1999
  %v2009 = vsel %vm2002, %v2005, %v2008
  %v2010 = vsel %vm2000, nan, %v2009
  %v2011 = vand.u32 2147483647, %v618
  %vm2012 = vcmp.le.f32.partialorder %v2011, 0.7853982
  %vm2013 = vcmp.lt.s32.totalorder %v618, 0
  %v2014 = vand.u32 %v618, 2139095040
  %v2015 = vshrl.u32 %v2014, 23
  %v2016 = vsub.s32 %v2015, 127
  %v2017 = vand.u32 2147483647, %v618
  %v2018 = vand.u32 %v2017, 8388607
  %v2019 = vor.u32 %v2018, 8388608
  %v2020 = vsub.s32 0, %v2019
  %v2021 = vadd.s32 %v2016, 1
  %vm2022 = vcmp.gt.s32.totalorder %v2021, 0
  %v2023 = vsel %vm2022, %v2021, 0
  %v2024 = vshrl.u32 %v2023, 5
  %v2025 = vand.u32 %v2023, 31
  %v2026 = vsub.s32 32, %v2025
  %v2027 = vshrl.u32 683565275, %v2026
  %v2028 = vshll.u32 683565275, %v2025
  %v2029 = vshrl.u32 2475754826, %v2026
  %v2030 = vor.u32 %v2028, %v2029
  %v2031 = vshll.u32 2475754826, %v2025
  %v2032 = vshrl.u32 2131351028, %v2026
  %v2033 = vor.u32 %v2031, %v2032
  %v2034 = vshll.u32 2131351028, %v2025
  %v2035 = vshrl.u32 2102212464, %v2026
  %v2036 = vor.u32 %v2034, %v2035
  %v2037 = vshll.u32 2102212464, %v2025
  %v2038 = vshrl.u32 920167782, %v2026
  %v2039 = vor.u32 %v2037, %v2038
  %v2040 = vshll.u32 920167782, %v2025
  %v2041 = vshrl.u32 1326507024, %v2026
  %v2042 = vor.u32 %v2040, %v2041
  %vm2043 = vcmp.lt.s32.totalorder %v2024, 1
  %vm2044 = vcmp.lt.s32.totalorder %v2024, 2
  %vm2045 = vcmp.lt.s32.totalorder %v2024, 3
  %vm2046 = vcmp.lt.s32.totalorder %v2024, 4
  %v2047 = vsel %vm2043, %v2027, %v2030
  %v2048 = vsel %vm2046, %v2036, 2102212464
  %v2049 = vsel %vm2045, %v2033, %v2048
  %v2050 = vsel %vm2044, %v2047, %v2049
  %v2051 = vsel %vm2043, %v2030, %v2033
  %v2052 = vsel %vm2046, %v2039, 920167782
  %v2053 = vsel %vm2045, %v2036, %v2052
  %v2054 = vsel %vm2044, %v2051, %v2053
  %v2055 = vsel %vm2043, %v2033, %v2036
  %v2056 = vsel %vm2046, %v2042, 1326507024
  %v2057 = vsel %vm2045, %v2039, %v2056
  %v2058 = vsel %vm2044, %v2055, %v2057
  %v2059 = vshll.u32 %v2019, 8
  %v2060 = vand.u32 %v2059, 65535
  %v2061 = vshrl.u32 %v2059, 16
  %v2062 = vand.u32 %v2058, 65535
  %v2063 = vshrl.u32 %v2058, 16
  %v2064 = vmul.u32 %v2060, %v2062
  %v2065 = vmul.u32 %v2060, %v2063
  %v2066 = vmul.u32 %v2061, %v2062
  %v2067 = vmul.u32 %v2061, %v2063
  %v2068 = vshll.u32 %v2065, 16
  %v2069 = vshrl.u32 %v2065, 16
  %v2070 = vshll.u32 %v2066, 16
  %v2071 = vshrl.u32 %v2066, 16
  %vm2072 = vc.u32 %v2064, %v2068
  %v2073 = vsel %vm2072, 1, 0
  %v2074 = vadd.s32 %v2064, %v2068
  %v2075 = vadd.s32 %v2067, %v2073
  %vm2076 = vc.u32 %v2074, %v2070
  %v2077 = vsel %vm2076, 1, 0
  %v2078 = vadd.s32 %v2074, %v2070
  %v2079 = vadd.s32 %v2075, %v2077
  %v2080 = vadd.s32 %v2079, %v2069
  %v2081 = vadd.s32 %v2080, %v2071
  %v2082 = vand.u32 %v2059, 65535
  %v2083 = vshrl.u32 %v2059, 16
  %v2084 = vand.u32 %v2054, 65535
  %v2085 = vshrl.u32 %v2054, 16
  %v2086 = vmul.u32 %v2082, %v2084
  %v2087 = vmul.u32 %v2082, %v2085
  %v2088 = vmul.u32 %v2083, %v2084
  %v2089 = vmul.u32 %v2083, %v2085
  %v2090 = vshll.u32 %v2087, 16
  %v2091 = vshrl.u32 %v2087, 16
  %v2092 = vshll.u32 %v2088, 16
  %v2093 = vshrl.u32 %v2088, 16
  %vm2094 = vc.u32 %v2086, %v2090
  %v2095 = vsel %vm2094, 1, 0
  %v2096 = vadd.s32 %v2086, %v2090
  %v2097 = vadd.s32 %v2089, %v2095
  %vm2098 = vc.u32 %v2096, %v2092
  %v2099 = vsel %vm2098, 1, 0
  %v2100 = vadd.s32 %v2096, %v2092
  %v2101 = vadd.s32 %v2097, %v2099
  %v2102 = vadd.s32 %v2101, %v2091
  %v2103 = vadd.s32 %v2102, %v2093
  %v2104 = vmul.u32 %v2059, %v2050
  %v2105 = vadd.s32 %v2081, %v2100
  %vm2106 = vc.u32 %v2081, %v2100
  %v2107 = vadd.s32 %v2103, 1
  %v2108 = vsel %vm2106, %v2107, %v2103
  %v2109 = vadd.s32 %v2104, %v2108
  %v2110 = vadd.s32 %v2109, 536870912
  %v2111 = vshrl.u32 %v2110, 30
  %v2112 = vshll.u32 %v2111, 30
  %v2113 = vsub.s32 %v2109, %v2112
  %vm2114 = vcmp.lt.s32.totalorder %v2113, 0
  %v2115 = vsub.s32 0, %v2113
  %v2116 = vsel %vm2114, %v2115, %v2113
  %v2117 = vclz %v2116
  %v2118 = vsub.s32 %v2117, 2
  %vm2119 = vcmp.gt.s32.totalorder 0, %v2118
  %v2120 = vsel %vm2119, 0, %v2118
  %v2121 = vsub.s32 32, %v2120
  %v2122 = vshll.u32 %v2113, %v2120
  %v2123 = vshrl.u32 %v2105, %v2121
  %v2124 = vor.u32 %v2122, %v2123
  %v2125 = vsub.s32 4294967266, %v2120
  %v2126 = vadd.s32 %v2125, 127
  %v2127 = vshll.u32 %v2126, 23
  %v2128 = vor.u32 4788187, %v2127
  %v2129 = vand.u32 2147483647, %v2128
  %v2131 = vcvt.s32.f32 %v2124
  %v2132 = vmul.f32 %v2131, %v2129
  %v2133 = vxor.u32 %v2132, 2147483648
  %v2134 = vsel %vm2013, %v2133, %v2132
  %v2135 = vsub.s32 4, %v2111
  %v2136 = vsel %vm2013, %v2135, %v2111
  %v2137 = vsel %vm2012, %v618, %v2134
  %v2138 = vsel %vm2012, 0, %v2136
  %v2139 = vmul.f32 %v2137, %v2137
  %v2140 = vmul.f32 %v2139, -0.001358992
  %v2141 = vadd.f32 %v2140, 0.041655596
  %v2142 = vmul.f32 %v2139, %v2141
  %v2143 = vadd.f32 %v2142, -0.4999988
  %v2144 = vmul.f32 %v2139, %v2143
  %v2145 = vadd.f32 1.0, %v2144
  %v2146 = vmul.f32 %v2137, %v2137
  %v2147 = vmul.f32 %v2146, -0.00019511016
  %v2148 = vadd.f32 %v2147, 0.008332121
  %v2149 = vmul.f32 %v2146, %v2148
  %v2150 = vadd.f32 %v2149, -0.16666654
  %v2151 = vmul.f32 %v2146, %v2150
  %v2152 = vadd.f32 %v2151, 1.0
  %v2153 = vmul.f32 %v2152, %v2137
  %vm2154 = vweird.f32 %v618
  %v2155 = vand.u32 %v2138, 3
  %vm2156 = vcmp.lt.s32.totalorder %v2155, 2
  %vm2157 = vcmp.eq.s32.totalorder %v2155, 0
  %v2158 = vxor.u32 %v2153, 2147483648
  %v2159 = vsel %vm2157, %v2145, %v2158
  %vm2160 = vcmp.eq.s32.totalorder %v2155, 2
  %v2161 = vxor.u32 %v2145, 2147483648
  %v2162 = vsel %vm2160, %v2161, %v2153
  %v2163 = vsel %vm2156, %v2159, %v2162
  %v2164 = vsel %vm2154, nan, %v2163
  %v2165 = vand.u32 2147483647, %v619
  %vm2166 = vcmp.le.f32.partialorder %v2165, 0.7853982
  %vm2167 = vcmp.lt.s32.totalorder %v619, 0
  %v2168 = vand.u32 %v619, 2139095040
  %v2169 = vshrl.u32 %v2168, 23
  %v2170 = vsub.s32 %v2169, 127
  %v2171 = vand.u32 2147483647, %v619
  %v2172 = vand.u32 %v2171, 8388607
  %v2173 = vor.u32 %v2172, 8388608
  %v2174 = vsub.s32 0, %v2173
  %v2175 = vadd.s32 %v2170, 1
  %vm2176 = vcmp.gt.s32.totalorder %v2175, 0
  %v2177 = vsel %vm2176, %v2175, 0
  %v2178 = vshrl.u32 %v2177, 5
  %v2179 = vand.u32 %v2177, 31
  %v2180 = vsub.s32 32, %v2179
  %v2181 = vshrl.u32 683565275, %v2180
  %v2182 = vshll.u32 683565275, %v2179
  %v2183 = vshrl.u32 2475754826, %v2180
  %v2184 = vor.u32 %v2182, %v2183
  %v2185 = vshll.u32 2475754826, %v2179
  %v2186 = vshrl.u32 2131351028, %v2180
  %v2187 = vor.u32 %v2185, %v2186
  %v2188 = vshll.u32 2131351028, %v2179
  %v2189 = vshrl.u32 2102212464, %v2180
  %v2190 = vor.u32 %v2188, %v2189
  %v2191 = vshll.u32 2102212464, %v2179
  %v2192 = vshrl.u32 920167782, %v2180
  %v2193 = vor.u32 %v2191, %v2192
  %v2194 = vshll.u32 920167782, %v2179
  %v2195 = vshrl.u32 1326507024, %v2180
  %v2196 = vor.u32 %v2194, %v2195
  %vm2197 = vcmp.lt.s32.totalorder %v2178, 1
  %vm2198 = vcmp.lt.s32.totalorder %v2178, 2
  %vm2199 = vcmp.lt.s32.totalorder %v2178, 3
  %vm2200 = vcmp.lt.s32.totalorder %v2178, 4
  %v2201 = vsel %vm2197, %v2181, %v2184
  %v2202 = vsel %vm2200, %v2190, 2102212464
  %v2203 = vsel %vm2199, %v2187, %v2202
  %v2204 = vsel %vm2198, %v2201, %v2203
  %v2205 = vsel %vm2197, %v2184, %v2187
  %v2206 = vsel %vm2200, %v2193, 920167782
  %v2207 = vsel %vm2199, %v2190, %v2206
  %v2208 = vsel %vm2198, %v2205, %v2207
  %v2209 = vsel %vm2197, %v2187, %v2190
  %v2210 = vsel %vm2200, %v2196, 1326507024
  %v2211 = vsel %vm2199, %v2193, %v2210
  %v2212 = vsel %vm2198, %v2209, %v2211
  %v2213 = vshll.u32 %v2173, 8
  %v2214 = vand.u32 %v2213, 65535
  %v2215 = vshrl.u32 %v2213, 16
  %v2216 = vand.u32 %v2212, 65535
  %v2217 = vshrl.u32 %v2212, 16
  %v2218 = vmul.u32 %v2214, %v2216
  %v2219 = vmul.u32 %v2214, %v2217
  %v2220 = vmul.u32 %v2215, %v2216
  %v2221 = vmul.u32 %v2215, %v2217
  %v2222 = vshll.u32 %v2219, 16
  %v2223 = vshrl.u32 %v2219, 16
  %v2224 = vshll.u32 %v2220, 16
  %v2225 = vshrl.u32 %v2220, 16
  %vm2226 = vc.u32 %v2218, %v2222
  %v2227 = vsel %vm2226, 1, 0
  %v2228 = vadd.s32 %v2218, %v2222
  %v2229 = vadd.s32 %v2221, %v2227
  %vm2230 = vc.u32 %v2228, %v2224
  %v2231 = vsel %vm2230, 1, 0
  %v2232 = vadd.s32 %v2228, %v2224
  %v2233 = vadd.s32 %v2229, %v2231
  %v2234 = vadd.s32 %v2233, %v2223
  %v2235 = vadd.s32 %v2234, %v2225
  %v2236 = vand.u32 %v2213, 65535
  %v2237 = vshrl.u32 %v2213, 16
  %v2238 = vand.u32 %v2208, 65535
  %v2239 = vshrl.u32 %v2208, 16
  %v2240 = vmul.u32 %v2236, %v2238
  %v2241 = vmul.u32 %v2236, %v2239
  %v2242 = vmul.u32 %v2237, %v2238
  %v2243 = vmul.u32 %v2237, %v2239
  %v2244 = vshll.u32 %v2241, 16
  %v2245 = vshrl.u32 %v2241, 16
  %v2246 = vshll.u32 %v2242, 16
  %v2247 = vshrl.u32 %v2242, 16
  %vm2248 = vc.u32 %v2240, %v2244
  %v2249 = vsel %vm2248, 1, 0
  %v2250 = vadd.s32 %v2240, %v2244
  %v2251 = vadd.s32 %v2243, %v2249
  %vm2252 = vc.u32 %v2250, %v2246
  %v2253 = vsel %vm2252, 1, 0
  %v2254 = vadd.s32 %v2250, %v2246
  %v2255 = vadd.s32 %v2251, %v2253
  %v2256 = vadd.s32 %v2255, %v2245
  %v2257 = vadd.s32 %v2256, %v2247
  %v2258 = vmul.u32 %v2213, %v2204
  %v2259 = vadd.s32 %v2235, %v2254
  %vm2260 = vc.u32 %v2235, %v2254
  %v2261 = vadd.s32 %v2257, 1
  %v2262 = vsel %vm2260, %v2261, %v2257
  %v2263 = vadd.s32 %v2258, %v2262
  %v2264 = vadd.s32 %v2263, 536870912
  %v2265 = vshrl.u32 %v2264, 30
  %v2266 = vshll.u32 %v2265, 30
  %v2267 = vsub.s32 %v2263, %v2266
  %vm2268 = vcmp.lt.s32.totalorder %v2267, 0
  %v2269 = vsub.s32 0, %v2267
  %v2270 = vsel %vm2268, %v2269, %v2267
  %v2271 = vclz %v2270
  %v2272 = vsub.s32 %v2271, 2
  %vm2273 = vcmp.gt.s32.totalorder 0, %v2272
  %v2274 = vsel %vm2273, 0, %v2272
  %v2275 = vsub.s32 32, %v2274
  %v2276 = vshll.u32 %v2267, %v2274
  %v2277 = vshrl.u32 %v2259, %v2275
  %v2278 = vor.u32 %v2276, %v2277
  %v2279 = vsub.s32 4294967266, %v2274
  %v2280 = vadd.s32 %v2279, 127
  %v2281 = vshll.u32 %v2280, 23
  %v2282 = vor.u32 4788187, %v2281
  %v2283 = vand.u32 2147483647, %v2282
  %v2285 = vcvt.s32.f32 %v2278
  %v2286 = vmul.f32 %v2285, %v2283
  %v2287 = vxor.u32 %v2286, 2147483648
  %v2288 = vsel %vm2167, %v2287, %v2286
  %v2289 = vsub.s32 4, %v2265
  %v2290 = vsel %vm2167, %v2289, %v2265
  %v2291 = vsel %vm2166, %v619, %v2288
  %v2292 = vsel %vm2166, 0, %v2290
  %v2293 = vmul.f32 %v2291, %v2291
  %v2294 = vmul.f32 %v2293, -0.001358992
  %v2295 = vadd.f32 %v2294, 0.041655596
  %v2296 = vmul.f32 %v2293, %v2295
  %v2297 = vadd.f32 %v2296, -0.4999988
  %v2298 = vmul.f32 %v2293, %v2297
  %v2299 = vadd.f32 1.0, %v2298
  %v2300 = vmul.f32 %v2291, %v2291
  %v2301 = vmul.f32 %v2300, -0.00019511016
  %v2302 = vadd.f32 %v2301, 0.008332121
  %v2303 = vmul.f32 %v2300, %v2302
  %v2304 = vadd.f32 %v2303, -0.16666654
  %v2305 = vmul.f32 %v2300, %v2304
  %v2306 = vadd.f32 %v2305, 1.0
  %v2307 = vmul.f32 %v2306, %v2291
  %vm2308 = vweird.f32 %v619
  %v2309 = vand.u32 %v2292, 3
  %vm2310 = vcmp.lt.s32.totalorder %v2309, 2
  %vm2311 = vcmp.eq.s32.totalorder %v2309, 0
  %v2312 = vxor.u32 %v2307, 2147483648
  %v2313 = vsel %vm2311, %v2299, %v2312
  %vm2314 = vcmp.eq.s32.totalorder %v2309, 2
  %v2315 = vxor.u32 %v2299, 2147483648
  %v2316 = vsel %vm2314, %v2315, %v2307
  %v2317 = vsel %vm2310, %v2313, %v2316
  %v2318 = vsel %vm2308, nan, %v2317
  %v2319 = vand.u32 2147483647, %v620
  %vm2320 = vcmp.le.f32.partialorder %v2319, 0.7853982
  %vm2321 = vcmp.lt.s32.totalorder %v620, 0
  %v2322 = vand.u32 %v620, 2139095040
  %v2323 = vshrl.u32 %v2322, 23
  %v2324 = vsub.s32 %v2323, 127
  %v2325 = vand.u32 2147483647, %v620
  %v2326 = vand.u32 %v2325, 8388607
  %v2327 = vor.u32 %v2326, 8388608
  %v2328 = vsub.s32 0, %v2327
  %v2329 = vadd.s32 %v2324, 1
  %vm2330 = vcmp.gt.s32.totalorder %v2329, 0
  %v2331 = vsel %vm2330, %v2329, 0
  %v2332 = vshrl.u32 %v2331, 5
  %v2333 = vand.u32 %v2331, 31
  %v2334 = vsub.s32 32, %v2333
  %v2335 = vshrl.u32 683565275, %v2334
  %v2336 = vshll.u32 683565275, %v2333
  %v2337 = vshrl.u32 2475754826, %v2334
  %v2338 = vor.u32 %v2336, %v2337
  %v2339 = vshll.u32 2475754826, %v2333
  %v2340 = vshrl.u32 2131351028, %v2334
  %v2341 = vor.u32 %v2339, %v2340
  %v2342 = vshll.u32 2131351028, %v2333
  %v2343 = vshrl.u32 2102212464, %v2334
  %v2344 = vor.u32 %v2342, %v2343
  %v2345 = vshll.u32 2102212464, %v2333
  %v2346 = vshrl.u32 920167782, %v2334
  %v2347 = vor.u32 %v2345, %v2346
  %v2348 = vshll.u32 920167782, %v2333
  %v2349 = vshrl.u32 1326507024, %v2334
  %v2350 = vor.u32 %v2348, %v2349
  %vm2351 = vcmp.lt.s32.totalorder %v2332, 1
  %vm2352 = vcmp.lt.s32.totalorder %v2332, 2
  %vm2353 = vcmp.lt.s32.totalorder %v2332, 3
  %vm2354 = vcmp.lt.s32.totalorder %v2332, 4
  %v2355 = vsel %vm2351, %v2335, %v2338
  %v2356 = vsel %vm2354, %v2344, 2102212464
  %v2357 = vsel %vm2353, %v2341, %v2356
  %v2358 = vsel %vm2352, %v2355, %v2357
  %v2359 = vsel %vm2351, %v2338, %v2341
  %v2360 = vsel %vm2354, %v2347, 920167782
  %v2361 = vsel %vm2353, %v2344, %v2360
  %v2362 = vsel %vm2352, %v2359, %v2361
  %v2363 = vsel %vm2351, %v2341, %v2344
  %v2364 = vsel %vm2354, %v2350, 1326507024
  %v2365 = vsel %vm2353, %v2347, %v2364
  %v2366 = vsel %vm2352, %v2363, %v2365
  %v2367 = vshll.u32 %v2327, 8
  %v2368 = vand.u32 %v2367, 65535
  %v2369 = vshrl.u32 %v2367, 16
  %v2370 = vand.u32 %v2366, 65535
  %v2371 = vshrl.u32 %v2366, 16
  %v2372 = vmul.u32 %v2368, %v2370
  %v2373 = vmul.u32 %v2368, %v2371
  %v2374 = vmul.u32 %v2369, %v2370
  %v2375 = vmul.u32 %v2369, %v2371
  %v2376 = vshll.u32 %v2373, 16
  %v2377 = vshrl.u32 %v2373, 16
  %v2378 = vshll.u32 %v2374, 16
  %v2379 = vshrl.u32 %v2374, 16
  %vm2380 = vc.u32 %v2372, %v2376
  %v2381 = vsel %vm2380, 1, 0
  %v2382 = vadd.s32 %v2372, %v2376
  %v2383 = vadd.s32 %v2375, %v2381
  %vm2384 = vc.u32 %v2382, %v2378
  %v2385 = vsel %vm2384, 1, 0
  %v2386 = vadd.s32 %v2382, %v2378
  %v2387 = vadd.s32 %v2383, %v2385
  %v2388 = vadd.s32 %v2387, %v2377
  %v2389 = vadd.s32 %v2388, %v2379
  %v2390 = vand.u32 %v2367, 65535
  %v2391 = vshrl.u32 %v2367, 16
  %v2392 = vand.u32 %v2362, 65535
  %v2393 = vshrl.u32 %v2362, 16
  %v2394 = vmul.u32 %v2390, %v2392
  %v2395 = vmul.u32 %v2390, %v2393
  %v2396 = vmul.u32 %v2391, %v2392
  %v2397 = vmul.u32 %v2391, %v2393
  %v2398 = vshll.u32 %v2395, 16
  %v2399 = vshrl.u32 %v2395, 16
  %v2400 = vshll.u32 %v2396, 16
  %v2401 = vshrl.u32 %v2396, 16
  %vm2402 = vc.u32 %v2394, %v2398
  %v2403 = vsel %vm2402, 1, 0
  %v2404 = vadd.s32 %v2394, %v2398
  %v2405 = vadd.s32 %v2397, %v2403
  %vm2406 = vc.u32 %v2404, %v2400
  %v2407 = vsel %vm2406, 1, 0
  %v2408 = vadd.s32 %v2404, %v2400
  %v2409 = vadd.s32 %v2405, %v2407
  %v2410 = vadd.s32 %v2409, %v2399
  %v2411 = vadd.s32 %v2410, %v2401
  %v2412 = vmul.u32 %v2367, %v2358
  %v2413 = vadd.s32 %v2389, %v2408
  %vm2414 = vc.u32 %v2389, %v2408
  %v2415 = vadd.s32 %v2411, 1
  %v2416 = vsel %vm2414, %v2415, %v2411
  %v2417 = vadd.s32 %v2412, %v2416
  %v2418 = vadd.s32 %v2417, 536870912
  %v2419 = vshrl.u32 %v2418, 30
  %v2420 = vshll.u32 %v2419, 30
  %v2421 = vsub.s32 %v2417, %v2420
  %vm2422 = vcmp.lt.s32.totalorder %v2421, 0
  %v2423 = vsub.s32 0, %v2421
  %v2424 = vsel %vm2422, %v2423, %v2421
  %v2425 = vclz %v2424
  %v2426 = vsub.s32 %v2425, 2
  %vm2427 = vcmp.gt.s32.totalorder 0, %v2426
  %v2428 = vsel %vm2427, 0, %v2426
  %v2429 = vsub.s32 32, %v2428
  %v2430 = vshll.u32 %v2421, %v2428
  %v2431 = vshrl.u32 %v2413, %v2429
  %v2432 = vor.u32 %v2430, %v2431
  %v2433 = vsub.s32 4294967266, %v2428
  %v2434 = vadd.s32 %v2433, 127
  %v2435 = vshll.u32 %v2434, 23
  %v2436 = vor.u32 4788187, %v2435
  %v2437 = vand.u32 2147483647, %v2436
  %v2439 = vcvt.s32.f32 %v2432
  %v2440 = vmul.f32 %v2439, %v2437
  %v2441 = vxor.u32 %v2440, 2147483648
  %v2442 = vsel %vm2321, %v2441, %v2440
  %v2443 = vsub.s32 4, %v2419
  %v2444 = vsel %vm2321, %v2443, %v2419
  %v2445 = vsel %vm2320, %v620, %v2442
  %v2446 = vsel %vm2320, 0, %v2444
  %v2447 = vmul.f32 %v2445, %v2445
  %v2448 = vmul.f32 %v2447, -0.001358992
  %v2449 = vadd.f32 %v2448, 0.041655596
  %v2450 = vmul.f32 %v2447, %v2449
  %v2451 = vadd.f32 %v2450, -0.4999988
  %v2452 = vmul.f32 %v2447, %v2451
  %v2453 = vadd.f32 1.0, %v2452
  %v2454 = vmul.f32 %v2445, %v2445
  %v2455 = vmul.f32 %v2454, -0.00019511016
  %v2456 = vadd.f32 %v2455, 0.008332121
  %v2457 = vmul.f32 %v2454, %v2456
  %v2458 = vadd.f32 %v2457, -0.16666654
  %v2459 = vmul.f32 %v2454, %v2458
  %v2460 = vadd.f32 %v2459, 1.0
  %v2461 = vmul.f32 %v2460, %v2445
  %vm2462 = vweird.f32 %v620
  %v2463 = vand.u32 %v2446, 3
  %vm2464 = vcmp.lt.s32.totalorder %v2463, 2
  %vm2465 = vcmp.eq.s32.totalorder %v2463, 0
  %v2466 = vxor.u32 %v2461, 2147483648
  %v2467 = vsel %vm2465, %v2453, %v2466
  %vm2468 = vcmp.eq.s32.totalorder %v2463, 2
  %v2469 = vxor.u32 %v2453, 2147483648
  %v2470 = vsel %vm2468, %v2469, %v2461
  %v2471 = vsel %vm2464, %v2467, %v2470
  %v2472 = vsel %vm2462, nan, %v2471
  %v2473 = vand.u32 2147483647, %v621
  %vm2474 = vcmp.le.f32.partialorder %v2473, 0.7853982
  %vm2475 = vcmp.lt.s32.totalorder %v621, 0
  %v2476 = vand.u32 %v621, 2139095040
  %v2477 = vshrl.u32 %v2476, 23
  %v2478 = vsub.s32 %v2477, 127
  %v2479 = vand.u32 2147483647, %v621
  %v2480 = vand.u32 %v2479, 8388607
  %v2481 = vor.u32 %v2480, 8388608
  %v2482 = vsub.s32 0, %v2481
  %v2483 = vadd.s32 %v2478, 1
  %vm2484 = vcmp.gt.s32.totalorder %v2483, 0
  %v2485 = vsel %vm2484, %v2483, 0
  %v2486 = vshrl.u32 %v2485, 5
  %v2487 = vand.u32 %v2485, 31
  %v2488 = vsub.s32 32, %v2487
  %v2489 = vshrl.u32 683565275, %v2488
  %v2490 = vshll.u32 683565275, %v2487
  %v2491 = vshrl.u32 2475754826, %v2488
  %v2492 = vor.u32 %v2490, %v2491
  %v2493 = vshll.u32 2475754826, %v2487
  %v2494 = vshrl.u32 2131351028, %v2488
  %v2495 = vor.u32 %v2493, %v2494
  %v2496 = vshll.u32 2131351028, %v2487
  %v2497 = vshrl.u32 2102212464, %v2488
  %v2498 = vor.u32 %v2496, %v2497
  %v2499 = vshll.u32 2102212464, %v2487
  %v2500 = vshrl.u32 920167782, %v2488
  %v2501 = vor.u32 %v2499, %v2500
  %v2502 = vshll.u32 920167782, %v2487
  %v2503 = vshrl.u32 1326507024, %v2488
  %v2504 = vor.u32 %v2502, %v2503
  %vm2505 = vcmp.lt.s32.totalorder %v2486, 1
  %vm2506 = vcmp.lt.s32.totalorder %v2486, 2
  %vm2507 = vcmp.lt.s32.totalorder %v2486, 3
  %vm2508 = vcmp.lt.s32.totalorder %v2486, 4
  %v2509 = vsel %vm2505, %v2489, %v2492
  %v2510 = vsel %vm2508, %v2498, 2102212464
  %v2511 = vsel %vm2507, %v2495, %v2510
  %v2512 = vsel %vm2506, %v2509, %v2511
  %v2513 = vsel %vm2505, %v2492, %v2495
  %v2514 = vsel %vm2508, %v2501, 920167782
  %v2515 = vsel %vm2507, %v2498, %v2514
  %v2516 = vsel %vm2506, %v2513, %v2515
  %v2517 = vsel %vm2505, %v2495, %v2498
  %v2518 = vsel %vm2508, %v2504, 1326507024
  %v2519 = vsel %vm2507, %v2501, %v2518
  %v2520 = vsel %vm2506, %v2517, %v2519
  %v2521 = vshll.u32 %v2481, 8
  %v2522 = vand.u32 %v2521, 65535
  %v2523 = vshrl.u32 %v2521, 16
  %v2524 = vand.u32 %v2520, 65535
  %v2525 = vshrl.u32 %v2520, 16
  %v2526 = vmul.u32 %v2522, %v2524
  %v2527 = vmul.u32 %v2522, %v2525
  %v2528 = vmul.u32 %v2523, %v2524
  %v2529 = vmul.u32 %v2523, %v2525
  %v2530 = vshll.u32 %v2527, 16
  %v2531 = vshrl.u32 %v2527, 16
  %v2532 = vshll.u32 %v2528, 16
  %v2533 = vshrl.u32 %v2528, 16
  %vm2534 = vc.u32 %v2526, %v2530
  %v2535 = vsel %vm2534, 1, 0
  %v2536 = vadd.s32 %v2526, %v2530
  %v2537 = vadd.s32 %v2529, %v2535
  %vm2538 = vc.u32 %v2536, %v2532
  %v2539 = vsel %vm2538, 1, 0
  %v2540 = vadd.s32 %v2536, %v2532
  %v2541 = vadd.s32 %v2537, %v2539
  %v2542 = vadd.s32 %v2541, %v2531
  %v2543 = vadd.s32 %v2542, %v2533
  %v2544 = vand.u32 %v2521, 65535
  %v2545 = vshrl.u32 %v2521, 16
  %v2546 = vand.u32 %v2516, 65535
  %v2547 = vshrl.u32 %v2516, 16
  %v2548 = vmul.u32 %v2544, %v2546
  %v2549 = vmul.u32 %v2544, %v2547
  %v2550 = vmul.u32 %v2545, %v2546
  %v2551 = vmul.u32 %v2545, %v2547
  %v2552 = vshll.u32 %v2549, 16
  %v2553 = vshrl.u32 %v2549, 16
  %v2554 = vshll.u32 %v2550, 16
  %v2555 = vshrl.u32 %v2550, 16
  %vm2556 = vc.u32 %v2548, %v2552
  %v2557 = vsel %vm2556, 1, 0
  %v2558 = vadd.s32 %v2548, %v2552
  %v2559 = vadd.s32 %v2551, %v2557
  %vm2560 = vc.u32 %v2558, %v2554
  %v2561 = vsel %vm2560, 1, 0
  %v2562 = vadd.s32 %v2558, %v2554
  %v2563 = vadd.s32 %v2559, %v2561
  %v2564 = vadd.s32 %v2563, %v2553
  %v2565 = vadd.s32 %v2564, %v2555
  %v2566 = vmul.u32 %v2521, %v2512
  %v2567 = vadd.s32 %v2543, %v2562
  %vm2568 = vc.u32 %v2543, %v2562
  %v2569 = vadd.s32 %v2565, 1
  %v2570 = vsel %vm2568, %v2569, %v2565
  %v2571 = vadd.s32 %v2566, %v2570
  %v2572 = vadd.s32 %v2571, 536870912
  %v2573 = vshrl.u32 %v2572, 30
  %v2574 = vshll.u32 %v2573, 30
  %v2575 = vsub.s32 %v2571, %v2574
  %vm2576 = vcmp.lt.s32.totalorder %v2575, 0
  %v2577 = vsub.s32 0, %v2575
  %v2578 = vsel %vm2576, %v2577, %v2575
  %v2579 = vclz %v2578
  %v2580 = vsub.s32 %v2579, 2
  %vm2581 = vcmp.gt.s32.totalorder 0, %v2580
  %v2582 = vsel %vm2581, 0, %v2580
  %v2583 = vsub.s32 32, %v2582
  %v2584 = vshll.u32 %v2575, %v2582
  %v2585 = vshrl.u32 %v2567, %v2583
  %v2586 = vor.u32 %v2584, %v2585
  %v2587 = vsub.s32 4294967266, %v2582
  %v2588 = vadd.s32 %v2587, 127
  %v2589 = vshll.u32 %v2588, 23
  %v2590 = vor.u32 4788187, %v2589
  %v2591 = vand.u32 2147483647, %v2590
  %v2593 = vcvt.s32.f32 %v2586
  %v2594 = vmul.f32 %v2593, %v2591
  %v2595 = vxor.u32 %v2594, 2147483648
  %v2596 = vsel %vm2475, %v2595, %v2594
  %v2597 = vsub.s32 4, %v2573
  %v2598 = vsel %vm2475, %v2597, %v2573
  %v2599 = vsel %vm2474, %v621, %v2596
  %v2600 = vsel %vm2474, 0, %v2598
  %v2601 = vmul.f32 %v2599, %v2599
  %v2602 = vmul.f32 %v2601, -0.001358992
  %v2603 = vadd.f32 %v2602, 0.041655596
  %v2604 = vmul.f32 %v2601, %v2603
  %v2605 = vadd.f32 %v2604, -0.4999988
  %v2606 = vmul.f32 %v2601, %v2605
  %v2607 = vadd.f32 1.0, %v2606
  %v2608 = vmul.f32 %v2599, %v2599
  %v2609 = vmul.f32 %v2608, -0.00019511016
  %v2610 = vadd.f32 %v2609, 0.008332121
  %v2611 = vmul.f32 %v2608, %v2610
  %v2612 = vadd.f32 %v2611, -0.16666654
  %v2613 = vmul.f32 %v2608, %v2612
  %v2614 = vadd.f32 %v2613, 1.0
  %v2615 = vmul.f32 %v2614, %v2599
  %vm2616 = vweird.f32 %v621
  %v2617 = vand.u32 %v2600, 3
  %vm2618 = vcmp.lt.s32.totalorder %v2617, 2
  %vm2619 = vcmp.eq.s32.totalorder %v2617, 0
  %v2620 = vxor.u32 %v2615, 2147483648
  %v2621 = vsel %vm2619, %v2607, %v2620
  %vm2622 = vcmp.eq.s32.totalorder %v2617, 2
  %v2623 = vxor.u32 %v2607, 2147483648
  %v2624 = vsel %vm2622, %v2623, %v2615
  %v2625 = vsel %vm2618, %v2621, %v2624
  %v2626 = vsel %vm2616, nan, %v2625
  %v2627 = vand.u32 2147483647, %v622
  %vm2628 = vcmp.le.f32.partialorder %v2627, 0.7853982
  %vm2629 = vcmp.lt.s32.totalorder %v622, 0
  %v2630 = vand.u32 %v622, 2139095040
  %v2631 = vshrl.u32 %v2630, 23
  %v2632 = vsub.s32 %v2631, 127
  %v2633 = vand.u32 2147483647, %v622
  %v2634 = vand.u32 %v2633, 8388607
  %v2635 = vor.u32 %v2634, 8388608
  %v2636 = vsub.s32 0, %v2635
  %v2637 = vadd.s32 %v2632, 1
  %vm2638 = vcmp.gt.s32.totalorder %v2637, 0
  %v2639 = vsel %vm2638, %v2637, 0
  %v2640 = vshrl.u32 %v2639, 5
  %v2641 = vand.u32 %v2639, 31
  %v2642 = vsub.s32 32, %v2641
  %v2643 = vshrl.u32 683565275, %v2642
  %v2644 = vshll.u32 683565275, %v2641
  %v2645 = vshrl.u32 2475754826, %v2642
  %v2646 = vor.u32 %v2644, %v2645
  %v2647 = vshll.u32 2475754826, %v2641
  %v2648 = vshrl.u32 2131351028, %v2642
  %v2649 = vor.u32 %v2647, %v2648
  %v2650 = vshll.u32 2131351028, %v2641
  %v2651 = vshrl.u32 2102212464, %v2642
  %v2652 = vor.u32 %v2650, %v2651
  %v2653 = vshll.u32 2102212464, %v2641
  %v2654 = vshrl.u32 920167782, %v2642
  %v2655 = vor.u32 %v2653, %v2654
  %v2656 = vshll.u32 920167782, %v2641
  %v2657 = vshrl.u32 1326507024, %v2642
  %v2658 = vor.u32 %v2656, %v2657
  %vm2659 = vcmp.lt.s32.totalorder %v2640, 1
  %vm2660 = vcmp.lt.s32.totalorder %v2640, 2
  %vm2661 = vcmp.lt.s32.totalorder %v2640, 3
  %vm2662 = vcmp.lt.s32.totalorder %v2640, 4
  %v2663 = vsel %vm2659, %v2643, %v2646
  %v2664 = vsel %vm2662, %v2652, 2102212464
  %v2665 = vsel %vm2661, %v2649, %v2664
  %v2666 = vsel %vm2660, %v2663, %v2665
  %v2667 = vsel %vm2659, %v2646, %v2649
  %v2668 = vsel %vm2662, %v2655, 920167782
  %v2669 = vsel %vm2661, %v2652, %v2668
  %v2670 = vsel %vm2660, %v2667, %v2669
  %v2671 = vsel %vm2659, %v2649, %v2652
  %v2672 = vsel %vm2662, %v2658, 1326507024
  %v2673 = vsel %vm2661, %v2655, %v2672
  %v2674 = vsel %vm2660, %v2671, %v2673
  %v2675 = vshll.u32 %v2635, 8
  %v2676 = vand.u32 %v2675, 65535
  %v2677 = vshrl.u32 %v2675, 16
  %v2678 = vand.u32 %v2674, 65535
  %v2679 = vshrl.u32 %v2674, 16
  %v2680 = vmul.u32 %v2676, %v2678
  %v2681 = vmul.u32 %v2676, %v2679
  %v2682 = vmul.u32 %v2677, %v2678
  %v2683 = vmul.u32 %v2677, %v2679
  %v2684 = vshll.u32 %v2681, 16
  %v2685 = vshrl.u32 %v2681, 16
  %v2686 = vshll.u32 %v2682, 16
  %v2687 = vshrl.u32 %v2682, 16
  %vm2688 = vc.u32 %v2680, %v2684
  %v2689 = vsel %vm2688, 1, 0
  %v2690 = vadd.s32 %v2680, %v2684
  %v2691 = vadd.s32 %v2683, %v2689
  %vm2692 = vc.u32 %v2690, %v2686
  %v2693 = vsel %vm2692, 1, 0
  %v2694 = vadd.s32 %v2690, %v2686
  %v2695 = vadd.s32 %v2691, %v2693
  %v2696 = vadd.s32 %v2695, %v2685
  %v2697 = vadd.s32 %v2696, %v2687
  %v2698 = vand.u32 %v2675, 65535
  %v2699 = vshrl.u32 %v2675, 16
  %v2700 = vand.u32 %v2670, 65535
  %v2701 = vshrl.u32 %v2670, 16
  %v2702 = vmul.u32 %v2698, %v2700
  %v2703 = vmul.u32 %v2698, %v2701
  %v2704 = vmul.u32 %v2699, %v2700
  %v2705 = vmul.u32 %v2699, %v2701
  %v2706 = vshll.u32 %v2703, 16
  %v2707 = vshrl.u32 %v2703, 16
  %v2708 = vshll.u32 %v2704, 16
  %v2709 = vshrl.u32 %v2704, 16
  %vm2710 = vc.u32 %v2702, %v2706
  %v2711 = vsel %vm2710, 1, 0
  %v2712 = vadd.s32 %v2702, %v2706
  %v2713 = vadd.s32 %v2705, %v2711
  %vm2714 = vc.u32 %v2712, %v2708
  %v2715 = vsel %vm2714, 1, 0
  %v2716 = vadd.s32 %v2712, %v2708
  %v2717 = vadd.s32 %v2713, %v2715
  %v2718 = vadd.s32 %v2717, %v2707
  %v2719 = vadd.s32 %v2718, %v2709
  %v2720 = vmul.u32 %v2675, %v2666
  %v2721 = vadd.s32 %v2697, %v2716
  %vm2722 = vc.u32 %v2697, %v2716
  %v2723 = vadd.s32 %v2719, 1
  %v2724 = vsel %vm2722, %v2723, %v2719
  %v2725 = vadd.s32 %v2720, %v2724
  %v2726 = vadd.s32 %v2725, 536870912
  %v2727 = vshrl.u32 %v2726, 30
  %v2728 = vshll.u32 %v2727, 30
  %v2729 = vsub.s32 %v2725, %v2728
  %vm2730 = vcmp.lt.s32.totalorder %v2729, 0
  %v2731 = vsub.s32 0, %v2729
  %v2732 = vsel %vm2730, %v2731, %v2729
  %v2733 = vclz %v2732
  %v2734 = vsub.s32 %v2733, 2
  %vm2735 = vcmp.gt.s32.totalorder 0, %v2734
  %v2736 = vsel %vm2735, 0, %v2734
  %v2737 = vsub.s32 32, %v2736
  %v2738 = vshll.u32 %v2729, %v2736
  %v2739 = vshrl.u32 %v2721, %v2737
  %v2740 = vor.u32 %v2738, %v2739
  %v2741 = vsub.s32 4294967266, %v2736
  %v2742 = vadd.s32 %v2741, 127
  %v2743 = vshll.u32 %v2742, 23
  %v2744 = vor.u32 4788187, %v2743
  %v2745 = vand.u32 2147483647, %v2744
  %v2747 = vcvt.s32.f32 %v2740
  %v2748 = vmul.f32 %v2747, %v2745
  %v2749 = vxor.u32 %v2748, 2147483648
  %v2750 = vsel %vm2629, %v2749, %v2748
  %v2751 = vsub.s32 4, %v2727
  %v2752 = vsel %vm2629, %v2751, %v2727
  %v2753 = vsel %vm2628, %v622, %v2750
  %v2754 = vsel %vm2628, 0, %v2752
  %v2755 = vmul.f32 %v2753, %v2753
  %v2756 = vmul.f32 %v2755, -0.001358992
  %v2757 = vadd.f32 %v2756, 0.041655596
  %v2758 = vmul.f32 %v2755, %v2757
  %v2759 = vadd.f32 %v2758, -0.4999988
  %v2760 = vmul.f32 %v2755, %v2759
  %v2761 = vadd.f32 1.0, %v2760
  %v2762 = vmul.f32 %v2753, %v2753
  %v2763 = vmul.f32 %v2762, -0.00019511016
  %v2764 = vadd.f32 %v2763, 0.008332121
  %v2765 = vmul.f32 %v2762, %v2764
  %v2766 = vadd.f32 %v2765, -0.16666654
  %v2767 = vmul.f32 %v2762, %v2766
  %v2768 = vadd.f32 %v2767, 1.0
  %v2769 = vmul.f32 %v2768, %v2753
  %vm2770 = vweird.f32 %v622
  %v2771 = vand.u32 %v2754, 3
  %vm2772 = vcmp.lt.s32.totalorder %v2771, 2
  %vm2773 = vcmp.eq.s32.totalorder %v2771, 0
  %v2774 = vxor.u32 %v2769, 2147483648
  %v2775 = vsel %vm2773, %v2761, %v2774
  %vm2776 = vcmp.eq.s32.totalorder %v2771, 2
  %v2777 = vxor.u32 %v2761, 2147483648
  %v2778 = vsel %vm2776, %v2777, %v2769
  %v2779 = vsel %vm2772, %v2775, %v2778
  %v2780 = vsel %vm2770, nan, %v2779
  %v2781 = vand.u32 2147483647, %v623
  %vm2782 = vcmp.le.f32.partialorder %v2781, 0.7853982
  %vm2783 = vcmp.lt.s32.totalorder %v623, 0
  %v2784 = vand.u32 %v623, 2139095040
  %v2785 = vshrl.u32 %v2784, 23
  %v2786 = vsub.s32 %v2785, 127
  %v2787 = vand.u32 2147483647, %v623
  %v2788 = vand.u32 %v2787, 8388607
  %v2789 = vor.u32 %v2788, 8388608
  %v2790 = vsub.s32 0, %v2789
  %v2791 = vadd.s32 %v2786, 1
  %vm2792 = vcmp.gt.s32.totalorder %v2791, 0
  %v2793 = vsel %vm2792, %v2791, 0
  %v2794 = vshrl.u32 %v2793, 5
  %v2795 = vand.u32 %v2793, 31
  %v2796 = vsub.s32 32, %v2795
  %v2797 = vshrl.u32 683565275, %v2796
  %v2798 = vshll.u32 683565275, %v2795
  %v2799 = vshrl.u32 2475754826, %v2796
  %v2800 = vor.u32 %v2798, %v2799
  %v2801 = vshll.u32 2475754826, %v2795
  %v2802 = vshrl.u32 2131351028, %v2796
  %v2803 = vor.u32 %v2801, %v2802
  %v2804 = vshll.u32 2131351028, %v2795
  %v2805 = vshrl.u32 2102212464, %v2796
  %v2806 = vor.u32 %v2804, %v2805
  %v2807 = vshll.u32 2102212464, %v2795
  %v2808 = vshrl.u32 920167782, %v2796
  %v2809 = vor.u32 %v2807, %v2808
  %v2810 = vshll.u32 920167782, %v2795
  %v2811 = vshrl.u32 1326507024, %v2796
  %v2812 = vor.u32 %v2810, %v2811
  %vm2813 = vcmp.lt.s32.totalorder %v2794, 1
  %vm2814 = vcmp.lt.s32.totalorder %v2794, 2
  %vm2815 = vcmp.lt.s32.totalorder %v2794, 3
  %vm2816 = vcmp.lt.s32.totalorder %v2794, 4
  %v2817 = vsel %vm2813, %v2797, %v2800
  %v2818 = vsel %vm2816, %v2806, 2102212464
  %v2819 = vsel %vm2815, %v2803, %v2818
  %v2820 = vsel %vm2814, %v2817, %v2819
  %v2821 = vsel %vm2813, %v2800, %v2803
  %v2822 = vsel %vm2816, %v2809, 920167782
  %v2823 = vsel %vm2815, %v2806, %v2822
  %v2824 = vsel %vm2814, %v2821, %v2823
  %v2825 = vsel %vm2813, %v2803, %v2806
  %v2826 = vsel %vm2816, %v2812, 1326507024
  %v2827 = vsel %vm2815, %v2809, %v2826
  %v2828 = vsel %vm2814, %v2825, %v2827
  %v2829 = vshll.u32 %v2789, 8
  %v2830 = vand.u32 %v2829, 65535
  %v2831 = vshrl.u32 %v2829, 16
  %v2832 = vand.u32 %v2828, 65535
  %v2833 = vshrl.u32 %v2828, 16
  %v2834 = vmul.u32 %v2830, %v2832
  %v2835 = vmul.u32 %v2830, %v2833
  %v2836 = vmul.u32 %v2831, %v2832
  %v2837 = vmul.u32 %v2831, %v2833
  %v2838 = vshll.u32 %v2835, 16
  %v2839 = vshrl.u32 %v2835, 16
  %v2840 = vshll.u32 %v2836, 16
  %v2841 = vshrl.u32 %v2836, 16
  %vm2842 = vc.u32 %v2834, %v2838
  %v2843 = vsel %vm2842, 1, 0
  %v2844 = vadd.s32 %v2834, %v2838
  %v2845 = vadd.s32 %v2837, %v2843
  %vm2846 = vc.u32 %v2844, %v2840
  %v2847 = vsel %vm2846, 1, 0
  %v2848 = vadd.s32 %v2844, %v2840
  %v2849 = vadd.s32 %v2845, %v2847
  %v2850 = vadd.s32 %v2849, %v2839
  %v2851 = vadd.s32 %v2850, %v2841
  %v2852 = vand.u32 %v2829, 65535
  %v2853 = vshrl.u32 %v2829, 16
  %v2854 = vand.u32 %v2824, 65535
  %v2855 = vshrl.u32 %v2824, 16
  %v2856 = vmul.u32 %v2852, %v2854
  %v2857 = vmul.u32 %v2852, %v2855
  %v2858 = vmul.u32 %v2853, %v2854
  %v2859 = vmul.u32 %v2853, %v2855
  %v2860 = vshll.u32 %v2857, 16
  %v2861 = vshrl.u32 %v2857, 16
  %v2862 = vshll.u32 %v2858, 16
  %v2863 = vshrl.u32 %v2858, 16
  %vm2864 = vc.u32 %v2856, %v2860
  %v2865 = vsel %vm2864, 1, 0
  %v2866 = vadd.s32 %v2856, %v2860
  %v2867 = vadd.s32 %v2859, %v2865
  %vm2868 = vc.u32 %v2866, %v2862
  %v2869 = vsel %vm2868, 1, 0
  %v2870 = vadd.s32 %v2866, %v2862
  %v2871 = vadd.s32 %v2867, %v2869
  %v2872 = vadd.s32 %v2871, %v2861
  %v2873 = vadd.s32 %v2872, %v2863
  %v2874 = vmul.u32 %v2829, %v2820
  %v2875 = vadd.s32 %v2851, %v2870
  %vm2876 = vc.u32 %v2851, %v2870
  %v2877 = vadd.s32 %v2873, 1
  %v2878 = vsel %vm2876, %v2877, %v2873
  %v2879 = vadd.s32 %v2874, %v2878
  %v2880 = vadd.s32 %v2879, 536870912
  %v2881 = vshrl.u32 %v2880, 30
  %v2882 = vshll.u32 %v2881, 30
  %v2883 = vsub.s32 %v2879, %v2882
  %vm2884 = vcmp.lt.s32.totalorder %v2883, 0
  %v2885 = vsub.s32 0, %v2883
  %v2886 = vsel %vm2884, %v2885, %v2883
  %v2887 = vclz %v2886
  %v2888 = vsub.s32 %v2887, 2
  %vm2889 = vcmp.gt.s32.totalorder 0, %v2888
  %v2890 = vsel %vm2889, 0, %v2888
  %v2891 = vsub.s32 32, %v2890
  %v2892 = vshll.u32 %v2883, %v2890
  %v2893 = vshrl.u32 %v2875, %v2891
  %v2894 = vor.u32 %v2892, %v2893
  %v2895 = vsub.s32 4294967266, %v2890
  %v2896 = vadd.s32 %v2895, 127
  %v2897 = vshll.u32 %v2896, 23
  %v2898 = vor.u32 4788187, %v2897
  %v2899 = vand.u32 2147483647, %v2898
  %v2901 = vcvt.s32.f32 %v2894
  %v2902 = vmul.f32 %v2901, %v2899
  %v2903 = vxor.u32 %v2902, 2147483648
  %v2904 = vsel %vm2783, %v2903, %v2902
  %v2905 = vsub.s32 4, %v2881
  %v2906 = vsel %vm2783, %v2905, %v2881
  %v2907 = vsel %vm2782, %v623, %v2904
  %v2908 = vsel %vm2782, 0, %v2906
  %v2909 = vmul.f32 %v2907, %v2907
  %v2910 = vmul.f32 %v2909, -0.001358992
  %v2911 = vadd.f32 %v2910, 0.041655596
  %v2912 = vmul.f32 %v2909, %v2911
  %v2913 = vadd.f32 %v2912, -0.4999988
  %v2914 = vmul.f32 %v2909, %v2913
  %v2915 = vadd.f32 1.0, %v2914
  %v2916 = vmul.f32 %v2907, %v2907
  %v2917 = vmul.f32 %v2916, -0.00019511016
  %v2918 = vadd.f32 %v2917, 0.008332121
  %v2919 = vmul.f32 %v2916, %v2918
  %v2920 = vadd.f32 %v2919, -0.16666654
  %v2921 = vmul.f32 %v2916, %v2920
  %v2922 = vadd.f32 %v2921, 1.0
  %v2923 = vmul.f32 %v2922, %v2907
  %vm2924 = vweird.f32 %v623
  %v2925 = vand.u32 %v2908, 3
  %vm2926 = vcmp.lt.s32.totalorder %v2925, 2
  %vm2927 = vcmp.eq.s32.totalorder %v2925, 0
  %v2928 = vxor.u32 %v2923, 2147483648
  %v2929 = vsel %vm2927, %v2915, %v2928
  %vm2930 = vcmp.eq.s32.totalorder %v2925, 2
  %v2931 = vxor.u32 %v2915, 2147483648
  %v2932 = vsel %vm2930, %v2931, %v2923
  %v2933 = vsel %vm2926, %v2929, %v2932
  %v2934 = vsel %vm2924, nan, %v2933
  %v2935 = vand.u32 2147483647, %v624
  %vm2936 = vcmp.le.f32.partialorder %v2935, 0.7853982
  %vm2937 = vcmp.lt.s32.totalorder %v624, 0
  %v2938 = vand.u32 %v624, 2139095040
  %v2939 = vshrl.u32 %v2938, 23
  %v2940 = vsub.s32 %v2939, 127
  %v2941 = vand.u32 2147483647, %v624
  %v2942 = vand.u32 %v2941, 8388607
  %v2943 = vor.u32 %v2942, 8388608
  %v2944 = vsub.s32 0, %v2943
  %v2945 = vadd.s32 %v2940, 1
  %vm2946 = vcmp.gt.s32.totalorder %v2945, 0
  %v2947 = vsel %vm2946, %v2945, 0
  %v2948 = vshrl.u32 %v2947, 5
  %v2949 = vand.u32 %v2947, 31
  %v2950 = vsub.s32 32, %v2949
  %v2951 = vshrl.u32 683565275, %v2950
  %v2952 = vshll.u32 683565275, %v2949
  %v2953 = vshrl.u32 2475754826, %v2950
  %v2954 = vor.u32 %v2952, %v2953
  %v2955 = vshll.u32 2475754826, %v2949
  %v2956 = vshrl.u32 2131351028, %v2950
  %v2957 = vor.u32 %v2955, %v2956
  %v2958 = vshll.u32 2131351028, %v2949
  %v2959 = vshrl.u32 2102212464, %v2950
  %v2960 = vor.u32 %v2958, %v2959
  %v2961 = vshll.u32 2102212464, %v2949
  %v2962 = vshrl.u32 920167782, %v2950
  %v2963 = vor.u32 %v2961, %v2962
  %v2964 = vshll.u32 920167782, %v2949
  %v2965 = vshrl.u32 1326507024, %v2950
  %v2966 = vor.u32 %v2964, %v2965
  %vm2967 = vcmp.lt.s32.totalorder %v2948, 1
  %vm2968 = vcmp.lt.s32.totalorder %v2948, 2
  %vm2969 = vcmp.lt.s32.totalorder %v2948, 3
  %vm2970 = vcmp.lt.s32.totalorder %v2948, 4
  %v2971 = vsel %vm2967, %v2951, %v2954
  %v2972 = vsel %vm2970, %v2960, 2102212464
  %v2973 = vsel %vm2969, %v2957, %v2972
  %v2974 = vsel %vm2968, %v2971, %v2973
  %v2975 = vsel %vm2967, %v2954, %v2957
  %v2976 = vsel %vm2970, %v2963, 920167782
  %v2977 = vsel %vm2969, %v2960, %v2976
  %v2978 = vsel %vm2968, %v2975, %v2977
  %v2979 = vsel %vm2967, %v2957, %v2960
  %v2980 = vsel %vm2970, %v2966, 1326507024
  %v2981 = vsel %vm2969, %v2963, %v2980
  %v2982 = vsel %vm2968, %v2979, %v2981
  %v2983 = vshll.u32 %v2943, 8
  %v2984 = vand.u32 %v2983, 65535
  %v2985 = vshrl.u32 %v2983, 16
  %v2986 = vand.u32 %v2982, 65535
  %v2987 = vshrl.u32 %v2982, 16
  %v2988 = vmul.u32 %v2984, %v2986
  %v2989 = vmul.u32 %v2984, %v2987
  %v2990 = vmul.u32 %v2985, %v2986
  %v2991 = vmul.u32 %v2985, %v2987
  %v2992 = vshll.u32 %v2989, 16
  %v2993 = vshrl.u32 %v2989, 16
  %v2994 = vshll.u32 %v2990, 16
  %v2995 = vshrl.u32 %v2990, 16
  %vm2996 = vc.u32 %v2988, %v2992
  %v2997 = vsel %vm2996, 1, 0
  %v2998 = vadd.s32 %v2988, %v2992
  %v2999 = vadd.s32 %v2991, %v2997
  %vm3000 = vc.u32 %v2998, %v2994
  %v3001 = vsel %vm3000, 1, 0
  %v3002 = vadd.s32 %v2998, %v2994
  %v3003 = vadd.s32 %v2999, %v3001
  %v3004 = vadd.s32 %v3003, %v2993
  %v3005 = vadd.s32 %v3004, %v2995
  %v3006 = vand.u32 %v2983, 65535
  %v3007 = vshrl.u32 %v2983, 16
  %v3008 = vand.u32 %v2978, 65535
  %v3009 = vshrl.u32 %v2978, 16
  %v3010 = vmul.u32 %v3006, %v3008
  %v3011 = vmul.u32 %v3006, %v3009
  %v3012 = vmul.u32 %v3007, %v3008
  %v3013 = vmul.u32 %v3007, %v3009
  %v3014 = vshll.u32 %v3011, 16
  %v3015 = vshrl.u32 %v3011, 16
  %v3016 = vshll.u32 %v3012, 16
  %v3017 = vshrl.u32 %v3012, 16
  %vm3018 = vc.u32 %v3010, %v3014
  %v3019 = vsel %vm3018, 1, 0
  %v3020 = vadd.s32 %v3010, %v3014
  %v3021 = vadd.s32 %v3013, %v3019
  %vm3022 = vc.u32 %v3020, %v3016
  %v3023 = vsel %vm3022, 1, 0
  %v3024 = vadd.s32 %v3020, %v3016
  %v3025 = vadd.s32 %v3021, %v3023
  %v3026 = vadd.s32 %v3025, %v3015
  %v3027 = vadd.s32 %v3026, %v3017
  %v3028 = vmul.u32 %v2983, %v2974
  %v3029 = vadd.s32 %v3005, %v3024
  %vm3030 = vc.u32 %v3005, %v3024
  %v3031 = vadd.s32 %v3027, 1
  %v3032 = vsel %vm3030, %v3031, %v3027
  %v3033 = vadd.s32 %v3028, %v3032
  %v3034 = vadd.s32 %v3033, 536870912
  %v3035 = vshrl.u32 %v3034, 30
  %v3036 = vshll.u32 %v3035, 30
  %v3037 = vsub.s32 %v3033, %v3036
  %vm3038 = vcmp.lt.s32.totalorder %v3037, 0
  %v3039 = vsub.s32 0, %v3037
  %v3040 = vsel %vm3038, %v3039, %v3037
  %v3041 = vclz %v3040
  %v3042 = vsub.s32 %v3041, 2
  %vm3043 = vcmp.gt.s32.totalorder 0, %v3042
  %v3044 = vsel %vm3043, 0, %v3042
  %v3045 = vsub.s32 32, %v3044
  %v3046 = vshll.u32 %v3037, %v3044
  %v3047 = vshrl.u32 %v3029, %v3045
  %v3048 = vor.u32 %v3046, %v3047
  %v3049 = vsub.s32 4294967266, %v3044
  %v3050 = vadd.s32 %v3049, 127
  %v3051 = vshll.u32 %v3050, 23
  %v3052 = vor.u32 4788187, %v3051
  %v3053 = vand.u32 2147483647, %v3052
  %v3055 = vcvt.s32.f32 %v3048
  %v3056 = vmul.f32 %v3055, %v3053
  %v3057 = vxor.u32 %v3056, 2147483648
  %v3058 = vsel %vm2937, %v3057, %v3056
  %v3059 = vsub.s32 4, %v3035
  %v3060 = vsel %vm2937, %v3059, %v3035
  %v3061 = vsel %vm2936, %v624, %v3058
  %v3062 = vsel %vm2936, 0, %v3060
  %v3063 = vmul.f32 %v3061, %v3061
  %v3064 = vmul.f32 %v3063, -0.001358992
  %v3065 = vadd.f32 %v3064, 0.041655596
  %v3066 = vmul.f32 %v3063, %v3065
  %v3067 = vadd.f32 %v3066, -0.4999988
  %v3068 = vmul.f32 %v3063, %v3067
  %v3069 = vadd.f32 1.0, %v3068
  %v3070 = vmul.f32 %v3061, %v3061
  %v3071 = vmul.f32 %v3070, -0.00019511016
  %v3072 = vadd.f32 %v3071, 0.008332121
  %v3073 = vmul.f32 %v3070, %v3072
  %v3074 = vadd.f32 %v3073, -0.16666654
  %v3075 = vmul.f32 %v3070, %v3074
  %v3076 = vadd.f32 %v3075, 1.0
  %v3077 = vmul.f32 %v3076, %v3061
  %vm3078 = vweird.f32 %v624
  %v3079 = vand.u32 %v3062, 3
  %vm3080 = vcmp.lt.s32.totalorder %v3079, 2
  %vm3081 = vcmp.eq.s32.totalorder %v3079, 0
  %v3082 = vxor.u32 %v3077, 2147483648
  %v3083 = vsel %vm3081, %v3069, %v3082
  %vm3084 = vcmp.eq.s32.totalorder %v3079, 2
  %v3085 = vxor.u32 %v3069, 2147483648
  %v3086 = vsel %vm3084, %v3085, %v3077
  %v3087 = vsel %vm3080, %v3083, %v3086
  %v3088 = vsel %vm3078, nan, %v3087
  %v3089 = vadd.f32 %v778, 1.0
  %v3090 = vadd.f32 %v932, 1.0
  %v3091 = vadd.f32 %v1086, 1.0
  %v3092 = vadd.f32 %v1240, 1.0
  %v3093 = vadd.f32 %v1394, 1.0
  %v3094 = vadd.f32 %v1548, 1.0
  %v3095 = vadd.f32 %v1702, 1.0
  %v3096 = vadd.f32 %v1856, 1.0
  %v3097 = vadd.f32 %v2010, 1.0
  %v3098 = vadd.f32 %v2164, 1.0
  %v3099 = vadd.f32 %v2318, 1.0
  %v3100 = vadd.f32 %v2472, 1.0
  %v3101 = vadd.f32 %v2626, 1.0
  %v3102 = vadd.f32 %v2780, 1.0
  %v3103 = vadd.f32 %v2934, 1.0
  %v3104 = vadd.f32 %v3088, 1.0
  %v3105 = vmul.f32 %v3089, 0.5
  %v3106 = vmul.f32 %v3090, 0.5
  %v3107 = vmul.f32 %v3091, 0.5
  %v3108 = vmul.f32 %v3092, 0.5
  %v3109 = vmul.f32 %v3093, 0.5
  %v3110 = vmul.f32 %v3094, 0.5
  %v3111 = vmul.f32 %v3095, 0.5
  %v3112 = vmul.f32 %v3096, 0.5
  %v3113 = vmul.f32 %v3097, 0.5
  %v3114 = vmul.f32 %v3098, 0.5
  %v3115 = vmul.f32 %v3099, 0.5
  %v3116 = vmul.f32 %v3100, 0.5
  %v3117 = vmul.f32 %v3101, 0.5
  %v3118 = vmul.f32 %v3102, 0.5
  %v3119 = vmul.f32 %v3103, 0.5
  %v3120 = vmul.f32 %v3104, 0.5
  %v3121 = vperm.slane %v537, 0
  %v3122 = vlaneseq
  %v3123 = vshrl.u32 %v3122, 7
  %3125 = vset.pattern.permute.xlu0 %v3123
  %3126 = vperm.xlu0 %3125, %v3121
  %v3127 = vpop.permute.xlu0 %3126
  %v3128 = vperm.slane %v537, 1
  %v3129 = vlaneseq
  %v3130 = vshrl.u32 %v3129, 7
  %3132 = vset.pattern.permute.xlu0 %v3130
  %3133 = vperm.xlu0 %3132, %v3128
  %v3134 = vpop.permute.xlu0 %3133
  %v3135 = vperm.slane %v537, 2
  %v3136 = vlaneseq
  %v3137 = vshrl.u32 %v3136, 7
  %3139 = vset.pattern.permute.xlu0 %v3137
  %3140 = vperm.xlu0 %3139, %v3135
  %v3141 = vpop.permute.xlu0 %3140
  %v3142 = vperm.slane %v537, 3
  %v3143 = vlaneseq
  %v3144 = vshrl.u32 %v3143, 7
  %3146 = vset.pattern.permute.xlu0 %v3144
  %3147 = vperm.xlu0 %3146, %v3142
  %v3148 = vpop.permute.xlu0 %3147
  %v3149 = vperm.slane %v538, 0
  %v3150 = vlaneseq
  %v3151 = vshrl.u32 %v3150, 7
  %3153 = vset.pattern.permute.xlu0 %v3151
  %3154 = vperm.xlu0 %3153, %v3149
  %v3155 = vpop.permute.xlu0 %3154
  %v3156 = vperm.slane %v538, 1
  %v3157 = vlaneseq
  %v3158 = vshrl.u32 %v3157, 7
  %3160 = vset.pattern.permute.xlu0 %v3158
  %3161 = vperm.xlu0 %3160, %v3156
  %v3162 = vpop.permute.xlu0 %3161
  %v3163 = vperm.slane %v538, 2
  %v3164 = vlaneseq
  %v3165 = vshrl.u32 %v3164, 7
  %3167 = vset.pattern.permute.xlu0 %v3165
  %3168 = vperm.xlu0 %3167, %v3163
  %v3169 = vpop.permute.xlu0 %3168
  %v3170 = vperm.slane %v538, 3
  %v3171 = vlaneseq
  %v3172 = vshrl.u32 %v3171, 7
  %3174 = vset.pattern.permute.xlu0 %v3172
  %3175 = vperm.xlu0 %3174, %v3170
  %v3176 = vpop.permute.xlu0 %3175
  %v3177 = vperm.slane %v539, 0
  %v3178 = vlaneseq
  %v3179 = vshrl.u32 %v3178, 7
  %3181 = vset.pattern.permute.xlu0 %v3179
  %3182 = vperm.xlu0 %3181, %v3177
  %v3183 = vpop.permute.xlu0 %3182
  %v3184 = vperm.slane %v539, 1
  %v3185 = vlaneseq
  %v3186 = vshrl.u32 %v3185, 7
  %3188 = vset.pattern.permute.xlu0 %v3186
  %3189 = vperm.xlu0 %3188, %v3184
  %v3190 = vpop.permute.xlu0 %3189
  %v3191 = vperm.slane %v539, 2
  %v3192 = vlaneseq
  %v3193 = vshrl.u32 %v3192, 7
  %3195 = vset.pattern.permute.xlu0 %v3193
  %3196 = vperm.xlu0 %3195, %v3191
  %v3197 = vpop.permute.xlu0 %3196
  %v3198 = vperm.slane %v539, 3
  %v3199 = vlaneseq
  %v3200 = vshrl.u32 %v3199, 7
  %3202 = vset.pattern.permute.xlu0 %v3200
  %3203 = vperm.xlu0 %3202, %v3198
  %v3204 = vpop.permute.xlu0 %3203
  %v3205 = vperm.slane %v540, 0
  %v3206 = vlaneseq
  %v3207 = vshrl.u32 %v3206, 7
  %3209 = vset.pattern.permute.xlu0 %v3207
  %3210 = vperm.xlu0 %3209, %v3205
  %v3211 = vpop.permute.xlu0 %3210
  %v3212 = vperm.slane %v540, 1
  %v3213 = vlaneseq
  %v3214 = vshrl.u32 %v3213, 7
  %3216 = vset.pattern.permute.xlu0 %v3214
  %3217 = vperm.xlu0 %3216, %v3212
  %v3218 = vpop.permute.xlu0 %3217
  %v3219 = vperm.slane %v540, 2
  %v3220 = vlaneseq
  %v3221 = vshrl.u32 %v3220, 7
  %3223 = vset.pattern.permute.xlu0 %v3221
  %3224 = vperm.xlu0 %3223, %v3219
  %v3225 = vpop.permute.xlu0 %3224
  %v3226 = vperm.slane %v540, 3
  %v3227 = vlaneseq
  %v3228 = vshrl.u32 %v3227, 7
  %3230 = vset.pattern.permute.xlu0 %v3228
  %3231 = vperm.xlu0 %3230, %v3226
  %v3232 = vpop.permute.xlu0 %3231
  %v3233 = vperm.slane %v541, 0
  %v3234 = vlaneseq
  %v3235 = vshrl.u32 %v3234, 7
  %3237 = vset.pattern.permute.xlu0 %v3235
  %3238 = vperm.xlu0 %3237, %v3233
  %v3239 = vpop.permute.xlu0 %3238
  %v3240 = vperm.slane %v541, 1
  %v3241 = vlaneseq
  %v3242 = vshrl.u32 %v3241, 7
  %3244 = vset.pattern.permute.xlu0 %v3242
  %3245 = vperm.xlu0 %3244, %v3240
  %v3246 = vpop.permute.xlu0 %3245
  %v3247 = vperm.slane %v541, 2
  %v3248 = vlaneseq
  %v3249 = vshrl.u32 %v3248, 7
  %3251 = vset.pattern.permute.xlu0 %v3249
  %3252 = vperm.xlu0 %3251, %v3247
  %v3253 = vpop.permute.xlu0 %3252
  %v3254 = vperm.slane %v541, 3
  %v3255 = vlaneseq
  %v3256 = vshrl.u32 %v3255, 7
  %3258 = vset.pattern.permute.xlu0 %v3256
  %3259 = vperm.xlu0 %3258, %v3254
  %v3260 = vpop.permute.xlu0 %3259
  %v3261 = vperm.slane %v542, 0
  %v3262 = vlaneseq
  %v3263 = vshrl.u32 %v3262, 7
  %3265 = vset.pattern.permute.xlu0 %v3263
  %3266 = vperm.xlu0 %3265, %v3261
  %v3267 = vpop.permute.xlu0 %3266
  %v3268 = vperm.slane %v542, 1
  %v3269 = vlaneseq
  %v3270 = vshrl.u32 %v3269, 7
  %3272 = vset.pattern.permute.xlu0 %v3270
  %3273 = vperm.xlu0 %3272, %v3268
  %v3274 = vpop.permute.xlu0 %3273
  %v3275 = vperm.slane %v542, 2
  %v3276 = vlaneseq
  %v3277 = vshrl.u32 %v3276, 7
  %3279 = vset.pattern.permute.xlu0 %v3277
  %3280 = vperm.xlu0 %3279, %v3275
  %v3281 = vpop.permute.xlu0 %3280
  %v3282 = vperm.slane %v542, 3
  %v3283 = vlaneseq
  %v3284 = vshrl.u32 %v3283, 7
  %3286 = vset.pattern.permute.xlu0 %v3284
  %3287 = vperm.xlu0 %3286, %v3282
  %v3288 = vpop.permute.xlu0 %3287
  %v3289 = vperm.slane %v543, 0
  %v3290 = vlaneseq
  %v3291 = vshrl.u32 %v3290, 7
  %3293 = vset.pattern.permute.xlu0 %v3291
  %3294 = vperm.xlu0 %3293, %v3289
  %v3295 = vpop.permute.xlu0 %3294
  %v3296 = vperm.slane %v543, 1
  %v3297 = vlaneseq
  %v3298 = vshrl.u32 %v3297, 7
  %3300 = vset.pattern.permute.xlu0 %v3298
  %3301 = vperm.xlu0 %3300, %v3296
  %v3302 = vpop.permute.xlu0 %3301
  %v3303 = vperm.slane %v543, 2
  %v3304 = vlaneseq
  %v3305 = vshrl.u32 %v3304, 7
  %3307 = vset.pattern.permute.xlu0 %v3305
  %3308 = vperm.xlu0 %3307, %v3303
  %v3309 = vpop.permute.xlu0 %3308
  %v3310 = vperm.slane %v543, 3
  %v3311 = vlaneseq
  %v3312 = vshrl.u32 %v3311, 7
  %3314 = vset.pattern.permute.xlu0 %v3312
  %3315 = vperm.xlu0 %3314, %v3310
  %v3316 = vpop.permute.xlu0 %3315
  %v3317 = vperm.slane %v544, 0
  %v3318 = vlaneseq
  %v3319 = vshrl.u32 %v3318, 7
  %3321 = vset.pattern.permute.xlu0 %v3319
  %3322 = vperm.xlu0 %3321, %v3317
  %v3323 = vpop.permute.xlu0 %3322
  %v3324 = vperm.slane %v544, 1
  %v3325 = vlaneseq
  %v3326 = vshrl.u32 %v3325, 7
  %3328 = vset.pattern.permute.xlu0 %v3326
  %3329 = vperm.xlu0 %3328, %v3324
  %v3330 = vpop.permute.xlu0 %3329
  %v3331 = vperm.slane %v544, 2
  %v3332 = vlaneseq
  %v3333 = vshrl.u32 %v3332, 7
  %3335 = vset.pattern.permute.xlu0 %v3333
  %3336 = vperm.xlu0 %3335, %v3331
  %v3337 = vpop.permute.xlu0 %3336
  %v3338 = vperm.slane %v544, 3
  %v3339 = vlaneseq
  %v3340 = vshrl.u32 %v3339, 7
  %3342 = vset.pattern.permute.xlu0 %v3340
  %3343 = vperm.xlu0 %3342, %v3338
  %v3344 = vpop.permute.xlu0 %3343
  %v3345 = vperm.slane %v545, 0
  %v3346 = vlaneseq
  %v3347 = vshrl.u32 %v3346, 7
  %3349 = vset.pattern.permute.xlu0 %v3347
  %3350 = vperm.xlu0 %3349, %v3345
  %v3351 = vpop.permute.xlu0 %3350
  %v3352 = vperm.slane %v545, 1
  %v3353 = vlaneseq
  %v3354 = vshrl.u32 %v3353, 7
  %3356 = vset.pattern.permute.xlu0 %v3354
  %3357 = vperm.xlu0 %3356, %v3352
  %v3358 = vpop.permute.xlu0 %3357
  %v3359 = vperm.slane %v545, 2
  %v3360 = vlaneseq
  %v3361 = vshrl.u32 %v3360, 7
  %3363 = vset.pattern.permute.xlu0 %v3361
  %3364 = vperm.xlu0 %3363, %v3359
  %v3365 = vpop.permute.xlu0 %3364
  %v3366 = vperm.slane %v545, 3
  %v3367 = vlaneseq
  %v3368 = vshrl.u32 %v3367, 7
  %3370 = vset.pattern.permute.xlu0 %v3368
  %3371 = vperm.xlu0 %3370, %v3366
  %v3372 = vpop.permute.xlu0 %3371
  %v3373 = vperm.slane %v546, 0
  %v3374 = vlaneseq
  %v3375 = vshrl.u32 %v3374, 7
  %3377 = vset.pattern.permute.xlu0 %v3375
  %3378 = vperm.xlu0 %3377, %v3373
  %v3379 = vpop.permute.xlu0 %3378
  %v3380 = vperm.slane %v546, 1
  %v3381 = vlaneseq
  %v3382 = vshrl.u32 %v3381, 7
  %3384 = vset.pattern.permute.xlu0 %v3382
  %3385 = vperm.xlu0 %3384, %v3380
  %v3386 = vpop.permute.xlu0 %3385
  %v3387 = vperm.slane %v546, 2
  %v3388 = vlaneseq
  %v3389 = vshrl.u32 %v3388, 7
  %3391 = vset.pattern.permute.xlu0 %v3389
  %3392 = vperm.xlu0 %3391, %v3387
  %v3393 = vpop.permute.xlu0 %3392
  %v3394 = vperm.slane %v546, 3
  %v3395 = vlaneseq
  %v3396 = vshrl.u32 %v3395, 7
  %3398 = vset.pattern.permute.xlu0 %v3396
  %3399 = vperm.xlu0 %3398, %v3394
  %v3400 = vpop.permute.xlu0 %3399
  %v3401 = vperm.slane %v547, 0
  %v3402 = vlaneseq
  %v3403 = vshrl.u32 %v3402, 7
  %3405 = vset.pattern.permute.xlu0 %v3403
  %3406 = vperm.xlu0 %3405, %v3401
  %v3407 = vpop.permute.xlu0 %3406
  %v3408 = vperm.slane %v547, 1
  %v3409 = vlaneseq
  %v3410 = vshrl.u32 %v3409, 7
  %3412 = vset.pattern.permute.xlu0 %v3410
  %3413 = vperm.xlu0 %3412, %v3408
  %v3414 = vpop.permute.xlu0 %3413
  %v3415 = vperm.slane %v547, 2
  %v3416 = vlaneseq
  %v3417 = vshrl.u32 %v3416, 7
  %3419 = vset.pattern.permute.xlu0 %v3417
  %3420 = vperm.xlu0 %3419, %v3415
  %v3421 = vpop.permute.xlu0 %3420
  %v3422 = vperm.slane %v547, 3
  %v3423 = vlaneseq
  %v3424 = vshrl.u32 %v3423, 7
  %3426 = vset.pattern.permute.xlu0 %v3424
  %3427 = vperm.xlu0 %3426, %v3422
  %v3428 = vpop.permute.xlu0 %3427
  %v3429 = vperm.slane %v548, 0
  %v3430 = vlaneseq
  %v3431 = vshrl.u32 %v3430, 7
  %3433 = vset.pattern.permute.xlu0 %v3431
  %3434 = vperm.xlu0 %3433, %v3429
  %v3435 = vpop.permute.xlu0 %3434
  %v3436 = vperm.slane %v548, 1
  %v3437 = vlaneseq
  %v3438 = vshrl.u32 %v3437, 7
  %3440 = vset.pattern.permute.xlu0 %v3438
  %3441 = vperm.xlu0 %3440, %v3436
  %v3442 = vpop.permute.xlu0 %3441
  %v3443 = vperm.slane %v548, 2
  %v3444 = vlaneseq
  %v3445 = vshrl.u32 %v3444, 7
  %3447 = vset.pattern.permute.xlu0 %v3445
  %3448 = vperm.xlu0 %3447, %v3443
  %v3449 = vpop.permute.xlu0 %3448
  %v3450 = vperm.slane %v548, 3
  %v3451 = vlaneseq
  %v3452 = vshrl.u32 %v3451, 7
  %3454 = vset.pattern.permute.xlu0 %v3452
  %3455 = vperm.xlu0 %3454, %v3450
  %v3456 = vpop.permute.xlu0 %3455
  %v3457 = vperm.slane %v549, 0
  %v3458 = vlaneseq
  %v3459 = vshrl.u32 %v3458, 7
  %3461 = vset.pattern.permute.xlu0 %v3459
  %3462 = vperm.xlu0 %3461, %v3457
  %v3463 = vpop.permute.xlu0 %3462
  %v3464 = vperm.slane %v549, 1
  %v3465 = vlaneseq
  %v3466 = vshrl.u32 %v3465, 7
  %3468 = vset.pattern.permute.xlu0 %v3466
  %3469 = vperm.xlu0 %3468, %v3464
  %v3470 = vpop.permute.xlu0 %3469
  %v3471 = vperm.slane %v549, 2
  %v3472 = vlaneseq
  %v3473 = vshrl.u32 %v3472, 7
  %3475 = vset.pattern.permute.xlu0 %v3473
  %3476 = vperm.xlu0 %3475, %v3471
  %v3477 = vpop.permute.xlu0 %3476
  %v3478 = vperm.slane %v549, 3
  %v3479 = vlaneseq
  %v3480 = vshrl.u32 %v3479, 7
  %3482 = vset.pattern.permute.xlu0 %v3480
  %3483 = vperm.xlu0 %3482, %v3478
  %v3484 = vpop.permute.xlu0 %3483
  %v3485 = vperm.slane %v550, 0
  %v3486 = vlaneseq
  %v3487 = vshrl.u32 %v3486, 7
  %3489 = vset.pattern.permute.xlu0 %v3487
  %3490 = vperm.xlu0 %3489, %v3485
  %v3491 = vpop.permute.xlu0 %3490
  %v3492 = vperm.slane %v550, 1
  %v3493 = vlaneseq
  %v3494 = vshrl.u32 %v3493, 7
  %3496 = vset.pattern.permute.xlu0 %v3494
  %3497 = vperm.xlu0 %3496, %v3492
  %v3498 = vpop.permute.xlu0 %3497
  %v3499 = vperm.slane %v550, 2
  %v3500 = vlaneseq
  %v3501 = vshrl.u32 %v3500, 7
  %3503 = vset.pattern.permute.xlu0 %v3501
  %3504 = vperm.xlu0 %3503, %v3499
  %v3505 = vpop.permute.xlu0 %3504
  %v3506 = vperm.slane %v550, 3
  %v3507 = vlaneseq
  %v3508 = vshrl.u32 %v3507, 7
  %3510 = vset.pattern.permute.xlu0 %v3508
  %3511 = vperm.xlu0 %3510, %v3506
  %v3512 = vpop.permute.xlu0 %3511
  %v3513 = vperm.slane %v551, 0
  %v3514 = vlaneseq
  %v3515 = vshrl.u32 %v3514, 7
  %3517 = vset.pattern.permute.xlu0 %v3515
  %3518 = vperm.xlu0 %3517, %v3513
  %v3519 = vpop.permute.xlu0 %3518
  %v3520 = vperm.slane %v551, 1
  %v3521 = vlaneseq
  %v3522 = vshrl.u32 %v3521, 7
  %3524 = vset.pattern.permute.xlu0 %v3522
  %3525 = vperm.xlu0 %3524, %v3520
  %v3526 = vpop.permute.xlu0 %3525
  %v3527 = vperm.slane %v551, 2
  %v3528 = vlaneseq
  %v3529 = vshrl.u32 %v3528, 7
  %3531 = vset.pattern.permute.xlu0 %v3529
  %3532 = vperm.xlu0 %3531, %v3527
  %v3533 = vpop.permute.xlu0 %3532
  %v3534 = vperm.slane %v551, 3
  %v3535 = vlaneseq
  %v3536 = vshrl.u32 %v3535, 7
  %3538 = vset.pattern.permute.xlu0 %v3536
  %3539 = vperm.xlu0 %3538, %v3534
  %v3540 = vpop.permute.xlu0 %3539
  %v3541 = vperm.slane %v552, 0
  %v3542 = vlaneseq
  %v3543 = vshrl.u32 %v3542, 7
  %3545 = vset.pattern.permute.xlu0 %v3543
  %3546 = vperm.xlu0 %3545, %v3541
  %v3547 = vpop.permute.xlu0 %3546
  %v3548 = vperm.slane %v552, 1
  %v3549 = vlaneseq
  %v3550 = vshrl.u32 %v3549, 7
  %3552 = vset.pattern.permute.xlu0 %v3550
  %3553 = vperm.xlu0 %3552, %v3548
  %v3554 = vpop.permute.xlu0 %3553
  %v3555 = vperm.slane %v552, 2
  %v3556 = vlaneseq
  %v3557 = vshrl.u32 %v3556, 7
  %3559 = vset.pattern.permute.xlu0 %v3557
  %3560 = vperm.xlu0 %3559, %v3555
  %v3561 = vpop.permute.xlu0 %3560
  %v3562 = vperm.slane %v552, 3
  %v3563 = vlaneseq
  %v3564 = vshrl.u32 %v3563, 7
  %3566 = vset.pattern.permute.xlu0 %v3564
  %3567 = vperm.xlu0 %3566, %v3562
  %v3568 = vpop.permute.xlu0 %3567
  %v3570 = vperm.slane %v553, 0
  %v3572 = vsub.f32 %v3127, %v3570
  %v3573 = vsub.f32 %v3134, %v3570
  %v3574 = vsub.f32 %v3141, %v3570
  %v3575 = vsub.f32 %v3148, %v3570
  %v3576 = vsub.f32 %v3155, %v3570
  %v3577 = vsub.f32 %v3162, %v3570
  %v3578 = vsub.f32 %v3169, %v3570
  %v3579 = vsub.f32 %v3176, %v3570
  %v3580 = vsub.f32 %v3183, %v3570
  %v3581 = vsub.f32 %v3190, %v3570
  %v3582 = vsub.f32 %v3197, %v3570
  %v3583 = vsub.f32 %v3204, %v3570
  %v3584 = vsub.f32 %v3211, %v3570
  %v3585 = vsub.f32 %v3218, %v3570
  %v3586 = vsub.f32 %v3225, %v3570
  %v3587 = vsub.f32 %v3232, %v3570
  %v3588 = vsub.f32 %v3239, %v3570
  %v3589 = vsub.f32 %v3246, %v3570
  %v3590 = vsub.f32 %v3253, %v3570
  %v3591 = vsub.f32 %v3260, %v3570
  %v3592 = vsub.f32 %v3267, %v3570
  %v3593 = vsub.f32 %v3274, %v3570
  %v3594 = vsub.f32 %v3281, %v3570
  %v3595 = vsub.f32 %v3288, %v3570
  %v3596 = vsub.f32 %v3295, %v3570
  %v3597 = vsub.f32 %v3302, %v3570
  %v3598 = vsub.f32 %v3309, %v3570
  %v3599 = vsub.f32 %v3316, %v3570
  %v3600 = vsub.f32 %v3323, %v3570
  %v3601 = vsub.f32 %v3330, %v3570
  %v3602 = vsub.f32 %v3337, %v3570
  %v3603 = vsub.f32 %v3344, %v3570
  %v3604 = vsub.f32 %v3351, %v3570
  %v3605 = vsub.f32 %v3358, %v3570
  %v3606 = vsub.f32 %v3365, %v3570
  %v3607 = vsub.f32 %v3372, %v3570
  %v3608 = vsub.f32 %v3379, %v3570
  %v3609 = vsub.f32 %v3386, %v3570
  %v3610 = vsub.f32 %v3393, %v3570
  %v3611 = vsub.f32 %v3400, %v3570
  %v3612 = vsub.f32 %v3407, %v3570
  %v3613 = vsub.f32 %v3414, %v3570
  %v3614 = vsub.f32 %v3421, %v3570
  %v3615 = vsub.f32 %v3428, %v3570
  %v3616 = vsub.f32 %v3435, %v3570
  %v3617 = vsub.f32 %v3442, %v3570
  %v3618 = vsub.f32 %v3449, %v3570
  %v3619 = vsub.f32 %v3456, %v3570
  %v3620 = vsub.f32 %v3463, %v3570
  %v3621 = vsub.f32 %v3470, %v3570
  %v3622 = vsub.f32 %v3477, %v3570
  %v3623 = vsub.f32 %v3484, %v3570
  %v3624 = vsub.f32 %v3491, %v3570
  %v3625 = vsub.f32 %v3498, %v3570
  %v3626 = vsub.f32 %v3505, %v3570
  %v3627 = vsub.f32 %v3512, %v3570
  %v3628 = vsub.f32 %v3519, %v3570
  %v3629 = vsub.f32 %v3526, %v3570
  %v3630 = vsub.f32 %v3533, %v3570
  %v3631 = vsub.f32 %v3540, %v3570
  %v3632 = vsub.f32 %v3547, %v3570
  %v3633 = vsub.f32 %v3554, %v3570
  %v3634 = vsub.f32 %v3561, %v3570
  %v3635 = vsub.f32 %v3568, %v3570
  %v3636 = vmul.f32 %v3572, %v3572
  %v3637 = vmul.f32 %v3573, %v3573
  %v3638 = vmul.f32 %v3574, %v3574
  %v3639 = vmul.f32 %v3575, %v3575
  %v3640 = vmul.f32 %v3576, %v3576
  %v3641 = vmul.f32 %v3577, %v3577
  %v3642 = vmul.f32 %v3578, %v3578
  %v3643 = vmul.f32 %v3579, %v3579
  %v3644 = vmul.f32 %v3580, %v3580
  %v3645 = vmul.f32 %v3581, %v3581
  %v3646 = vmul.f32 %v3582, %v3582
  %v3647 = vmul.f32 %v3583, %v3583
  %v3648 = vmul.f32 %v3584, %v3584
  %v3649 = vmul.f32 %v3585, %v3585
  %v3650 = vmul.f32 %v3586, %v3586
  %v3651 = vmul.f32 %v3587, %v3587
  %v3652 = vmul.f32 %v3588, %v3588
  %v3653 = vmul.f32 %v3589, %v3589
  %v3654 = vmul.f32 %v3590, %v3590
  %v3655 = vmul.f32 %v3591, %v3591
  %v3656 = vmul.f32 %v3592, %v3592
  %v3657 = vmul.f32 %v3593, %v3593
  %v3658 = vmul.f32 %v3594, %v3594
  %v3659 = vmul.f32 %v3595, %v3595
  %v3660 = vmul.f32 %v3596, %v3596
  %v3661 = vmul.f32 %v3597, %v3597
  %v3662 = vmul.f32 %v3598, %v3598
  %v3663 = vmul.f32 %v3599, %v3599
  %v3664 = vmul.f32 %v3600, %v3600
  %v3665 = vmul.f32 %v3601, %v3601
  %v3666 = vmul.f32 %v3602, %v3602
  %v3667 = vmul.f32 %v3603, %v3603
  %v3668 = vmul.f32 %v3604, %v3604
  %v3669 = vmul.f32 %v3605, %v3605
  %v3670 = vmul.f32 %v3606, %v3606
  %v3671 = vmul.f32 %v3607, %v3607
  %v3672 = vmul.f32 %v3608, %v3608
  %v3673 = vmul.f32 %v3609, %v3609
  %v3674 = vmul.f32 %v3610, %v3610
  %v3675 = vmul.f32 %v3611, %v3611
  %v3676 = vmul.f32 %v3612, %v3612
  %v3677 = vmul.f32 %v3613, %v3613
  %v3678 = vmul.f32 %v3614, %v3614
  %v3679 = vmul.f32 %v3615, %v3615
  %v3680 = vmul.f32 %v3616, %v3616
  %v3681 = vmul.f32 %v3617, %v3617
  %v3682 = vmul.f32 %v3618, %v3618
  %v3683 = vmul.f32 %v3619, %v3619
  %v3684 = vmul.f32 %v3620, %v3620
  %v3685 = vmul.f32 %v3621, %v3621
  %v3686 = vmul.f32 %v3622, %v3622
  %v3687 = vmul.f32 %v3623, %v3623
  %v3688 = vmul.f32 %v3624, %v3624
  %v3689 = vmul.f32 %v3625, %v3625
  %v3690 = vmul.f32 %v3626, %v3626
  %v3691 = vmul.f32 %v3627, %v3627
  %v3692 = vmul.f32 %v3628, %v3628
  %v3693 = vmul.f32 %v3629, %v3629
  %v3694 = vmul.f32 %v3630, %v3630
  %v3695 = vmul.f32 %v3631, %v3631
  %v3696 = vmul.f32 %v3632, %v3632
  %v3697 = vmul.f32 %v3633, %v3633
  %v3698 = vmul.f32 %v3634, %v3634
  %v3699 = vmul.f32 %v3635, %v3635
  %v3700 = vmul.f32 %v3636, -1.1111112
  %v3701 = vmul.f32 %v3637, -1.1111112
  %v3702 = vmul.f32 %v3638, -1.1111112
  %v3703 = vmul.f32 %v3639, -1.1111112
  %v3704 = vmul.f32 %v3640, -1.1111112
  %v3705 = vmul.f32 %v3641, -1.1111112
  %v3706 = vmul.f32 %v3642, -1.1111112
  %v3707 = vmul.f32 %v3643, -1.1111112
  %v3708 = vmul.f32 %v3644, -1.1111112
  %v3709 = vmul.f32 %v3645, -1.1111112
  %v3710 = vmul.f32 %v3646, -1.1111112
  %v3711 = vmul.f32 %v3647, -1.1111112
  %v3712 = vmul.f32 %v3648, -1.1111112
  %v3713 = vmul.f32 %v3649, -1.1111112
  %v3714 = vmul.f32 %v3650, -1.1111112
  %v3715 = vmul.f32 %v3651, -1.1111112
  %v3716 = vmul.f32 %v3652, -1.1111112
  %v3717 = vmul.f32 %v3653, -1.1111112
  %v3718 = vmul.f32 %v3654, -1.1111112
  %v3719 = vmul.f32 %v3655, -1.1111112
  %v3720 = vmul.f32 %v3656, -1.1111112
  %v3721 = vmul.f32 %v3657, -1.1111112
  %v3722 = vmul.f32 %v3658, -1.1111112
  %v3723 = vmul.f32 %v3659, -1.1111112
  %v3724 = vmul.f32 %v3660, -1.1111112
  %v3725 = vmul.f32 %v3661, -1.1111112
  %v3726 = vmul.f32 %v3662, -1.1111112
  %v3727 = vmul.f32 %v3663, -1.1111112
  %v3728 = vmul.f32 %v3664, -1.1111112
  %v3729 = vmul.f32 %v3665, -1.1111112
  %v3730 = vmul.f32 %v3666, -1.1111112
  %v3731 = vmul.f32 %v3667, -1.1111112
  %v3732 = vmul.f32 %v3668, -1.1111112
  %v3733 = vmul.f32 %v3669, -1.1111112
  %v3734 = vmul.f32 %v3670, -1.1111112
  %v3735 = vmul.f32 %v3671, -1.1111112
  %v3736 = vmul.f32 %v3672, -1.1111112
  %v3737 = vmul.f32 %v3673, -1.1111112
  %v3738 = vmul.f32 %v3674, -1.1111112
  %v3739 = vmul.f32 %v3675, -1.1111112
  %v3740 = vmul.f32 %v3676, -1.1111112
  %v3741 = vmul.f32 %v3677, -1.1111112
  %v3742 = vmul.f32 %v3678, -1.1111112
  %v3743 = vmul.f32 %v3679, -1.1111112
  %v3744 = vmul.f32 %v3680, -1.1111112
  %v3745 = vmul.f32 %v3681, -1.1111112
  %v3746 = vmul.f32 %v3682, -1.1111112
  %v3747 = vmul.f32 %v3683, -1.1111112
  %v3748 = vmul.f32 %v3684, -1.1111112
  %v3749 = vmul.f32 %v3685, -1.1111112
  %v3750 = vmul.f32 %v3686, -1.1111112
  %v3751 = vmul.f32 %v3687, -1.1111112
  %v3752 = vmul.f32 %v3688, -1.1111112
  %v3753 = vmul.f32 %v3689, -1.1111112
  %v3754 = vmul.f32 %v3690, -1.1111112
  %v3755 = vmul.f32 %v3691, -1.1111112
  %v3756 = vmul.f32 %v3692, -1.1111112
  %v3757 = vmul.f32 %v3693, -1.1111112
  %v3758 = vmul.f32 %v3694, -1.1111112
  %v3759 = vmul.f32 %v3695, -1.1111112
  %v3760 = vmul.f32 %v3696, -1.1111112
  %v3761 = vmul.f32 %v3697, -1.1111112
  %v3762 = vmul.f32 %v3698, -1.1111112
  %v3763 = vmul.f32 %v3699, -1.1111112
  %v3764 = vmul.f32 %v3700, 1.442695
  %v3765 = vpow.pop %v3764
  %v3766 = vmul.f32 %v3701, 1.442695
  %v3767 = vpow.pop %v3766
  %v3768 = vmul.f32 %v3702, 1.442695
  %v3769 = vpow.pop %v3768
  %v3770 = vmul.f32 %v3703, 1.442695
  %v3771 = vpow.pop %v3770
  %v3772 = vmul.f32 %v3704, 1.442695
  %v3773 = vpow.pop %v3772
  %v3774 = vmul.f32 %v3705, 1.442695
  %v3775 = vpow.pop %v3774
  %v3776 = vmul.f32 %v3706, 1.442695
  %v3777 = vpow.pop %v3776
  %v3778 = vmul.f32 %v3707, 1.442695
  %v3779 = vpow.pop %v3778
  %v3780 = vmul.f32 %v3708, 1.442695
  %v3781 = vpow.pop %v3780
  %v3782 = vmul.f32 %v3709, 1.442695
  %v3783 = vpow.pop %v3782
  %v3784 = vmul.f32 %v3710, 1.442695
  %v3785 = vpow.pop %v3784
  %v3786 = vmul.f32 %v3711, 1.442695
  %v3787 = vpow.pop %v3786
  %v3788 = vmul.f32 %v3712, 1.442695
  %v3789 = vpow.pop %v3788
  %v3790 = vmul.f32 %v3713, 1.442695
  %v3791 = vpow.pop %v3790
  %v3792 = vmul.f32 %v3714, 1.442695
  %v3793 = vpow.pop %v3792
  %v3794 = vmul.f32 %v3715, 1.442695
  %v3795 = vpow.pop %v3794
  %v3796 = vmul.f32 %v3716, 1.442695
  %v3797 = vpow.pop %v3796
  %v3798 = vmul.f32 %v3717, 1.442695
  %v3799 = vpow.pop %v3798
  %v3800 = vmul.f32 %v3718, 1.442695
  %v3801 = vpow.pop %v3800
  %v3802 = vmul.f32 %v3719, 1.442695
  %v3803 = vpow.pop %v3802
  %v3804 = vmul.f32 %v3720, 1.442695
  %v3805 = vpow.pop %v3804
  %v3806 = vmul.f32 %v3721, 1.442695
  %v3807 = vpow.pop %v3806
  %v3808 = vmul.f32 %v3722, 1.442695
  %v3809 = vpow.pop %v3808
  %v3810 = vmul.f32 %v3723, 1.442695
  %v3811 = vpow.pop %v3810
  %v3812 = vmul.f32 %v3724, 1.442695
  %v3813 = vpow.pop %v3812
  %v3814 = vmul.f32 %v3725, 1.442695
  %v3815 = vpow.pop %v3814
  %v3816 = vmul.f32 %v3726, 1.442695
  %v3817 = vpow.pop %v3816
  %v3818 = vmul.f32 %v3727, 1.442695
  %v3819 = vpow.pop %v3818
  %v3820 = vmul.f32 %v3728, 1.442695
  %v3821 = vpow.pop %v3820
  %v3822 = vmul.f32 %v3729, 1.442695
  %v3823 = vpow.pop %v3822
  %v3824 = vmul.f32 %v3730, 1.442695
  %v3825 = vpow.pop %v3824
  %v3826 = vmul.f32 %v3731, 1.442695
  %v3827 = vpow.pop %v3826
  %v3828 = vmul.f32 %v3732, 1.442695
  %v3829 = vpow.pop %v3828
  %v3830 = vmul.f32 %v3733, 1.442695
  %v3831 = vpow.pop %v3830
  %v3832 = vmul.f32 %v3734, 1.442695
  %v3833 = vpow.pop %v3832
  %v3834 = vmul.f32 %v3735, 1.442695
  %v3835 = vpow.pop %v3834
  %v3836 = vmul.f32 %v3736, 1.442695
  %v3837 = vpow.pop %v3836
  %v3838 = vmul.f32 %v3737, 1.442695
  %v3839 = vpow.pop %v3838
  %v3840 = vmul.f32 %v3738, 1.442695
  %v3841 = vpow.pop %v3840
  %v3842 = vmul.f32 %v3739, 1.442695
  %v3843 = vpow.pop %v3842
  %v3844 = vmul.f32 %v3740, 1.442695
  %v3845 = vpow.pop %v3844
  %v3846 = vmul.f32 %v3741, 1.442695
  %v3847 = vpow.pop %v3846
  %v3848 = vmul.f32 %v3742, 1.442695
  %v3849 = vpow.pop %v3848
  %v3850 = vmul.f32 %v3743, 1.442695
  %v3851 = vpow.pop %v3850
  %v3852 = vmul.f32 %v3744, 1.442695
  %v3853 = vpow.pop %v3852
  %v3854 = vmul.f32 %v3745, 1.442695
  %v3855 = vpow.pop %v3854
  %v3856 = vmul.f32 %v3746, 1.442695
  %v3857 = vpow.pop %v3856
  %v3858 = vmul.f32 %v3747, 1.442695
  %v3859 = vpow.pop %v3858
  %v3860 = vmul.f32 %v3748, 1.442695
  %v3861 = vpow.pop %v3860
  %v3862 = vmul.f32 %v3749, 1.442695
  %v3863 = vpow.pop %v3862
  %v3864 = vmul.f32 %v3750, 1.442695
  %v3865 = vpow.pop %v3864
  %v3866 = vmul.f32 %v3751, 1.442695
  %v3867 = vpow.pop %v3866
  %v3868 = vmul.f32 %v3752, 1.442695
  %v3869 = vpow.pop %v3868
  %v3870 = vmul.f32 %v3753, 1.442695
  %v3871 = vpow.pop %v3870
  %v3872 = vmul.f32 %v3754, 1.442695
  %v3873 = vpow.pop %v3872
  %v3874 = vmul.f32 %v3755, 1.442695
  %v3875 = vpow.pop %v3874
  %v3876 = vmul.f32 %v3756, 1.442695
  %v3877 = vpow.pop %v3876
  %v3878 = vmul.f32 %v3757, 1.442695
  %v3879 = vpow.pop %v3878
  %v3880 = vmul.f32 %v3758, 1.442695
  %v3881 = vpow.pop %v3880
  %v3882 = vmul.f32 %v3759, 1.442695
  %v3883 = vpow.pop %v3882
  %v3884 = vmul.f32 %v3760, 1.442695
  %v3885 = vpow.pop %v3884
  %v3886 = vmul.f32 %v3761, 1.442695
  %v3887 = vpow.pop %v3886
  %v3888 = vmul.f32 %v3762, 1.442695
  %v3889 = vpow.pop %v3888
  %v3890 = vmul.f32 %v3763, 1.442695
  %v3891 = vpow.pop %v3890
  %v3892 = vperm.slane %v3105, 0
  %v3893 = vlaneseq
  %v3894 = vshrl.u32 %v3893, 7
  %3896 = vset.pattern.permute.xlu0 %v3894
  %3897 = vperm.xlu0 %3896, %v3892
  %v3898 = vpop.permute.xlu0 %3897
  %v3899 = vperm.slane %v3105, 1
  %v3900 = vlaneseq
  %v3901 = vshrl.u32 %v3900, 7
  %3903 = vset.pattern.permute.xlu0 %v3901
  %3904 = vperm.xlu0 %3903, %v3899
  %v3905 = vpop.permute.xlu0 %3904
  %v3906 = vperm.slane %v3105, 2
  %v3907 = vlaneseq
  %v3908 = vshrl.u32 %v3907, 7
  %3910 = vset.pattern.permute.xlu0 %v3908
  %3911 = vperm.xlu0 %3910, %v3906
  %v3912 = vpop.permute.xlu0 %3911
  %v3913 = vperm.slane %v3105, 3
  %v3914 = vlaneseq
  %v3915 = vshrl.u32 %v3914, 7
  %3917 = vset.pattern.permute.xlu0 %v3915
  %3918 = vperm.xlu0 %3917, %v3913
  %v3919 = vpop.permute.xlu0 %3918
  %v3920 = vperm.slane %v3106, 0
  %v3921 = vlaneseq
  %v3922 = vshrl.u32 %v3921, 7
  %3924 = vset.pattern.permute.xlu0 %v3922
  %3925 = vperm.xlu0 %3924, %v3920
  %v3926 = vpop.permute.xlu0 %3925
  %v3927 = vperm.slane %v3106, 1
  %v3928 = vlaneseq
  %v3929 = vshrl.u32 %v3928, 7
  %3931 = vset.pattern.permute.xlu0 %v3929
  %3932 = vperm.xlu0 %3931, %v3927
  %v3933 = vpop.permute.xlu0 %3932
  %v3934 = vperm.slane %v3106, 2
  %v3935 = vlaneseq
  %v3936 = vshrl.u32 %v3935, 7
  %3938 = vset.pattern.permute.xlu0 %v3936
  %3939 = vperm.xlu0 %3938, %v3934
  %v3940 = vpop.permute.xlu0 %3939
  %v3941 = vperm.slane %v3106, 3
  %v3942 = vlaneseq
  %v3943 = vshrl.u32 %v3942, 7
  %3945 = vset.pattern.permute.xlu0 %v3943
  %3946 = vperm.xlu0 %3945, %v3941
  %v3947 = vpop.permute.xlu0 %3946
  %v3948 = vperm.slane %v3107, 0
  %v3949 = vlaneseq
  %v3950 = vshrl.u32 %v3949, 7
  %3952 = vset.pattern.permute.xlu0 %v3950
  %3953 = vperm.xlu0 %3952, %v3948
  %v3954 = vpop.permute.xlu0 %3953
  %v3955 = vperm.slane %v3107, 1
  %v3956 = vlaneseq
  %v3957 = vshrl.u32 %v3956, 7
  %3959 = vset.pattern.permute.xlu0 %v3957
  %3960 = vperm.xlu0 %3959, %v3955
  %v3961 = vpop.permute.xlu0 %3960
  %v3962 = vperm.slane %v3107, 2
  %v3963 = vlaneseq
  %v3964 = vshrl.u32 %v3963, 7
  %3966 = vset.pattern.permute.xlu0 %v3964
  %3967 = vperm.xlu0 %3966, %v3962
  %v3968 = vpop.permute.xlu0 %3967
  %v3969 = vperm.slane %v3107, 3
  %v3970 = vlaneseq
  %v3971 = vshrl.u32 %v3970, 7
  %3973 = vset.pattern.permute.xlu0 %v3971
  %3974 = vperm.xlu0 %3973, %v3969
  %v3975 = vpop.permute.xlu0 %3974
  %v3976 = vperm.slane %v3108, 0
  %v3977 = vlaneseq
  %v3978 = vshrl.u32 %v3977, 7
  %3980 = vset.pattern.permute.xlu0 %v3978
  %3981 = vperm.xlu0 %3980, %v3976
  %v3982 = vpop.permute.xlu0 %3981
  %v3983 = vperm.slane %v3108, 1
  %v3984 = vlaneseq
  %v3985 = vshrl.u32 %v3984, 7
  %3987 = vset.pattern.permute.xlu0 %v3985
  %3988 = vperm.xlu0 %3987, %v3983
  %v3989 = vpop.permute.xlu0 %3988
  %v3990 = vperm.slane %v3108, 2
  %v3991 = vlaneseq
  %v3992 = vshrl.u32 %v3991, 7
  %3994 = vset.pattern.permute.xlu0 %v3992
  %3995 = vperm.xlu0 %3994, %v3990
  %v3996 = vpop.permute.xlu0 %3995
  %v3997 = vperm.slane %v3108, 3
  %v3998 = vlaneseq
  %v3999 = vshrl.u32 %v3998, 7
  %4001 = vset.pattern.permute.xlu0 %v3999
  %4002 = vperm.xlu0 %4001, %v3997
  %v4003 = vpop.permute.xlu0 %4002
  %v4004 = vperm.slane %v3109, 0
  %v4005 = vlaneseq
  %v4006 = vshrl.u32 %v4005, 7
  %4008 = vset.pattern.permute.xlu0 %v4006
  %4009 = vperm.xlu0 %4008, %v4004
  %v4010 = vpop.permute.xlu0 %4009
  %v4011 = vperm.slane %v3109, 1
  %v4012 = vlaneseq
  %v4013 = vshrl.u32 %v4012, 7
  %4015 = vset.pattern.permute.xlu0 %v4013
  %4016 = vperm.xlu0 %4015, %v4011
  %v4017 = vpop.permute.xlu0 %4016
  %v4018 = vperm.slane %v3109, 2
  %v4019 = vlaneseq
  %v4020 = vshrl.u32 %v4019, 7
  %4022 = vset.pattern.permute.xlu0 %v4020
  %4023 = vperm.xlu0 %4022, %v4018
  %v4024 = vpop.permute.xlu0 %4023
  %v4025 = vperm.slane %v3109, 3
  %v4026 = vlaneseq
  %v4027 = vshrl.u32 %v4026, 7
  %4029 = vset.pattern.permute.xlu0 %v4027
  %4030 = vperm.xlu0 %4029, %v4025
  %v4031 = vpop.permute.xlu0 %4030
  %v4032 = vperm.slane %v3110, 0
  %v4033 = vlaneseq
  %v4034 = vshrl.u32 %v4033, 7
  %4036 = vset.pattern.permute.xlu0 %v4034
  %4037 = vperm.xlu0 %4036, %v4032
  %v4038 = vpop.permute.xlu0 %4037
  %v4039 = vperm.slane %v3110, 1
  %v4040 = vlaneseq
  %v4041 = vshrl.u32 %v4040, 7
  %4043 = vset.pattern.permute.xlu0 %v4041
  %4044 = vperm.xlu0 %4043, %v4039
  %v4045 = vpop.permute.xlu0 %4044
  %v4046 = vperm.slane %v3110, 2
  %v4047 = vlaneseq
  %v4048 = vshrl.u32 %v4047, 7
  %4050 = vset.pattern.permute.xlu0 %v4048
  %4051 = vperm.xlu0 %4050, %v4046
  %v4052 = vpop.permute.xlu0 %4051
  %v4053 = vperm.slane %v3110, 3
  %v4054 = vlaneseq
  %v4055 = vshrl.u32 %v4054, 7
  %4057 = vset.pattern.permute.xlu0 %v4055
  %4058 = vperm.xlu0 %4057, %v4053
  %v4059 = vpop.permute.xlu0 %4058
  %v4060 = vperm.slane %v3111, 0
  %v4061 = vlaneseq
  %v4062 = vshrl.u32 %v4061, 7
  %4064 = vset.pattern.permute.xlu0 %v4062
  %4065 = vperm.xlu0 %4064, %v4060
  %v4066 = vpop.permute.xlu0 %4065
  %v4067 = vperm.slane %v3111, 1
  %v4068 = vlaneseq
  %v4069 = vshrl.u32 %v4068, 7
  %4071 = vset.pattern.permute.xlu0 %v4069
  %4072 = vperm.xlu0 %4071, %v4067
  %v4073 = vpop.permute.xlu0 %4072
  %v4074 = vperm.slane %v3111, 2
  %v4075 = vlaneseq
  %v4076 = vshrl.u32 %v4075, 7
  %4078 = vset.pattern.permute.xlu0 %v4076
  %4079 = vperm.xlu0 %4078, %v4074
  %v4080 = vpop.permute.xlu0 %4079
  %v4081 = vperm.slane %v3111, 3
  %v4082 = vlaneseq
  %v4083 = vshrl.u32 %v4082, 7
  %4085 = vset.pattern.permute.xlu0 %v4083
  %4086 = vperm.xlu0 %4085, %v4081
  %v4087 = vpop.permute.xlu0 %4086
  %v4088 = vperm.slane %v3112, 0
  %v4089 = vlaneseq
  %v4090 = vshrl.u32 %v4089, 7
  %4092 = vset.pattern.permute.xlu0 %v4090
  %4093 = vperm.xlu0 %4092, %v4088
  %v4094 = vpop.permute.xlu0 %4093
  %v4095 = vperm.slane %v3112, 1
  %v4096 = vlaneseq
  %v4097 = vshrl.u32 %v4096, 7
  %4099 = vset.pattern.permute.xlu0 %v4097
  %4100 = vperm.xlu0 %4099, %v4095
  %v4101 = vpop.permute.xlu0 %4100
  %v4102 = vperm.slane %v3112, 2
  %v4103 = vlaneseq
  %v4104 = vshrl.u32 %v4103, 7
  %4106 = vset.pattern.permute.xlu0 %v4104
  %4107 = vperm.xlu0 %4106, %v4102
  %v4108 = vpop.permute.xlu0 %4107
  %v4109 = vperm.slane %v3112, 3
  %v4110 = vlaneseq
  %v4111 = vshrl.u32 %v4110, 7
  %4113 = vset.pattern.permute.xlu0 %v4111
  %4114 = vperm.xlu0 %4113, %v4109
  %v4115 = vpop.permute.xlu0 %4114
  %v4116 = vperm.slane %v3113, 0
  %v4117 = vlaneseq
  %v4118 = vshrl.u32 %v4117, 7
  %4120 = vset.pattern.permute.xlu0 %v4118
  %4121 = vperm.xlu0 %4120, %v4116
  %v4122 = vpop.permute.xlu0 %4121
  %v4123 = vperm.slane %v3113, 1
  %v4124 = vlaneseq
  %v4125 = vshrl.u32 %v4124, 7
  %4127 = vset.pattern.permute.xlu0 %v4125
  %4128 = vperm.xlu0 %4127, %v4123
  %v4129 = vpop.permute.xlu0 %4128
  %v4130 = vperm.slane %v3113, 2
  %v4131 = vlaneseq
  %v4132 = vshrl.u32 %v4131, 7
  %4134 = vset.pattern.permute.xlu0 %v4132
  %4135 = vperm.xlu0 %4134, %v4130
  %v4136 = vpop.permute.xlu0 %4135
  %v4137 = vperm.slane %v3113, 3
  %v4138 = vlaneseq
  %v4139 = vshrl.u32 %v4138, 7
  %4141 = vset.pattern.permute.xlu0 %v4139
  %4142 = vperm.xlu0 %4141, %v4137
  %v4143 = vpop.permute.xlu0 %4142
  %v4144 = vperm.slane %v3114, 0
  %v4145 = vlaneseq
  %v4146 = vshrl.u32 %v4145, 7
  %4148 = vset.pattern.permute.xlu0 %v4146
  %4149 = vperm.xlu0 %4148, %v4144
  %v4150 = vpop.permute.xlu0 %4149
  %v4151 = vperm.slane %v3114, 1
  %v4152 = vlaneseq
  %v4153 = vshrl.u32 %v4152, 7
  %4155 = vset.pattern.permute.xlu0 %v4153
  %4156 = vperm.xlu0 %4155, %v4151
  %v4157 = vpop.permute.xlu0 %4156
  %v4158 = vperm.slane %v3114, 2
  %v4159 = vlaneseq
  %v4160 = vshrl.u32 %v4159, 7
  %4162 = vset.pattern.permute.xlu0 %v4160
  %4163 = vperm.xlu0 %4162, %v4158
  %v4164 = vpop.permute.xlu0 %4163
  %v4165 = vperm.slane %v3114, 3
  %v4166 = vlaneseq
  %v4167 = vshrl.u32 %v4166, 7
  %4169 = vset.pattern.permute.xlu0 %v4167
  %4170 = vperm.xlu0 %4169, %v4165
  %v4171 = vpop.permute.xlu0 %4170
  %v4172 = vperm.slane %v3115, 0
  %v4173 = vlaneseq
  %v4174 = vshrl.u32 %v4173, 7
  %4176 = vset.pattern.permute.xlu0 %v4174
  %4177 = vperm.xlu0 %4176, %v4172
  %v4178 = vpop.permute.xlu0 %4177
  %v4179 = vperm.slane %v3115, 1
  %v4180 = vlaneseq
  %v4181 = vshrl.u32 %v4180, 7
  %4183 = vset.pattern.permute.xlu0 %v4181
  %4184 = vperm.xlu0 %4183, %v4179
  %v4185 = vpop.permute.xlu0 %4184
  %v4186 = vperm.slane %v3115, 2
  %v4187 = vlaneseq
  %v4188 = vshrl.u32 %v4187, 7
  %4190 = vset.pattern.permute.xlu0 %v4188
  %4191 = vperm.xlu0 %4190, %v4186
  %v4192 = vpop.permute.xlu0 %4191
  %v4193 = vperm.slane %v3115, 3
  %v4194 = vlaneseq
  %v4195 = vshrl.u32 %v4194, 7
  %4197 = vset.pattern.permute.xlu0 %v4195
  %4198 = vperm.xlu0 %4197, %v4193
  %v4199 = vpop.permute.xlu0 %4198
  %v4200 = vperm.slane %v3116, 0
  %v4201 = vlaneseq
  %v4202 = vshrl.u32 %v4201, 7
  %4204 = vset.pattern.permute.xlu0 %v4202
  %4205 = vperm.xlu0 %4204, %v4200
  %v4206 = vpop.permute.xlu0 %4205
  %v4207 = vperm.slane %v3116, 1
  %v4208 = vlaneseq
  %v4209 = vshrl.u32 %v4208, 7
  %4211 = vset.pattern.permute.xlu0 %v4209
  %4212 = vperm.xlu0 %4211, %v4207
  %v4213 = vpop.permute.xlu0 %4212
  %v4214 = vperm.slane %v3116, 2
  %v4215 = vlaneseq
  %v4216 = vshrl.u32 %v4215, 7
  %4218 = vset.pattern.permute.xlu0 %v4216
  %4219 = vperm.xlu0 %4218, %v4214
  %v4220 = vpop.permute.xlu0 %4219
  %v4221 = vperm.slane %v3116, 3
  %v4222 = vlaneseq
  %v4223 = vshrl.u32 %v4222, 7
  %4225 = vset.pattern.permute.xlu0 %v4223
  %4226 = vperm.xlu0 %4225, %v4221
  %v4227 = vpop.permute.xlu0 %4226
  %v4228 = vperm.slane %v3117, 0
  %v4229 = vlaneseq
  %v4230 = vshrl.u32 %v4229, 7
  %4232 = vset.pattern.permute.xlu0 %v4230
  %4233 = vperm.xlu0 %4232, %v4228
  %v4234 = vpop.permute.xlu0 %4233
  %v4235 = vperm.slane %v3117, 1
  %v4236 = vlaneseq
  %v4237 = vshrl.u32 %v4236, 7
  %4239 = vset.pattern.permute.xlu0 %v4237
  %4240 = vperm.xlu0 %4239, %v4235
  %v4241 = vpop.permute.xlu0 %4240
  %v4242 = vperm.slane %v3117, 2
  %v4243 = vlaneseq
  %v4244 = vshrl.u32 %v4243, 7
  %4246 = vset.pattern.permute.xlu0 %v4244
  %4247 = vperm.xlu0 %4246, %v4242
  %v4248 = vpop.permute.xlu0 %4247
  %v4249 = vperm.slane %v3117, 3
  %v4250 = vlaneseq
  %v4251 = vshrl.u32 %v4250, 7
  %4253 = vset.pattern.permute.xlu0 %v4251
  %4254 = vperm.xlu0 %4253, %v4249
  %v4255 = vpop.permute.xlu0 %4254
  %v4256 = vperm.slane %v3118, 0
  %v4257 = vlaneseq
  %v4258 = vshrl.u32 %v4257, 7
  %4260 = vset.pattern.permute.xlu0 %v4258
  %4261 = vperm.xlu0 %4260, %v4256
  %v4262 = vpop.permute.xlu0 %4261
  %v4263 = vperm.slane %v3118, 1
  %v4264 = vlaneseq
  %v4265 = vshrl.u32 %v4264, 7
  %4267 = vset.pattern.permute.xlu0 %v4265
  %4268 = vperm.xlu0 %4267, %v4263
  %v4269 = vpop.permute.xlu0 %4268
  %v4270 = vperm.slane %v3118, 2
  %v4271 = vlaneseq
  %v4272 = vshrl.u32 %v4271, 7
  %4274 = vset.pattern.permute.xlu0 %v4272
  %4275 = vperm.xlu0 %4274, %v4270
  %v4276 = vpop.permute.xlu0 %4275
  %v4277 = vperm.slane %v3118, 3
  %v4278 = vlaneseq
  %v4279 = vshrl.u32 %v4278, 7
  %4281 = vset.pattern.permute.xlu0 %v4279
  %4282 = vperm.xlu0 %4281, %v4277
  %v4283 = vpop.permute.xlu0 %4282
  %v4284 = vperm.slane %v3119, 0
  %v4285 = vlaneseq
  %v4286 = vshrl.u32 %v4285, 7
  %4288 = vset.pattern.permute.xlu0 %v4286
  %4289 = vperm.xlu0 %4288, %v4284
  %v4290 = vpop.permute.xlu0 %4289
  %v4291 = vperm.slane %v3119, 1
  %v4292 = vlaneseq
  %v4293 = vshrl.u32 %v4292, 7
  %4295 = vset.pattern.permute.xlu0 %v4293
  %4296 = vperm.xlu0 %4295, %v4291
  %v4297 = vpop.permute.xlu0 %4296
  %v4298 = vperm.slane %v3119, 2
  %v4299 = vlaneseq
  %v4300 = vshrl.u32 %v4299, 7
  %4302 = vset.pattern.permute.xlu0 %v4300
  %4303 = vperm.xlu0 %4302, %v4298
  %v4304 = vpop.permute.xlu0 %4303
  %v4305 = vperm.slane %v3119, 3
  %v4306 = vlaneseq
  %v4307 = vshrl.u32 %v4306, 7
  %4309 = vset.pattern.permute.xlu0 %v4307
  %4310 = vperm.xlu0 %4309, %v4305
  %v4311 = vpop.permute.xlu0 %4310
  %v4312 = vperm.slane %v3120, 0
  %v4313 = vlaneseq
  %v4314 = vshrl.u32 %v4313, 7
  %4316 = vset.pattern.permute.xlu0 %v4314
  %4317 = vperm.xlu0 %4316, %v4312
  %v4318 = vpop.permute.xlu0 %4317
  %v4319 = vperm.slane %v3120, 1
  %v4320 = vlaneseq
  %v4321 = vshrl.u32 %v4320, 7
  %4323 = vset.pattern.permute.xlu0 %v4321
  %4324 = vperm.xlu0 %4323, %v4319
  %v4325 = vpop.permute.xlu0 %4324
  %v4326 = vperm.slane %v3120, 2
  %v4327 = vlaneseq
  %v4328 = vshrl.u32 %v4327, 7
  %4330 = vset.pattern.permute.xlu0 %v4328
  %4331 = vperm.xlu0 %4330, %v4326
  %v4332 = vpop.permute.xlu0 %4331
  %v4333 = vperm.slane %v3120, 3
  %v4334 = vlaneseq
  %v4335 = vshrl.u32 %v4334, 7
  %4337 = vset.pattern.permute.xlu0 %v4335
  %4338 = vperm.xlu0 %4337, %v4333
  %v4339 = vpop.permute.xlu0 %4338
  %v4340 = vmul.f32 %v3765, %v3898
  %v4341 = vmul.f32 %v3767, %v3905
  %v4342 = vmul.f32 %v3769, %v3912
  %v4343 = vmul.f32 %v3771, %v3919
  %v4344 = vmul.f32 %v3773, %v3926
  %v4345 = vmul.f32 %v3775, %v3933
  %v4346 = vmul.f32 %v3777, %v3940
  %v4347 = vmul.f32 %v3779, %v3947
  %v4348 = vmul.f32 %v3781, %v3954
  %v4349 = vmul.f32 %v3783, %v3961
  %v4350 = vmul.f32 %v3785, %v3968
  %v4351 = vmul.f32 %v3787, %v3975
  %v4352 = vmul.f32 %v3789, %v3982
  %v4353 = vmul.f32 %v3791, %v3989
  %v4354 = vmul.f32 %v3793, %v3996
  %v4355 = vmul.f32 %v3795, %v4003
  %v4356 = vmul.f32 %v3797, %v4010
  %v4357 = vmul.f32 %v3799, %v4017
  %v4358 = vmul.f32 %v3801, %v4024
  %v4359 = vmul.f32 %v3803, %v4031
  %v4360 = vmul.f32 %v3805, %v4038
  %v4361 = vmul.f32 %v3807, %v4045
  %v4362 = vmul.f32 %v3809, %v4052
  %v4363 = vmul.f32 %v3811, %v4059
  %v4364 = vmul.f32 %v3813, %v4066
  %v4365 = vmul.f32 %v3815, %v4073
  %v4366 = vmul.f32 %v3817, %v4080
  %v4367 = vmul.f32 %v3819, %v4087
  %v4368 = vmul.f32 %v3821, %v4094
  %v4369 = vmul.f32 %v3823, %v4101
  %v4370 = vmul.f32 %v3825, %v4108
  %v4371 = vmul.f32 %v3827, %v4115
  %v4372 = vmul.f32 %v3829, %v4122
  %v4373 = vmul.f32 %v3831, %v4129
  %v4374 = vmul.f32 %v3833, %v4136
  %v4375 = vmul.f32 %v3835, %v4143
  %v4376 = vmul.f32 %v3837, %v4150
  %v4377 = vmul.f32 %v3839, %v4157
  %v4378 = vmul.f32 %v3841, %v4164
  %v4379 = vmul.f32 %v3843, %v4171
  %v4380 = vmul.f32 %v3845, %v4178
  %v4381 = vmul.f32 %v3847, %v4185
  %v4382 = vmul.f32 %v3849, %v4192
  %v4383 = vmul.f32 %v3851, %v4199
  %v4384 = vmul.f32 %v3853, %v4206
  %v4385 = vmul.f32 %v3855, %v4213
  %v4386 = vmul.f32 %v3857, %v4220
  %v4387 = vmul.f32 %v3859, %v4227
  %v4388 = vmul.f32 %v3861, %v4234
  %v4389 = vmul.f32 %v3863, %v4241
  %v4390 = vmul.f32 %v3865, %v4248
  %v4391 = vmul.f32 %v3867, %v4255
  %v4392 = vmul.f32 %v3869, %v4262
  %v4393 = vmul.f32 %v3871, %v4269
  %v4394 = vmul.f32 %v3873, %v4276
  %v4395 = vmul.f32 %v3875, %v4283
  %v4396 = vmul.f32 %v3877, %v4290
  %v4397 = vmul.f32 %v3879, %v4297
  %v4398 = vmul.f32 %v3881, %v4304
  %v4399 = vmul.f32 %v3883, %v4311
  %v4400 = vmul.f32 %v3885, %v4318
  %v4401 = vmul.f32 %v3887, %v4325
  %v4402 = vmul.f32 %v3889, %v4332
  %v4403 = vmul.f32 %v3891, %v4339
  %v4404 = vld [vmem:[%s8] sm:$0xff]
  %v4405 = vld [vmem:[%s8 + $0x8] sm:$0xff]
  %v4406 = vld [vmem:[%s9] sm:$0x1]
  %v4408 = vperm.slane %v4406, 0
  %4474 = vst [vmem:[#allocation1] ss:$2 sm:$0xff] %v4340
  %s4475 = scalar_lea.vmem [#allocation1], 1
  %4476 = vst [vmem:[%s4475] ss:$2 sm:$0xff] %v4341
  %s4477 = scalar_lea.vmem [#allocation1], 16
  %4478 = vst [vmem:[%s4477] ss:$2 sm:$0xff] %v4342
  %s4479 = scalar_lea.vmem [#allocation1], 17
  %4480 = vst [vmem:[%s4479] ss:$2 sm:$0xff] %v4343
  %s4481 = scalar_lea.vmem [#allocation1], 32
  %4482 = vst [vmem:[%s4481] ss:$2 sm:$0xff] %v4344
  %s4483 = scalar_lea.vmem [#allocation1], 33
  %4484 = vst [vmem:[%s4483] ss:$2 sm:$0xff] %v4345
  %s4485 = scalar_lea.vmem [#allocation1], 48
  %4486 = vst [vmem:[%s4485] ss:$2 sm:$0xff] %v4346
  %s4487 = scalar_lea.vmem [#allocation1], 49
  %4488 = vst [vmem:[%s4487] ss:$2 sm:$0xff] %v4347
  %v4489 = vld.sshfl [vmem:[#allocation1] sm:$0xff pattern:$0x75316420]
  %v4490 = vld.sshfl [vmem:[#allocation1 + $0x10] sm:$0xff pattern:$0x75316420]
  %v4491 = vld.sshfl [vmem:[#allocation1 + $0x20] sm:$0xff pattern:$0x75316420]
  %v4492 = vld.sshfl [vmem:[#allocation1 + $0x30] sm:$0xff pattern:$0x75316420]
  %4493 = vst [vmem:[#allocation1] ss:$2 sm:$0xff] %v4348
  %4494 = vst [vmem:[%s4475] ss:$2 sm:$0xff] %v4349
  %4495 = vst [vmem:[%s4477] ss:$2 sm:$0xff] %v4350
  %4496 = vst [vmem:[%s4479] ss:$2 sm:$0xff] %v4351
  %4497 = vst [vmem:[%s4481] ss:$2 sm:$0xff] %v4352
  %4498 = vst [vmem:[%s4483] ss:$2 sm:$0xff] %v4353
  %4499 = vst [vmem:[%s4485] ss:$2 sm:$0xff] %v4354
  %4500 = vst [vmem:[%s4487] ss:$2 sm:$0xff] %v4355
  %v4501 = vld.sshfl [vmem:[#allocation1] sm:$0xff pattern:$0x75316420]
  %v4502 = vld.sshfl [vmem:[#allocation1 + $0x10] sm:$0xff pattern:$0x75316420]
  %v4503 = vld.sshfl [vmem:[#allocation1 + $0x20] sm:$0xff pattern:$0x75316420]
  %v4504 = vld.sshfl [vmem:[#allocation1 + $0x30] sm:$0xff pattern:$0x75316420]
  %4505 = vst [vmem:[#allocation1] ss:$2 sm:$0xff] %v4356
  %4506 = vst [vmem:[%s4475] ss:$2 sm:$0xff] %v4357
  %4507 = vst [vmem:[%s4477] ss:$2 sm:$0xff] %v4358
  %4508 = vst [vmem:[%s4479] ss:$2 sm:$0xff] %v4359
  %4509 = vst [vmem:[%s4481] ss:$2 sm:$0xff] %v4360
  %4510 = vst [vmem:[%s4483] ss:$2 sm:$0xff] %v4361
  %4511 = vst [vmem:[%s4485] ss:$2 sm:$0xff] %v4362
  %4512 = vst [vmem:[%s4487] ss:$2 sm:$0xff] %v4363
  %v4513 = vld.sshfl [vmem:[#allocation1] sm:$0xff pattern:$0x75316420]
  %v4514 = vld.sshfl [vmem:[#allocation1 + $0x10] sm:$0xff pattern:$0x75316420]
  %v4515 = vld.sshfl [vmem:[#allocation1 + $0x20] sm:$0xff pattern:$0x75316420]
  %v4516 = vld.sshfl [vmem:[#allocation1 + $0x30] sm:$0xff pattern:$0x75316420]
  %4517 = vst [vmem:[#allocation1] ss:$2 sm:$0xff] %v4364
  %4518 = vst [vmem:[%s4475] ss:$2 sm:$0xff] %v4365
  %4519 = vst [vmem:[%s4477] ss:$2 sm:$0xff] %v4366
  %4520 = vst [vmem:[%s4479] ss:$2 sm:$0xff] %v4367
  %4521 = vst [vmem:[%s4481] ss:$2 sm:$0xff] %v4368
  %4522 = vst [vmem:[%s4483] ss:$2 sm:$0xff] %v4369
  %4523 = vst [vmem:[%s4485] ss:$2 sm:$0xff] %v4370
  %4524 = vst [vmem:[%s4487] ss:$2 sm:$0xff] %v4371
  %v4525 = vld.sshfl [vmem:[#allocation1] sm:$0xff pattern:$0x75316420]
  %v4526 = vld.sshfl [vmem:[#allocation1 + $0x10] sm:$0xff pattern:$0x75316420]
  %v4527 = vld.sshfl [vmem:[#allocation1 + $0x20] sm:$0xff pattern:$0x75316420]
  %v4528 = vld.sshfl [vmem:[#allocation1 + $0x30] sm:$0xff pattern:$0x75316420]
  %4529 = vst [vmem:[#allocation1] ss:$2 sm:$0xff] %v4372
  %4530 = vst [vmem:[%s4475] ss:$2 sm:$0xff] %v4373
  %4531 = vst [vmem:[%s4477] ss:$2 sm:$0xff] %v4374
  %4532 = vst [vmem:[%s4479] ss:$2 sm:$0xff] %v4375
  %4533 = vst [vmem:[%s4481] ss:$2 sm:$0xff] %v4376
  %4534 = vst [vmem:[%s4483] ss:$2 sm:$0xff] %v4377
  %4535 = vst [vmem:[%s4485] ss:$2 sm:$0xff] %v4378
  %4536 = vst [vmem:[%s4487] ss:$2 sm:$0xff] %v4379
  %v4537 = vld.sshfl [vmem:[#allocation1] sm:$0xff pattern:$0x75316420]
  %v4538 = vld.sshfl [vmem:[#allocation1 + $0x10] sm:$0xff pattern:$0x75316420]
  %v4539 = vld.sshfl [vmem:[#allocation1 + $0x20] sm:$0xff pattern:$0x75316420]
  %v4540 = vld.sshfl [vmem:[#allocation1 + $0x30] sm:$0xff pattern:$0x75316420]
  %4541 = vst [vmem:[#allocation1] ss:$2 sm:$0xff] %v4380
  %4542 = vst [vmem:[%s4475] ss:$2 sm:$0xff] %v4381
  %4543 = vst [vmem:[%s4477] ss:$2 sm:$0xff] %v4382
  %4544 = vst [vmem:[%s4479] ss:$2 sm:$0xff] %v4383
  %4545 = vst [vmem:[%s4481] ss:$2 sm:$0xff] %v4384
  %4546 = vst [vmem:[%s4483] ss:$2 sm:$0xff] %v4385
  %4547 = vst [vmem:[%s4485] ss:$2 sm:$0xff] %v4386
  %4548 = vst [vmem:[%s4487] ss:$2 sm:$0xff] %v4387
  %v4549 = vld.sshfl [vmem:[#allocation1] sm:$0xff pattern:$0x75316420]
  %v4550 = vld.sshfl [vmem:[#allocation1 + $0x10] sm:$0xff pattern:$0x75316420]
  %v4551 = vld.sshfl [vmem:[#allocation1 + $0x20] sm:$0xff pattern:$0x75316420]
  %v4552 = vld.sshfl [vmem:[#allocation1 + $0x30] sm:$0xff pattern:$0x75316420]
  %4553 = vst [vmem:[#allocation1] ss:$2 sm:$0xff] %v4388
  %4554 = vst [vmem:[%s4475] ss:$2 sm:$0xff] %v4389
  %4555 = vst [vmem:[%s4477] ss:$2 sm:$0xff] %v4390
  %4556 = vst [vmem:[%s4479] ss:$2 sm:$0xff] %v4391
  %4557 = vst [vmem:[%s4481] ss:$2 sm:$0xff] %v4392
  %4558 = vst [vmem:[%s4483] ss:$2 sm:$0xff] %v4393
  %4559 = vst [vmem:[%s4485] ss:$2 sm:$0xff] %v4394
  %4560 = vst [vmem:[%s4487] ss:$2 sm:$0xff] %v4395
  %v4561 = vld.sshfl [vmem:[#allocation1] sm:$0xff pattern:$0x75316420]
  %v4562 = vld.sshfl [vmem:[#allocation1 + $0x10] sm:$0xff pattern:$0x75316420]
  %v4563 = vld.sshfl [vmem:[#allocation1 + $0x20] sm:$0xff pattern:$0x75316420]
  %v4564 = vld.sshfl [vmem:[#allocation1 + $0x30] sm:$0xff pattern:$0x75316420]
  %4565 = vst [vmem:[#allocation1] ss:$2 sm:$0xff] %v4396
  %4566 = vst [vmem:[%s4475] ss:$2 sm:$0xff] %v4397
  %4567 = vst [vmem:[%s4477] ss:$2 sm:$0xff] %v4398
  %4568 = vst [vmem:[%s4479] ss:$2 sm:$0xff] %v4399
  %4569 = vst [vmem:[%s4481] ss:$2 sm:$0xff] %v4400
  %4570 = vst [vmem:[%s4483] ss:$2 sm:$0xff] %v4401
  %4571 = vst [vmem:[%s4485] ss:$2 sm:$0xff] %v4402
  %4572 = vst [vmem:[%s4487] ss:$2 sm:$0xff] %v4403
  %v4573 = vld.sshfl [vmem:[#allocation1] sm:$0xff pattern:$0x75316420]
  %v4574 = vld.sshfl [vmem:[#allocation1 + $0x10] sm:$0xff pattern:$0x75316420]
  %v4575 = vld.sshfl [vmem:[#allocation1 + $0x20] sm:$0xff pattern:$0x75316420]
  %v4576 = vld.sshfl [vmem:[#allocation1 + $0x30] sm:$0xff pattern:$0x75316420]
  %v4577 = vsel %vm64, %v4489, 0
  %v4579 = vsel %vm64, %v4490, 0
  %v4581 = vsel %vm64, %v4491, 0
  %v4583 = vsel %vm64, %v4492, 0
  %v4585 = vsel %vm64, %v4501, 0
  %v4587 = vsel %vm64, %v4502, 0
  %v4589 = vsel %vm64, %v4503, 0
  %v4591 = vsel %vm64, %v4504, 0
  %v4593 = vsel %vm64, %v4513, 0
  %v4595 = vsel %vm64, %v4514, 0
  %v4597 = vsel %vm64, %v4515, 0
  %v4599 = vsel %vm64, %v4516, 0
  %v4601 = vsel %vm64, %v4525, 0
  %v4603 = vsel %vm64, %v4526, 0
  %v4605 = vsel %vm64, %v4527, 0
  %v4607 = vsel %vm64, %v4528, 0
  %v4609 = vsel %vm64, %v4537, 0
  %v4611 = vsel %vm64, %v4538, 0
  %v4613 = vsel %vm64, %v4539, 0
  %v4615 = vsel %vm64, %v4540, 0
  %v4617 = vsel %vm64, %v4549, 0
  %v4619 = vsel %vm64, %v4550, 0
  %v4621 = vsel %vm64, %v4551, 0
  %v4623 = vsel %vm64, %v4552, 0
  %v4625 = vsel %vm64, %v4561, 0
  %v4627 = vsel %vm64, %v4562, 0
  %v4629 = vsel %vm64, %v4563, 0
  %v4631 = vsel %vm64, %v4564, 0
  %v4633 = vsel %vm64, %v4573, 0
  %v4635 = vsel %vm64, %v4574, 0
  %v4637 = vsel %vm64, %v4575, 0
  %v4639 = vsel %vm64, %v4576, 0
  %4641 = vmatpush.msra.mxu0 0.0
  %4642 = vmatpush.msra.mxu0 0.0
  %4643 = vmatpush.msra.mxu0 0.0
  %4644 = vmatpush.msra.mxu0 0.0
  %4645 = vmatpush.msra.mxu0 0.0
  %4646 = vmatpush.msra.mxu0 0.0
  %4647 = vmatpush.msra.mxu0 0.0
  %4648 = vmatpush.msra.mxu0 0.0
  %4649 = vmatpush.msra.mxu0 0.0
  %4650 = vmatpush.msra.mxu0 0.0
  %4651 = vmatpush.msra.mxu0 0.0
  %4652 = vmatpush.msra.mxu0 0.0
  %4653 = vmatpush.msra.mxu0 0.0
  %4654 = vmatpush.msra.mxu0 0.0
  %4655 = vmatpush.msra.mxu0 %v4405
  %4656 = vmatpush.msra.mxu0 %v4404
  %4657 = vmatmul.f32.gmra.mxu0 %v4577
  %v4658 = vpop.f32.mrf.mxu0
  %v4659 = vadd.f32 %v4408, %v4658
  %4660 = vmatmul.f32.gmra.mxu0 %v4579
  %v4661 = vpop.f32.mrf.mxu0
  %v4662 = vadd.f32 %v4408, %v4661
  %4663 = vmatmul.f32.gmra.mxu0 %v4581
  %v4664 = vpop.f32.mrf.mxu0
  %v4665 = vadd.f32 %v4408, %v4664
  %4666 = vmatmul.f32.gmra.mxu0 %v4583
  %v4667 = vpop.f32.mrf.mxu0
  %v4668 = vadd.f32 %v4408, %v4667
  %4669 = vmatmul.f32.gmra.mxu0 %v4585
  %v4670 = vpop.f32.mrf.mxu0
  %v4671 = vadd.f32 %v4408, %v4670
  %4672 = vmatmul.f32.gmra.mxu0 %v4587
  %v4673 = vpop.f32.mrf.mxu0
  %v4674 = vadd.f32 %v4408, %v4673
  %4675 = vmatmul.f32.gmra.mxu0 %v4589
  %v4676 = vpop.f32.mrf.mxu0
  %v4677 = vadd.f32 %v4408, %v4676
  %4678 = vmatmul.f32.gmra.mxu0 %v4591
  %v4679 = vpop.f32.mrf.mxu0
  %v4680 = vadd.f32 %v4408, %v4679
  %4681 = vmatmul.f32.gmra.mxu0 %v4593
  %v4682 = vpop.f32.mrf.mxu0
  %v4683 = vadd.f32 %v4408, %v4682
  %4684 = vmatmul.f32.gmra.mxu0 %v4595
  %v4685 = vpop.f32.mrf.mxu0
  %v4686 = vadd.f32 %v4408, %v4685
  %4687 = vmatmul.f32.gmra.mxu0 %v4597
  %v4688 = vpop.f32.mrf.mxu0
  %v4689 = vadd.f32 %v4408, %v4688
  %4690 = vmatmul.f32.gmra.mxu0 %v4599
  %v4691 = vpop.f32.mrf.mxu0
  %v4692 = vadd.f32 %v4408, %v4691
  %4693 = vmatmul.f32.gmra.mxu0 %v4601
  %v4694 = vpop.f32.mrf.mxu0
  %v4695 = vadd.f32 %v4408, %v4694
  %4696 = vmatmul.f32.gmra.mxu0 %v4603
  %v4697 = vpop.f32.mrf.mxu0
  %v4698 = vadd.f32 %v4408, %v4697
  %4699 = vmatmul.f32.gmra.mxu0 %v4605
  %v4700 = vpop.f32.mrf.mxu0
  %v4701 = vadd.f32 %v4408, %v4700
  %4702 = vmatmul.f32.gmra.mxu0 %v4607
  %v4703 = vpop.f32.mrf.mxu0
  %v4704 = vadd.f32 %v4408, %v4703
  %4705 = vmatmul.f32.gmra.mxu0 %v4609
  %v4706 = vpop.f32.mrf.mxu0
  %v4707 = vadd.f32 %v4408, %v4706
  %4708 = vmatmul.f32.gmra.mxu0 %v4611
  %v4709 = vpop.f32.mrf.mxu0
  %v4710 = vadd.f32 %v4408, %v4709
  %4711 = vmatmul.f32.gmra.mxu0 %v4613
  %v4712 = vpop.f32.mrf.mxu0
  %v4713 = vadd.f32 %v4408, %v4712
  %4714 = vmatmul.f32.gmra.mxu0 %v4615
  %v4715 = vpop.f32.mrf.mxu0
  %v4716 = vadd.f32 %v4408, %v4715
  %4717 = vmatmul.f32.gmra.mxu0 %v4617
  %v4718 = vpop.f32.mrf.mxu0
  %v4719 = vadd.f32 %v4408, %v4718
  %4720 = vmatmul.f32.gmra.mxu0 %v4619
  %v4721 = vpop.f32.mrf.mxu0
  %v4722 = vadd.f32 %v4408, %v4721
  %4723 = vmatmul.f32.gmra.mxu0 %v4621
  %v4724 = vpop.f32.mrf.mxu0
  %v4725 = vadd.f32 %v4408, %v4724
  %4726 = vmatmul.f32.gmra.mxu0 %v4623
  %v4727 = vpop.f32.mrf.mxu0
  %v4728 = vadd.f32 %v4408, %v4727
  %4729 = vmatmul.f32.gmra.mxu0 %v4625
  %v4730 = vpop.f32.mrf.mxu0
  %v4731 = vadd.f32 %v4408, %v4730
  %4732 = vmatmul.f32.gmra.mxu0 %v4627
  %v4733 = vpop.f32.mrf.mxu0
  %v4734 = vadd.f32 %v4408, %v4733
  %4735 = vmatmul.f32.gmra.mxu0 %v4629
  %v4736 = vpop.f32.mrf.mxu0
  %v4737 = vadd.f32 %v4408, %v4736
  %4738 = vmatmul.f32.gmra.mxu0 %v4631
  %v4739 = vpop.f32.mrf.mxu0
  %v4740 = vadd.f32 %v4408, %v4739
  %4741 = vmatmul.f32.gmra.mxu0 %v4633
  %v4742 = vpop.f32.mrf.mxu0
  %v4743 = vadd.f32 %v4408, %v4742
  %4744 = vmatmul.f32.gmra.mxu0 %v4635
  %v4745 = vpop.f32.mrf.mxu0
  %v4746 = vadd.f32 %v4408, %v4745
  %4747 = vmatmul.f32.gmra.mxu0 %v4637
  %v4748 = vpop.f32.mrf.mxu0
  %v4749 = vadd.f32 %v4408, %v4748
  %4750 = vmatmul.f32.gmra.mxu0 %v4639
  %v4751 = vpop.f32.mrf.mxu0
  %v4752 = vadd.f32 %v4408, %v4751
  %4753 = vdwg.mxu0
  %v4754 = vxor.u32 %v4659, 2147483648
  %v4755 = vxor.u32 %v4662, 2147483648
  %v4756 = vxor.u32 %v4665, 2147483648
  %v4757 = vxor.u32 %v4668, 2147483648
  %v4758 = vxor.u32 %v4671, 2147483648
  %v4759 = vxor.u32 %v4674, 2147483648
  %v4760 = vxor.u32 %v4677, 2147483648
  %v4761 = vxor.u32 %v4680, 2147483648
  %v4762 = vxor.u32 %v4683, 2147483648
  %v4763 = vxor.u32 %v4686, 2147483648
  %v4764 = vxor.u32 %v4689, 2147483648
  %v4765 = vxor.u32 %v4692, 2147483648
  %v4766 = vxor.u32 %v4695, 2147483648
  %v4767 = vxor.u32 %v4698, 2147483648
  %v4768 = vxor.u32 %v4701, 2147483648
  %v4769 = vxor.u32 %v4704, 2147483648
  %v4770 = vxor.u32 %v4707, 2147483648
  %v4771 = vxor.u32 %v4710, 2147483648
  %v4772 = vxor.u32 %v4713, 2147483648
  %v4773 = vxor.u32 %v4716, 2147483648
  %v4774 = vxor.u32 %v4719, 2147483648
  %v4775 = vxor.u32 %v4722, 2147483648
  %v4776 = vxor.u32 %v4725, 2147483648
  %v4777 = vxor.u32 %v4728, 2147483648
  %v4778 = vxor.u32 %v4731, 2147483648
  %v4779 = vxor.u32 %v4734, 2147483648
  %v4780 = vxor.u32 %v4737, 2147483648
  %v4781 = vxor.u32 %v4740, 2147483648
  %v4782 = vxor.u32 %v4743, 2147483648
  %v4783 = vxor.u32 %v4746, 2147483648
  %v4784 = vxor.u32 %v4749, 2147483648
  %v4785 = vxor.u32 %v4752, 2147483648
  %v4786 = vmul.f32 %v4754, 1.442695
  %v4787 = vpow.pop %v4786
  %v4788 = vmul.f32 %v4755, 1.442695
  %v4789 = vpow.pop %v4788
  %v4790 = vmul.f32 %v4756, 1.442695
  %v4791 = vpow.pop %v4790
  %v4792 = vmul.f32 %v4757, 1.442695
  %v4793 = vpow.pop %v4792
  %v4794 = vmul.f32 %v4758, 1.442695
  %v4795 = vpow.pop %v4794
  %v4796 = vmul.f32 %v4759, 1.442695
  %v4797 = vpow.pop %v4796
  %v4798 = vmul.f32 %v4760, 1.442695
  %v4799 = vpow.pop %v4798
  %v4800 = vmul.f32 %v4761, 1.442695
  %v4801 = vpow.pop %v4800
  %v4802 = vmul.f32 %v4762, 1.442695
  %v4803 = vpow.pop %v4802
  %v4804 = vmul.f32 %v4763, 1.442695
  %v4805 = vpow.pop %v4804
  %v4806 = vmul.f32 %v4764, 1.442695
  %v4807 = vpow.pop %v4806
  %v4808 = vmul.f32 %v4765, 1.442695
  %v4809 = vpow.pop %v4808
  %v4810 = vmul.f32 %v4766, 1.442695
  %v4811 = vpow.pop %v4810
  %v4812 = vmul.f32 %v4767, 1.442695
  %v4813 = vpow.pop %v4812
  %v4814 = vmul.f32 %v4768, 1.442695
  %v4815 = vpow.pop %v4814
  %v4816 = vmul.f32 %v4769, 1.442695
  %v4817 = vpow.pop %v4816
  %v4818 = vmul.f32 %v4770, 1.442695
  %v4819 = vpow.pop %v4818
  %v4820 = vmul.f32 %v4771, 1.442695
  %v4821 = vpow.pop %v4820
  %v4822 = vmul.f32 %v4772, 1.442695
  %v4823 = vpow.pop %v4822
  %v4824 = vmul.f32 %v4773, 1.442695
  %v4825 = vpow.pop %v4824
  %v4826 = vmul.f32 %v4774, 1.442695
  %v4827 = vpow.pop %v4826
  %v4828 = vmul.f32 %v4775, 1.442695
  %v4829 = vpow.pop %v4828
  %v4830 = vmul.f32 %v4776, 1.442695
  %v4831 = vpow.pop %v4830
  %v4832 = vmul.f32 %v4777, 1.442695
  %v4833 = vpow.pop %v4832
  %v4834 = vmul.f32 %v4778, 1.442695
  %v4835 = vpow.pop %v4834
  %v4836 = vmul.f32 %v4779, 1.442695
  %v4837 = vpow.pop %v4836
  %v4838 = vmul.f32 %v4780, 1.442695
  %v4839 = vpow.pop %v4838
  %v4840 = vmul.f32 %v4781, 1.442695
  %v4841 = vpow.pop %v4840
  %v4842 = vmul.f32 %v4782, 1.442695
  %v4843 = vpow.pop %v4842
  %v4844 = vmul.f32 %v4783, 1.442695
  %v4845 = vpow.pop %v4844
  %v4846 = vmul.f32 %v4784, 1.442695
  %v4847 = vpow.pop %v4846
  %v4848 = vmul.f32 %v4785, 1.442695
  %v4849 = vpow.pop %v4848
  %v4850 = vadd.f32 %v4787, 1.0
  %v4851 = vadd.f32 %v4789, 1.0
  %v4852 = vadd.f32 %v4791, 1.0
  %v4853 = vadd.f32 %v4793, 1.0
  %v4854 = vadd.f32 %v4795, 1.0
  %v4855 = vadd.f32 %v4797, 1.0
  %v4856 = vadd.f32 %v4799, 1.0
  %v4857 = vadd.f32 %v4801, 1.0
  %v4858 = vadd.f32 %v4803, 1.0
  %v4859 = vadd.f32 %v4805, 1.0
  %v4860 = vadd.f32 %v4807, 1.0
  %v4861 = vadd.f32 %v4809, 1.0
  %v4862 = vadd.f32 %v4811, 1.0
  %v4863 = vadd.f32 %v4813, 1.0
  %v4864 = vadd.f32 %v4815, 1.0
  %v4865 = vadd.f32 %v4817, 1.0
  %v4866 = vadd.f32 %v4819, 1.0
  %v4867 = vadd.f32 %v4821, 1.0
  %v4868 = vadd.f32 %v4823, 1.0
  %v4869 = vadd.f32 %v4825, 1.0
  %v4870 = vadd.f32 %v4827, 1.0
  %v4871 = vadd.f32 %v4829, 1.0
  %v4872 = vadd.f32 %v4831, 1.0
  %v4873 = vadd.f32 %v4833, 1.0
  %v4874 = vadd.f32 %v4835, 1.0
  %v4875 = vadd.f32 %v4837, 1.0
  %v4876 = vadd.f32 %v4839, 1.0
  %v4877 = vadd.f32 %v4841, 1.0
  %v4878 = vadd.f32 %v4843, 1.0
  %v4879 = vadd.f32 %v4845, 1.0
  %v4880 = vadd.f32 %v4847, 1.0
  %v4881 = vadd.f32 %v4849, 1.0
  %v4882 = vrcp.pop %v4850
  %v4883 = vmul.f32 %v4850, %v4882
  %v4884 = vsub.f32 1.0, %v4883
  %v4885 = vmul.f32 %v4882, %v4884
  %v4886 = vadd.f32 %v4882, %v4885
  %vm4887 = vweird.f32 %v4850
  %vm4888 = vweird.f32 %v4882
  %vm4889 = vmor %vm4887, %vm4888
  %v4890 = vsel %vm4889, %v4882, %v4886
  %v4891 = vand.u32 2147483647, %v4850
  %vm4892 = vcmp.eq.f32.partialorder %v4891, 8.507059e+37
  %v4893 = vand.u32 %v4850, 2147483648
  %v4894 = vor.u32 1.1754944e-38, %v4893
  %v4895 = vsel %vm4892, %v4894, %v4890
  %v4896 = vmul.f32 1.0, %v4895
  %v4897 = vrcp.pop %v4851
  %v4898 = vmul.f32 %v4851, %v4897
  %v4899 = vsub.f32 1.0, %v4898
  %v4900 = vmul.f32 %v4897, %v4899
  %v4901 = vadd.f32 %v4897, %v4900
  %vm4902 = vweird.f32 %v4851
  %vm4903 = vweird.f32 %v4897
  %vm4904 = vmor %vm4902, %vm4903
  %v4905 = vsel %vm4904, %v4897, %v4901
  %v4906 = vand.u32 2147483647, %v4851
  %vm4907 = vcmp.eq.f32.partialorder %v4906, 8.507059e+37
  %v4908 = vand.u32 %v4851, 2147483648
  %v4909 = vor.u32 1.1754944e-38, %v4908
  %v4910 = vsel %vm4907, %v4909, %v4905
  %v4911 = vmul.f32 1.0, %v4910
  %v4912 = vrcp.pop %v4852
  %v4913 = vmul.f32 %v4852, %v4912
  %v4914 = vsub.f32 1.0, %v4913
  %v4915 = vmul.f32 %v4912, %v4914
  %v4916 = vadd.f32 %v4912, %v4915
  %vm4917 = vweird.f32 %v4852
  %vm4918 = vweird.f32 %v4912
  %vm4919 = vmor %vm4917, %vm4918
  %v4920 = vsel %vm4919, %v4912, %v4916
  %v4921 = vand.u32 2147483647, %v4852
  %vm4922 = vcmp.eq.f32.partialorder %v4921, 8.507059e+37
  %v4923 = vand.u32 %v4852, 2147483648
  %v4924 = vor.u32 1.1754944e-38, %v4923
  %v4925 = vsel %vm4922, %v4924, %v4920
  %v4926 = vmul.f32 1.0, %v4925
  %v4927 = vrcp.pop %v4853
  %v4928 = vmul.f32 %v4853, %v4927
  %v4929 = vsub.f32 1.0, %v4928
  %v4930 = vmul.f32 %v4927, %v4929
  %v4931 = vadd.f32 %v4927, %v4930
  %vm4932 = vweird.f32 %v4853
  %vm4933 = vweird.f32 %v4927
  %vm4934 = vmor %vm4932, %vm4933
  %v4935 = vsel %vm4934, %v4927, %v4931
  %v4936 = vand.u32 2147483647, %v4853
  %vm4937 = vcmp.eq.f32.partialorder %v4936, 8.507059e+37
  %v4938 = vand.u32 %v4853, 2147483648
  %v4939 = vor.u32 1.1754944e-38, %v4938
  %v4940 = vsel %vm4937, %v4939, %v4935
  %v4941 = vmul.f32 1.0, %v4940
  %v4942 = vrcp.pop %v4854
  %v4943 = vmul.f32 %v4854, %v4942
  %v4944 = vsub.f32 1.0, %v4943
  %v4945 = vmul.f32 %v4942, %v4944
  %v4946 = vadd.f32 %v4942, %v4945
  %vm4947 = vweird.f32 %v4854
  %vm4948 = vweird.f32 %v4942
  %vm4949 = vmor %vm4947, %vm4948
  %v4950 = vsel %vm4949, %v4942, %v4946
  %v4951 = vand.u32 2147483647, %v4854
  %vm4952 = vcmp.eq.f32.partialorder %v4951, 8.507059e+37
  %v4953 = vand.u32 %v4854, 2147483648
  %v4954 = vor.u32 1.1754944e-38, %v4953
  %v4955 = vsel %vm4952, %v4954, %v4950
  %v4956 = vmul.f32 1.0, %v4955
  %v4957 = vrcp.pop %v4855
  %v4958 = vmul.f32 %v4855, %v4957
  %v4959 = vsub.f32 1.0, %v4958
  %v4960 = vmul.f32 %v4957, %v4959
  %v4961 = vadd.f32 %v4957, %v4960
  %vm4962 = vweird.f32 %v4855
  %vm4963 = vweird.f32 %v4957
  %vm4964 = vmor %vm4962, %vm4963
  %v4965 = vsel %vm4964, %v4957, %v4961
  %v4966 = vand.u32 2147483647, %v4855
  %vm4967 = vcmp.eq.f32.partialorder %v4966, 8.507059e+37
  %v4968 = vand.u32 %v4855, 2147483648
  %v4969 = vor.u32 1.1754944e-38, %v4968
  %v4970 = vsel %vm4967, %v4969, %v4965
  %v4971 = vmul.f32 1.0, %v4970
  %v4972 = vrcp.pop %v4856
  %v4973 = vmul.f32 %v4856, %v4972
  %v4974 = vsub.f32 1.0, %v4973
  %v4975 = vmul.f32 %v4972, %v4974
  %v4976 = vadd.f32 %v4972, %v4975
  %vm4977 = vweird.f32 %v4856
  %vm4978 = vweird.f32 %v4972
  %vm4979 = vmor %vm4977, %vm4978
  %v4980 = vsel %vm4979, %v4972, %v4976
  %v4981 = vand.u32 2147483647, %v4856
  %vm4982 = vcmp.eq.f32.partialorder %v4981, 8.507059e+37
  %v4983 = vand.u32 %v4856, 2147483648
  %v4984 = vor.u32 1.1754944e-38, %v4983
  %v4985 = vsel %vm4982, %v4984, %v4980
  %v4986 = vmul.f32 1.0, %v4985
  %v4987 = vrcp.pop %v4857
  %v4988 = vmul.f32 %v4857, %v4987
  %v4989 = vsub.f32 1.0, %v4988
  %v4990 = vmul.f32 %v4987, %v4989
  %v4991 = vadd.f32 %v4987, %v4990
  %vm4992 = vweird.f32 %v4857
  %vm4993 = vweird.f32 %v4987
  %vm4994 = vmor %vm4992, %vm4993
  %v4995 = vsel %vm4994, %v4987, %v4991
  %v4996 = vand.u32 2147483647, %v4857
  %vm4997 = vcmp.eq.f32.partialorder %v4996, 8.507059e+37
  %v4998 = vand.u32 %v4857, 2147483648
  %v4999 = vor.u32 1.1754944e-38, %v4998
  %v5000 = vsel %vm4997, %v4999, %v4995
  %v5001 = vmul.f32 1.0, %v5000
  %v5002 = vrcp.pop %v4858
  %v5003 = vmul.f32 %v4858, %v5002
  %v5004 = vsub.f32 1.0, %v5003
  %v5005 = vmul.f32 %v5002, %v5004
  %v5006 = vadd.f32 %v5002, %v5005
  %vm5007 = vweird.f32 %v4858
  %vm5008 = vweird.f32 %v5002
  %vm5009 = vmor %vm5007, %vm5008
  %v5010 = vsel %vm5009, %v5002, %v5006
  %v5011 = vand.u32 2147483647, %v4858
  %vm5012 = vcmp.eq.f32.partialorder %v5011, 8.507059e+37
  %v5013 = vand.u32 %v4858, 2147483648
  %v5014 = vor.u32 1.1754944e-38, %v5013
  %v5015 = vsel %vm5012, %v5014, %v5010
  %v5016 = vmul.f32 1.0, %v5015
  %v5017 = vrcp.pop %v4859
  %v5018 = vmul.f32 %v4859, %v5017
  %v5019 = vsub.f32 1.0, %v5018
  %v5020 = vmul.f32 %v5017, %v5019
  %v5021 = vadd.f32 %v5017, %v5020
  %vm5022 = vweird.f32 %v4859
  %vm5023 = vweird.f32 %v5017
  %vm5024 = vmor %vm5022, %vm5023
  %v5025 = vsel %vm5024, %v5017, %v5021
  %v5026 = vand.u32 2147483647, %v4859
  %vm5027 = vcmp.eq.f32.partialorder %v5026, 8.507059e+37
  %v5028 = vand.u32 %v4859, 2147483648
  %v5029 = vor.u32 1.1754944e-38, %v5028
  %v5030 = vsel %vm5027, %v5029, %v5025
  %v5031 = vmul.f32 1.0, %v5030
  %v5032 = vrcp.pop %v4860
  %v5033 = vmul.f32 %v4860, %v5032
  %v5034 = vsub.f32 1.0, %v5033
  %v5035 = vmul.f32 %v5032, %v5034
  %v5036 = vadd.f32 %v5032, %v5035
  %vm5037 = vweird.f32 %v4860
  %vm5038 = vweird.f32 %v5032
  %vm5039 = vmor %vm5037, %vm5038
  %v5040 = vsel %vm5039, %v5032, %v5036
  %v5041 = vand.u32 2147483647, %v4860
  %vm5042 = vcmp.eq.f32.partialorder %v5041, 8.507059e+37
  %v5043 = vand.u32 %v4860, 2147483648
  %v5044 = vor.u32 1.1754944e-38, %v5043
  %v5045 = vsel %vm5042, %v5044, %v5040
  %v5046 = vmul.f32 1.0, %v5045
  %v5047 = vrcp.pop %v4861
  %v5048 = vmul.f32 %v4861, %v5047
  %v5049 = vsub.f32 1.0, %v5048
  %v5050 = vmul.f32 %v5047, %v5049
  %v5051 = vadd.f32 %v5047, %v5050
  %vm5052 = vweird.f32 %v4861
  %vm5053 = vweird.f32 %v5047
  %vm5054 = vmor %vm5052, %vm5053
  %v5055 = vsel %vm5054, %v5047, %v5051
  %v5056 = vand.u32 2147483647, %v4861
  %vm5057 = vcmp.eq.f32.partialorder %v5056, 8.507059e+37
  %v5058 = vand.u32 %v4861, 2147483648
  %v5059 = vor.u32 1.1754944e-38, %v5058
  %v5060 = vsel %vm5057, %v5059, %v5055
  %v5061 = vmul.f32 1.0, %v5060
  %v5062 = vrcp.pop %v4862
  %v5063 = vmul.f32 %v4862, %v5062
  %v5064 = vsub.f32 1.0, %v5063
  %v5065 = vmul.f32 %v5062, %v5064
  %v5066 = vadd.f32 %v5062, %v5065
  %vm5067 = vweird.f32 %v4862
  %vm5068 = vweird.f32 %v5062
  %vm5069 = vmor %vm5067, %vm5068
  %v5070 = vsel %vm5069, %v5062, %v5066
  %v5071 = vand.u32 2147483647, %v4862
  %vm5072 = vcmp.eq.f32.partialorder %v5071, 8.507059e+37
  %v5073 = vand.u32 %v4862, 2147483648
  %v5074 = vor.u32 1.1754944e-38, %v5073
  %v5075 = vsel %vm5072, %v5074, %v5070
  %v5076 = vmul.f32 1.0, %v5075
  %v5077 = vrcp.pop %v4863
  %v5078 = vmul.f32 %v4863, %v5077
  %v5079 = vsub.f32 1.0, %v5078
  %v5080 = vmul.f32 %v5077, %v5079
  %v5081 = vadd.f32 %v5077, %v5080
  %vm5082 = vweird.f32 %v4863
  %vm5083 = vweird.f32 %v5077
  %vm5084 = vmor %vm5082, %vm5083
  %v5085 = vsel %vm5084, %v5077, %v5081
  %v5086 = vand.u32 2147483647, %v4863
  %vm5087 = vcmp.eq.f32.partialorder %v5086, 8.507059e+37
  %v5088 = vand.u32 %v4863, 2147483648
  %v5089 = vor.u32 1.1754944e-38, %v5088
  %v5090 = vsel %vm5087, %v5089, %v5085
  %v5091 = vmul.f32 1.0, %v5090
  %v5092 = vrcp.pop %v4864
  %v5093 = vmul.f32 %v4864, %v5092
  %v5094 = vsub.f32 1.0, %v5093
  %v5095 = vmul.f32 %v5092, %v5094
  %v5096 = vadd.f32 %v5092, %v5095
  %vm5097 = vweird.f32 %v4864
  %vm5098 = vweird.f32 %v5092
  %vm5099 = vmor %vm5097, %vm5098
  %v5100 = vsel %vm5099, %v5092, %v5096
  %v5101 = vand.u32 2147483647, %v4864
  %vm5102 = vcmp.eq.f32.partialorder %v5101, 8.507059e+37
  %v5103 = vand.u32 %v4864, 2147483648
  %v5104 = vor.u32 1.1754944e-38, %v5103
  %v5105 = vsel %vm5102, %v5104, %v5100
  %v5106 = vmul.f32 1.0, %v5105
  %v5107 = vrcp.pop %v4865
  %v5108 = vmul.f32 %v4865, %v5107
  %v5109 = vsub.f32 1.0, %v5108
  %v5110 = vmul.f32 %v5107, %v5109
  %v5111 = vadd.f32 %v5107, %v5110
  %vm5112 = vweird.f32 %v4865
  %vm5113 = vweird.f32 %v5107
  %vm5114 = vmor %vm5112, %vm5113
  %v5115 = vsel %vm5114, %v5107, %v5111
  %v5116 = vand.u32 2147483647, %v4865
  %vm5117 = vcmp.eq.f32.partialorder %v5116, 8.507059e+37
  %v5118 = vand.u32 %v4865, 2147483648
  %v5119 = vor.u32 1.1754944e-38, %v5118
  %v5120 = vsel %vm5117, %v5119, %v5115
  %v5121 = vmul.f32 1.0, %v5120
  %v5122 = vrcp.pop %v4866
  %v5123 = vmul.f32 %v4866, %v5122
  %v5124 = vsub.f32 1.0, %v5123
  %v5125 = vmul.f32 %v5122, %v5124
  %v5126 = vadd.f32 %v5122, %v5125
  %vm5127 = vweird.f32 %v4866
  %vm5128 = vweird.f32 %v5122
  %vm5129 = vmor %vm5127, %vm5128
  %v5130 = vsel %vm5129, %v5122, %v5126
  %v5131 = vand.u32 2147483647, %v4866
  %vm5132 = vcmp.eq.f32.partialorder %v5131, 8.507059e+37
  %v5133 = vand.u32 %v4866, 2147483648
  %v5134 = vor.u32 1.1754944e-38, %v5133
  %v5135 = vsel %vm5132, %v5134, %v5130
  %v5136 = vmul.f32 1.0, %v5135
  %v5137 = vrcp.pop %v4867
  %v5138 = vmul.f32 %v4867, %v5137
  %v5139 = vsub.f32 1.0, %v5138
  %v5140 = vmul.f32 %v5137, %v5139
  %v5141 = vadd.f32 %v5137, %v5140
  %vm5142 = vweird.f32 %v4867
  %vm5143 = vweird.f32 %v5137
  %vm5144 = vmor %vm5142, %vm5143
  %v5145 = vsel %vm5144, %v5137, %v5141
  %v5146 = vand.u32 2147483647, %v4867
  %vm5147 = vcmp.eq.f32.partialorder %v5146, 8.507059e+37
  %v5148 = vand.u32 %v4867, 2147483648
  %v5149 = vor.u32 1.1754944e-38, %v5148
  %v5150 = vsel %vm5147, %v5149, %v5145
  %v5151 = vmul.f32 1.0, %v5150
  %v5152 = vrcp.pop %v4868
  %v5153 = vmul.f32 %v4868, %v5152
  %v5154 = vsub.f32 1.0, %v5153
  %v5155 = vmul.f32 %v5152, %v5154
  %v5156 = vadd.f32 %v5152, %v5155
  %vm5157 = vweird.f32 %v4868
  %vm5158 = vweird.f32 %v5152
  %vm5159 = vmor %vm5157, %vm5158
  %v5160 = vsel %vm5159, %v5152, %v5156
  %v5161 = vand.u32 2147483647, %v4868
  %vm5162 = vcmp.eq.f32.partialorder %v5161, 8.507059e+37
  %v5163 = vand.u32 %v4868, 2147483648
  %v5164 = vor.u32 1.1754944e-38, %v5163
  %v5165 = vsel %vm5162, %v5164, %v5160
  %v5166 = vmul.f32 1.0, %v5165
  %v5167 = vrcp.pop %v4869
  %v5168 = vmul.f32 %v4869, %v5167
  %v5169 = vsub.f32 1.0, %v5168
  %v5170 = vmul.f32 %v5167, %v5169
  %v5171 = vadd.f32 %v5167, %v5170
  %vm5172 = vweird.f32 %v4869
  %vm5173 = vweird.f32 %v5167
  %vm5174 = vmor %vm5172, %vm5173
  %v5175 = vsel %vm5174, %v5167, %v5171
  %v5176 = vand.u32 2147483647, %v4869
  %vm5177 = vcmp.eq.f32.partialorder %v5176, 8.507059e+37
  %v5178 = vand.u32 %v4869, 2147483648
  %v5179 = vor.u32 1.1754944e-38, %v5178
  %v5180 = vsel %vm5177, %v5179, %v5175
  %v5181 = vmul.f32 1.0, %v5180
  %v5182 = vrcp.pop %v4870
  %v5183 = vmul.f32 %v4870, %v5182
  %v5184 = vsub.f32 1.0, %v5183
  %v5185 = vmul.f32 %v5182, %v5184
  %v5186 = vadd.f32 %v5182, %v5185
  %vm5187 = vweird.f32 %v4870
  %vm5188 = vweird.f32 %v5182
  %vm5189 = vmor %vm5187, %vm5188
  %v5190 = vsel %vm5189, %v5182, %v5186
  %v5191 = vand.u32 2147483647, %v4870
  %vm5192 = vcmp.eq.f32.partialorder %v5191, 8.507059e+37
  %v5193 = vand.u32 %v4870, 2147483648
  %v5194 = vor.u32 1.1754944e-38, %v5193
  %v5195 = vsel %vm5192, %v5194, %v5190
  %v5196 = vmul.f32 1.0, %v5195
  %v5197 = vrcp.pop %v4871
  %v5198 = vmul.f32 %v4871, %v5197
  %v5199 = vsub.f32 1.0, %v5198
  %v5200 = vmul.f32 %v5197, %v5199
  %v5201 = vadd.f32 %v5197, %v5200
  %vm5202 = vweird.f32 %v4871
  %vm5203 = vweird.f32 %v5197
  %vm5204 = vmor %vm5202, %vm5203
  %v5205 = vsel %vm5204, %v5197, %v5201
  %v5206 = vand.u32 2147483647, %v4871
  %vm5207 = vcmp.eq.f32.partialorder %v5206, 8.507059e+37
  %v5208 = vand.u32 %v4871, 2147483648
  %v5209 = vor.u32 1.1754944e-38, %v5208
  %v5210 = vsel %vm5207, %v5209, %v5205
  %v5211 = vmul.f32 1.0, %v5210
  %v5212 = vrcp.pop %v4872
  %v5213 = vmul.f32 %v4872, %v5212
  %v5214 = vsub.f32 1.0, %v5213
  %v5215 = vmul.f32 %v5212, %v5214
  %v5216 = vadd.f32 %v5212, %v5215
  %vm5217 = vweird.f32 %v4872
  %vm5218 = vweird.f32 %v5212
  %vm5219 = vmor %vm5217, %vm5218
  %v5220 = vsel %vm5219, %v5212, %v5216
  %v5221 = vand.u32 2147483647, %v4872
  %vm5222 = vcmp.eq.f32.partialorder %v5221, 8.507059e+37
  %v5223 = vand.u32 %v4872, 2147483648
  %v5224 = vor.u32 1.1754944e-38, %v5223
  %v5225 = vsel %vm5222, %v5224, %v5220
  %v5226 = vmul.f32 1.0, %v5225
  %v5227 = vrcp.pop %v4873
  %v5228 = vmul.f32 %v4873, %v5227
  %v5229 = vsub.f32 1.0, %v5228
  %v5230 = vmul.f32 %v5227, %v5229
  %v5231 = vadd.f32 %v5227, %v5230
  %vm5232 = vweird.f32 %v4873
  %vm5233 = vweird.f32 %v5227
  %vm5234 = vmor %vm5232, %vm5233
  %v5235 = vsel %vm5234, %v5227, %v5231
  %v5236 = vand.u32 2147483647, %v4873
  %vm5237 = vcmp.eq.f32.partialorder %v5236, 8.507059e+37
  %v5238 = vand.u32 %v4873, 2147483648
  %v5239 = vor.u32 1.1754944e-38, %v5238
  %v5240 = vsel %vm5237, %v5239, %v5235
  %v5241 = vmul.f32 1.0, %v5240
  %v5242 = vrcp.pop %v4874
  %v5243 = vmul.f32 %v4874, %v5242
  %v5244 = vsub.f32 1.0, %v5243
  %v5245 = vmul.f32 %v5242, %v5244
  %v5246 = vadd.f32 %v5242, %v5245
  %vm5247 = vweird.f32 %v4874
  %vm5248 = vweird.f32 %v5242
  %vm5249 = vmor %vm5247, %vm5248
  %v5250 = vsel %vm5249, %v5242, %v5246
  %v5251 = vand.u32 2147483647, %v4874
  %vm5252 = vcmp.eq.f32.partialorder %v5251, 8.507059e+37
  %v5253 = vand.u32 %v4874, 2147483648
  %v5254 = vor.u32 1.1754944e-38, %v5253
  %v5255 = vsel %vm5252, %v5254, %v5250
  %v5256 = vmul.f32 1.0, %v5255
  %v5257 = vrcp.pop %v4875
  %v5258 = vmul.f32 %v4875, %v5257
  %v5259 = vsub.f32 1.0, %v5258
  %v5260 = vmul.f32 %v5257, %v5259
  %v5261 = vadd.f32 %v5257, %v5260
  %vm5262 = vweird.f32 %v4875
  %vm5263 = vweird.f32 %v5257
  %vm5264 = vmor %vm5262, %vm5263
  %v5265 = vsel %vm5264, %v5257, %v5261
  %v5266 = vand.u32 2147483647, %v4875
  %vm5267 = vcmp.eq.f32.partialorder %v5266, 8.507059e+37
  %v5268 = vand.u32 %v4875, 2147483648
  %v5269 = vor.u32 1.1754944e-38, %v5268
  %v5270 = vsel %vm5267, %v5269, %v5265
  %v5271 = vmul.f32 1.0, %v5270
  %v5272 = vrcp.pop %v4876
  %v5273 = vmul.f32 %v4876, %v5272
  %v5274 = vsub.f32 1.0, %v5273
  %v5275 = vmul.f32 %v5272, %v5274
  %v5276 = vadd.f32 %v5272, %v5275
  %vm5277 = vweird.f32 %v4876
  %vm5278 = vweird.f32 %v5272
  %vm5279 = vmor %vm5277, %vm5278
  %v5280 = vsel %vm5279, %v5272, %v5276
  %v5281 = vand.u32 2147483647, %v4876
  %vm5282 = vcmp.eq.f32.partialorder %v5281, 8.507059e+37
  %v5283 = vand.u32 %v4876, 2147483648
  %v5284 = vor.u32 1.1754944e-38, %v5283
  %v5285 = vsel %vm5282, %v5284, %v5280
  %v5286 = vmul.f32 1.0, %v5285
  %v5287 = vrcp.pop %v4877
  %v5288 = vmul.f32 %v4877, %v5287
  %v5289 = vsub.f32 1.0, %v5288
  %v5290 = vmul.f32 %v5287, %v5289
  %v5291 = vadd.f32 %v5287, %v5290
  %vm5292 = vweird.f32 %v4877
  %vm5293 = vweird.f32 %v5287
  %vm5294 = vmor %vm5292, %vm5293
  %v5295 = vsel %vm5294, %v5287, %v5291
  %v5296 = vand.u32 2147483647, %v4877
  %vm5297 = vcmp.eq.f32.partialorder %v5296, 8.507059e+37
  %v5298 = vand.u32 %v4877, 2147483648
  %v5299 = vor.u32 1.1754944e-38, %v5298
  %v5300 = vsel %vm5297, %v5299, %v5295
  %v5301 = vmul.f32 1.0, %v5300
  %v5302 = vrcp.pop %v4878
  %v5303 = vmul.f32 %v4878, %v5302
  %v5304 = vsub.f32 1.0, %v5303
  %v5305 = vmul.f32 %v5302, %v5304
  %v5306 = vadd.f32 %v5302, %v5305
  %vm5307 = vweird.f32 %v4878
  %vm5308 = vweird.f32 %v5302
  %vm5309 = vmor %vm5307, %vm5308
  %v5310 = vsel %vm5309, %v5302, %v5306
  %v5311 = vand.u32 2147483647, %v4878
  %vm5312 = vcmp.eq.f32.partialorder %v5311, 8.507059e+37
  %v5313 = vand.u32 %v4878, 2147483648
  %v5314 = vor.u32 1.1754944e-38, %v5313
  %v5315 = vsel %vm5312, %v5314, %v5310
  %v5316 = vmul.f32 1.0, %v5315
  %v5317 = vrcp.pop %v4879
  %v5318 = vmul.f32 %v4879, %v5317
  %v5319 = vsub.f32 1.0, %v5318
  %v5320 = vmul.f32 %v5317, %v5319
  %v5321 = vadd.f32 %v5317, %v5320
  %vm5322 = vweird.f32 %v4879
  %vm5323 = vweird.f32 %v5317
  %vm5324 = vmor %vm5322, %vm5323
  %v5325 = vsel %vm5324, %v5317, %v5321
  %v5326 = vand.u32 2147483647, %v4879
  %vm5327 = vcmp.eq.f32.partialorder %v5326, 8.507059e+37
  %v5328 = vand.u32 %v4879, 2147483648
  %v5329 = vor.u32 1.1754944e-38, %v5328
  %v5330 = vsel %vm5327, %v5329, %v5325
  %v5331 = vmul.f32 1.0, %v5330
  %v5332 = vrcp.pop %v4880
  %v5333 = vmul.f32 %v4880, %v5332
  %v5334 = vsub.f32 1.0, %v5333
  %v5335 = vmul.f32 %v5332, %v5334
  %v5336 = vadd.f32 %v5332, %v5335
  %vm5337 = vweird.f32 %v4880
  %vm5338 = vweird.f32 %v5332
  %vm5339 = vmor %vm5337, %vm5338
  %v5340 = vsel %vm5339, %v5332, %v5336
  %v5341 = vand.u32 2147483647, %v4880
  %vm5342 = vcmp.eq.f32.partialorder %v5341, 8.507059e+37
  %v5343 = vand.u32 %v4880, 2147483648
  %v5344 = vor.u32 1.1754944e-38, %v5343
  %v5345 = vsel %vm5342, %v5344, %v5340
  %v5346 = vmul.f32 1.0, %v5345
  %v5347 = vrcp.pop %v4881
  %v5348 = vmul.f32 %v4881, %v5347
  %v5349 = vsub.f32 1.0, %v5348
  %v5350 = vmul.f32 %v5347, %v5349
  %v5351 = vadd.f32 %v5347, %v5350
  %vm5352 = vweird.f32 %v4881
  %vm5353 = vweird.f32 %v5347
  %vm5354 = vmor %vm5352, %vm5353
  %v5355 = vsel %vm5354, %v5347, %v5351
  %v5356 = vand.u32 2147483647, %v4881
  %vm5357 = vcmp.eq.f32.partialorder %v5356, 8.507059e+37
  %v5358 = vand.u32 %v4881, 2147483648
  %v5359 = vor.u32 1.1754944e-38, %v5358
  %v5360 = vsel %vm5357, %v5359, %v5355
  %v5361 = vmul.f32 1.0, %v5360
  %v5362 = vmul.f32 %v4659, %v4896
  %v5363 = vmul.f32 %v4662, %v4911
  %v5364 = vmul.f32 %v4665, %v4926
  %v5365 = vmul.f32 %v4668, %v4941
  %v5366 = vmul.f32 %v4671, %v4956
  %v5367 = vmul.f32 %v4674, %v4971
  %v5368 = vmul.f32 %v4677, %v4986
  %v5369 = vmul.f32 %v4680, %v5001
  %v5370 = vmul.f32 %v4683, %v5016
  %v5371 = vmul.f32 %v4686, %v5031
  %v5372 = vmul.f32 %v4689, %v5046
  %v5373 = vmul.f32 %v4692, %v5061
  %v5374 = vmul.f32 %v4695, %v5076
  %v5375 = vmul.f32 %v4698, %v5091
  %v5376 = vmul.f32 %v4701, %v5106
  %v5377 = vmul.f32 %v4704, %v5121
  %v5378 = vmul.f32 %v4707, %v5136
  %v5379 = vmul.f32 %v4710, %v5151
  %v5380 = vmul.f32 %v4713, %v5166
  %v5381 = vmul.f32 %v4716, %v5181
  %v5382 = vmul.f32 %v4719, %v5196
  %v5383 = vmul.f32 %v4722, %v5211
  %v5384 = vmul.f32 %v4725, %v5226
  %v5385 = vmul.f32 %v4728, %v5241
  %v5386 = vmul.f32 %v4731, %v5256
  %v5387 = vmul.f32 %v4734, %v5271
  %v5388 = vmul.f32 %v4737, %v5286
  %v5389 = vmul.f32 %v4740, %v5301
  %v5390 = vmul.f32 %v4743, %v5316
  %v5391 = vmul.f32 %v4746, %v5331
  %v5392 = vmul.f32 %v4749, %v5346
  %v5393 = vmul.f32 %v4752, %v5361
  %v5426 = vrot.slane %v5362, 4
  %v5427 = vrot.slane %v5363, 4
  %v5428 = vrot.slane %v5364, 4
  %v5429 = vrot.slane %v5365, 4
  %v5430 = vrot.slane %v5366, 4
  %v5431 = vrot.slane %v5367, 4
  %v5432 = vrot.slane %v5368, 4
  %v5433 = vrot.slane %v5369, 4
  %v5434 = vrot.slane %v5370, 4
  %v5435 = vrot.slane %v5371, 4
  %v5436 = vrot.slane %v5372, 4
  %v5437 = vrot.slane %v5373, 4
  %v5438 = vrot.slane %v5374, 4
  %v5439 = vrot.slane %v5375, 4
  %v5440 = vrot.slane %v5376, 4
  %v5441 = vrot.slane %v5377, 4
  %v5442 = vrot.slane %v5378, 4
  %v5443 = vrot.slane %v5379, 4
  %v5444 = vrot.slane %v5380, 4
  %v5445 = vrot.slane %v5381, 4
  %v5446 = vrot.slane %v5382, 4
  %v5447 = vrot.slane %v5383, 4
  %v5448 = vrot.slane %v5384, 4
  %v5449 = vrot.slane %v5385, 4
  %v5450 = vrot.slane %v5386, 4
  %v5451 = vrot.slane %v5387, 4
  %v5452 = vrot.slane %v5388, 4
  %v5453 = vrot.slane %v5389, 4
  %v5454 = vrot.slane %v5390, 4
  %v5455 = vrot.slane %v5391, 4
  %v5456 = vrot.slane %v5392, 4
  %v5457 = vrot.slane %v5393, 4
  %v5490 = vlaneseq
  %v5491 = vshrl.u32 %v5490, 7
  %v5492 = vlaneseq
  %v5493 = vand.u32 %v5492, 127
  %vm5494 = vcmp.ne.s32.totalorder %v5491, %v5493
  %v5495 = vsel %vm5494, 1, 0
  %v5496 = vcvt.s32.f32 %v5495
  %v5497 = vmul.f32 %v3105, %v5496
  %v5498 = vmul.f32 %v3106, %v5496
  %v5499 = vmul.f32 %v3107, %v5496
  %v5500 = vmul.f32 %v3108, %v5496
  %v5501 = vmul.f32 %v3109, %v5496
  %v5502 = vmul.f32 %v3110, %v5496
  %v5503 = vmul.f32 %v3111, %v5496
  %v5504 = vmul.f32 %v3112, %v5496
  %v5505 = vmul.f32 %v3113, %v5496
  %v5506 = vmul.f32 %v3114, %v5496
  %v5507 = vmul.f32 %v3115, %v5496
  %v5508 = vmul.f32 %v3116, %v5496
  %v5509 = vmul.f32 %v3117, %v5496
  %v5510 = vmul.f32 %v3118, %v5496
  %v5511 = vmul.f32 %v3119, %v5496
  %v5512 = vmul.f32 %v3120, %v5496
  %v5513 = vperm.slane %v5497, 0
  %v5514 = vlaneseq
  %v5515 = vshrl.u32 %v5514, 7
  %5517 = vset.pattern.permute.xlu0 %v5515
  %5518 = vperm.xlu0 %5517, %v5513
  %v5519 = vpop.permute.xlu0 %5518
  %v5520 = vperm.slane %v5497, 1
  %v5521 = vlaneseq
  %v5522 = vshrl.u32 %v5521, 7
  %5524 = vset.pattern.permute.xlu0 %v5522
  %5525 = vperm.xlu0 %5524, %v5520
  %v5526 = vpop.permute.xlu0 %5525
  %v5527 = vperm.slane %v5497, 2
  %v5528 = vlaneseq
  %v5529 = vshrl.u32 %v5528, 7
  %5531 = vset.pattern.permute.xlu0 %v5529
  %5532 = vperm.xlu0 %5531, %v5527
  %v5533 = vpop.permute.xlu0 %5532
  %v5534 = vperm.slane %v5497, 3
  %v5535 = vlaneseq
  %v5536 = vshrl.u32 %v5535, 7
  %5538 = vset.pattern.permute.xlu0 %v5536
  %5539 = vperm.xlu0 %5538, %v5534
  %v5540 = vpop.permute.xlu0 %5539
  %v5541 = vperm.slane %v5498, 0
  %v5542 = vlaneseq
  %v5543 = vshrl.u32 %v5542, 7
  %5545 = vset.pattern.permute.xlu0 %v5543
  %5546 = vperm.xlu0 %5545, %v5541
  %v5547 = vpop.permute.xlu0 %5546
  %v5548 = vperm.slane %v5498, 1
  %v5549 = vlaneseq
  %v5550 = vshrl.u32 %v5549, 7
  %5552 = vset.pattern.permute.xlu0 %v5550
  %5553 = vperm.xlu0 %5552, %v5548
  %v5554 = vpop.permute.xlu0 %5553
  %v5555 = vperm.slane %v5498, 2
  %v5556 = vlaneseq
  %v5557 = vshrl.u32 %v5556, 7
  %5559 = vset.pattern.permute.xlu0 %v5557
  %5560 = vperm.xlu0 %5559, %v5555
  %v5561 = vpop.permute.xlu0 %5560
  %v5562 = vperm.slane %v5498, 3
  %v5563 = vlaneseq
  %v5564 = vshrl.u32 %v5563, 7
  %5566 = vset.pattern.permute.xlu0 %v5564
  %5567 = vperm.xlu0 %5566, %v5562
  %v5568 = vpop.permute.xlu0 %5567
  %v5569 = vperm.slane %v5499, 0
  %v5570 = vlaneseq
  %v5571 = vshrl.u32 %v5570, 7
  %5573 = vset.pattern.permute.xlu0 %v5571
  %5574 = vperm.xlu0 %5573, %v5569
  %v5575 = vpop.permute.xlu0 %5574
  %v5576 = vperm.slane %v5499, 1
  %v5577 = vlaneseq
  %v5578 = vshrl.u32 %v5577, 7
  %5580 = vset.pattern.permute.xlu0 %v5578
  %5581 = vperm.xlu0 %5580, %v5576
  %v5582 = vpop.permute.xlu0 %5581
  %v5583 = vperm.slane %v5499, 2
  %v5584 = vlaneseq
  %v5585 = vshrl.u32 %v5584, 7
  %5587 = vset.pattern.permute.xlu0 %v5585
  %5588 = vperm.xlu0 %5587, %v5583
  %v5589 = vpop.permute.xlu0 %5588
  %v5590 = vperm.slane %v5499, 3
  %v5591 = vlaneseq
  %v5592 = vshrl.u32 %v5591, 7
  %5594 = vset.pattern.permute.xlu0 %v5592
  %5595 = vperm.xlu0 %5594, %v5590
  %v5596 = vpop.permute.xlu0 %5595
  %v5597 = vperm.slane %v5500, 0
  %v5598 = vlaneseq
  %v5599 = vshrl.u32 %v5598, 7
  %5601 = vset.pattern.permute.xlu0 %v5599
  %5602 = vperm.xlu0 %5601, %v5597
  %v5603 = vpop.permute.xlu0 %5602
  %v5604 = vperm.slane %v5500, 1
  %v5605 = vlaneseq
  %v5606 = vshrl.u32 %v5605, 7
  %5608 = vset.pattern.permute.xlu0 %v5606
  %5609 = vperm.xlu0 %5608, %v5604
  %v5610 = vpop.permute.xlu0 %5609
  %v5611 = vperm.slane %v5500, 2
  %v5612 = vlaneseq
  %v5613 = vshrl.u32 %v5612, 7
  %5615 = vset.pattern.permute.xlu0 %v5613
  %5616 = vperm.xlu0 %5615, %v5611
  %v5617 = vpop.permute.xlu0 %5616
  %v5618 = vperm.slane %v5500, 3
  %v5619 = vlaneseq
  %v5620 = vshrl.u32 %v5619, 7
  %5622 = vset.pattern.permute.xlu0 %v5620
  %5623 = vperm.xlu0 %5622, %v5618
  %v5624 = vpop.permute.xlu0 %5623
  %v5625 = vperm.slane %v5501, 0
  %v5626 = vlaneseq
  %v5627 = vshrl.u32 %v5626, 7
  %5629 = vset.pattern.permute.xlu0 %v5627
  %5630 = vperm.xlu0 %5629, %v5625
  %v5631 = vpop.permute.xlu0 %5630
  %v5632 = vperm.slane %v5501, 1
  %v5633 = vlaneseq
  %v5634 = vshrl.u32 %v5633, 7
  %5636 = vset.pattern.permute.xlu0 %v5634
  %5637 = vperm.xlu0 %5636, %v5632
  %v5638 = vpop.permute.xlu0 %5637
  %v5639 = vperm.slane %v5501, 2
  %v5640 = vlaneseq
  %v5641 = vshrl.u32 %v5640, 7
  %5643 = vset.pattern.permute.xlu0 %v5641
  %5644 = vperm.xlu0 %5643, %v5639
  %v5645 = vpop.permute.xlu0 %5644
  %v5646 = vperm.slane %v5501, 3
  %v5647 = vlaneseq
  %v5648 = vshrl.u32 %v5647, 7
  %5650 = vset.pattern.permute.xlu0 %v5648
  %5651 = vperm.xlu0 %5650, %v5646
  %v5652 = vpop.permute.xlu0 %5651
  %v5653 = vperm.slane %v5502, 0
  %v5654 = vlaneseq
  %v5655 = vshrl.u32 %v5654, 7
  %5657 = vset.pattern.permute.xlu0 %v5655
  %5658 = vperm.xlu0 %5657, %v5653
  %v5659 = vpop.permute.xlu0 %5658
  %v5660 = vperm.slane %v5502, 1
  %v5661 = vlaneseq
  %v5662 = vshrl.u32 %v5661, 7
  %5664 = vset.pattern.permute.xlu0 %v5662
  %5665 = vperm.xlu0 %5664, %v5660
  %v5666 = vpop.permute.xlu0 %5665
  %v5667 = vperm.slane %v5502, 2
  %v5668 = vlaneseq
  %v5669 = vshrl.u32 %v5668, 7
  %5671 = vset.pattern.permute.xlu0 %v5669
  %5672 = vperm.xlu0 %5671, %v5667
  %v5673 = vpop.permute.xlu0 %5672
  %v5674 = vperm.slane %v5502, 3
  %v5675 = vlaneseq
  %v5676 = vshrl.u32 %v5675, 7
  %5678 = vset.pattern.permute.xlu0 %v5676
  %5679 = vperm.xlu0 %5678, %v5674
  %v5680 = vpop.permute.xlu0 %5679
  %v5681 = vperm.slane %v5503, 0
  %v5682 = vlaneseq
  %v5683 = vshrl.u32 %v5682, 7
  %5685 = vset.pattern.permute.xlu0 %v5683
  %5686 = vperm.xlu0 %5685, %v5681
  %v5687 = vpop.permute.xlu0 %5686
  %v5688 = vperm.slane %v5503, 1
  %v5689 = vlaneseq
  %v5690 = vshrl.u32 %v5689, 7
  %5692 = vset.pattern.permute.xlu0 %v5690
  %5693 = vperm.xlu0 %5692, %v5688
  %v5694 = vpop.permute.xlu0 %5693
  %v5695 = vperm.slane %v5503, 2
  %v5696 = vlaneseq
  %v5697 = vshrl.u32 %v5696, 7
  %5699 = vset.pattern.permute.xlu0 %v5697
  %5700 = vperm.xlu0 %5699, %v5695
  %v5701 = vpop.permute.xlu0 %5700
  %v5702 = vperm.slane %v5503, 3
  %v5703 = vlaneseq
  %v5704 = vshrl.u32 %v5703, 7
  %5706 = vset.pattern.permute.xlu0 %v5704
  %5707 = vperm.xlu0 %5706, %v5702
  %v5708 = vpop.permute.xlu0 %5707
  %v5709 = vperm.slane %v5504, 0
  %v5710 = vlaneseq
  %v5711 = vshrl.u32 %v5710, 7
  %5713 = vset.pattern.permute.xlu0 %v5711
  %5714 = vperm.xlu0 %5713, %v5709
  %v5715 = vpop.permute.xlu0 %5714
  %v5716 = vperm.slane %v5504, 1
  %v5717 = vlaneseq
  %v5718 = vshrl.u32 %v5717, 7
  %5720 = vset.pattern.permute.xlu0 %v5718
  %5721 = vperm.xlu0 %5720, %v5716
  %v5722 = vpop.permute.xlu0 %5721
  %v5723 = vperm.slane %v5504, 2
  %v5724 = vlaneseq
  %v5725 = vshrl.u32 %v5724, 7
  %5727 = vset.pattern.permute.xlu0 %v5725
  %5728 = vperm.xlu0 %5727, %v5723
  %v5729 = vpop.permute.xlu0 %5728
  %v5730 = vperm.slane %v5504, 3
  %v5731 = vlaneseq
  %v5732 = vshrl.u32 %v5731, 7
  %5734 = vset.pattern.permute.xlu0 %v5732
  %5735 = vperm.xlu0 %5734, %v5730
  %v5736 = vpop.permute.xlu0 %5735
  %v5737 = vperm.slane %v5505, 0
  %v5738 = vlaneseq
  %v5739 = vshrl.u32 %v5738, 7
  %5741 = vset.pattern.permute.xlu0 %v5739
  %5742 = vperm.xlu0 %5741, %v5737
  %v5743 = vpop.permute.xlu0 %5742
  %v5744 = vperm.slane %v5505, 1
  %v5745 = vlaneseq
  %v5746 = vshrl.u32 %v5745, 7
  %5748 = vset.pattern.permute.xlu0 %v5746
  %5749 = vperm.xlu0 %5748, %v5744
  %v5750 = vpop.permute.xlu0 %5749
  %v5751 = vperm.slane %v5505, 2
  %v5752 = vlaneseq
  %v5753 = vshrl.u32 %v5752, 7
  %5755 = vset.pattern.permute.xlu0 %v5753
  %5756 = vperm.xlu0 %5755, %v5751
  %v5757 = vpop.permute.xlu0 %5756
  %v5758 = vperm.slane %v5505, 3
  %v5759 = vlaneseq
  %v5760 = vshrl.u32 %v5759, 7
  %5762 = vset.pattern.permute.xlu0 %v5760
  %5763 = vperm.xlu0 %5762, %v5758
  %v5764 = vpop.permute.xlu0 %5763
  %v5765 = vperm.slane %v5506, 0
  %v5766 = vlaneseq
  %v5767 = vshrl.u32 %v5766, 7
  %5769 = vset.pattern.permute.xlu0 %v5767
  %5770 = vperm.xlu0 %5769, %v5765
  %v5771 = vpop.permute.xlu0 %5770
  %v5772 = vperm.slane %v5506, 1
  %v5773 = vlaneseq
  %v5774 = vshrl.u32 %v5773, 7
  %5776 = vset.pattern.permute.xlu0 %v5774
  %5777 = vperm.xlu0 %5776, %v5772
  %v5778 = vpop.permute.xlu0 %5777
  %v5779 = vperm.slane %v5506, 2
  %v5780 = vlaneseq
  %v5781 = vshrl.u32 %v5780, 7
  %5783 = vset.pattern.permute.xlu0 %v5781
  %5784 = vperm.xlu0 %5783, %v5779
  %v5785 = vpop.permute.xlu0 %5784
  %v5786 = vperm.slane %v5506, 3
  %v5787 = vlaneseq
  %v5788 = vshrl.u32 %v5787, 7
  %5790 = vset.pattern.permute.xlu0 %v5788
  %5791 = vperm.xlu0 %5790, %v5786
  %v5792 = vpop.permute.xlu0 %5791
  %v5793 = vperm.slane %v5507, 0
  %v5794 = vlaneseq
  %v5795 = vshrl.u32 %v5794, 7
  %5797 = vset.pattern.permute.xlu0 %v5795
  %5798 = vperm.xlu0 %5797, %v5793
  %v5799 = vpop.permute.xlu0 %5798
  %v5800 = vperm.slane %v5507, 1
  %v5801 = vlaneseq
  %v5802 = vshrl.u32 %v5801, 7
  %5804 = vset.pattern.permute.xlu0 %v5802
  %5805 = vperm.xlu0 %5804, %v5800
  %v5806 = vpop.permute.xlu0 %5805
  %v5807 = vperm.slane %v5507, 2
  %v5808 = vlaneseq
  %v5809 = vshrl.u32 %v5808, 7
  %5811 = vset.pattern.permute.xlu0 %v5809
  %5812 = vperm.xlu0 %5811, %v5807
  %v5813 = vpop.permute.xlu0 %5812
  %v5814 = vperm.slane %v5507, 3
  %v5815 = vlaneseq
  %v5816 = vshrl.u32 %v5815, 7
  %5818 = vset.pattern.permute.xlu0 %v5816
  %5819 = vperm.xlu0 %5818, %v5814
  %v5820 = vpop.permute.xlu0 %5819
  %v5821 = vperm.slane %v5508, 0
  %v5822 = vlaneseq
  %v5823 = vshrl.u32 %v5822, 7
  %5825 = vset.pattern.permute.xlu0 %v5823
  %5826 = vperm.xlu0 %5825, %v5821
  %v5827 = vpop.permute.xlu0 %5826
  %v5828 = vperm.slane %v5508, 1
  %v5829 = vlaneseq
  %v5830 = vshrl.u32 %v5829, 7
  %5832 = vset.pattern.permute.xlu0 %v5830
  %5833 = vperm.xlu0 %5832, %v5828
  %v5834 = vpop.permute.xlu0 %5833
  %v5835 = vperm.slane %v5508, 2
  %v5836 = vlaneseq
  %v5837 = vshrl.u32 %v5836, 7
  %5839 = vset.pattern.permute.xlu0 %v5837
  %5840 = vperm.xlu0 %5839, %v5835
  %v5841 = vpop.permute.xlu0 %5840
  %v5842 = vperm.slane %v5508, 3
  %v5843 = vlaneseq
  %v5844 = vshrl.u32 %v5843, 7
  %5846 = vset.pattern.permute.xlu0 %v5844
  %5847 = vperm.xlu0 %5846, %v5842
  %v5848 = vpop.permute.xlu0 %5847
  %v5849 = vperm.slane %v5509, 0
  %v5850 = vlaneseq
  %v5851 = vshrl.u32 %v5850, 7
  %5853 = vset.pattern.permute.xlu0 %v5851
  %5854 = vperm.xlu0 %5853, %v5849
  %v5855 = vpop.permute.xlu0 %5854
  %v5856 = vperm.slane %v5509, 1
  %v5857 = vlaneseq
  %v5858 = vshrl.u32 %v5857, 7
  %5860 = vset.pattern.permute.xlu0 %v5858
  %5861 = vperm.xlu0 %5860, %v5856
  %v5862 = vpop.permute.xlu0 %5861
  %v5863 = vperm.slane %v5509, 2
  %v5864 = vlaneseq
  %v5865 = vshrl.u32 %v5864, 7
  %5867 = vset.pattern.permute.xlu0 %v5865
  %5868 = vperm.xlu0 %5867, %v5863
  %v5869 = vpop.permute.xlu0 %5868
  %v5870 = vperm.slane %v5509, 3
  %v5871 = vlaneseq
  %v5872 = vshrl.u32 %v5871, 7
  %5874 = vset.pattern.permute.xlu0 %v5872
  %5875 = vperm.xlu0 %5874, %v5870
  %v5876 = vpop.permute.xlu0 %5875
  %v5877 = vperm.slane %v5510, 0
  %v5878 = vlaneseq
  %v5879 = vshrl.u32 %v5878, 7
  %5881 = vset.pattern.permute.xlu0 %v5879
  %5882 = vperm.xlu0 %5881, %v5877
  %v5883 = vpop.permute.xlu0 %5882
  %v5884 = vperm.slane %v5510, 1
  %v5885 = vlaneseq
  %v5886 = vshrl.u32 %v5885, 7
  %5888 = vset.pattern.permute.xlu0 %v5886
  %5889 = vperm.xlu0 %5888, %v5884
  %v5890 = vpop.permute.xlu0 %5889
  %v5891 = vperm.slane %v5510, 2
  %v5892 = vlaneseq
  %v5893 = vshrl.u32 %v5892, 7
  %5895 = vset.pattern.permute.xlu0 %v5893
  %5896 = vperm.xlu0 %5895, %v5891
  %v5897 = vpop.permute.xlu0 %5896
  %v5898 = vperm.slane %v5510, 3
  %v5899 = vlaneseq
  %v5900 = vshrl.u32 %v5899, 7
  %5902 = vset.pattern.permute.xlu0 %v5900
  %5903 = vperm.xlu0 %5902, %v5898
  %v5904 = vpop.permute.xlu0 %5903
  %v5905 = vperm.slane %v5511, 0
  %v5906 = vlaneseq
  %v5907 = vshrl.u32 %v5906, 7
  %5909 = vset.pattern.permute.xlu0 %v5907
  %5910 = vperm.xlu0 %5909, %v5905
  %v5911 = vpop.permute.xlu0 %5910
  %v5912 = vperm.slane %v5511, 1
  %v5913 = vlaneseq
  %v5914 = vshrl.u32 %v5913, 7
  %5916 = vset.pattern.permute.xlu0 %v5914
  %5917 = vperm.xlu0 %5916, %v5912
  %v5918 = vpop.permute.xlu0 %5917
  %v5919 = vperm.slane %v5511, 2
  %v5920 = vlaneseq
  %v5921 = vshrl.u32 %v5920, 7
  %5923 = vset.pattern.permute.xlu0 %v5921
  %5924 = vperm.xlu0 %5923, %v5919
  %v5925 = vpop.permute.xlu0 %5924
  %v5926 = vperm.slane %v5511, 3
  %v5927 = vlaneseq
  %v5928 = vshrl.u32 %v5927, 7
  %5930 = vset.pattern.permute.xlu0 %v5928
  %5931 = vperm.xlu0 %5930, %v5926
  %v5932 = vpop.permute.xlu0 %5931
  %v5933 = vperm.slane %v5512, 0
  %v5934 = vlaneseq
  %v5935 = vshrl.u32 %v5934, 7
  %5937 = vset.pattern.permute.xlu0 %v5935
  %5938 = vperm.xlu0 %5937, %v5933
  %v5939 = vpop.permute.xlu0 %5938
  %v5940 = vperm.slane %v5512, 1
  %v5941 = vlaneseq
  %v5942 = vshrl.u32 %v5941, 7
  %5944 = vset.pattern.permute.xlu0 %v5942
  %5945 = vperm.xlu0 %5944, %v5940
  %v5946 = vpop.permute.xlu0 %5945
  %v5947 = vperm.slane %v5512, 2
  %v5948 = vlaneseq
  %v5949 = vshrl.u32 %v5948, 7
  %5951 = vset.pattern.permute.xlu0 %v5949
  %5952 = vperm.xlu0 %5951, %v5947
  %v5953 = vpop.permute.xlu0 %5952
  %v5954 = vperm.slane %v5512, 3
  %v5955 = vlaneseq
  %v5956 = vshrl.u32 %v5955, 7
  %5958 = vset.pattern.permute.xlu0 %v5956
  %5959 = vperm.xlu0 %5958, %v5954
  %v5960 = vpop.permute.xlu0 %5959
  %v5961 = vmul.f32 %v5362, %v5519
  %v5962 = vmul.f32 %v5426, %v5526
  %v5963 = vmul.f32 %v5363, %v5533
  %v5964 = vmul.f32 %v5427, %v5540
  %v5965 = vmul.f32 %v5364, %v5547
  %v5966 = vmul.f32 %v5428, %v5554
  %v5967 = vmul.f32 %v5365, %v5561
  %v5968 = vmul.f32 %v5429, %v5568
  %v5969 = vmul.f32 %v5366, %v5575
  %v5970 = vmul.f32 %v5430, %v5582
  %v5971 = vmul.f32 %v5367, %v5589
  %v5972 = vmul.f32 %v5431, %v5596
  %v5973 = vmul.f32 %v5368, %v5603
  %v5974 = vmul.f32 %v5432, %v5610
  %v5975 = vmul.f32 %v5369, %v5617
  %v5976 = vmul.f32 %v5433, %v5624
  %v5977 = vmul.f32 %v5370, %v5631
  %v5978 = vmul.f32 %v5434, %v5638
  %v5979 = vmul.f32 %v5371, %v5645
  %v5980 = vmul.f32 %v5435, %v5652
  %v5981 = vmul.f32 %v5372, %v5659
  %v5982 = vmul.f32 %v5436, %v5666
  %v5983 = vmul.f32 %v5373, %v5673
  %v5984 = vmul.f32 %v5437, %v5680
  %v5985 = vmul.f32 %v5374, %v5687
  %v5986 = vmul.f32 %v5438, %v5694
  %v5987 = vmul.f32 %v5375, %v5701
  %v5988 = vmul.f32 %v5439, %v5708
  %v5989 = vmul.f32 %v5376, %v5715
  %v5990 = vmul.f32 %v5440, %v5722
  %v5991 = vmul.f32 %v5377, %v5729
  %v5992 = vmul.f32 %v5441, %v5736
  %v5993 = vmul.f32 %v5378, %v5743
  %v5994 = vmul.f32 %v5442, %v5750
  %v5995 = vmul.f32 %v5379, %v5757
  %v5996 = vmul.f32 %v5443, %v5764
  %v5997 = vmul.f32 %v5380, %v5771
  %v5998 = vmul.f32 %v5444, %v5778
  %v5999 = vmul.f32 %v5381, %v5785
  %v6000 = vmul.f32 %v5445, %v5792
  %v6001 = vmul.f32 %v5382, %v5799
  %v6002 = vmul.f32 %v5446, %v5806
  %v6003 = vmul.f32 %v5383, %v5813
  %v6004 = vmul.f32 %v5447, %v5820
  %v6005 = vmul.f32 %v5384, %v5827
  %v6006 = vmul.f32 %v5448, %v5834
  %v6007 = vmul.f32 %v5385, %v5841
  %v6008 = vmul.f32 %v5449, %v5848
  %v6009 = vmul.f32 %v5386, %v5855
  %v6010 = vmul.f32 %v5450, %v5862
  %v6011 = vmul.f32 %v5387, %v5869
  %v6012 = vmul.f32 %v5451, %v5876
  %v6013 = vmul.f32 %v5388, %v5883
  %v6014 = vmul.f32 %v5452, %v5890
  %v6015 = vmul.f32 %v5389, %v5897
  %v6016 = vmul.f32 %v5453, %v5904
  %v6017 = vmul.f32 %v5390, %v5911
  %v6018 = vmul.f32 %v5454, %v5918
  %v6019 = vmul.f32 %v5391, %v5925
  %v6020 = vmul.f32 %v5455, %v5932
  %v6021 = vmul.f32 %v5392, %v5939
  %v6022 = vmul.f32 %v5456, %v5946
  %v6023 = vmul.f32 %v5393, %v5953
  %v6024 = vmul.f32 %v5457, %v5960
  %v6033 = vrot.slane %v529, 4
  %v6034 = vrot.slane %v530, 4
  %v6035 = vrot.slane %v531, 4
  %v6036 = vrot.slane %v532, 4
  %v6037 = vrot.slane %v533, 4
  %v6038 = vrot.slane %v534, 4
  %v6039 = vrot.slane %v535, 4
  %v6040 = vrot.slane %v536, 4
  %v6049 = vmul.f32 %v5961, %v529
  %v6050 = vmul.f32 %v5962, %v529
  %v6051 = vmul.f32 %v5963, %v529
  %v6052 = vmul.f32 %v5964, %v529
  %v6053 = vmul.f32 %v5965, %v6033
  %v6054 = vmul.f32 %v5966, %v6033
  %v6055 = vmul.f32 %v5967, %v6033
  %v6056 = vmul.f32 %v5968, %v6033
  %v6057 = vmul.f32 %v5969, %v530
  %v6058 = vmul.f32 %v5970, %v530
  %v6059 = vmul.f32 %v5971, %v530
  %v6060 = vmul.f32 %v5972, %v530
  %v6061 = vmul.f32 %v5973, %v6034
  %v6062 = vmul.f32 %v5974, %v6034
  %v6063 = vmul.f32 %v5975, %v6034
  %v6064 = vmul.f32 %v5976, %v6034
  %v6065 = vmul.f32 %v5977, %v531
  %v6066 = vmul.f32 %v5978, %v531
  %v6067 = vmul.f32 %v5979, %v531
  %v6068 = vmul.f32 %v5980, %v531
  %v6069 = vmul.f32 %v5981, %v6035
  %v6070 = vmul.f32 %v5982, %v6035
  %v6071 = vmul.f32 %v5983, %v6035
  %v6072 = vmul.f32 %v5984, %v6035
  %v6073 = vmul.f32 %v5985, %v532
  %v6074 = vmul.f32 %v5986, %v532
  %v6075 = vmul.f32 %v5987, %v532
  %v6076 = vmul.f32 %v5988, %v532
  %v6077 = vmul.f32 %v5989, %v6036
  %v6078 = vmul.f32 %v5990, %v6036
  %v6079 = vmul.f32 %v5991, %v6036
  %v6080 = vmul.f32 %v5992, %v6036
  %v6081 = vmul.f32 %v5993, %v533
  %v6082 = vmul.f32 %v5994, %v533
  %v6083 = vmul.f32 %v5995, %v533
  %v6084 = vmul.f32 %v5996, %v533
  %v6085 = vmul.f32 %v5997, %v6037
  %v6086 = vmul.f32 %v5998, %v6037
  %v6087 = vmul.f32 %v5999, %v6037
  %v6088 = vmul.f32 %v6000, %v6037
  %v6089 = vmul.f32 %v6001, %v534
  %v6090 = vmul.f32 %v6002, %v534
  %v6091 = vmul.f32 %v6003, %v534
  %v6092 = vmul.f32 %v6004, %v534
  %v6093 = vmul.f32 %v6005, %v6038
  %v6094 = vmul.f32 %v6006, %v6038
  %v6095 = vmul.f32 %v6007, %v6038
  %v6096 = vmul.f32 %v6008, %v6038
  %v6097 = vmul.f32 %v6009, %v535
  %v6098 = vmul.f32 %v6010, %v535
  %v6099 = vmul.f32 %v6011, %v535
  %v6100 = vmul.f32 %v6012, %v535
  %v6101 = vmul.f32 %v6013, %v6039
  %v6102 = vmul.f32 %v6014, %v6039
  %v6103 = vmul.f32 %v6015, %v6039
  %v6104 = vmul.f32 %v6016, %v6039
  %v6105 = vmul.f32 %v6017, %v536
  %v6106 = vmul.f32 %v6018, %v536
  %v6107 = vmul.f32 %v6019, %v536
  %v6108 = vmul.f32 %v6020, %v536
  %v6109 = vmul.f32 %v6021, %v6040
  %v6110 = vmul.f32 %v6022, %v6040
  %v6111 = vmul.f32 %v6023, %v6040
  %v6112 = vmul.f32 %v6024, %v6040
  %vm6113 = vcmask 257024
  %v6114 = vsel %vm6113, %v6049, 0.0
  %v6115 = vrot.slane %v6114, 4
  %v6116 = vadd.f32 %v6114, %v6115
  %v6117 = vrot.slane %v6116, 2
  %v6118 = vadd.f32 %v6116, %v6117
  %v6119 = vrot.slane %v6118, 1
  %v6120 = vadd.f32 %v6118, %v6119
  %v6121 = vsel %vm6113, %v6050, 0.0
  %v6122 = vrot.slane %v6121, 4
  %v6123 = vadd.f32 %v6121, %v6122
  %v6124 = vrot.slane %v6123, 2
  %v6125 = vadd.f32 %v6123, %v6124
  %v6126 = vrot.slane %v6125, 1
  %v6127 = vadd.f32 %v6125, %v6126
  %v6128 = vsel %vm6113, %v6051, 0.0
  %v6129 = vrot.slane %v6128, 4
  %v6130 = vadd.f32 %v6128, %v6129
  %v6131 = vrot.slane %v6130, 2
  %v6132 = vadd.f32 %v6130, %v6131
  %v6133 = vrot.slane %v6132, 1
  %v6134 = vadd.f32 %v6132, %v6133
  %v6135 = vsel %vm6113, %v6052, 0.0
  %v6136 = vrot.slane %v6135, 4
  %v6137 = vadd.f32 %v6135, %v6136
  %v6138 = vrot.slane %v6137, 2
  %v6139 = vadd.f32 %v6137, %v6138
  %v6140 = vrot.slane %v6139, 1
  %v6141 = vadd.f32 %v6139, %v6140
  %v6142 = vsel %vm6113, %v6053, 0.0
  %v6143 = vrot.slane %v6142, 4
  %v6144 = vadd.f32 %v6142, %v6143
  %v6145 = vrot.slane %v6144, 2
  %v6146 = vadd.f32 %v6144, %v6145
  %v6147 = vrot.slane %v6146, 1
  %v6148 = vadd.f32 %v6146, %v6147
  %v6149 = vsel %vm6113, %v6054, 0.0
  %v6150 = vrot.slane %v6149, 4
  %v6151 = vadd.f32 %v6149, %v6150
  %v6152 = vrot.slane %v6151, 2
  %v6153 = vadd.f32 %v6151, %v6152
  %v6154 = vrot.slane %v6153, 1
  %v6155 = vadd.f32 %v6153, %v6154
  %v6156 = vsel %vm6113, %v6055, 0.0
  %v6157 = vrot.slane %v6156, 4
  %v6158 = vadd.f32 %v6156, %v6157
  %v6159 = vrot.slane %v6158, 2
  %v6160 = vadd.f32 %v6158, %v6159
  %v6161 = vrot.slane %v6160, 1
  %v6162 = vadd.f32 %v6160, %v6161
  %v6163 = vsel %vm6113, %v6056, 0.0
  %v6164 = vrot.slane %v6163, 4
  %v6165 = vadd.f32 %v6163, %v6164
  %v6166 = vrot.slane %v6165, 2
  %v6167 = vadd.f32 %v6165, %v6166
  %v6168 = vrot.slane %v6167, 1
  %v6169 = vadd.f32 %v6167, %v6168
  %v6170 = vsel %vm6113, %v6057, 0.0
  %v6171 = vrot.slane %v6170, 4
  %v6172 = vadd.f32 %v6170, %v6171
  %v6173 = vrot.slane %v6172, 2
  %v6174 = vadd.f32 %v6172, %v6173
  %v6175 = vrot.slane %v6174, 1
  %v6176 = vadd.f32 %v6174, %v6175
  %v6177 = vsel %vm6113, %v6058, 0.0
  %v6178 = vrot.slane %v6177, 4
  %v6179 = vadd.f32 %v6177, %v6178
  %v6180 = vrot.slane %v6179, 2
  %v6181 = vadd.f32 %v6179, %v6180
  %v6182 = vrot.slane %v6181, 1
  %v6183 = vadd.f32 %v6181, %v6182
  %v6184 = vsel %vm6113, %v6059, 0.0
  %v6185 = vrot.slane %v6184, 4
  %v6186 = vadd.f32 %v6184, %v6185
  %v6187 = vrot.slane %v6186, 2
  %v6188 = vadd.f32 %v6186, %v6187
  %v6189 = vrot.slane %v6188, 1
  %v6190 = vadd.f32 %v6188, %v6189
  %v6191 = vsel %vm6113, %v6060, 0.0
  %v6192 = vrot.slane %v6191, 4
  %v6193 = vadd.f32 %v6191, %v6192
  %v6194 = vrot.slane %v6193, 2
  %v6195 = vadd.f32 %v6193, %v6194
  %v6196 = vrot.slane %v6195, 1
  %v6197 = vadd.f32 %v6195, %v6196
  %v6198 = vsel %vm6113, %v6061, 0.0
  %v6199 = vrot.slane %v6198, 4
  %v6200 = vadd.f32 %v6198, %v6199
  %v6201 = vrot.slane %v6200, 2
  %v6202 = vadd.f32 %v6200, %v6201
  %v6203 = vrot.slane %v6202, 1
  %v6204 = vadd.f32 %v6202, %v6203
  %v6205 = vsel %vm6113, %v6062, 0.0
  %v6206 = vrot.slane %v6205, 4
  %v6207 = vadd.f32 %v6205, %v6206
  %v6208 = vrot.slane %v6207, 2
  %v6209 = vadd.f32 %v6207, %v6208
  %v6210 = vrot.slane %v6209, 1
  %v6211 = vadd.f32 %v6209, %v6210
  %v6212 = vsel %vm6113, %v6063, 0.0
  %v6213 = vrot.slane %v6212, 4
  %v6214 = vadd.f32 %v6212, %v6213
  %v6215 = vrot.slane %v6214, 2
  %v6216 = vadd.f32 %v6214, %v6215
  %v6217 = vrot.slane %v6216, 1
  %v6218 = vadd.f32 %v6216, %v6217
  %v6219 = vsel %vm6113, %v6064, 0.0
  %v6220 = vrot.slane %v6219, 4
  %v6221 = vadd.f32 %v6219, %v6220
  %v6222 = vrot.slane %v6221, 2
  %v6223 = vadd.f32 %v6221, %v6222
  %v6224 = vrot.slane %v6223, 1
  %v6225 = vadd.f32 %v6223, %v6224
  %v6226 = vsel %vm6113, %v6065, 0.0
  %v6227 = vrot.slane %v6226, 4
  %v6228 = vadd.f32 %v6226, %v6227
  %v6229 = vrot.slane %v6228, 2
  %v6230 = vadd.f32 %v6228, %v6229
  %v6231 = vrot.slane %v6230, 1
  %v6232 = vadd.f32 %v6230, %v6231
  %v6233 = vsel %vm6113, %v6066, 0.0
  %v6234 = vrot.slane %v6233, 4
  %v6235 = vadd.f32 %v6233, %v6234
  %v6236 = vrot.slane %v6235, 2
  %v6237 = vadd.f32 %v6235, %v6236
  %v6238 = vrot.slane %v6237, 1
  %v6239 = vadd.f32 %v6237, %v6238
  %v6240 = vsel %vm6113, %v6067, 0.0
  %v6241 = vrot.slane %v6240, 4
  %v6242 = vadd.f32 %v6240, %v6241
  %v6243 = vrot.slane %v6242, 2
  %v6244 = vadd.f32 %v6242, %v6243
  %v6245 = vrot.slane %v6244, 1
  %v6246 = vadd.f32 %v6244, %v6245
  %v6247 = vsel %vm6113, %v6068, 0.0
  %v6248 = vrot.slane %v6247, 4
  %v6249 = vadd.f32 %v6247, %v6248
  %v6250 = vrot.slane %v6249, 2
  %v6251 = vadd.f32 %v6249, %v6250
  %v6252 = vrot.slane %v6251, 1
  %v6253 = vadd.f32 %v6251, %v6252
  %v6254 = vsel %vm6113, %v6069, 0.0
  %v6255 = vrot.slane %v6254, 4
  %v6256 = vadd.f32 %v6254, %v6255
  %v6257 = vrot.slane %v6256, 2
  %v6258 = vadd.f32 %v6256, %v6257
  %v6259 = vrot.slane %v6258, 1
  %v6260 = vadd.f32 %v6258, %v6259
  %v6261 = vsel %vm6113, %v6070, 0.0
  %v6262 = vrot.slane %v6261, 4
  %v6263 = vadd.f32 %v6261, %v6262
  %v6264 = vrot.slane %v6263, 2
  %v6265 = vadd.f32 %v6263, %v6264
  %v6266 = vrot.slane %v6265, 1
  %v6267 = vadd.f32 %v6265, %v6266
  %v6268 = vsel %vm6113, %v6071, 0.0
  %v6269 = vrot.slane %v6268, 4
  %v6270 = vadd.f32 %v6268, %v6269
  %v6271 = vrot.slane %v6270, 2
  %v6272 = vadd.f32 %v6270, %v6271
  %v6273 = vrot.slane %v6272, 1
  %v6274 = vadd.f32 %v6272, %v6273
  %v6275 = vsel %vm6113, %v6072, 0.0
  %v6276 = vrot.slane %v6275, 4
  %v6277 = vadd.f32 %v6275, %v6276
  %v6278 = vrot.slane %v6277, 2
  %v6279 = vadd.f32 %v6277, %v6278
  %v6280 = vrot.slane %v6279, 1
  %v6281 = vadd.f32 %v6279, %v6280
  %v6282 = vsel %vm6113, %v6073, 0.0
  %v6283 = vrot.slane %v6282, 4
  %v6284 = vadd.f32 %v6282, %v6283
  %v6285 = vrot.slane %v6284, 2
  %v6286 = vadd.f32 %v6284, %v6285
  %v6287 = vrot.slane %v6286, 1
  %v6288 = vadd.f32 %v6286, %v6287
  %v6289 = vsel %vm6113, %v6074, 0.0
  %v6290 = vrot.slane %v6289, 4
  %v6291 = vadd.f32 %v6289, %v6290
  %v6292 = vrot.slane %v6291, 2
  %v6293 = vadd.f32 %v6291, %v6292
  %v6294 = vrot.slane %v6293, 1
  %v6295 = vadd.f32 %v6293, %v6294
  %v6296 = vsel %vm6113, %v6075, 0.0
  %v6297 = vrot.slane %v6296, 4
  %v6298 = vadd.f32 %v6296, %v6297
  %v6299 = vrot.slane %v6298, 2
  %v6300 = vadd.f32 %v6298, %v6299
  %v6301 = vrot.slane %v6300, 1
  %v6302 = vadd.f32 %v6300, %v6301
  %v6303 = vsel %vm6113, %v6076, 0.0
  %v6304 = vrot.slane %v6303, 4
  %v6305 = vadd.f32 %v6303, %v6304
  %v6306 = vrot.slane %v6305, 2
  %v6307 = vadd.f32 %v6305, %v6306
  %v6308 = vrot.slane %v6307, 1
  %v6309 = vadd.f32 %v6307, %v6308
  %v6310 = vsel %vm6113, %v6077, 0.0
  %v6311 = vrot.slane %v6310, 4
  %v6312 = vadd.f32 %v6310, %v6311
  %v6313 = vrot.slane %v6312, 2
  %v6314 = vadd.f32 %v6312, %v6313
  %v6315 = vrot.slane %v6314, 1
  %v6316 = vadd.f32 %v6314, %v6315
  %v6317 = vsel %vm6113, %v6078, 0.0
  %v6318 = vrot.slane %v6317, 4
  %v6319 = vadd.f32 %v6317, %v6318
  %v6320 = vrot.slane %v6319, 2
  %v6321 = vadd.f32 %v6319, %v6320
  %v6322 = vrot.slane %v6321, 1
  %v6323 = vadd.f32 %v6321, %v6322
  %v6324 = vsel %vm6113, %v6079, 0.0
  %v6325 = vrot.slane %v6324, 4
  %v6326 = vadd.f32 %v6324, %v6325
  %v6327 = vrot.slane %v6326, 2
  %v6328 = vadd.f32 %v6326, %v6327
  %v6329 = vrot.slane %v6328, 1
  %v6330 = vadd.f32 %v6328, %v6329
  %v6331 = vsel %vm6113, %v6080, 0.0
  %v6332 = vrot.slane %v6331, 4
  %v6333 = vadd.f32 %v6331, %v6332
  %v6334 = vrot.slane %v6333, 2
  %v6335 = vadd.f32 %v6333, %v6334
  %v6336 = vrot.slane %v6335, 1
  %v6337 = vadd.f32 %v6335, %v6336
  %v6338 = vsel %vm6113, %v6081, 0.0
  %v6339 = vrot.slane %v6338, 4
  %v6340 = vadd.f32 %v6338, %v6339
  %v6341 = vrot.slane %v6340, 2
  %v6342 = vadd.f32 %v6340, %v6341
  %v6343 = vrot.slane %v6342, 1
  %v6344 = vadd.f32 %v6342, %v6343
  %v6345 = vsel %vm6113, %v6082, 0.0
  %v6346 = vrot.slane %v6345, 4
  %v6347 = vadd.f32 %v6345, %v6346
  %v6348 = vrot.slane %v6347, 2
  %v6349 = vadd.f32 %v6347, %v6348
  %v6350 = vrot.slane %v6349, 1
  %v6351 = vadd.f32 %v6349, %v6350
  %v6352 = vsel %vm6113, %v6083, 0.0
  %v6353 = vrot.slane %v6352, 4
  %v6354 = vadd.f32 %v6352, %v6353
  %v6355 = vrot.slane %v6354, 2
  %v6356 = vadd.f32 %v6354, %v6355
  %v6357 = vrot.slane %v6356, 1
  %v6358 = vadd.f32 %v6356, %v6357
  %v6359 = vsel %vm6113, %v6084, 0.0
  %v6360 = vrot.slane %v6359, 4
  %v6361 = vadd.f32 %v6359, %v6360
  %v6362 = vrot.slane %v6361, 2
  %v6363 = vadd.f32 %v6361, %v6362
  %v6364 = vrot.slane %v6363, 1
  %v6365 = vadd.f32 %v6363, %v6364
  %v6366 = vsel %vm6113, %v6085, 0.0
  %v6367 = vrot.slane %v6366, 4
  %v6368 = vadd.f32 %v6366, %v6367
  %v6369 = vrot.slane %v6368, 2
  %v6370 = vadd.f32 %v6368, %v6369
  %v6371 = vrot.slane %v6370, 1
  %v6372 = vadd.f32 %v6370, %v6371
  %v6373 = vsel %vm6113, %v6086, 0.0
  %v6374 = vrot.slane %v6373, 4
  %v6375 = vadd.f32 %v6373, %v6374
  %v6376 = vrot.slane %v6375, 2
  %v6377 = vadd.f32 %v6375, %v6376
  %v6378 = vrot.slane %v6377, 1
  %v6379 = vadd.f32 %v6377, %v6378
  %v6380 = vsel %vm6113, %v6087, 0.0
  %v6381 = vrot.slane %v6380, 4
  %v6382 = vadd.f32 %v6380, %v6381
  %v6383 = vrot.slane %v6382, 2
  %v6384 = vadd.f32 %v6382, %v6383
  %v6385 = vrot.slane %v6384, 1
  %v6386 = vadd.f32 %v6384, %v6385
  %v6387 = vsel %vm6113, %v6088, 0.0
  %v6388 = vrot.slane %v6387, 4
  %v6389 = vadd.f32 %v6387, %v6388
  %v6390 = vrot.slane %v6389, 2
  %v6391 = vadd.f32 %v6389, %v6390
  %v6392 = vrot.slane %v6391, 1
  %v6393 = vadd.f32 %v6391, %v6392
  %v6394 = vsel %vm6113, %v6089, 0.0
  %v6395 = vrot.slane %v6394, 4
  %v6396 = vadd.f32 %v6394, %v6395
  %v6397 = vrot.slane %v6396, 2
  %v6398 = vadd.f32 %v6396, %v6397
  %v6399 = vrot.slane %v6398, 1
  %v6400 = vadd.f32 %v6398, %v6399
  %v6401 = vsel %vm6113, %v6090, 0.0
  %v6402 = vrot.slane %v6401, 4
  %v6403 = vadd.f32 %v6401, %v6402
  %v6404 = vrot.slane %v6403, 2
  %v6405 = vadd.f32 %v6403, %v6404
  %v6406 = vrot.slane %v6405, 1
  %v6407 = vadd.f32 %v6405, %v6406
  %v6408 = vsel %vm6113, %v6091, 0.0
  %v6409 = vrot.slane %v6408, 4
  %v6410 = vadd.f32 %v6408, %v6409
  %v6411 = vrot.slane %v6410, 2
  %v6412 = vadd.f32 %v6410, %v6411
  %v6413 = vrot.slane %v6412, 1
  %v6414 = vadd.f32 %v6412, %v6413
  %v6415 = vsel %vm6113, %v6092, 0.0
  %v6416 = vrot.slane %v6415, 4
  %v6417 = vadd.f32 %v6415, %v6416
  %v6418 = vrot.slane %v6417, 2
  %v6419 = vadd.f32 %v6417, %v6418
  %v6420 = vrot.slane %v6419, 1
  %v6421 = vadd.f32 %v6419, %v6420
  %v6422 = vsel %vm6113, %v6093, 0.0
  %v6423 = vrot.slane %v6422, 4
  %v6424 = vadd.f32 %v6422, %v6423
  %v6425 = vrot.slane %v6424, 2
  %v6426 = vadd.f32 %v6424, %v6425
  %v6427 = vrot.slane %v6426, 1
  %v6428 = vadd.f32 %v6426, %v6427
  %v6429 = vsel %vm6113, %v6094, 0.0
  %v6430 = vrot.slane %v6429, 4
  %v6431 = vadd.f32 %v6429, %v6430
  %v6432 = vrot.slane %v6431, 2
  %v6433 = vadd.f32 %v6431, %v6432
  %v6434 = vrot.slane %v6433, 1
  %v6435 = vadd.f32 %v6433, %v6434
  %v6436 = vsel %vm6113, %v6095, 0.0
  %v6437 = vrot.slane %v6436, 4
  %v6438 = vadd.f32 %v6436, %v6437
  %v6439 = vrot.slane %v6438, 2
  %v6440 = vadd.f32 %v6438, %v6439
  %v6441 = vrot.slane %v6440, 1
  %v6442 = vadd.f32 %v6440, %v6441
  %v6443 = vsel %vm6113, %v6096, 0.0
  %v6444 = vrot.slane %v6443, 4
  %v6445 = vadd.f32 %v6443, %v6444
  %v6446 = vrot.slane %v6445, 2
  %v6447 = vadd.f32 %v6445, %v6446
  %v6448 = vrot.slane %v6447, 1
  %v6449 = vadd.f32 %v6447, %v6448
  %v6450 = vsel %vm6113, %v6097, 0.0
  %v6451 = vrot.slane %v6450, 4
  %v6452 = vadd.f32 %v6450, %v6451
  %v6453 = vrot.slane %v6452, 2
  %v6454 = vadd.f32 %v6452, %v6453
  %v6455 = vrot.slane %v6454, 1
  %v6456 = vadd.f32 %v6454, %v6455
  %v6457 = vsel %vm6113, %v6098, 0.0
  %v6458 = vrot.slane %v6457, 4
  %v6459 = vadd.f32 %v6457, %v6458
  %v6460 = vrot.slane %v6459, 2
  %v6461 = vadd.f32 %v6459, %v6460
  %v6462 = vrot.slane %v6461, 1
  %v6463 = vadd.f32 %v6461, %v6462
  %v6464 = vsel %vm6113, %v6099, 0.0
  %v6465 = vrot.slane %v6464, 4
  %v6466 = vadd.f32 %v6464, %v6465
  %v6467 = vrot.slane %v6466, 2
  %v6468 = vadd.f32 %v6466, %v6467
  %v6469 = vrot.slane %v6468, 1
  %v6470 = vadd.f32 %v6468, %v6469
  %v6471 = vsel %vm6113, %v6100, 0.0
  %v6472 = vrot.slane %v6471, 4
  %v6473 = vadd.f32 %v6471, %v6472
  %v6474 = vrot.slane %v6473, 2
  %v6475 = vadd.f32 %v6473, %v6474
  %v6476 = vrot.slane %v6475, 1
  %v6477 = vadd.f32 %v6475, %v6476
  %v6478 = vsel %vm6113, %v6101, 0.0
  %v6479 = vrot.slane %v6478, 4
  %v6480 = vadd.f32 %v6478, %v6479
  %v6481 = vrot.slane %v6480, 2
  %v6482 = vadd.f32 %v6480, %v6481
  %v6483 = vrot.slane %v6482, 1
  %v6484 = vadd.f32 %v6482, %v6483
  %v6485 = vsel %vm6113, %v6102, 0.0
  %v6486 = vrot.slane %v6485, 4
  %v6487 = vadd.f32 %v6485, %v6486
  %v6488 = vrot.slane %v6487, 2
  %v6489 = vadd.f32 %v6487, %v6488
  %v6490 = vrot.slane %v6489, 1
  %v6491 = vadd.f32 %v6489, %v6490
  %v6492 = vsel %vm6113, %v6103, 0.0
  %v6493 = vrot.slane %v6492, 4
  %v6494 = vadd.f32 %v6492, %v6493
  %v6495 = vrot.slane %v6494, 2
  %v6496 = vadd.f32 %v6494, %v6495
  %v6497 = vrot.slane %v6496, 1
  %v6498 = vadd.f32 %v6496, %v6497
  %v6499 = vsel %vm6113, %v6104, 0.0
  %v6500 = vrot.slane %v6499, 4
  %v6501 = vadd.f32 %v6499, %v6500
  %v6502 = vrot.slane %v6501, 2
  %v6503 = vadd.f32 %v6501, %v6502
  %v6504 = vrot.slane %v6503, 1
  %v6505 = vadd.f32 %v6503, %v6504
  %v6506 = vsel %vm6113, %v6105, 0.0
  %v6507 = vrot.slane %v6506, 4
  %v6508 = vadd.f32 %v6506, %v6507
  %v6509 = vrot.slane %v6508, 2
  %v6510 = vadd.f32 %v6508, %v6509
  %v6511 = vrot.slane %v6510, 1
  %v6512 = vadd.f32 %v6510, %v6511
  %v6513 = vsel %vm6113, %v6106, 0.0
  %v6514 = vrot.slane %v6513, 4
  %v6515 = vadd.f32 %v6513, %v6514
  %v6516 = vrot.slane %v6515, 2
  %v6517 = vadd.f32 %v6515, %v6516
  %v6518 = vrot.slane %v6517, 1
  %v6519 = vadd.f32 %v6517, %v6518
  %v6520 = vsel %vm6113, %v6107, 0.0
  %v6521 = vrot.slane %v6520, 4
  %v6522 = vadd.f32 %v6520, %v6521
  %v6523 = vrot.slane %v6522, 2
  %v6524 = vadd.f32 %v6522, %v6523
  %v6525 = vrot.slane %v6524, 1
  %v6526 = vadd.f32 %v6524, %v6525
  %v6527 = vsel %vm6113, %v6108, 0.0
  %v6528 = vrot.slane %v6527, 4
  %v6529 = vadd.f32 %v6527, %v6528
  %v6530 = vrot.slane %v6529, 2
  %v6531 = vadd.f32 %v6529, %v6530
  %v6532 = vrot.slane %v6531, 1
  %v6533 = vadd.f32 %v6531, %v6532
  %v6534 = vsel %vm6113, %v6109, 0.0
  %v6535 = vrot.slane %v6534, 4
  %v6536 = vadd.f32 %v6534, %v6535
  %v6537 = vrot.slane %v6536, 2
  %v6538 = vadd.f32 %v6536, %v6537
  %v6539 = vrot.slane %v6538, 1
  %v6540 = vadd.f32 %v6538, %v6539
  %v6541 = vsel %vm6113, %v6110, 0.0
  %v6542 = vrot.slane %v6541, 4
  %v6543 = vadd.f32 %v6541, %v6542
  %v6544 = vrot.slane %v6543, 2
  %v6545 = vadd.f32 %v6543, %v6544
  %v6546 = vrot.slane %v6545, 1
  %v6547 = vadd.f32 %v6545, %v6546
  %v6548 = vsel %vm6113, %v6111, 0.0
  %v6549 = vrot.slane %v6548, 4
  %v6550 = vadd.f32 %v6548, %v6549
  %v6551 = vrot.slane %v6550, 2
  %v6552 = vadd.f32 %v6550, %v6551
  %v6553 = vrot.slane %v6552, 1
  %v6554 = vadd.f32 %v6552, %v6553
  %v6555 = vsel %vm6113, %v6112, 0.0
  %v6556 = vrot.slane %v6555, 4
  %v6557 = vadd.f32 %v6555, %v6556
  %v6558 = vrot.slane %v6557, 2
  %v6559 = vadd.f32 %v6557, %v6558
  %v6560 = vrot.slane %v6559, 1
  %v6561 = vadd.f32 %v6559, %v6560
  %v6562 = vld [vmem:[%s11] sm:$0xff]
  %v6563 = vld [vmem:[%s11 + $0x8] sm:$0xff]
  %v6564 = vld [vmem:[%s11 + $0x10] sm:$0xff]
  %v6565 = vld [vmem:[%s11 + $0x18] sm:$0xff]
  %v6566 = vld [vmem:[%s12] sm:$0x1]
  %v6568 = vperm.slane %v6566, 0
  %vm6634 = vcmask 1041409
  %v6635 = vsel %vm6634, %v6127, %v6120
  %vm6636 = vcmask 1042434
  %v6637 = vsel %vm6636, %v6134, %v6635
  %vm6638 = vcmask 1043459
  %v6639 = vsel %vm6638, %v6141, %v6637
  %vm6640 = vcmask 1044484
  %v6641 = vsel %vm6640, %v6148, %v6639
  %vm6642 = vcmask 1045509
  %v6643 = vsel %vm6642, %v6155, %v6641
  %vm6644 = vcmask 1046534
  %v6645 = vsel %vm6644, %v6162, %v6643
  %vm6646 = vcmask 1047559
  %v6647 = vsel %vm6646, %v6169, %v6645
  %v6648 = vsel %vm6634, %v6183, %v6176
  %v6649 = vsel %vm6636, %v6190, %v6648
  %v6650 = vsel %vm6638, %v6197, %v6649
  %v6651 = vsel %vm6640, %v6204, %v6650
  %v6652 = vsel %vm6642, %v6211, %v6651
  %v6653 = vsel %vm6644, %v6218, %v6652
  %v6654 = vsel %vm6646, %v6225, %v6653
  %v6655 = vsel %vm6634, %v6239, %v6232
  %v6656 = vsel %vm6636, %v6246, %v6655
  %v6657 = vsel %vm6638, %v6253, %v6656
  %v6658 = vsel %vm6640, %v6260, %v6657
  %v6659 = vsel %vm6642, %v6267, %v6658
  %v6660 = vsel %vm6644, %v6274, %v6659
  %v6661 = vsel %vm6646, %v6281, %v6660
  %v6662 = vsel %vm6634, %v6295, %v6288
  %v6663 = vsel %vm6636, %v6302, %v6662
  %v6664 = vsel %vm6638, %v6309, %v6663
  %v6665 = vsel %vm6640, %v6316, %v6664
  %v6666 = vsel %vm6642, %v6323, %v6665
  %v6667 = vsel %vm6644, %v6330, %v6666
  %v6668 = vsel %vm6646, %v6337, %v6667
  %v6669 = vsel %vm6634, %v6351, %v6344
  %v6670 = vsel %vm6636, %v6358, %v6669
  %v6671 = vsel %vm6638, %v6365, %v6670
  %v6672 = vsel %vm6640, %v6372, %v6671
  %v6673 = vsel %vm6642, %v6379, %v6672
  %v6674 = vsel %vm6644, %v6386, %v6673
  %v6675 = vsel %vm6646, %v6393, %v6674
  %v6676 = vsel %vm6634, %v6407, %v6400
  %v6677 = vsel %vm6636, %v6414, %v6676
  %v6678 = vsel %vm6638, %v6421, %v6677
  %v6679 = vsel %vm6640, %v6428, %v6678
  %v6680 = vsel %vm6642, %v6435, %v6679
  %v6681 = vsel %vm6644, %v6442, %v6680
  %v6682 = vsel %vm6646, %v6449, %v6681
  %v6683 = vsel %vm6634, %v6463, %v6456
  %v6684 = vsel %vm6636, %v6470, %v6683
  %v6685 = vsel %vm6638, %v6477, %v6684
  %v6686 = vsel %vm6640, %v6484, %v6685
  %v6687 = vsel %vm6642, %v6491, %v6686
  %v6688 = vsel %vm6644, %v6498, %v6687
  %v6689 = vsel %vm6646, %v6505, %v6688
  %v6690 = vsel %vm6634, %v6519, %v6512
  %v6691 = vsel %vm6636, %v6526, %v6690
  %v6692 = vsel %vm6638, %v6533, %v6691
  %v6693 = vsel %vm6640, %v6540, %v6692
  %v6694 = vsel %vm6642, %v6547, %v6693
  %v6695 = vsel %vm6644, %v6554, %v6694
  %v6696 = vsel %vm6646, %v6561, %v6695
  %vm6697 = vcmask 261120
  %v6698 = vsel %vm6697, %v6647, 0
  %v6700 = vsel %vm6697, %v6654, 0
  %v6702 = vsel %vm6697, %v6661, 0
  %v6704 = vsel %vm6697, %v6668, 0
  %v6706 = vsel %vm6697, %v6675, 0
  %v6708 = vsel %vm6697, %v6682, 0
  %v6710 = vsel %vm6697, %v6689, 0
  %v6712 = vsel %vm6697, %v6696, 0
  %6714 = vmatpush.msra.mxu0 0.0
  %6715 = vmatpush.msra.mxu0 0.0
  %6716 = vmatpush.msra.mxu0 0.0
  %6717 = vmatpush.msra.mxu0 0.0
  %6718 = vmatpush.msra.mxu0 0.0
  %6719 = vmatpush.msra.mxu0 0.0
  %6720 = vmatpush.msra.mxu0 0.0
  %6721 = vmatpush.msra.mxu0 0.0
  %6722 = vmatpush.msra.mxu0 0.0
  %6723 = vmatpush.msra.mxu0 0.0
  %6724 = vmatpush.msra.mxu0 0.0
  %6725 = vmatpush.msra.mxu0 0.0
  %6726 = vmatpush.msra.mxu0 %v6565
  %6727 = vmatpush.msra.mxu0 %v6564
  %6728 = vmatpush.msra.mxu0 %v6563
  %6729 = vmatpush.msra.mxu0 %v6562
  %6730 = vmatmul.f32.gmra.mxu0 %v6698
  %v6731 = vpop.f32.mrf.mxu0
  %v6732 = vadd.f32 %v6568, %v6731
  %6733 = vmatmul.f32.gmra.mxu0 %v6700
  %v6734 = vpop.f32.mrf.mxu0
  %v6735 = vadd.f32 %v6568, %v6734
  %6736 = vmatmul.f32.gmra.mxu0 %v6702
  %v6737 = vpop.f32.mrf.mxu0
  %v6738 = vadd.f32 %v6568, %v6737
  %6739 = vmatmul.f32.gmra.mxu0 %v6704
  %v6740 = vpop.f32.mrf.mxu0
  %v6741 = vadd.f32 %v6568, %v6740
  %6742 = vmatmul.f32.gmra.mxu0 %v6706
  %v6743 = vpop.f32.mrf.mxu0
  %v6744 = vadd.f32 %v6568, %v6743
  %6745 = vmatmul.f32.gmra.mxu0 %v6708
  %v6746 = vpop.f32.mrf.mxu0
  %v6747 = vadd.f32 %v6568, %v6746
  %6748 = vmatmul.f32.gmra.mxu0 %v6710
  %v6749 = vpop.f32.mrf.mxu0
  %v6750 = vadd.f32 %v6568, %v6749
  %6751 = vmatmul.f32.gmra.mxu0 %v6712
  %v6752 = vpop.f32.mrf.mxu0
  %v6753 = vadd.f32 %v6568, %v6752
  %6754 = vdwg.mxu0
  %v6755 = vxor.u32 %v6732, 2147483648
  %v6756 = vxor.u32 %v6735, 2147483648
  %v6757 = vxor.u32 %v6738, 2147483648
  %v6758 = vxor.u32 %v6741, 2147483648
  %v6759 = vxor.u32 %v6744, 2147483648
  %v6760 = vxor.u32 %v6747, 2147483648
  %v6761 = vxor.u32 %v6750, 2147483648
  %v6762 = vxor.u32 %v6753, 2147483648
  %v6763 = vmul.f32 %v6755, 1.442695
  %v6764 = vpow.pop %v6763
  %v6765 = vmul.f32 %v6756, 1.442695
  %v6766 = vpow.pop %v6765
  %v6767 = vmul.f32 %v6757, 1.442695
  %v6768 = vpow.pop %v6767
  %v6769 = vmul.f32 %v6758, 1.442695
  %v6770 = vpow.pop %v6769
  %v6771 = vmul.f32 %v6759, 1.442695
  %v6772 = vpow.pop %v6771
  %v6773 = vmul.f32 %v6760, 1.442695
  %v6774 = vpow.pop %v6773
  %v6775 = vmul.f32 %v6761, 1.442695
  %v6776 = vpow.pop %v6775
  %v6777 = vmul.f32 %v6762, 1.442695
  %v6778 = vpow.pop %v6777
  %v6779 = vadd.f32 %v6764, 1.0
  %v6780 = vadd.f32 %v6766, 1.0
  %v6781 = vadd.f32 %v6768, 1.0
  %v6782 = vadd.f32 %v6770, 1.0
  %v6783 = vadd.f32 %v6772, 1.0
  %v6784 = vadd.f32 %v6774, 1.0
  %v6785 = vadd.f32 %v6776, 1.0
  %v6786 = vadd.f32 %v6778, 1.0
  %v6787 = vrcp.pop %v6779
  %v6788 = vmul.f32 %v6779, %v6787
  %v6789 = vsub.f32 1.0, %v6788
  %v6790 = vmul.f32 %v6787, %v6789
  %v6791 = vadd.f32 %v6787, %v6790
  %vm6792 = vweird.f32 %v6779
  %vm6793 = vweird.f32 %v6787
  %vm6794 = vmor %vm6792, %vm6793
  %v6795 = vsel %vm6794, %v6787, %v6791
  %v6796 = vand.u32 2147483647, %v6779
  %vm6797 = vcmp.eq.f32.partialorder %v6796, 8.507059e+37
  %v6798 = vand.u32 %v6779, 2147483648
  %v6799 = vor.u32 1.1754944e-38, %v6798
  %v6800 = vsel %vm6797, %v6799, %v6795
  %v6801 = vmul.f32 1.0, %v6800
  %v6802 = vrcp.pop %v6780
  %v6803 = vmul.f32 %v6780, %v6802
  %v6804 = vsub.f32 1.0, %v6803
  %v6805 = vmul.f32 %v6802, %v6804
  %v6806 = vadd.f32 %v6802, %v6805
  %vm6807 = vweird.f32 %v6780
  %vm6808 = vweird.f32 %v6802
  %vm6809 = vmor %vm6807, %vm6808
  %v6810 = vsel %vm6809, %v6802, %v6806
  %v6811 = vand.u32 2147483647, %v6780
  %vm6812 = vcmp.eq.f32.partialorder %v6811, 8.507059e+37
  %v6813 = vand.u32 %v6780, 2147483648
  %v6814 = vor.u32 1.1754944e-38, %v6813
  %v6815 = vsel %vm6812, %v6814, %v6810
  %v6816 = vmul.f32 1.0, %v6815
  %v6817 = vrcp.pop %v6781
  %v6818 = vmul.f32 %v6781, %v6817
  %v6819 = vsub.f32 1.0, %v6818
  %v6820 = vmul.f32 %v6817, %v6819
  %v6821 = vadd.f32 %v6817, %v6820
  %vm6822 = vweird.f32 %v6781
  %vm6823 = vweird.f32 %v6817
  %vm6824 = vmor %vm6822, %vm6823
  %v6825 = vsel %vm6824, %v6817, %v6821
  %v6826 = vand.u32 2147483647, %v6781
  %vm6827 = vcmp.eq.f32.partialorder %v6826, 8.507059e+37
  %v6828 = vand.u32 %v6781, 2147483648
  %v6829 = vor.u32 1.1754944e-38, %v6828
  %v6830 = vsel %vm6827, %v6829, %v6825
  %v6831 = vmul.f32 1.0, %v6830
  %v6832 = vrcp.pop %v6782
  %v6833 = vmul.f32 %v6782, %v6832
  %v6834 = vsub.f32 1.0, %v6833
  %v6835 = vmul.f32 %v6832, %v6834
  %v6836 = vadd.f32 %v6832, %v6835
  %vm6837 = vweird.f32 %v6782
  %vm6838 = vweird.f32 %v6832
  %vm6839 = vmor %vm6837, %vm6838
  %v6840 = vsel %vm6839, %v6832, %v6836
  %v6841 = vand.u32 2147483647, %v6782
  %vm6842 = vcmp.eq.f32.partialorder %v6841, 8.507059e+37
  %v6843 = vand.u32 %v6782, 2147483648
  %v6844 = vor.u32 1.1754944e-38, %v6843
  %v6845 = vsel %vm6842, %v6844, %v6840
  %v6846 = vmul.f32 1.0, %v6845
  %v6847 = vrcp.pop %v6783
  %v6848 = vmul.f32 %v6783, %v6847
  %v6849 = vsub.f32 1.0, %v6848
  %v6850 = vmul.f32 %v6847, %v6849
  %v6851 = vadd.f32 %v6847, %v6850
  %vm6852 = vweird.f32 %v6783
  %vm6853 = vweird.f32 %v6847
  %vm6854 = vmor %vm6852, %vm6853
  %v6855 = vsel %vm6854, %v6847, %v6851
  %v6856 = vand.u32 2147483647, %v6783
  %vm6857 = vcmp.eq.f32.partialorder %v6856, 8.507059e+37
  %v6858 = vand.u32 %v6783, 2147483648
  %v6859 = vor.u32 1.1754944e-38, %v6858
  %v6860 = vsel %vm6857, %v6859, %v6855
  %v6861 = vmul.f32 1.0, %v6860
  %v6862 = vrcp.pop %v6784
  %v6863 = vmul.f32 %v6784, %v6862
  %v6864 = vsub.f32 1.0, %v6863
  %v6865 = vmul.f32 %v6862, %v6864
  %v6866 = vadd.f32 %v6862, %v6865
  %vm6867 = vweird.f32 %v6784
  %vm6868 = vweird.f32 %v6862
  %vm6869 = vmor %vm6867, %vm6868
  %v6870 = vsel %vm6869, %v6862, %v6866
  %v6871 = vand.u32 2147483647, %v6784
  %vm6872 = vcmp.eq.f32.partialorder %v6871, 8.507059e+37
  %v6873 = vand.u32 %v6784, 2147483648
  %v6874 = vor.u32 1.1754944e-38, %v6873
  %v6875 = vsel %vm6872, %v6874, %v6870
  %v6876 = vmul.f32 1.0, %v6875
  %v6877 = vrcp.pop %v6785
  %v6878 = vmul.f32 %v6785, %v6877
  %v6879 = vsub.f32 1.0, %v6878
  %v6880 = vmul.f32 %v6877, %v6879
  %v6881 = vadd.f32 %v6877, %v6880
  %vm6882 = vweird.f32 %v6785
  %vm6883 = vweird.f32 %v6877
  %vm6884 = vmor %vm6882, %vm6883
  %v6885 = vsel %vm6884, %v6877, %v6881
  %v6886 = vand.u32 2147483647, %v6785
  %vm6887 = vcmp.eq.f32.partialorder %v6886, 8.507059e+37
  %v6888 = vand.u32 %v6785, 2147483648
  %v6889 = vor.u32 1.1754944e-38, %v6888
  %v6890 = vsel %vm6887, %v6889, %v6885
  %v6891 = vmul.f32 1.0, %v6890
  %v6892 = vrcp.pop %v6786
  %v6893 = vmul.f32 %v6786, %v6892
  %v6894 = vsub.f32 1.0, %v6893
  %v6895 = vmul.f32 %v6892, %v6894
  %v6896 = vadd.f32 %v6892, %v6895
  %vm6897 = vweird.f32 %v6786
  %vm6898 = vweird.f32 %v6892
  %vm6899 = vmor %vm6897, %vm6898
  %v6900 = vsel %vm6899, %v6892, %v6896
  %v6901 = vand.u32 2147483647, %v6786
  %vm6902 = vcmp.eq.f32.partialorder %v6901, 8.507059e+37
  %v6903 = vand.u32 %v6786, 2147483648
  %v6904 = vor.u32 1.1754944e-38, %v6903
  %v6905 = vsel %vm6902, %v6904, %v6900
  %v6906 = vmul.f32 1.0, %v6905
  %v6907 = vmul.f32 %v6732, %v6801
  %v6908 = vmul.f32 %v6735, %v6816
  %v6909 = vmul.f32 %v6738, %v6831
  %v6910 = vmul.f32 %v6741, %v6846
  %v6911 = vmul.f32 %v6744, %v6861
  %v6912 = vmul.f32 %v6747, %v6876
  %v6913 = vmul.f32 %v6750, %v6891
  %v6914 = vmul.f32 %v6753, %v6906
  %v6915 = vld [vmem:[%s13] sm:$0xff]
  %v6916 = vld [vmem:[%s13 + $0x8] sm:$0xff]
  %v6917 = vld [vmem:[%s13 + $0x10] sm:$0xff]
  %v6918 = vld [vmem:[%s13 + $0x18] sm:$0xff]
  %v6919 = vld [vmem:[%s14] sm:$0x1]
  %v6921 = vperm.slane %v6919, 0
  %v6924 = vsel %vm6697, %v6907, 0
  %v6927 = vsel %vm6697, %v6908, 0
  %v6930 = vsel %vm6697, %v6909, 0
  %v6933 = vsel %vm6697, %v6910, 0
  %v6936 = vsel %vm6697, %v6911, 0
  %v6939 = vsel %vm6697, %v6912, 0
  %v6942 = vsel %vm6697, %v6913, 0
  %v6945 = vsel %vm6697, %v6914, 0
  %6947 = vmatpush.msra.mxu0 0.0
  %6948 = vmatpush.msra.mxu0 0.0
  %6949 = vmatpush.msra.mxu0 0.0
  %6950 = vmatpush.msra.mxu0 0.0
  %6951 = vmatpush.msra.mxu0 0.0
  %6952 = vmatpush.msra.mxu0 0.0
  %6953 = vmatpush.msra.mxu0 0.0
  %6954 = vmatpush.msra.mxu0 0.0
  %6955 = vmatpush.msra.mxu0 0.0
  %6956 = vmatpush.msra.mxu0 0.0
  %6957 = vmatpush.msra.mxu0 0.0
  %6958 = vmatpush.msra.mxu0 0.0
  %6959 = vmatpush.msra.mxu0 %v6918
  %6960 = vmatpush.msra.mxu0 %v6917
  %6961 = vmatpush.msra.mxu0 %v6916
  %6962 = vmatpush.msra.mxu0 %v6915
  %6963 = vmatmul.f32.gmra.mxu0 %v6924
  %v6964 = vpop.f32.mrf.mxu0
  %v6965 = vadd.f32 %v6921, %v6964
  %6966 = vmatmul.f32.gmra.mxu0 %v6927
  %v6967 = vpop.f32.mrf.mxu0
  %v6968 = vadd.f32 %v6921, %v6967
  %6969 = vmatmul.f32.gmra.mxu0 %v6930
  %v6970 = vpop.f32.mrf.mxu0
  %v6971 = vadd.f32 %v6921, %v6970
  %6972 = vmatmul.f32.gmra.mxu0 %v6933
  %v6973 = vpop.f32.mrf.mxu0
  %v6974 = vadd.f32 %v6921, %v6973
  %6975 = vmatmul.f32.gmra.mxu0 %v6936
  %v6976 = vpop.f32.mrf.mxu0
  %v6977 = vadd.f32 %v6921, %v6976
  %6978 = vmatmul.f32.gmra.mxu0 %v6939
  %v6979 = vpop.f32.mrf.mxu0
  %v6980 = vadd.f32 %v6921, %v6979
  %6981 = vmatmul.f32.gmra.mxu0 %v6942
  %v6982 = vpop.f32.mrf.mxu0
  %v6983 = vadd.f32 %v6921, %v6982
  %6984 = vmatmul.f32.gmra.mxu0 %v6945
  %v6985 = vpop.f32.mrf.mxu0
  %v6986 = vadd.f32 %v6921, %v6985
  %6987 = vdwg.mxu0
  %v6988 = vxor.u32 %v6965, 2147483648
  %v6989 = vxor.u32 %v6968, 2147483648
  %v6990 = vxor.u32 %v6971, 2147483648
  %v6991 = vxor.u32 %v6974, 2147483648
  %v6992 = vxor.u32 %v6977, 2147483648
  %v6993 = vxor.u32 %v6980, 2147483648
  %v6994 = vxor.u32 %v6983, 2147483648
  %v6995 = vxor.u32 %v6986, 2147483648
  %v6996 = vmul.f32 %v6988, 1.442695
  %v6997 = vpow.pop %v6996
  %v6998 = vmul.f32 %v6989, 1.442695
  %v6999 = vpow.pop %v6998
  %v7000 = vmul.f32 %v6990, 1.442695
  %v7001 = vpow.pop %v7000
  %v7002 = vmul.f32 %v6991, 1.442695
  %v7003 = vpow.pop %v7002
  %v7004 = vmul.f32 %v6992, 1.442695
  %v7005 = vpow.pop %v7004
  %v7006 = vmul.f32 %v6993, 1.442695
  %v7007 = vpow.pop %v7006
  %v7008 = vmul.f32 %v6994, 1.442695
  %v7009 = vpow.pop %v7008
  %v7010 = vmul.f32 %v6995, 1.442695
  %v7011 = vpow.pop %v7010
  %v7012 = vadd.f32 %v6997, 1.0
  %v7013 = vadd.f32 %v6999, 1.0
  %v7014 = vadd.f32 %v7001, 1.0
  %v7015 = vadd.f32 %v7003, 1.0
  %v7016 = vadd.f32 %v7005, 1.0
  %v7017 = vadd.f32 %v7007, 1.0
  %v7018 = vadd.f32 %v7009, 1.0
  %v7019 = vadd.f32 %v7011, 1.0
  %v7020 = vrcp.pop %v7012
  %v7021 = vmul.f32 %v7012, %v7020
  %v7022 = vsub.f32 1.0, %v7021
  %v7023 = vmul.f32 %v7020, %v7022
  %v7024 = vadd.f32 %v7020, %v7023
  %vm7025 = vweird.f32 %v7012
  %vm7026 = vweird.f32 %v7020
  %vm7027 = vmor %vm7025, %vm7026
  %v7028 = vsel %vm7027, %v7020, %v7024
  %v7029 = vand.u32 2147483647, %v7012
  %vm7030 = vcmp.eq.f32.partialorder %v7029, 8.507059e+37
  %v7031 = vand.u32 %v7012, 2147483648
  %v7032 = vor.u32 1.1754944e-38, %v7031
  %v7033 = vsel %vm7030, %v7032, %v7028
  %v7034 = vmul.f32 1.0, %v7033
  %v7035 = vrcp.pop %v7013
  %v7036 = vmul.f32 %v7013, %v7035
  %v7037 = vsub.f32 1.0, %v7036
  %v7038 = vmul.f32 %v7035, %v7037
  %v7039 = vadd.f32 %v7035, %v7038
  %vm7040 = vweird.f32 %v7013
  %vm7041 = vweird.f32 %v7035
  %vm7042 = vmor %vm7040, %vm7041
  %v7043 = vsel %vm7042, %v7035, %v7039
  %v7044 = vand.u32 2147483647, %v7013
  %vm7045 = vcmp.eq.f32.partialorder %v7044, 8.507059e+37
  %v7046 = vand.u32 %v7013, 2147483648
  %v7047 = vor.u32 1.1754944e-38, %v7046
  %v7048 = vsel %vm7045, %v7047, %v7043
  %v7049 = vmul.f32 1.0, %v7048
  %v7050 = vrcp.pop %v7014
  %v7051 = vmul.f32 %v7014, %v7050
  %v7052 = vsub.f32 1.0, %v7051
  %v7053 = vmul.f32 %v7050, %v7052
  %v7054 = vadd.f32 %v7050, %v7053
  %vm7055 = vweird.f32 %v7014
  %vm7056 = vweird.f32 %v7050
  %vm7057 = vmor %vm7055, %vm7056
  %v7058 = vsel %vm7057, %v7050, %v7054
  %v7059 = vand.u32 2147483647, %v7014
  %vm7060 = vcmp.eq.f32.partialorder %v7059, 8.507059e+37
  %v7061 = vand.u32 %v7014, 2147483648
  %v7062 = vor.u32 1.1754944e-38, %v7061
  %v7063 = vsel %vm7060, %v7062, %v7058
  %v7064 = vmul.f32 1.0, %v7063
  %v7065 = vrcp.pop %v7015
  %v7066 = vmul.f32 %v7015, %v7065
  %v7067 = vsub.f32 1.0, %v7066
  %v7068 = vmul.f32 %v7065, %v7067
  %v7069 = vadd.f32 %v7065, %v7068
  %vm7070 = vweird.f32 %v7015
  %vm7071 = vweird.f32 %v7065
  %vm7072 = vmor %vm7070, %vm7071
  %v7073 = vsel %vm7072, %v7065, %v7069
  %v7074 = vand.u32 2147483647, %v7015
  %vm7075 = vcmp.eq.f32.partialorder %v7074, 8.507059e+37
  %v7076 = vand.u32 %v7015, 2147483648
  %v7077 = vor.u32 1.1754944e-38, %v7076
  %v7078 = vsel %vm7075, %v7077, %v7073
  %v7079 = vmul.f32 1.0, %v7078
  %v7080 = vrcp.pop %v7016
  %v7081 = vmul.f32 %v7016, %v7080
  %v7082 = vsub.f32 1.0, %v7081
  %v7083 = vmul.f32 %v7080, %v7082
  %v7084 = vadd.f32 %v7080, %v7083
  %vm7085 = vweird.f32 %v7016
  %vm7086 = vweird.f32 %v7080
  %vm7087 = vmor %vm7085, %vm7086
  %v7088 = vsel %vm7087, %v7080, %v7084
  %v7089 = vand.u32 2147483647, %v7016
  %vm7090 = vcmp.eq.f32.partialorder %v7089, 8.507059e+37
  %v7091 = vand.u32 %v7016, 2147483648
  %v7092 = vor.u32 1.1754944e-38, %v7091
  %v7093 = vsel %vm7090, %v7092, %v7088
  %v7094 = vmul.f32 1.0, %v7093
  %v7095 = vrcp.pop %v7017
  %v7096 = vmul.f32 %v7017, %v7095
  %v7097 = vsub.f32 1.0, %v7096
  %v7098 = vmul.f32 %v7095, %v7097
  %v7099 = vadd.f32 %v7095, %v7098
  %vm7100 = vweird.f32 %v7017
  %vm7101 = vweird.f32 %v7095
  %vm7102 = vmor %vm7100, %vm7101
  %v7103 = vsel %vm7102, %v7095, %v7099
  %v7104 = vand.u32 2147483647, %v7017
  %vm7105 = vcmp.eq.f32.partialorder %v7104, 8.507059e+37
  %v7106 = vand.u32 %v7017, 2147483648
  %v7107 = vor.u32 1.1754944e-38, %v7106
  %v7108 = vsel %vm7105, %v7107, %v7103
  %v7109 = vmul.f32 1.0, %v7108
  %v7110 = vrcp.pop %v7018
  %v7111 = vmul.f32 %v7018, %v7110
  %v7112 = vsub.f32 1.0, %v7111
  %v7113 = vmul.f32 %v7110, %v7112
  %v7114 = vadd.f32 %v7110, %v7113
  %vm7115 = vweird.f32 %v7018
  %vm7116 = vweird.f32 %v7110
  %vm7117 = vmor %vm7115, %vm7116
  %v7118 = vsel %vm7117, %v7110, %v7114
  %v7119 = vand.u32 2147483647, %v7018
  %vm7120 = vcmp.eq.f32.partialorder %v7119, 8.507059e+37
  %v7121 = vand.u32 %v7018, 2147483648
  %v7122 = vor.u32 1.1754944e-38, %v7121
  %v7123 = vsel %vm7120, %v7122, %v7118
  %v7124 = vmul.f32 1.0, %v7123
  %v7125 = vrcp.pop %v7019
  %v7126 = vmul.f32 %v7019, %v7125
  %v7127 = vsub.f32 1.0, %v7126
  %v7128 = vmul.f32 %v7125, %v7127
  %v7129 = vadd.f32 %v7125, %v7128
  %vm7130 = vweird.f32 %v7019
  %vm7131 = vweird.f32 %v7125
  %vm7132 = vmor %vm7130, %vm7131
  %v7133 = vsel %vm7132, %v7125, %v7129
  %v7134 = vand.u32 2147483647, %v7019
  %vm7135 = vcmp.eq.f32.partialorder %v7134, 8.507059e+37
  %v7136 = vand.u32 %v7019, 2147483648
  %v7137 = vor.u32 1.1754944e-38, %v7136
  %v7138 = vsel %vm7135, %v7137, %v7133
  %v7139 = vmul.f32 1.0, %v7138
  %v7140 = vmul.f32 %v6965, %v7034
  %v7141 = vmul.f32 %v6968, %v7049
  %v7142 = vmul.f32 %v6971, %v7064
  %v7143 = vmul.f32 %v6974, %v7079
  %v7144 = vmul.f32 %v6977, %v7094
  %v7145 = vmul.f32 %v6980, %v7109
  %v7146 = vmul.f32 %v6983, %v7124
  %v7147 = vmul.f32 %v6986, %v7139
  %v7148 = vadd.f32 %v529, %v7140
  %v7149 = vadd.f32 %v530, %v7141
  %v7150 = vadd.f32 %v531, %v7142
  %v7151 = vadd.f32 %v532, %v7143
  %v7152 = vadd.f32 %v533, %v7144
  %v7153 = vadd.f32 %v534, %v7145
  %v7154 = vadd.f32 %v535, %v7146
  %v7155 = vadd.f32 %v536, %v7147
  %v7164 = vrot.slane %v7148, 4
  %v7165 = vrot.slane %v7149, 4
  %v7166 = vrot.slane %v7150, 4
  %v7167 = vrot.slane %v7151, 4
  %v7168 = vrot.slane %v7152, 4
  %v7169 = vrot.slane %v7153, 4
  %v7170 = vrot.slane %v7154, 4
  %v7171 = vrot.slane %v7155, 4
  %v7180 = vmul.f32 %v5961, %v7148
  %v7181 = vmul.f32 %v5962, %v7148
  %v7182 = vmul.f32 %v5963, %v7148
  %v7183 = vmul.f32 %v5964, %v7148
  %v7184 = vmul.f32 %v5965, %v7164
  %v7185 = vmul.f32 %v5966, %v7164
  %v7186 = vmul.f32 %v5967, %v7164
  %v7187 = vmul.f32 %v5968, %v7164
  %v7188 = vmul.f32 %v5969, %v7149
  %v7189 = vmul.f32 %v5970, %v7149
  %v7190 = vmul.f32 %v5971, %v7149
  %v7191 = vmul.f32 %v5972, %v7149
  %v7192 = vmul.f32 %v5973, %v7165
  %v7193 = vmul.f32 %v5974, %v7165
  %v7194 = vmul.f32 %v5975, %v7165
  %v7195 = vmul.f32 %v5976, %v7165
  %v7196 = vmul.f32 %v5977, %v7150
  %v7197 = vmul.f32 %v5978, %v7150
  %v7198 = vmul.f32 %v5979, %v7150
  %v7199 = vmul.f32 %v5980, %v7150
  %v7200 = vmul.f32 %v5981, %v7166
  %v7201 = vmul.f32 %v5982, %v7166
  %v7202 = vmul.f32 %v5983, %v7166
  %v7203 = vmul.f32 %v5984, %v7166
  %v7204 = vmul.f32 %v5985, %v7151
  %v7205 = vmul.f32 %v5986, %v7151
  %v7206 = vmul.f32 %v5987, %v7151
  %v7207 = vmul.f32 %v5988, %v7151
  %v7208 = vmul.f32 %v5989, %v7167
  %v7209 = vmul.f32 %v5990, %v7167
  %v7210 = vmul.f32 %v5991, %v7167
  %v7211 = vmul.f32 %v5992, %v7167
  %v7212 = vmul.f32 %v5993, %v7152
  %v7213 = vmul.f32 %v5994, %v7152
  %v7214 = vmul.f32 %v5995, %v7152
  %v7215 = vmul.f32 %v5996, %v7152
  %v7216 = vmul.f32 %v5997, %v7168
  %v7217 = vmul.f32 %v5998, %v7168
  %v7218 = vmul.f32 %v5999, %v7168
  %v7219 = vmul.f32 %v6000, %v7168
  %v7220 = vmul.f32 %v6001, %v7153
  %v7221 = vmul.f32 %v6002, %v7153
  %v7222 = vmul.f32 %v6003, %v7153
  %v7223 = vmul.f32 %v6004, %v7153
  %v7224 = vmul.f32 %v6005, %v7169
  %v7225 = vmul.f32 %v6006, %v7169
  %v7226 = vmul.f32 %v6007, %v7169
  %v7227 = vmul.f32 %v6008, %v7169
  %v7228 = vmul.f32 %v6009, %v7154
  %v7229 = vmul.f32 %v6010, %v7154
  %v7230 = vmul.f32 %v6011, %v7154
  %v7231 = vmul.f32 %v6012, %v7154
  %v7232 = vmul.f32 %v6013, %v7170
  %v7233 = vmul.f32 %v6014, %v7170
  %v7234 = vmul.f32 %v6015, %v7170
  %v7235 = vmul.f32 %v6016, %v7170
  %v7236 = vmul.f32 %v6017, %v7155
  %v7237 = vmul.f32 %v6018, %v7155
  %v7238 = vmul.f32 %v6019, %v7155
  %v7239 = vmul.f32 %v6020, %v7155
  %v7240 = vmul.f32 %v6021, %v7171
  %v7241 = vmul.f32 %v6022, %v7171
  %v7242 = vmul.f32 %v6023, %v7171
  %v7243 = vmul.f32 %v6024, %v7171
  %v7244 = vsel %vm6113, %v7180, 0.0
  %v7245 = vrot.slane %v7244, 4
  %v7246 = vadd.f32 %v7244, %v7245
  %v7247 = vrot.slane %v7246, 2
  %v7248 = vadd.f32 %v7246, %v7247
  %v7249 = vrot.slane %v7248, 1
  %v7250 = vadd.f32 %v7248, %v7249
  %v7251 = vsel %vm6113, %v7181, 0.0
  %v7252 = vrot.slane %v7251, 4
  %v7253 = vadd.f32 %v7251, %v7252
  %v7254 = vrot.slane %v7253, 2
  %v7255 = vadd.f32 %v7253, %v7254
  %v7256 = vrot.slane %v7255, 1
  %v7257 = vadd.f32 %v7255, %v7256
  %v7258 = vsel %vm6113, %v7182, 0.0
  %v7259 = vrot.slane %v7258, 4
  %v7260 = vadd.f32 %v7258, %v7259
  %v7261 = vrot.slane %v7260, 2
  %v7262 = vadd.f32 %v7260, %v7261
  %v7263 = vrot.slane %v7262, 1
  %v7264 = vadd.f32 %v7262, %v7263
  %v7265 = vsel %vm6113, %v7183, 0.0
  %v7266 = vrot.slane %v7265, 4
  %v7267 = vadd.f32 %v7265, %v7266
  %v7268 = vrot.slane %v7267, 2
  %v7269 = vadd.f32 %v7267, %v7268
  %v7270 = vrot.slane %v7269, 1
  %v7271 = vadd.f32 %v7269, %v7270
  %v7272 = vsel %vm6113, %v7184, 0.0
  %v7273 = vrot.slane %v7272, 4
  %v7274 = vadd.f32 %v7272, %v7273
  %v7275 = vrot.slane %v7274, 2
  %v7276 = vadd.f32 %v7274, %v7275
  %v7277 = vrot.slane %v7276, 1
  %v7278 = vadd.f32 %v7276, %v7277
  %v7279 = vsel %vm6113, %v7185, 0.0
  %v7280 = vrot.slane %v7279, 4
  %v7281 = vadd.f32 %v7279, %v7280
  %v7282 = vrot.slane %v7281, 2
  %v7283 = vadd.f32 %v7281, %v7282
  %v7284 = vrot.slane %v7283, 1
  %v7285 = vadd.f32 %v7283, %v7284
  %v7286 = vsel %vm6113, %v7186, 0.0
  %v7287 = vrot.slane %v7286, 4
  %v7288 = vadd.f32 %v7286, %v7287
  %v7289 = vrot.slane %v7288, 2
  %v7290 = vadd.f32 %v7288, %v7289
  %v7291 = vrot.slane %v7290, 1
  %v7292 = vadd.f32 %v7290, %v7291
  %v7293 = vsel %vm6113, %v7187, 0.0
  %v7294 = vrot.slane %v7293, 4
  %v7295 = vadd.f32 %v7293, %v7294
  %v7296 = vrot.slane %v7295, 2
  %v7297 = vadd.f32 %v7295, %v7296
  %v7298 = vrot.slane %v7297, 1
  %v7299 = vadd.f32 %v7297, %v7298
  %v7300 = vsel %vm6113, %v7188, 0.0
  %v7301 = vrot.slane %v7300, 4
  %v7302 = vadd.f32 %v7300, %v7301
  %v7303 = vrot.slane %v7302, 2
  %v7304 = vadd.f32 %v7302, %v7303
  %v7305 = vrot.slane %v7304, 1
  %v7306 = vadd.f32 %v7304, %v7305
  %v7307 = vsel %vm6113, %v7189, 0.0
  %v7308 = vrot.slane %v7307, 4
  %v7309 = vadd.f32 %v7307, %v7308
  %v7310 = vrot.slane %v7309, 2
  %v7311 = vadd.f32 %v7309, %v7310
  %v7312 = vrot.slane %v7311, 1
  %v7313 = vadd.f32 %v7311, %v7312
  %v7314 = vsel %vm6113, %v7190, 0.0
  %v7315 = vrot.slane %v7314, 4
  %v7316 = vadd.f32 %v7314, %v7315
  %v7317 = vrot.slane %v7316, 2
  %v7318 = vadd.f32 %v7316, %v7317
  %v7319 = vrot.slane %v7318, 1
  %v7320 = vadd.f32 %v7318, %v7319
  %v7321 = vsel %vm6113, %v7191, 0.0
  %v7322 = vrot.slane %v7321, 4
  %v7323 = vadd.f32 %v7321, %v7322
  %v7324 = vrot.slane %v7323, 2
  %v7325 = vadd.f32 %v7323, %v7324
  %v7326 = vrot.slane %v7325, 1
  %v7327 = vadd.f32 %v7325, %v7326
  %v7328 = vsel %vm6113, %v7192, 0.0
  %v7329 = vrot.slane %v7328, 4
  %v7330 = vadd.f32 %v7328, %v7329
  %v7331 = vrot.slane %v7330, 2
  %v7332 = vadd.f32 %v7330, %v7331
  %v7333 = vrot.slane %v7332, 1
  %v7334 = vadd.f32 %v7332, %v7333
  %v7335 = vsel %vm6113, %v7193, 0.0
  %v7336 = vrot.slane %v7335, 4
  %v7337 = vadd.f32 %v7335, %v7336
  %v7338 = vrot.slane %v7337, 2
  %v7339 = vadd.f32 %v7337, %v7338
  %v7340 = vrot.slane %v7339, 1
  %v7341 = vadd.f32 %v7339, %v7340
  %v7342 = vsel %vm6113, %v7194, 0.0
  %v7343 = vrot.slane %v7342, 4
  %v7344 = vadd.f32 %v7342, %v7343
  %v7345 = vrot.slane %v7344, 2
  %v7346 = vadd.f32 %v7344, %v7345
  %v7347 = vrot.slane %v7346, 1
  %v7348 = vadd.f32 %v7346, %v7347
  %v7349 = vsel %vm6113, %v7195, 0.0
  %v7350 = vrot.slane %v7349, 4
  %v7351 = vadd.f32 %v7349, %v7350
  %v7352 = vrot.slane %v7351, 2
  %v7353 = vadd.f32 %v7351, %v7352
  %v7354 = vrot.slane %v7353, 1
  %v7355 = vadd.f32 %v7353, %v7354
  %v7356 = vsel %vm6113, %v7196, 0.0
  %v7357 = vrot.slane %v7356, 4
  %v7358 = vadd.f32 %v7356, %v7357
  %v7359 = vrot.slane %v7358, 2
  %v7360 = vadd.f32 %v7358, %v7359
  %v7361 = vrot.slane %v7360, 1
  %v7362 = vadd.f32 %v7360, %v7361
  %v7363 = vsel %vm6113, %v7197, 0.0
  %v7364 = vrot.slane %v7363, 4
  %v7365 = vadd.f32 %v7363, %v7364
  %v7366 = vrot.slane %v7365, 2
  %v7367 = vadd.f32 %v7365, %v7366
  %v7368 = vrot.slane %v7367, 1
  %v7369 = vadd.f32 %v7367, %v7368
  %v7370 = vsel %vm6113, %v7198, 0.0
  %v7371 = vrot.slane %v7370, 4
  %v7372 = vadd.f32 %v7370, %v7371
  %v7373 = vrot.slane %v7372, 2
  %v7374 = vadd.f32 %v7372, %v7373
  %v7375 = vrot.slane %v7374, 1
  %v7376 = vadd.f32 %v7374, %v7375
  %v7377 = vsel %vm6113, %v7199, 0.0
  %v7378 = vrot.slane %v7377, 4
  %v7379 = vadd.f32 %v7377, %v7378
  %v7380 = vrot.slane %v7379, 2
  %v7381 = vadd.f32 %v7379, %v7380
  %v7382 = vrot.slane %v7381, 1
  %v7383 = vadd.f32 %v7381, %v7382
  %v7384 = vsel %vm6113, %v7200, 0.0
  %v7385 = vrot.slane %v7384, 4
  %v7386 = vadd.f32 %v7384, %v7385
  %v7387 = vrot.slane %v7386, 2
  %v7388 = vadd.f32 %v7386, %v7387
  %v7389 = vrot.slane %v7388, 1
  %v7390 = vadd.f32 %v7388, %v7389
  %v7391 = vsel %vm6113, %v7201, 0.0
  %v7392 = vrot.slane %v7391, 4
  %v7393 = vadd.f32 %v7391, %v7392
  %v7394 = vrot.slane %v7393, 2
  %v7395 = vadd.f32 %v7393, %v7394
  %v7396 = vrot.slane %v7395, 1
  %v7397 = vadd.f32 %v7395, %v7396
  %v7398 = vsel %vm6113, %v7202, 0.0
  %v7399 = vrot.slane %v7398, 4
  %v7400 = vadd.f32 %v7398, %v7399
  %v7401 = vrot.slane %v7400, 2
  %v7402 = vadd.f32 %v7400, %v7401
  %v7403 = vrot.slane %v7402, 1
  %v7404 = vadd.f32 %v7402, %v7403
  %v7405 = vsel %vm6113, %v7203, 0.0
  %v7406 = vrot.slane %v7405, 4
  %v7407 = vadd.f32 %v7405, %v7406
  %v7408 = vrot.slane %v7407, 2
  %v7409 = vadd.f32 %v7407, %v7408
  %v7410 = vrot.slane %v7409, 1
  %v7411 = vadd.f32 %v7409, %v7410
  %v7412 = vsel %vm6113, %v7204, 0.0
  %v7413 = vrot.slane %v7412, 4
  %v7414 = vadd.f32 %v7412, %v7413
  %v7415 = vrot.slane %v7414, 2
  %v7416 = vadd.f32 %v7414, %v7415
  %v7417 = vrot.slane %v7416, 1
  %v7418 = vadd.f32 %v7416, %v7417
  %v7419 = vsel %vm6113, %v7205, 0.0
  %v7420 = vrot.slane %v7419, 4
  %v7421 = vadd.f32 %v7419, %v7420
  %v7422 = vrot.slane %v7421, 2
  %v7423 = vadd.f32 %v7421, %v7422
  %v7424 = vrot.slane %v7423, 1
  %v7425 = vadd.f32 %v7423, %v7424
  %v7426 = vsel %vm6113, %v7206, 0.0
  %v7427 = vrot.slane %v7426, 4
  %v7428 = vadd.f32 %v7426, %v7427
  %v7429 = vrot.slane %v7428, 2
  %v7430 = vadd.f32 %v7428, %v7429
  %v7431 = vrot.slane %v7430, 1
  %v7432 = vadd.f32 %v7430, %v7431
  %v7433 = vsel %vm6113, %v7207, 0.0
  %v7434 = vrot.slane %v7433, 4
  %v7435 = vadd.f32 %v7433, %v7434
  %v7436 = vrot.slane %v7435, 2
  %v7437 = vadd.f32 %v7435, %v7436
  %v7438 = vrot.slane %v7437, 1
  %v7439 = vadd.f32 %v7437, %v7438
  %v7440 = vsel %vm6113, %v7208, 0.0
  %v7441 = vrot.slane %v7440, 4
  %v7442 = vadd.f32 %v7440, %v7441
  %v7443 = vrot.slane %v7442, 2
  %v7444 = vadd.f32 %v7442, %v7443
  %v7445 = vrot.slane %v7444, 1
  %v7446 = vadd.f32 %v7444, %v7445
  %v7447 = vsel %vm6113, %v7209, 0.0
  %v7448 = vrot.slane %v7447, 4
  %v7449 = vadd.f32 %v7447, %v7448
  %v7450 = vrot.slane %v7449, 2
  %v7451 = vadd.f32 %v7449, %v7450
  %v7452 = vrot.slane %v7451, 1
  %v7453 = vadd.f32 %v7451, %v7452
  %v7454 = vsel %vm6113, %v7210, 0.0
  %v7455 = vrot.slane %v7454, 4
  %v7456 = vadd.f32 %v7454, %v7455
  %v7457 = vrot.slane %v7456, 2
  %v7458 = vadd.f32 %v7456, %v7457
  %v7459 = vrot.slane %v7458, 1
  %v7460 = vadd.f32 %v7458, %v7459
  %v7461 = vsel %vm6113, %v7211, 0.0
  %v7462 = vrot.slane %v7461, 4
  %v7463 = vadd.f32 %v7461, %v7462
  %v7464 = vrot.slane %v7463, 2
  %v7465 = vadd.f32 %v7463, %v7464
  %v7466 = vrot.slane %v7465, 1
  %v7467 = vadd.f32 %v7465, %v7466
  %v7468 = vsel %vm6113, %v7212, 0.0
  %v7469 = vrot.slane %v7468, 4
  %v7470 = vadd.f32 %v7468, %v7469
  %v7471 = vrot.slane %v7470, 2
  %v7472 = vadd.f32 %v7470, %v7471
  %v7473 = vrot.slane %v7472, 1
  %v7474 = vadd.f32 %v7472, %v7473
  %v7475 = vsel %vm6113, %v7213, 0.0
  %v7476 = vrot.slane %v7475, 4
  %v7477 = vadd.f32 %v7475, %v7476
  %v7478 = vrot.slane %v7477, 2
  %v7479 = vadd.f32 %v7477, %v7478
  %v7480 = vrot.slane %v7479, 1
  %v7481 = vadd.f32 %v7479, %v7480
  %v7482 = vsel %vm6113, %v7214, 0.0
  %v7483 = vrot.slane %v7482, 4
  %v7484 = vadd.f32 %v7482, %v7483
  %v7485 = vrot.slane %v7484, 2
  %v7486 = vadd.f32 %v7484, %v7485
  %v7487 = vrot.slane %v7486, 1
  %v7488 = vadd.f32 %v7486, %v7487
  %v7489 = vsel %vm6113, %v7215, 0.0
  %v7490 = vrot.slane %v7489, 4
  %v7491 = vadd.f32 %v7489, %v7490
  %v7492 = vrot.slane %v7491, 2
  %v7493 = vadd.f32 %v7491, %v7492
  %v7494 = vrot.slane %v7493, 1
  %v7495 = vadd.f32 %v7493, %v7494
  %v7496 = vsel %vm6113, %v7216, 0.0
  %v7497 = vrot.slane %v7496, 4
  %v7498 = vadd.f32 %v7496, %v7497
  %v7499 = vrot.slane %v7498, 2
  %v7500 = vadd.f32 %v7498, %v7499
  %v7501 = vrot.slane %v7500, 1
  %v7502 = vadd.f32 %v7500, %v7501
  %v7503 = vsel %vm6113, %v7217, 0.0
  %v7504 = vrot.slane %v7503, 4
  %v7505 = vadd.f32 %v7503, %v7504
  %v7506 = vrot.slane %v7505, 2
  %v7507 = vadd.f32 %v7505, %v7506
  %v7508 = vrot.slane %v7507, 1
  %v7509 = vadd.f32 %v7507, %v7508
  %v7510 = vsel %vm6113, %v7218, 0.0
  %v7511 = vrot.slane %v7510, 4
  %v7512 = vadd.f32 %v7510, %v7511
  %v7513 = vrot.slane %v7512, 2
  %v7514 = vadd.f32 %v7512, %v7513
  %v7515 = vrot.slane %v7514, 1
  %v7516 = vadd.f32 %v7514, %v7515
  %v7517 = vsel %vm6113, %v7219, 0.0
  %v7518 = vrot.slane %v7517, 4
  %v7519 = vadd.f32 %v7517, %v7518
  %v7520 = vrot.slane %v7519, 2
  %v7521 = vadd.f32 %v7519, %v7520
  %v7522 = vrot.slane %v7521, 1
  %v7523 = vadd.f32 %v7521, %v7522
  %v7524 = vsel %vm6113, %v7220, 0.0
  %v7525 = vrot.slane %v7524, 4
  %v7526 = vadd.f32 %v7524, %v7525
  %v7527 = vrot.slane %v7526, 2
  %v7528 = vadd.f32 %v7526, %v7527
  %v7529 = vrot.slane %v7528, 1
  %v7530 = vadd.f32 %v7528, %v7529
  %v7531 = vsel %vm6113, %v7221, 0.0
  %v7532 = vrot.slane %v7531, 4
  %v7533 = vadd.f32 %v7531, %v7532
  %v7534 = vrot.slane %v7533, 2
  %v7535 = vadd.f32 %v7533, %v7534
  %v7536 = vrot.slane %v7535, 1
  %v7537 = vadd.f32 %v7535, %v7536
  %v7538 = vsel %vm6113, %v7222, 0.0
  %v7539 = vrot.slane %v7538, 4
  %v7540 = vadd.f32 %v7538, %v7539
  %v7541 = vrot.slane %v7540, 2
  %v7542 = vadd.f32 %v7540, %v7541
  %v7543 = vrot.slane %v7542, 1
  %v7544 = vadd.f32 %v7542, %v7543
  %v7545 = vsel %vm6113, %v7223, 0.0
  %v7546 = vrot.slane %v7545, 4
  %v7547 = vadd.f32 %v7545, %v7546
  %v7548 = vrot.slane %v7547, 2
  %v7549 = vadd.f32 %v7547, %v7548
  %v7550 = vrot.slane %v7549, 1
  %v7551 = vadd.f32 %v7549, %v7550
  %v7552 = vsel %vm6113, %v7224, 0.0
  %v7553 = vrot.slane %v7552, 4
  %v7554 = vadd.f32 %v7552, %v7553
  %v7555 = vrot.slane %v7554, 2
  %v7556 = vadd.f32 %v7554, %v7555
  %v7557 = vrot.slane %v7556, 1
  %v7558 = vadd.f32 %v7556, %v7557
  %v7559 = vsel %vm6113, %v7225, 0.0
  %v7560 = vrot.slane %v7559, 4
  %v7561 = vadd.f32 %v7559, %v7560
  %v7562 = vrot.slane %v7561, 2
  %v7563 = vadd.f32 %v7561, %v7562
  %v7564 = vrot.slane %v7563, 1
  %v7565 = vadd.f32 %v7563, %v7564
  %v7566 = vsel %vm6113, %v7226, 0.0
  %v7567 = vrot.slane %v7566, 4
  %v7568 = vadd.f32 %v7566, %v7567
  %v7569 = vrot.slane %v7568, 2
  %v7570 = vadd.f32 %v7568, %v7569
  %v7571 = vrot.slane %v7570, 1
  %v7572 = vadd.f32 %v7570, %v7571
  %v7573 = vsel %vm6113, %v7227, 0.0
  %v7574 = vrot.slane %v7573, 4
  %v7575 = vadd.f32 %v7573, %v7574
  %v7576 = vrot.slane %v7575, 2
  %v7577 = vadd.f32 %v7575, %v7576
  %v7578 = vrot.slane %v7577, 1
  %v7579 = vadd.f32 %v7577, %v7578
  %v7580 = vsel %vm6113, %v7228, 0.0
  %v7581 = vrot.slane %v7580, 4
  %v7582 = vadd.f32 %v7580, %v7581
  %v7583 = vrot.slane %v7582, 2
  %v7584 = vadd.f32 %v7582, %v7583
  %v7585 = vrot.slane %v7584, 1
  %v7586 = vadd.f32 %v7584, %v7585
  %v7587 = vsel %vm6113, %v7229, 0.0
  %v7588 = vrot.slane %v7587, 4
  %v7589 = vadd.f32 %v7587, %v7588
  %v7590 = vrot.slane %v7589, 2
  %v7591 = vadd.f32 %v7589, %v7590
  %v7592 = vrot.slane %v7591, 1
  %v7593 = vadd.f32 %v7591, %v7592
  %v7594 = vsel %vm6113, %v7230, 0.0
  %v7595 = vrot.slane %v7594, 4
  %v7596 = vadd.f32 %v7594, %v7595
  %v7597 = vrot.slane %v7596, 2
  %v7598 = vadd.f32 %v7596, %v7597
  %v7599 = vrot.slane %v7598, 1
  %v7600 = vadd.f32 %v7598, %v7599
  %v7601 = vsel %vm6113, %v7231, 0.0
  %v7602 = vrot.slane %v7601, 4
  %v7603 = vadd.f32 %v7601, %v7602
  %v7604 = vrot.slane %v7603, 2
  %v7605 = vadd.f32 %v7603, %v7604
  %v7606 = vrot.slane %v7605, 1
  %v7607 = vadd.f32 %v7605, %v7606
  %v7608 = vsel %vm6113, %v7232, 0.0
  %v7609 = vrot.slane %v7608, 4
  %v7610 = vadd.f32 %v7608, %v7609
  %v7611 = vrot.slane %v7610, 2
  %v7612 = vadd.f32 %v7610, %v7611
  %v7613 = vrot.slane %v7612, 1
  %v7614 = vadd.f32 %v7612, %v7613
  %v7615 = vsel %vm6113, %v7233, 0.0
  %v7616 = vrot.slane %v7615, 4
  %v7617 = vadd.f32 %v7615, %v7616
  %v7618 = vrot.slane %v7617, 2
  %v7619 = vadd.f32 %v7617, %v7618
  %v7620 = vrot.slane %v7619, 1
  %v7621 = vadd.f32 %v7619, %v7620
  %v7622 = vsel %vm6113, %v7234, 0.0
  %v7623 = vrot.slane %v7622, 4
  %v7624 = vadd.f32 %v7622, %v7623
  %v7625 = vrot.slane %v7624, 2
  %v7626 = vadd.f32 %v7624, %v7625
  %v7627 = vrot.slane %v7626, 1
  %v7628 = vadd.f32 %v7626, %v7627
  %v7629 = vsel %vm6113, %v7235, 0.0
  %v7630 = vrot.slane %v7629, 4
  %v7631 = vadd.f32 %v7629, %v7630
  %v7632 = vrot.slane %v7631, 2
  %v7633 = vadd.f32 %v7631, %v7632
  %v7634 = vrot.slane %v7633, 1
  %v7635 = vadd.f32 %v7633, %v7634
  %v7636 = vsel %vm6113, %v7236, 0.0
  %v7637 = vrot.slane %v7636, 4
  %v7638 = vadd.f32 %v7636, %v7637
  %v7639 = vrot.slane %v7638, 2
  %v7640 = vadd.f32 %v7638, %v7639
  %v7641 = vrot.slane %v7640, 1
  %v7642 = vadd.f32 %v7640, %v7641
  %v7643 = vsel %vm6113, %v7237, 0.0
  %v7644 = vrot.slane %v7643, 4
  %v7645 = vadd.f32 %v7643, %v7644
  %v7646 = vrot.slane %v7645, 2
  %v7647 = vadd.f32 %v7645, %v7646
  %v7648 = vrot.slane %v7647, 1
  %v7649 = vadd.f32 %v7647, %v7648
  %v7650 = vsel %vm6113, %v7238, 0.0
  %v7651 = vrot.slane %v7650, 4
  %v7652 = vadd.f32 %v7650, %v7651
  %v7653 = vrot.slane %v7652, 2
  %v7654 = vadd.f32 %v7652, %v7653
  %v7655 = vrot.slane %v7654, 1
  %v7656 = vadd.f32 %v7654, %v7655
  %v7657 = vsel %vm6113, %v7239, 0.0
  %v7658 = vrot.slane %v7657, 4
  %v7659 = vadd.f32 %v7657, %v7658
  %v7660 = vrot.slane %v7659, 2
  %v7661 = vadd.f32 %v7659, %v7660
  %v7662 = vrot.slane %v7661, 1
  %v7663 = vadd.f32 %v7661, %v7662
  %v7664 = vsel %vm6113, %v7240, 0.0
  %v7665 = vrot.slane %v7664, 4
  %v7666 = vadd.f32 %v7664, %v7665
  %v7667 = vrot.slane %v7666, 2
  %v7668 = vadd.f32 %v7666, %v7667
  %v7669 = vrot.slane %v7668, 1
  %v7670 = vadd.f32 %v7668, %v7669
  %v7671 = vsel %vm6113, %v7241, 0.0
  %v7672 = vrot.slane %v7671, 4
  %v7673 = vadd.f32 %v7671, %v7672
  %v7674 = vrot.slane %v7673, 2
  %v7675 = vadd.f32 %v7673, %v7674
  %v7676 = vrot.slane %v7675, 1
  %v7677 = vadd.f32 %v7675, %v7676
  %v7678 = vsel %vm6113, %v7242, 0.0
  %v7679 = vrot.slane %v7678, 4
  %v7680 = vadd.f32 %v7678, %v7679
  %v7681 = vrot.slane %v7680, 2
  %v7682 = vadd.f32 %v7680, %v7681
  %v7683 = vrot.slane %v7682, 1
  %v7684 = vadd.f32 %v7682, %v7683
  %v7685 = vsel %vm6113, %v7243, 0.0
  %v7686 = vrot.slane %v7685, 4
  %v7687 = vadd.f32 %v7685, %v7686
  %v7688 = vrot.slane %v7687, 2
  %v7689 = vadd.f32 %v7687, %v7688
  %v7690 = vrot.slane %v7689, 1
  %v7691 = vadd.f32 %v7689, %v7690
  %s7692 = scalar_lea.vmem %s11, 32
  %v7693 = vld [vmem:[%s7692] sm:$0xff]
  %v7694 = vld [vmem:[%s7692 + $0x8] sm:$0xff]
  %v7695 = vld [vmem:[%s7692 + $0x10] sm:$0xff]
  %v7696 = vld [vmem:[%s7692 + $0x18] sm:$0xff]
  %s7697 = scalar_lea.vmem %s12, 1
  %v7698 = vld [vmem:[%s7697] sm:$0x1]
  %v7700 = vperm.slane %v7698, 0
  %v7766 = vsel %vm6634, %v7257, %v7250
  %v7767 = vsel %vm6636, %v7264, %v7766
  %v7768 = vsel %vm6638, %v7271, %v7767
  %v7769 = vsel %vm6640, %v7278, %v7768
  %v7770 = vsel %vm6642, %v7285, %v7769
  %v7771 = vsel %vm6644, %v7292, %v7770
  %v7772 = vsel %vm6646, %v7299, %v7771
  %v7773 = vsel %vm6634, %v7313, %v7306
  %v7774 = vsel %vm6636, %v7320, %v7773
  %v7775 = vsel %vm6638, %v7327, %v7774
  %v7776 = vsel %vm6640, %v7334, %v7775
  %v7777 = vsel %vm6642, %v7341, %v7776
  %v7778 = vsel %vm6644, %v7348, %v7777
  %v7779 = vsel %vm6646, %v7355, %v7778
  %v7780 = vsel %vm6634, %v7369, %v7362
  %v7781 = vsel %vm6636, %v7376, %v7780
  %v7782 = vsel %vm6638, %v7383, %v7781
  %v7783 = vsel %vm6640, %v7390, %v7782
  %v7784 = vsel %vm6642, %v7397, %v7783
  %v7785 = vsel %vm6644, %v7404, %v7784
  %v7786 = vsel %vm6646, %v7411, %v7785
  %v7787 = vsel %vm6634, %v7425, %v7418
  %v7788 = vsel %vm6636, %v7432, %v7787
  %v7789 = vsel %vm6638, %v7439, %v7788
  %v7790 = vsel %vm6640, %v7446, %v7789
  %v7791 = vsel %vm6642, %v7453, %v7790
  %v7792 = vsel %vm6644, %v7460, %v7791
  %v7793 = vsel %vm6646, %v7467, %v7792
  %v7794 = vsel %vm6634, %v7481, %v7474
  %v7795 = vsel %vm6636, %v7488, %v7794
  %v7796 = vsel %vm6638, %v7495, %v7795
  %v7797 = vsel %vm6640, %v7502, %v7796
  %v7798 = vsel %vm6642, %v7509, %v7797
  %v7799 = vsel %vm6644, %v7516, %v7798
  %v7800 = vsel %vm6646, %v7523, %v7799
  %v7801 = vsel %vm6634, %v7537, %v7530
  %v7802 = vsel %vm6636, %v7544, %v7801
  %v7803 = vsel %vm6638, %v7551, %v7802
  %v7804 = vsel %vm6640, %v7558, %v7803
  %v7805 = vsel %vm6642, %v7565, %v7804
  %v7806 = vsel %vm6644, %v7572, %v7805
  %v7807 = vsel %vm6646, %v7579, %v7806
  %v7808 = vsel %vm6634, %v7593, %v7586
  %v7809 = vsel %vm6636, %v7600, %v7808
  %v7810 = vsel %vm6638, %v7607, %v7809
  %v7811 = vsel %vm6640, %v7614, %v7810
  %v7812 = vsel %vm6642, %v7621, %v7811
  %v7813 = vsel %vm6644, %v7628, %v7812
  %v7814 = vsel %vm6646, %v7635, %v7813
  %v7815 = vsel %vm6634, %v7649, %v7642
  %v7816 = vsel %vm6636, %v7656, %v7815
  %v7817 = vsel %vm6638, %v7663, %v7816
  %v7818 = vsel %vm6640, %v7670, %v7817
  %v7819 = vsel %vm6642, %v7677, %v7818
  %v7820 = vsel %vm6644, %v7684, %v7819
  %v7821 = vsel %vm6646, %v7691, %v7820
  %v7822 = vsel %vm6697, %v7772, 0
  %v7824 = vsel %vm6697, %v7779, 0
  %v7826 = vsel %vm6697, %v7786, 0
  %v7828 = vsel %vm6697, %v7793, 0
  %v7830 = vsel %vm6697, %v7800, 0
  %v7832 = vsel %vm6697, %v7807, 0
  %v7834 = vsel %vm6697, %v7814, 0
  %v7836 = vsel %vm6697, %v7821, 0
  %7838 = vmatpush.msra.mxu0 0.0
  %7839 = vmatpush.msra.mxu0 0.0
  %7840 = vmatpush.msra.mxu0 0.0
  %7841 = vmatpush.msra.mxu0 0.0
  %7842 = vmatpush.msra.mxu0 0.0
  %7843 = vmatpush.msra.mxu0 0.0
  %7844 = vmatpush.msra.mxu0 0.0
  %7845 = vmatpush.msra.mxu0 0.0
  %7846 = vmatpush.msra.mxu0 0.0
  %7847 = vmatpush.msra.mxu0 0.0
  %7848 = vmatpush.msra.mxu0 0.0
  %7849 = vmatpush.msra.mxu0 0.0
  %7850 = vmatpush.msra.mxu0 %v7696
  %7851 = vmatpush.msra.mxu0 %v7695
  %7852 = vmatpush.msra.mxu0 %v7694
  %7853 = vmatpush.msra.mxu0 %v7693
  %7854 = vmatmul.f32.gmra.mxu0 %v7822
  %v7855 = vpop.f32.mrf.mxu0
  %v7856 = vadd.f32 %v7700, %v7855
  %7857 = vmatmul.f32.gmra.mxu0 %v7824
  %v7858 = vpop.f32.mrf.mxu0
  %v7859 = vadd.f32 %v7700, %v7858
  %7860 = vmatmul.f32.gmra.mxu0 %v7826
  %v7861 = vpop.f32.mrf.mxu0
  %v7862 = vadd.f32 %v7700, %v7861
  %7863 = vmatmul.f32.gmra.mxu0 %v7828
  %v7864 = vpop.f32.mrf.mxu0
  %v7865 = vadd.f32 %v7700, %v7864
  %7866 = vmatmul.f32.gmra.mxu0 %v7830
  %v7867 = vpop.f32.mrf.mxu0
  %v7868 = vadd.f32 %v7700, %v7867
  %7869 = vmatmul.f32.gmra.mxu0 %v7832
  %v7870 = vpop.f32.mrf.mxu0
  %v7871 = vadd.f32 %v7700, %v7870
  %7872 = vmatmul.f32.gmra.mxu0 %v7834
  %v7873 = vpop.f32.mrf.mxu0
  %v7874 = vadd.f32 %v7700, %v7873
  %7875 = vmatmul.f32.gmra.mxu0 %v7836
  %v7876 = vpop.f32.mrf.mxu0
  %v7877 = vadd.f32 %v7700, %v7876
  %7878 = vdwg.mxu0
  %v7879 = vxor.u32 %v7856, 2147483648
  %v7880 = vxor.u32 %v7859, 2147483648
  %v7881 = vxor.u32 %v7862, 2147483648
  %v7882 = vxor.u32 %v7865, 2147483648
  %v7883 = vxor.u32 %v7868, 2147483648
  %v7884 = vxor.u32 %v7871, 2147483648
  %v7885 = vxor.u32 %v7874, 2147483648
  %v7886 = vxor.u32 %v7877, 2147483648
  %v7887 = vmul.f32 %v7879, 1.442695
  %v7888 = vpow.pop %v7887
  %v7889 = vmul.f32 %v7880, 1.442695
  %v7890 = vpow.pop %v7889
  %v7891 = vmul.f32 %v7881, 1.442695
  %v7892 = vpow.pop %v7891
  %v7893 = vmul.f32 %v7882, 1.442695
  %v7894 = vpow.pop %v7893
  %v7895 = vmul.f32 %v7883, 1.442695
  %v7896 = vpow.pop %v7895
  %v7897 = vmul.f32 %v7884, 1.442695
  %v7898 = vpow.pop %v7897
  %v7899 = vmul.f32 %v7885, 1.442695
  %v7900 = vpow.pop %v7899
  %v7901 = vmul.f32 %v7886, 1.442695
  %v7902 = vpow.pop %v7901
  %v7903 = vadd.f32 %v7888, 1.0
  %v7904 = vadd.f32 %v7890, 1.0
  %v7905 = vadd.f32 %v7892, 1.0
  %v7906 = vadd.f32 %v7894, 1.0
  %v7907 = vadd.f32 %v7896, 1.0
  %v7908 = vadd.f32 %v7898, 1.0
  %v7909 = vadd.f32 %v7900, 1.0
  %v7910 = vadd.f32 %v7902, 1.0
  %v7911 = vrcp.pop %v7903
  %v7912 = vmul.f32 %v7903, %v7911
  %v7913 = vsub.f32 1.0, %v7912
  %v7914 = vmul.f32 %v7911, %v7913
  %v7915 = vadd.f32 %v7911, %v7914
  %vm7916 = vweird.f32 %v7903
  %vm7917 = vweird.f32 %v7911
  %vm7918 = vmor %vm7916, %vm7917
  %v7919 = vsel %vm7918, %v7911, %v7915
  %v7920 = vand.u32 2147483647, %v7903
  %vm7921 = vcmp.eq.f32.partialorder %v7920, 8.507059e+37
  %v7922 = vand.u32 %v7903, 2147483648
  %v7923 = vor.u32 1.1754944e-38, %v7922
  %v7924 = vsel %vm7921, %v7923, %v7919
  %v7925 = vmul.f32 1.0, %v7924
  %v7926 = vrcp.pop %v7904
  %v7927 = vmul.f32 %v7904, %v7926
  %v7928 = vsub.f32 1.0, %v7927
  %v7929 = vmul.f32 %v7926, %v7928
  %v7930 = vadd.f32 %v7926, %v7929
  %vm7931 = vweird.f32 %v7904
  %vm7932 = vweird.f32 %v7926
  %vm7933 = vmor %vm7931, %vm7932
  %v7934 = vsel %vm7933, %v7926, %v7930
  %v7935 = vand.u32 2147483647, %v7904
  %vm7936 = vcmp.eq.f32.partialorder %v7935, 8.507059e+37
  %v7937 = vand.u32 %v7904, 2147483648
  %v7938 = vor.u32 1.1754944e-38, %v7937
  %v7939 = vsel %vm7936, %v7938, %v7934
  %v7940 = vmul.f32 1.0, %v7939
  %v7941 = vrcp.pop %v7905
  %v7942 = vmul.f32 %v7905, %v7941
  %v7943 = vsub.f32 1.0, %v7942
  %v7944 = vmul.f32 %v7941, %v7943
  %v7945 = vadd.f32 %v7941, %v7944
  %vm7946 = vweird.f32 %v7905
  %vm7947 = vweird.f32 %v7941
  %vm7948 = vmor %vm7946, %vm7947
  %v7949 = vsel %vm7948, %v7941, %v7945
  %v7950 = vand.u32 2147483647, %v7905
  %vm7951 = vcmp.eq.f32.partialorder %v7950, 8.507059e+37
  %v7952 = vand.u32 %v7905, 2147483648
  %v7953 = vor.u32 1.1754944e-38, %v7952
  %v7954 = vsel %vm7951, %v7953, %v7949
  %v7955 = vmul.f32 1.0, %v7954
  %v7956 = vrcp.pop %v7906
  %v7957 = vmul.f32 %v7906, %v7956
  %v7958 = vsub.f32 1.0, %v7957
  %v7959 = vmul.f32 %v7956, %v7958
  %v7960 = vadd.f32 %v7956, %v7959
  %vm7961 = vweird.f32 %v7906
  %vm7962 = vweird.f32 %v7956
  %vm7963 = vmor %vm7961, %vm7962
  %v7964 = vsel %vm7963, %v7956, %v7960
  %v7965 = vand.u32 2147483647, %v7906
  %vm7966 = vcmp.eq.f32.partialorder %v7965, 8.507059e+37
  %v7967 = vand.u32 %v7906, 2147483648
  %v7968 = vor.u32 1.1754944e-38, %v7967
  %v7969 = vsel %vm7966, %v7968, %v7964
  %v7970 = vmul.f32 1.0, %v7969
  %v7971 = vrcp.pop %v7907
  %v7972 = vmul.f32 %v7907, %v7971
  %v7973 = vsub.f32 1.0, %v7972
  %v7974 = vmul.f32 %v7971, %v7973
  %v7975 = vadd.f32 %v7971, %v7974
  %vm7976 = vweird.f32 %v7907
  %vm7977 = vweird.f32 %v7971
  %vm7978 = vmor %vm7976, %vm7977
  %v7979 = vsel %vm7978, %v7971, %v7975
  %v7980 = vand.u32 2147483647, %v7907
  %vm7981 = vcmp.eq.f32.partialorder %v7980, 8.507059e+37
  %v7982 = vand.u32 %v7907, 2147483648
  %v7983 = vor.u32 1.1754944e-38, %v7982
  %v7984 = vsel %vm7981, %v7983, %v7979
  %v7985 = vmul.f32 1.0, %v7984
  %v7986 = vrcp.pop %v7908
  %v7987 = vmul.f32 %v7908, %v7986
  %v7988 = vsub.f32 1.0, %v7987
  %v7989 = vmul.f32 %v7986, %v7988
  %v7990 = vadd.f32 %v7986, %v7989
  %vm7991 = vweird.f32 %v7908
  %vm7992 = vweird.f32 %v7986
  %vm7993 = vmor %vm7991, %vm7992
  %v7994 = vsel %vm7993, %v7986, %v7990
  %v7995 = vand.u32 2147483647, %v7908
  %vm7996 = vcmp.eq.f32.partialorder %v7995, 8.507059e+37
  %v7997 = vand.u32 %v7908, 2147483648
  %v7998 = vor.u32 1.1754944e-38, %v7997
  %v7999 = vsel %vm7996, %v7998, %v7994
  %v8000 = vmul.f32 1.0, %v7999
  %v8001 = vrcp.pop %v7909
  %v8002 = vmul.f32 %v7909, %v8001
  %v8003 = vsub.f32 1.0, %v8002
  %v8004 = vmul.f32 %v8001, %v8003
  %v8005 = vadd.f32 %v8001, %v8004
  %vm8006 = vweird.f32 %v7909
  %vm8007 = vweird.f32 %v8001
  %vm8008 = vmor %vm8006, %vm8007
  %v8009 = vsel %vm8008, %v8001, %v8005
  %v8010 = vand.u32 2147483647, %v7909
  %vm8011 = vcmp.eq.f32.partialorder %v8010, 8.507059e+37
  %v8012 = vand.u32 %v7909, 2147483648
  %v8013 = vor.u32 1.1754944e-38, %v8012
  %v8014 = vsel %vm8011, %v8013, %v8009
  %v8015 = vmul.f32 1.0, %v8014
  %v8016 = vrcp.pop %v7910
  %v8017 = vmul.f32 %v7910, %v8016
  %v8018 = vsub.f32 1.0, %v8017
  %v8019 = vmul.f32 %v8016, %v8018
  %v8020 = vadd.f32 %v8016, %v8019
  %vm8021 = vweird.f32 %v7910
  %vm8022 = vweird.f32 %v8016
  %vm8023 = vmor %vm8021, %vm8022
  %v8024 = vsel %vm8023, %v8016, %v8020
  %v8025 = vand.u32 2147483647, %v7910
  %vm8026 = vcmp.eq.f32.partialorder %v8025, 8.507059e+37
  %v8027 = vand.u32 %v7910, 2147483648
  %v8028 = vor.u32 1.1754944e-38, %v8027
  %v8029 = vsel %vm8026, %v8028, %v8024
  %v8030 = vmul.f32 1.0, %v8029
  %v8031 = vmul.f32 %v7856, %v7925
  %v8032 = vmul.f32 %v7859, %v7940
  %v8033 = vmul.f32 %v7862, %v7955
  %v8034 = vmul.f32 %v7865, %v7970
  %v8035 = vmul.f32 %v7868, %v7985
  %v8036 = vmul.f32 %v7871, %v8000
  %v8037 = vmul.f32 %v7874, %v8015
  %v8038 = vmul.f32 %v7877, %v8030
  %s8039 = scalar_lea.vmem %s13, 32
  %v8040 = vld [vmem:[%s8039] sm:$0xff]
  %v8041 = vld [vmem:[%s8039 + $0x8] sm:$0xff]
  %v8042 = vld [vmem:[%s8039 + $0x10] sm:$0xff]
  %v8043 = vld [vmem:[%s8039 + $0x18] sm:$0xff]
  %s8044 = scalar_lea.vmem %s14, 1
  %v8045 = vld [vmem:[%s8044] sm:$0x1]
  %v8047 = vperm.slane %v8045, 0
  %v8050 = vsel %vm6697, %v8031, 0
  %v8053 = vsel %vm6697, %v8032, 0
  %v8056 = vsel %vm6697, %v8033, 0
  %v8059 = vsel %vm6697, %v8034, 0
  %v8062 = vsel %vm6697, %v8035, 0
  %v8065 = vsel %vm6697, %v8036, 0
  %v8068 = vsel %vm6697, %v8037, 0
  %v8071 = vsel %vm6697, %v8038, 0
  %8073 = vmatpush.msra.mxu0 0.0
  %8074 = vmatpush.msra.mxu0 0.0
  %8075 = vmatpush.msra.mxu0 0.0
  %8076 = vmatpush.msra.mxu0 0.0
  %8077 = vmatpush.msra.mxu0 0.0
  %8078 = vmatpush.msra.mxu0 0.0
  %8079 = vmatpush.msra.mxu0 0.0
  %8080 = vmatpush.msra.mxu0 0.0
  %8081 = vmatpush.msra.mxu0 0.0
  %8082 = vmatpush.msra.mxu0 0.0
  %8083 = vmatpush.msra.mxu0 0.0
  %8084 = vmatpush.msra.mxu0 0.0
  %8085 = vmatpush.msra.mxu0 %v8043
  %8086 = vmatpush.msra.mxu0 %v8042
  %8087 = vmatpush.msra.mxu0 %v8041
  %8088 = vmatpush.msra.mxu0 %v8040
  %8089 = vmatmul.f32.gmra.mxu0 %v8050
  %v8090 = vpop.f32.mrf.mxu0
  %v8091 = vadd.f32 %v8047, %v8090
  %8092 = vmatmul.f32.gmra.mxu0 %v8053
  %v8093 = vpop.f32.mrf.mxu0
  %v8094 = vadd.f32 %v8047, %v8093
  %8095 = vmatmul.f32.gmra.mxu0 %v8056
  %v8096 = vpop.f32.mrf.mxu0
  %v8097 = vadd.f32 %v8047, %v8096
  %8098 = vmatmul.f32.gmra.mxu0 %v8059
  %v8099 = vpop.f32.mrf.mxu0
  %v8100 = vadd.f32 %v8047, %v8099
  %8101 = vmatmul.f32.gmra.mxu0 %v8062
  %v8102 = vpop.f32.mrf.mxu0
  %v8103 = vadd.f32 %v8047, %v8102
  %8104 = vmatmul.f32.gmra.mxu0 %v8065
  %v8105 = vpop.f32.mrf.mxu0
  %v8106 = vadd.f32 %v8047, %v8105
  %8107 = vmatmul.f32.gmra.mxu0 %v8068
  %v8108 = vpop.f32.mrf.mxu0
  %v8109 = vadd.f32 %v8047, %v8108
  %8110 = vmatmul.f32.gmra.mxu0 %v8071
  %v8111 = vpop.f32.mrf.mxu0
  %v8112 = vadd.f32 %v8047, %v8111
  %8113 = vdwg.mxu0
  %v8114 = vxor.u32 %v8091, 2147483648
  %v8115 = vxor.u32 %v8094, 2147483648
  %v8116 = vxor.u32 %v8097, 2147483648
  %v8117 = vxor.u32 %v8100, 2147483648
  %v8118 = vxor.u32 %v8103, 2147483648
  %v8119 = vxor.u32 %v8106, 2147483648
  %v8120 = vxor.u32 %v8109, 2147483648
  %v8121 = vxor.u32 %v8112, 2147483648
  %v8122 = vmul.f32 %v8114, 1.442695
  %v8123 = vpow.pop %v8122
  %v8124 = vmul.f32 %v8115, 1.442695
  %v8125 = vpow.pop %v8124
  %v8126 = vmul.f32 %v8116, 1.442695
  %v8127 = vpow.pop %v8126
  %v8128 = vmul.f32 %v8117, 1.442695
  %v8129 = vpow.pop %v8128
  %v8130 = vmul.f32 %v8118, 1.442695
  %v8131 = vpow.pop %v8130
  %v8132 = vmul.f32 %v8119, 1.442695
  %v8133 = vpow.pop %v8132
  %v8134 = vmul.f32 %v8120, 1.442695
  %v8135 = vpow.pop %v8134
  %v8136 = vmul.f32 %v8121, 1.442695
  %v8137 = vpow.pop %v8136
  %v8138 = vadd.f32 %v8123, 1.0
  %v8139 = vadd.f32 %v8125, 1.0
  %v8140 = vadd.f32 %v8127, 1.0
  %v8141 = vadd.f32 %v8129, 1.0
  %v8142 = vadd.f32 %v8131, 1.0
  %v8143 = vadd.f32 %v8133, 1.0
  %v8144 = vadd.f32 %v8135, 1.0
  %v8145 = vadd.f32 %v8137, 1.0
  %v8146 = vrcp.pop %v8138
  %v8147 = vmul.f32 %v8138, %v8146
  %v8148 = vsub.f32 1.0, %v8147
  %v8149 = vmul.f32 %v8146, %v8148
  %v8150 = vadd.f32 %v8146, %v8149
  %vm8151 = vweird.f32 %v8138
  %vm8152 = vweird.f32 %v8146
  %vm8153 = vmor %vm8151, %vm8152
  %v8154 = vsel %vm8153, %v8146, %v8150
  %v8155 = vand.u32 2147483647, %v8138
  %vm8156 = vcmp.eq.f32.partialorder %v8155, 8.507059e+37
  %v8157 = vand.u32 %v8138, 2147483648
  %v8158 = vor.u32 1.1754944e-38, %v8157
  %v8159 = vsel %vm8156, %v8158, %v8154
  %v8160 = vmul.f32 1.0, %v8159
  %v8161 = vrcp.pop %v8139
  %v8162 = vmul.f32 %v8139, %v8161
  %v8163 = vsub.f32 1.0, %v8162
  %v8164 = vmul.f32 %v8161, %v8163
  %v8165 = vadd.f32 %v8161, %v8164
  %vm8166 = vweird.f32 %v8139
  %vm8167 = vweird.f32 %v8161
  %vm8168 = vmor %vm8166, %vm8167
  %v8169 = vsel %vm8168, %v8161, %v8165
  %v8170 = vand.u32 2147483647, %v8139
  %vm8171 = vcmp.eq.f32.partialorder %v8170, 8.507059e+37
  %v8172 = vand.u32 %v8139, 2147483648
  %v8173 = vor.u32 1.1754944e-38, %v8172
  %v8174 = vsel %vm8171, %v8173, %v8169
  %v8175 = vmul.f32 1.0, %v8174
  %v8176 = vrcp.pop %v8140
  %v8177 = vmul.f32 %v8140, %v8176
  %v8178 = vsub.f32 1.0, %v8177
  %v8179 = vmul.f32 %v8176, %v8178
  %v8180 = vadd.f32 %v8176, %v8179
  %vm8181 = vweird.f32 %v8140
  %vm8182 = vweird.f32 %v8176
  %vm8183 = vmor %vm8181, %vm8182
  %v8184 = vsel %vm8183, %v8176, %v8180
  %v8185 = vand.u32 2147483647, %v8140
  %vm8186 = vcmp.eq.f32.partialorder %v8185, 8.507059e+37
  %v8187 = vand.u32 %v8140, 2147483648
  %v8188 = vor.u32 1.1754944e-38, %v8187
  %v8189 = vsel %vm8186, %v8188, %v8184
  %v8190 = vmul.f32 1.0, %v8189
  %v8191 = vrcp.pop %v8141
  %v8192 = vmul.f32 %v8141, %v8191
  %v8193 = vsub.f32 1.0, %v8192
  %v8194 = vmul.f32 %v8191, %v8193
  %v8195 = vadd.f32 %v8191, %v8194
  %vm8196 = vweird.f32 %v8141
  %vm8197 = vweird.f32 %v8191
  %vm8198 = vmor %vm8196, %vm8197
  %v8199 = vsel %vm8198, %v8191, %v8195
  %v8200 = vand.u32 2147483647, %v8141
  %vm8201 = vcmp.eq.f32.partialorder %v8200, 8.507059e+37
  %v8202 = vand.u32 %v8141, 2147483648
  %v8203 = vor.u32 1.1754944e-38, %v8202
  %v8204 = vsel %vm8201, %v8203, %v8199
  %v8205 = vmul.f32 1.0, %v8204
  %v8206 = vrcp.pop %v8142
  %v8207 = vmul.f32 %v8142, %v8206
  %v8208 = vsub.f32 1.0, %v8207
  %v8209 = vmul.f32 %v8206, %v8208
  %v8210 = vadd.f32 %v8206, %v8209
  %vm8211 = vweird.f32 %v8142
  %vm8212 = vweird.f32 %v8206
  %vm8213 = vmor %vm8211, %vm8212
  %v8214 = vsel %vm8213, %v8206, %v8210
  %v8215 = vand.u32 2147483647, %v8142
  %vm8216 = vcmp.eq.f32.partialorder %v8215, 8.507059e+37
  %v8217 = vand.u32 %v8142, 2147483648
  %v8218 = vor.u32 1.1754944e-38, %v8217
  %v8219 = vsel %vm8216, %v8218, %v8214
  %v8220 = vmul.f32 1.0, %v8219
  %v8221 = vrcp.pop %v8143
  %v8222 = vmul.f32 %v8143, %v8221
  %v8223 = vsub.f32 1.0, %v8222
  %v8224 = vmul.f32 %v8221, %v8223
  %v8225 = vadd.f32 %v8221, %v8224
  %vm8226 = vweird.f32 %v8143
  %vm8227 = vweird.f32 %v8221
  %vm8228 = vmor %vm8226, %vm8227
  %v8229 = vsel %vm8228, %v8221, %v8225
  %v8230 = vand.u32 2147483647, %v8143
  %vm8231 = vcmp.eq.f32.partialorder %v8230, 8.507059e+37
  %v8232 = vand.u32 %v8143, 2147483648
  %v8233 = vor.u32 1.1754944e-38, %v8232
  %v8234 = vsel %vm8231, %v8233, %v8229
  %v8235 = vmul.f32 1.0, %v8234
  %v8236 = vrcp.pop %v8144
  %v8237 = vmul.f32 %v8144, %v8236
  %v8238 = vsub.f32 1.0, %v8237
  %v8239 = vmul.f32 %v8236, %v8238
  %v8240 = vadd.f32 %v8236, %v8239
  %vm8241 = vweird.f32 %v8144
  %vm8242 = vweird.f32 %v8236
  %vm8243 = vmor %vm8241, %vm8242
  %v8244 = vsel %vm8243, %v8236, %v8240
  %v8245 = vand.u32 2147483647, %v8144
  %vm8246 = vcmp.eq.f32.partialorder %v8245, 8.507059e+37
  %v8247 = vand.u32 %v8144, 2147483648
  %v8248 = vor.u32 1.1754944e-38, %v8247
  %v8249 = vsel %vm8246, %v8248, %v8244
  %v8250 = vmul.f32 1.0, %v8249
  %v8251 = vrcp.pop %v8145
  %v8252 = vmul.f32 %v8145, %v8251
  %v8253 = vsub.f32 1.0, %v8252
  %v8254 = vmul.f32 %v8251, %v8253
  %v8255 = vadd.f32 %v8251, %v8254
  %vm8256 = vweird.f32 %v8145
  %vm8257 = vweird.f32 %v8251
  %vm8258 = vmor %vm8256, %vm8257
  %v8259 = vsel %vm8258, %v8251, %v8255
  %v8260 = vand.u32 2147483647, %v8145
  %vm8261 = vcmp.eq.f32.partialorder %v8260, 8.507059e+37
  %v8262 = vand.u32 %v8145, 2147483648
  %v8263 = vor.u32 1.1754944e-38, %v8262
  %v8264 = vsel %vm8261, %v8263, %v8259
  %v8265 = vmul.f32 1.0, %v8264
  %v8266 = vmul.f32 %v8091, %v8160
  %v8267 = vmul.f32 %v8094, %v8175
  %v8268 = vmul.f32 %v8097, %v8190
  %v8269 = vmul.f32 %v8100, %v8205
  %v8270 = vmul.f32 %v8103, %v8220
  %v8271 = vmul.f32 %v8106, %v8235
  %v8272 = vmul.f32 %v8109, %v8250
  %v8273 = vmul.f32 %v8112, %v8265
  %v8274 = vadd.f32 %v7148, %v8266
  %v8275 = vadd.f32 %v7149, %v8267
  %v8276 = vadd.f32 %v7150, %v8268
  %v8277 = vadd.f32 %v7151, %v8269
  %v8278 = vadd.f32 %v7152, %v8270
  %v8279 = vadd.f32 %v7153, %v8271
  %v8280 = vadd.f32 %v7154, %v8272
  %v8281 = vadd.f32 %v7155, %v8273
  %v8282 = vld [vmem:[%s3] sm:$0xff]
  %v8283 = vld [vmem:[%s3 + $0x8] sm:$0xff]
  %v8284 = vmul.f32 %v8282, %v560
  %v8285 = vmul.f32 %v8283, %v560
  %v8286 = vmax.f32 %v8284, 0.0
  %v8287 = vmax.f32 %v8285, 0.0
  %v8288 = vmin.f32 %v8286, 1.0
  %v8289 = vmin.f32 %v8287, 1.0
  %v8290 = vmul.f32 %v8288, 3.1415927
  %v8291 = vmul.f32 %v8289, 3.1415927
  %v8292 = vand.u32 2147483647, %v8290
  %vm8293 = vcmp.le.f32.partialorder %v8292, 0.7853982
  %vm8294 = vcmp.lt.s32.totalorder %v8290, 0
  %v8295 = vand.u32 %v8290, 2139095040
  %v8296 = vshrl.u32 %v8295, 23
  %v8297 = vsub.s32 %v8296, 127
  %v8298 = vand.u32 2147483647, %v8290
  %v8299 = vand.u32 %v8298, 8388607
  %v8300 = vor.u32 %v8299, 8388608
  %v8301 = vsub.s32 0, %v8300
  %v8302 = vadd.s32 %v8297, 1
  %vm8303 = vcmp.gt.s32.totalorder %v8302, 0
  %v8304 = vsel %vm8303, %v8302, 0
  %v8305 = vshrl.u32 %v8304, 5
  %v8306 = vand.u32 %v8304, 31
  %v8307 = vsub.s32 32, %v8306
  %v8308 = vshrl.u32 683565275, %v8307
  %v8309 = vshll.u32 683565275, %v8306
  %v8310 = vshrl.u32 2475754826, %v8307
  %v8311 = vor.u32 %v8309, %v8310
  %v8312 = vshll.u32 2475754826, %v8306
  %v8313 = vshrl.u32 2131351028, %v8307
  %v8314 = vor.u32 %v8312, %v8313
  %v8315 = vshll.u32 2131351028, %v8306
  %v8316 = vshrl.u32 2102212464, %v8307
  %v8317 = vor.u32 %v8315, %v8316
  %v8318 = vshll.u32 2102212464, %v8306
  %v8319 = vshrl.u32 920167782, %v8307
  %v8320 = vor.u32 %v8318, %v8319
  %v8321 = vshll.u32 920167782, %v8306
  %v8322 = vshrl.u32 1326507024, %v8307
  %v8323 = vor.u32 %v8321, %v8322
  %vm8324 = vcmp.lt.s32.totalorder %v8305, 1
  %vm8325 = vcmp.lt.s32.totalorder %v8305, 2
  %vm8326 = vcmp.lt.s32.totalorder %v8305, 3
  %vm8327 = vcmp.lt.s32.totalorder %v8305, 4
  %v8328 = vsel %vm8324, %v8308, %v8311
  %v8329 = vsel %vm8327, %v8317, 2102212464
  %v8330 = vsel %vm8326, %v8314, %v8329
  %v8331 = vsel %vm8325, %v8328, %v8330
  %v8332 = vsel %vm8324, %v8311, %v8314
  %v8333 = vsel %vm8327, %v8320, 920167782
  %v8334 = vsel %vm8326, %v8317, %v8333
  %v8335 = vsel %vm8325, %v8332, %v8334
  %v8336 = vsel %vm8324, %v8314, %v8317
  %v8337 = vsel %vm8327, %v8323, 1326507024
  %v8338 = vsel %vm8326, %v8320, %v8337
  %v8339 = vsel %vm8325, %v8336, %v8338
  %v8340 = vshll.u32 %v8300, 8
  %v8341 = vand.u32 %v8340, 65535
  %v8342 = vshrl.u32 %v8340, 16
  %v8343 = vand.u32 %v8339, 65535
  %v8344 = vshrl.u32 %v8339, 16
  %v8345 = vmul.u32 %v8341, %v8343
  %v8346 = vmul.u32 %v8341, %v8344
  %v8347 = vmul.u32 %v8342, %v8343
  %v8348 = vmul.u32 %v8342, %v8344
  %v8349 = vshll.u32 %v8346, 16
  %v8350 = vshrl.u32 %v8346, 16
  %v8351 = vshll.u32 %v8347, 16
  %v8352 = vshrl.u32 %v8347, 16
  %vm8353 = vc.u32 %v8345, %v8349
  %v8354 = vsel %vm8353, 1, 0
  %v8355 = vadd.s32 %v8345, %v8349
  %v8356 = vadd.s32 %v8348, %v8354
  %vm8357 = vc.u32 %v8355, %v8351
  %v8358 = vsel %vm8357, 1, 0
  %v8359 = vadd.s32 %v8355, %v8351
  %v8360 = vadd.s32 %v8356, %v8358
  %v8361 = vadd.s32 %v8360, %v8350
  %v8362 = vadd.s32 %v8361, %v8352
  %v8363 = vand.u32 %v8340, 65535
  %v8364 = vshrl.u32 %v8340, 16
  %v8365 = vand.u32 %v8335, 65535
  %v8366 = vshrl.u32 %v8335, 16
  %v8367 = vmul.u32 %v8363, %v8365
  %v8368 = vmul.u32 %v8363, %v8366
  %v8369 = vmul.u32 %v8364, %v8365
  %v8370 = vmul.u32 %v8364, %v8366
  %v8371 = vshll.u32 %v8368, 16
  %v8372 = vshrl.u32 %v8368, 16
  %v8373 = vshll.u32 %v8369, 16
  %v8374 = vshrl.u32 %v8369, 16
  %vm8375 = vc.u32 %v8367, %v8371
  %v8376 = vsel %vm8375, 1, 0
  %v8377 = vadd.s32 %v8367, %v8371
  %v8378 = vadd.s32 %v8370, %v8376
  %vm8379 = vc.u32 %v8377, %v8373
  %v8380 = vsel %vm8379, 1, 0
  %v8381 = vadd.s32 %v8377, %v8373
  %v8382 = vadd.s32 %v8378, %v8380
  %v8383 = vadd.s32 %v8382, %v8372
  %v8384 = vadd.s32 %v8383, %v8374
  %v8385 = vmul.u32 %v8340, %v8331
  %v8386 = vadd.s32 %v8362, %v8381
  %vm8387 = vc.u32 %v8362, %v8381
  %v8388 = vadd.s32 %v8384, 1
  %v8389 = vsel %vm8387, %v8388, %v8384
  %v8390 = vadd.s32 %v8385, %v8389
  %v8391 = vadd.s32 %v8390, 536870912
  %v8392 = vshrl.u32 %v8391, 30
  %v8393 = vshll.u32 %v8392, 30
  %v8394 = vsub.s32 %v8390, %v8393
  %vm8395 = vcmp.lt.s32.totalorder %v8394, 0
  %v8396 = vsub.s32 0, %v8394
  %v8397 = vsel %vm8395, %v8396, %v8394
  %v8398 = vclz %v8397
  %v8399 = vsub.s32 %v8398, 2
  %vm8400 = vcmp.gt.s32.totalorder 0, %v8399
  %v8401 = vsel %vm8400, 0, %v8399
  %v8402 = vsub.s32 32, %v8401
  %v8403 = vshll.u32 %v8394, %v8401
  %v8404 = vshrl.u32 %v8386, %v8402
  %v8405 = vor.u32 %v8403, %v8404
  %v8406 = vsub.s32 4294967266, %v8401
  %v8407 = vadd.s32 %v8406, 127
  %v8408 = vshll.u32 %v8407, 23
  %v8409 = vor.u32 4788187, %v8408
  %v8410 = vand.u32 2147483647, %v8409
  %v8412 = vcvt.s32.f32 %v8405
  %v8413 = vmul.f32 %v8412, %v8410
  %v8414 = vxor.u32 %v8413, 2147483648
  %v8415 = vsel %vm8294, %v8414, %v8413
  %v8416 = vsub.s32 4, %v8392
  %v8417 = vsel %vm8294, %v8416, %v8392
  %v8418 = vsel %vm8293, %v8290, %v8415
  %v8419 = vsel %vm8293, 0, %v8417
  %v8420 = vmul.f32 %v8418, %v8418
  %v8421 = vmul.f32 %v8420, -0.001358992
  %v8422 = vadd.f32 %v8421, 0.041655596
  %v8423 = vmul.f32 %v8420, %v8422
  %v8424 = vadd.f32 %v8423, -0.4999988
  %v8425 = vmul.f32 %v8420, %v8424
  %v8426 = vadd.f32 1.0, %v8425
  %v8427 = vmul.f32 %v8418, %v8418
  %v8428 = vmul.f32 %v8427, -0.00019511016
  %v8429 = vadd.f32 %v8428, 0.008332121
  %v8430 = vmul.f32 %v8427, %v8429
  %v8431 = vadd.f32 %v8430, -0.16666654
  %v8432 = vmul.f32 %v8427, %v8431
  %v8433 = vadd.f32 %v8432, 1.0
  %v8434 = vmul.f32 %v8433, %v8418
  %vm8435 = vweird.f32 %v8290
  %v8436 = vand.u32 %v8419, 3
  %vm8437 = vcmp.lt.s32.totalorder %v8436, 2
  %vm8438 = vcmp.eq.s32.totalorder %v8436, 0
  %v8439 = vxor.u32 %v8434, 2147483648
  %v8440 = vsel %vm8438, %v8426, %v8439
  %vm8441 = vcmp.eq.s32.totalorder %v8436, 2
  %v8442 = vxor.u32 %v8426, 2147483648
  %v8443 = vsel %vm8441, %v8442, %v8434
  %v8444 = vsel %vm8437, %v8440, %v8443
  %v8445 = vsel %vm8435, nan, %v8444
  %v8446 = vand.u32 2147483647, %v8291
  %vm8447 = vcmp.le.f32.partialorder %v8446, 0.7853982
  %vm8448 = vcmp.lt.s32.totalorder %v8291, 0
  %v8449 = vand.u32 %v8291, 2139095040
  %v8450 = vshrl.u32 %v8449, 23
  %v8451 = vsub.s32 %v8450, 127
  %v8452 = vand.u32 2147483647, %v8291
  %v8453 = vand.u32 %v8452, 8388607
  %v8454 = vor.u32 %v8453, 8388608
  %v8455 = vsub.s32 0, %v8454
  %v8456 = vadd.s32 %v8451, 1
  %vm8457 = vcmp.gt.s32.totalorder %v8456, 0
  %v8458 = vsel %vm8457, %v8456, 0
  %v8459 = vshrl.u32 %v8458, 5
  %v8460 = vand.u32 %v8458, 31
  %v8461 = vsub.s32 32, %v8460
  %v8462 = vshrl.u32 683565275, %v8461
  %v8463 = vshll.u32 683565275, %v8460
  %v8464 = vshrl.u32 2475754826, %v8461
  %v8465 = vor.u32 %v8463, %v8464
  %v8466 = vshll.u32 2475754826, %v8460
  %v8467 = vshrl.u32 2131351028, %v8461
  %v8468 = vor.u32 %v8466, %v8467
  %v8469 = vshll.u32 2131351028, %v8460
  %v8470 = vshrl.u32 2102212464, %v8461
  %v8471 = vor.u32 %v8469, %v8470
  %v8472 = vshll.u32 2102212464, %v8460
  %v8473 = vshrl.u32 920167782, %v8461
  %v8474 = vor.u32 %v8472, %v8473
  %v8475 = vshll.u32 920167782, %v8460
  %v8476 = vshrl.u32 1326507024, %v8461
  %v8477 = vor.u32 %v8475, %v8476
  %vm8478 = vcmp.lt.s32.totalorder %v8459, 1
  %vm8479 = vcmp.lt.s32.totalorder %v8459, 2
  %vm8480 = vcmp.lt.s32.totalorder %v8459, 3
  %vm8481 = vcmp.lt.s32.totalorder %v8459, 4
  %v8482 = vsel %vm8478, %v8462, %v8465
  %v8483 = vsel %vm8481, %v8471, 2102212464
  %v8484 = vsel %vm8480, %v8468, %v8483
  %v8485 = vsel %vm8479, %v8482, %v8484
  %v8486 = vsel %vm8478, %v8465, %v8468
  %v8487 = vsel %vm8481, %v8474, 920167782
  %v8488 = vsel %vm8480, %v8471, %v8487
  %v8489 = vsel %vm8479, %v8486, %v8488
  %v8490 = vsel %vm8478, %v8468, %v8471
  %v8491 = vsel %vm8481, %v8477, 1326507024
  %v8492 = vsel %vm8480, %v8474, %v8491
  %v8493 = vsel %vm8479, %v8490, %v8492
  %v8494 = vshll.u32 %v8454, 8
  %v8495 = vand.u32 %v8494, 65535
  %v8496 = vshrl.u32 %v8494, 16
  %v8497 = vand.u32 %v8493, 65535
  %v8498 = vshrl.u32 %v8493, 16
  %v8499 = vmul.u32 %v8495, %v8497
  %v8500 = vmul.u32 %v8495, %v8498
  %v8501 = vmul.u32 %v8496, %v8497
  %v8502 = vmul.u32 %v8496, %v8498
  %v8503 = vshll.u32 %v8500, 16
  %v8504 = vshrl.u32 %v8500, 16
  %v8505 = vshll.u32 %v8501, 16
  %v8506 = vshrl.u32 %v8501, 16
  %vm8507 = vc.u32 %v8499, %v8503
  %v8508 = vsel %vm8507, 1, 0
  %v8509 = vadd.s32 %v8499, %v8503
  %v8510 = vadd.s32 %v8502, %v8508
  %vm8511 = vc.u32 %v8509, %v8505
  %v8512 = vsel %vm8511, 1, 0
  %v8513 = vadd.s32 %v8509, %v8505
  %v8514 = vadd.s32 %v8510, %v8512
  %v8515 = vadd.s32 %v8514, %v8504
  %v8516 = vadd.s32 %v8515, %v8506
  %v8517 = vand.u32 %v8494, 65535
  %v8518 = vshrl.u32 %v8494, 16
  %v8519 = vand.u32 %v8489, 65535
  %v8520 = vshrl.u32 %v8489, 16
  %v8521 = vmul.u32 %v8517, %v8519
  %v8522 = vmul.u32 %v8517, %v8520
  %v8523 = vmul.u32 %v8518, %v8519
  %v8524 = vmul.u32 %v8518, %v8520
  %v8525 = vshll.u32 %v8522, 16
  %v8526 = vshrl.u32 %v8522, 16
  %v8527 = vshll.u32 %v8523, 16
  %v8528 = vshrl.u32 %v8523, 16
  %vm8529 = vc.u32 %v8521, %v8525
  %v8530 = vsel %vm8529, 1, 0
  %v8531 = vadd.s32 %v8521, %v8525
  %v8532 = vadd.s32 %v8524, %v8530
  %vm8533 = vc.u32 %v8531, %v8527
  %v8534 = vsel %vm8533, 1, 0
  %v8535 = vadd.s32 %v8531, %v8527
  %v8536 = vadd.s32 %v8532, %v8534
  %v8537 = vadd.s32 %v8536, %v8526
  %v8538 = vadd.s32 %v8537, %v8528
  %v8539 = vmul.u32 %v8494, %v8485
  %v8540 = vadd.s32 %v8516, %v8535
  %vm8541 = vc.u32 %v8516, %v8535
  %v8542 = vadd.s32 %v8538, 1
  %v8543 = vsel %vm8541, %v8542, %v8538
  %v8544 = vadd.s32 %v8539, %v8543
  %v8545 = vadd.s32 %v8544, 536870912
  %v8546 = vshrl.u32 %v8545, 30
  %v8547 = vshll.u32 %v8546, 30
  %v8548 = vsub.s32 %v8544, %v8547
  %vm8549 = vcmp.lt.s32.totalorder %v8548, 0
  %v8550 = vsub.s32 0, %v8548
  %v8551 = vsel %vm8549, %v8550, %v8548
  %v8552 = vclz %v8551
  %v8553 = vsub.s32 %v8552, 2
  %vm8554 = vcmp.gt.s32.totalorder 0, %v8553
  %v8555 = vsel %vm8554, 0, %v8553
  %v8556 = vsub.s32 32, %v8555
  %v8557 = vshll.u32 %v8548, %v8555
  %v8558 = vshrl.u32 %v8540, %v8556
  %v8559 = vor.u32 %v8557, %v8558
  %v8560 = vsub.s32 4294967266, %v8555
  %v8561 = vadd.s32 %v8560, 127
  %v8562 = vshll.u32 %v8561, 23
  %v8563 = vor.u32 4788187, %v8562
  %v8564 = vand.u32 2147483647, %v8563
  %v8566 = vcvt.s32.f32 %v8559
  %v8567 = vmul.f32 %v8566, %v8564
  %v8568 = vxor.u32 %v8567, 2147483648
  %v8569 = vsel %vm8448, %v8568, %v8567
  %v8570 = vsub.s32 4, %v8546
  %v8571 = vsel %vm8448, %v8570, %v8546
  %v8572 = vsel %vm8447, %v8291, %v8569
  %v8573 = vsel %vm8447, 0, %v8571
  %v8574 = vmul.f32 %v8572, %v8572
  %v8575 = vmul.f32 %v8574, -0.001358992
  %v8576 = vadd.f32 %v8575, 0.041655596
  %v8577 = vmul.f32 %v8574, %v8576
  %v8578 = vadd.f32 %v8577, -0.4999988
  %v8579 = vmul.f32 %v8574, %v8578
  %v8580 = vadd.f32 1.0, %v8579
  %v8581 = vmul.f32 %v8572, %v8572
  %v8582 = vmul.f32 %v8581, -0.00019511016
  %v8583 = vadd.f32 %v8582, 0.008332121
  %v8584 = vmul.f32 %v8581, %v8583
  %v8585 = vadd.f32 %v8584, -0.16666654
  %v8586 = vmul.f32 %v8581, %v8585
  %v8587 = vadd.f32 %v8586, 1.0
  %v8588 = vmul.f32 %v8587, %v8572
  %vm8589 = vweird.f32 %v8291
  %v8590 = vand.u32 %v8573, 3
  %vm8591 = vcmp.lt.s32.totalorder %v8590, 2
  %vm8592 = vcmp.eq.s32.totalorder %v8590, 0
  %v8593 = vxor.u32 %v8588, 2147483648
  %v8594 = vsel %vm8592, %v8580, %v8593
  %vm8595 = vcmp.eq.s32.totalorder %v8590, 2
  %v8596 = vxor.u32 %v8580, 2147483648
  %v8597 = vsel %vm8595, %v8596, %v8588
  %v8598 = vsel %vm8591, %v8594, %v8597
  %v8599 = vsel %vm8589, nan, %v8598
  %v8600 = vadd.f32 %v8445, 1.0
  %v8601 = vadd.f32 %v8599, 1.0
  %v8602 = vmul.f32 %v8600, 0.5
  %v8603 = vmul.f32 %v8601, 0.5
  %v8604 = vperm.slane %v8602, 0
  %v8605 = vlaneseq
  %v8606 = vshrl.u32 %v8605, 7
  %8608 = vset.pattern.permute.xlu0 %v8606
  %8609 = vperm.xlu0 %8608, %v8604
  %v8610 = vpop.permute.xlu0 %8609
  %v8611 = vperm.slane %v8602, 1
  %v8612 = vlaneseq
  %v8613 = vshrl.u32 %v8612, 7
  %8615 = vset.pattern.permute.xlu0 %v8613
  %8616 = vperm.xlu0 %8615, %v8611
  %v8617 = vpop.permute.xlu0 %8616
  %v8618 = vperm.slane %v8602, 2
  %v8619 = vlaneseq
  %v8620 = vshrl.u32 %v8619, 7
  %8622 = vset.pattern.permute.xlu0 %v8620
  %8623 = vperm.xlu0 %8622, %v8618
  %v8624 = vpop.permute.xlu0 %8623
  %v8625 = vperm.slane %v8602, 3
  %v8626 = vlaneseq
  %v8627 = vshrl.u32 %v8626, 7
  %8629 = vset.pattern.permute.xlu0 %v8627
  %8630 = vperm.xlu0 %8629, %v8625
  %v8631 = vpop.permute.xlu0 %8630
  %v8632 = vperm.slane %v8602, 4
  %v8633 = vlaneseq
  %v8634 = vshrl.u32 %v8633, 7
  %8636 = vset.pattern.permute.xlu0 %v8634
  %8637 = vperm.xlu0 %8636, %v8632
  %v8638 = vpop.permute.xlu0 %8637
  %v8639 = vperm.slane %v8602, 5
  %v8640 = vlaneseq
  %v8641 = vshrl.u32 %v8640, 7
  %8643 = vset.pattern.permute.xlu0 %v8641
  %8644 = vperm.xlu0 %8643, %v8639
  %v8645 = vpop.permute.xlu0 %8644
  %v8646 = vperm.slane %v8602, 6
  %v8647 = vlaneseq
  %v8648 = vshrl.u32 %v8647, 7
  %8650 = vset.pattern.permute.xlu0 %v8648
  %8651 = vperm.xlu0 %8650, %v8646
  %v8652 = vpop.permute.xlu0 %8651
  %v8653 = vperm.slane %v8602, 7
  %v8654 = vlaneseq
  %v8655 = vshrl.u32 %v8654, 7
  %8657 = vset.pattern.permute.xlu0 %v8655
  %8658 = vperm.xlu0 %8657, %v8653
  %v8659 = vpop.permute.xlu0 %8658
  %v8660 = vperm.slane %v8603, 0
  %v8661 = vlaneseq
  %v8662 = vshrl.u32 %v8661, 7
  %8664 = vset.pattern.permute.xlu0 %v8662
  %8665 = vperm.xlu0 %8664, %v8660
  %v8666 = vpop.permute.xlu0 %8665
  %v8667 = vperm.slane %v8603, 1
  %v8668 = vlaneseq
  %v8669 = vshrl.u32 %v8668, 7
  %8671 = vset.pattern.permute.xlu0 %v8669
  %8672 = vperm.xlu0 %8671, %v8667
  %v8673 = vpop.permute.xlu0 %8672
  %v8674 = vperm.slane %v8603, 2
  %v8675 = vlaneseq
  %v8676 = vshrl.u32 %v8675, 7
  %8678 = vset.pattern.permute.xlu0 %v8676
  %8679 = vperm.xlu0 %8678, %v8674
  %v8680 = vpop.permute.xlu0 %8679
  %v8681 = vperm.slane %v8603, 3
  %v8682 = vlaneseq
  %v8683 = vshrl.u32 %v8682, 7
  %8685 = vset.pattern.permute.xlu0 %v8683
  %8686 = vperm.xlu0 %8685, %v8681
  %v8687 = vpop.permute.xlu0 %8686
  %v8688 = vperm.slane %v8603, 4
  %v8689 = vlaneseq
  %v8690 = vshrl.u32 %v8689, 7
  %8692 = vset.pattern.permute.xlu0 %v8690
  %8693 = vperm.xlu0 %8692, %v8688
  %v8694 = vpop.permute.xlu0 %8693
  %v8695 = vperm.slane %v8603, 5
  %v8696 = vlaneseq
  %v8697 = vshrl.u32 %v8696, 7
  %8699 = vset.pattern.permute.xlu0 %v8697
  %8700 = vperm.xlu0 %8699, %v8695
  %v8701 = vpop.permute.xlu0 %8700
  %v8702 = vperm.slane %v8603, 6
  %v8703 = vlaneseq
  %v8704 = vshrl.u32 %v8703, 7
  %8706 = vset.pattern.permute.xlu0 %v8704
  %8707 = vperm.xlu0 %8706, %v8702
  %v8708 = vpop.permute.xlu0 %8707
  %v8709 = vperm.slane %v8603, 7
  %v8710 = vlaneseq
  %v8711 = vshrl.u32 %v8710, 7
  %8713 = vset.pattern.permute.xlu0 %v8711
  %8714 = vperm.xlu0 %8713, %v8709
  %v8715 = vpop.permute.xlu0 %8714
  %v8724 = vrot.slane %v8274, 4
  %v8725 = vrot.slane %v8275, 4
  %v8726 = vrot.slane %v8276, 4
  %v8727 = vrot.slane %v8277, 4
  %v8728 = vrot.slane %v8278, 4
  %v8729 = vrot.slane %v8279, 4
  %v8730 = vrot.slane %v8280, 4
  %v8731 = vrot.slane %v8281, 4
  %v8740 = vmul.f32 %v8610, %v8274
  %v8741 = vmul.f32 %v8617, %v8724
  %v8742 = vmul.f32 %v8624, %v8275
  %v8743 = vmul.f32 %v8631, %v8725
  %v8744 = vmul.f32 %v8638, %v8276
  %v8745 = vmul.f32 %v8645, %v8726
  %v8746 = vmul.f32 %v8652, %v8277
  %v8747 = vmul.f32 %v8659, %v8727
  %v8748 = vmul.f32 %v8666, %v8278
  %v8749 = vmul.f32 %v8673, %v8728
  %v8750 = vmul.f32 %v8680, %v8279
  %v8751 = vmul.f32 %v8687, %v8729
  %v8752 = vmul.f32 %v8694, %v8280
  %v8753 = vmul.f32 %v8701, %v8730
  %v8754 = vmul.f32 %v8708, %v8281
  %v8755 = vmul.f32 %v8715, %v8731
  %v8756 = vsel %vm6113, %v8740, 0.0
  %v8757 = vrot.slane %v8756, 4
  %v8758 = vadd.f32 %v8756, %v8757
  %v8759 = vrot.slane %v8758, 2
  %v8760 = vadd.f32 %v8758, %v8759
  %v8761 = vrot.slane %v8760, 1
  %v8762 = vadd.f32 %v8760, %v8761
  %v8763 = vsel %vm6113, %v8741, 0.0
  %v8764 = vrot.slane %v8763, 4
  %v8765 = vadd.f32 %v8763, %v8764
  %v8766 = vrot.slane %v8765, 2
  %v8767 = vadd.f32 %v8765, %v8766
  %v8768 = vrot.slane %v8767, 1
  %v8769 = vadd.f32 %v8767, %v8768
  %v8770 = vsel %vm6113, %v8742, 0.0
  %v8771 = vrot.slane %v8770, 4
  %v8772 = vadd.f32 %v8770, %v8771
  %v8773 = vrot.slane %v8772, 2
  %v8774 = vadd.f32 %v8772, %v8773
  %v8775 = vrot.slane %v8774, 1
  %v8776 = vadd.f32 %v8774, %v8775
  %v8777 = vsel %vm6113, %v8743, 0.0
  %v8778 = vrot.slane %v8777, 4
  %v8779 = vadd.f32 %v8777, %v8778
  %v8780 = vrot.slane %v8779, 2
  %v8781 = vadd.f32 %v8779, %v8780
  %v8782 = vrot.slane %v8781, 1
  %v8783 = vadd.f32 %v8781, %v8782
  %v8784 = vsel %vm6113, %v8744, 0.0
  %v8785 = vrot.slane %v8784, 4
  %v8786 = vadd.f32 %v8784, %v8785
  %v8787 = vrot.slane %v8786, 2
  %v8788 = vadd.f32 %v8786, %v8787
  %v8789 = vrot.slane %v8788, 1
  %v8790 = vadd.f32 %v8788, %v8789
  %v8791 = vsel %vm6113, %v8745, 0.0
  %v8792 = vrot.slane %v8791, 4
  %v8793 = vadd.f32 %v8791, %v8792
  %v8794 = vrot.slane %v8793, 2
  %v8795 = vadd.f32 %v8793, %v8794
  %v8796 = vrot.slane %v8795, 1
  %v8797 = vadd.f32 %v8795, %v8796
  %v8798 = vsel %vm6113, %v8746, 0.0
  %v8799 = vrot.slane %v8798, 4
  %v8800 = vadd.f32 %v8798, %v8799
  %v8801 = vrot.slane %v8800, 2
  %v8802 = vadd.f32 %v8800, %v8801
  %v8803 = vrot.slane %v8802, 1
  %v8804 = vadd.f32 %v8802, %v8803
  %v8805 = vsel %vm6113, %v8747, 0.0
  %v8806 = vrot.slane %v8805, 4
  %v8807 = vadd.f32 %v8805, %v8806
  %v8808 = vrot.slane %v8807, 2
  %v8809 = vadd.f32 %v8807, %v8808
  %v8810 = vrot.slane %v8809, 1
  %v8811 = vadd.f32 %v8809, %v8810
  %v8812 = vsel %vm6113, %v8748, 0.0
  %v8813 = vrot.slane %v8812, 4
  %v8814 = vadd.f32 %v8812, %v8813
  %v8815 = vrot.slane %v8814, 2
  %v8816 = vadd.f32 %v8814, %v8815
  %v8817 = vrot.slane %v8816, 1
  %v8818 = vadd.f32 %v8816, %v8817
  %v8819 = vsel %vm6113, %v8749, 0.0
  %v8820 = vrot.slane %v8819, 4
  %v8821 = vadd.f32 %v8819, %v8820
  %v8822 = vrot.slane %v8821, 2
  %v8823 = vadd.f32 %v8821, %v8822
  %v8824 = vrot.slane %v8823, 1
  %v8825 = vadd.f32 %v8823, %v8824
  %v8826 = vsel %vm6113, %v8750, 0.0
  %v8827 = vrot.slane %v8826, 4
  %v8828 = vadd.f32 %v8826, %v8827
  %v8829 = vrot.slane %v8828, 2
  %v8830 = vadd.f32 %v8828, %v8829
  %v8831 = vrot.slane %v8830, 1
  %v8832 = vadd.f32 %v8830, %v8831
  %v8833 = vsel %vm6113, %v8751, 0.0
  %v8834 = vrot.slane %v8833, 4
  %v8835 = vadd.f32 %v8833, %v8834
  %v8836 = vrot.slane %v8835, 2
  %v8837 = vadd.f32 %v8835, %v8836
  %v8838 = vrot.slane %v8837, 1
  %v8839 = vadd.f32 %v8837, %v8838
  %v8840 = vsel %vm6113, %v8752, 0.0
  %v8841 = vrot.slane %v8840, 4
  %v8842 = vadd.f32 %v8840, %v8841
  %v8843 = vrot.slane %v8842, 2
  %v8844 = vadd.f32 %v8842, %v8843
  %v8845 = vrot.slane %v8844, 1
  %v8846 = vadd.f32 %v8844, %v8845
  %v8847 = vsel %vm6113, %v8753, 0.0
  %v8848 = vrot.slane %v8847, 4
  %v8849 = vadd.f32 %v8847, %v8848
  %v8850 = vrot.slane %v8849, 2
  %v8851 = vadd.f32 %v8849, %v8850
  %v8852 = vrot.slane %v8851, 1
  %v8853 = vadd.f32 %v8851, %v8852
  %v8854 = vsel %vm6113, %v8754, 0.0
  %v8855 = vrot.slane %v8854, 4
  %v8856 = vadd.f32 %v8854, %v8855
  %v8857 = vrot.slane %v8856, 2
  %v8858 = vadd.f32 %v8856, %v8857
  %v8859 = vrot.slane %v8858, 1
  %v8860 = vadd.f32 %v8858, %v8859
  %v8861 = vsel %vm6113, %v8755, 0.0
  %v8862 = vrot.slane %v8861, 4
  %v8863 = vadd.f32 %v8861, %v8862
  %v8864 = vrot.slane %v8863, 2
  %v8865 = vadd.f32 %v8863, %v8864
  %v8866 = vrot.slane %v8865, 1
  %v8867 = vadd.f32 %v8865, %v8866
  %v8868 = vmul.f32 %v8762, 0.5
  %v8869 = vmul.f32 %v8769, 0.5
  %v8870 = vmul.f32 %v8776, 0.5
  %v8871 = vmul.f32 %v8783, 0.5
  %v8872 = vmul.f32 %v8790, 0.5
  %v8873 = vmul.f32 %v8797, 0.5
  %v8874 = vmul.f32 %v8804, 0.5
  %v8875 = vmul.f32 %v8811, 0.5
  %v8876 = vmul.f32 %v8818, 0.5
  %v8877 = vmul.f32 %v8825, 0.5
  %v8878 = vmul.f32 %v8832, 0.5
  %v8879 = vmul.f32 %v8839, 0.5
  %v8880 = vmul.f32 %v8846, 0.5
  %v8881 = vmul.f32 %v8853, 0.5
  %v8882 = vmul.f32 %v8860, 0.5
  %v8883 = vmul.f32 %v8867, 0.5
  %v8900 = vsel %vm6634, %v8869, %v8868
  %v8901 = vsel %vm6636, %v8870, %v8900
  %v8902 = vsel %vm6638, %v8871, %v8901
  %v8903 = vsel %vm6640, %v8872, %v8902
  %v8904 = vsel %vm6642, %v8873, %v8903
  %v8905 = vsel %vm6644, %v8874, %v8904
  %v8906 = vsel %vm6646, %v8875, %v8905
  %v8907 = vsel %vm6634, %v8877, %v8876
  %v8908 = vsel %vm6636, %v8878, %v8907
  %v8909 = vsel %vm6638, %v8879, %v8908
  %v8910 = vsel %vm6640, %v8880, %v8909
  %v8911 = vsel %vm6642, %v8881, %v8910
  %v8912 = vsel %vm6644, %v8882, %v8911
  %v8913 = vsel %vm6646, %v8883, %v8912
  %8916 = vst.msk [vmem:[%s15] sm:$0xff] %vm6697, %v8906
  %8917 = vst.msk [vmem:[%s15 + $0x8] sm:$0xff] %vm6697, %v8913
  // Predicated region
  $region62: #{geongnn_forward.2} parent=0 // pred_check
    _
  $region63: #{geongnn_forward.2} parent=0 // pred_check_branch
    %8919 = sbr.rel (0) target = $region65
  $region64: #{geongnn_forward.2} parent=0 // pred_region
    _
  $region65: #{geongnn_forward.2} parent=0 // pred_fallthru
    _
  // Predicated region
  $region66: #{geongnn_forward.2} parent=0 // pred_check
    _
  $region67: #{geongnn_forward.2} parent=0 // pred_check_branch
    %8921 = sbr.rel (0) target = $region69
  $region68: #{geongnn_forward.2} parent=0 // pred_region
    _
  $region69: #{geongnn_forward.2} parent=0 // pred_fallthru
    _

</llo_original>
